<compile_context>
chip_gen: v7x
topology: tpu7x:2x2x1
jax: 0.10.0
libtpu: 0.0.40
codegen_flags: <defaults>
</compile_context>

<pallas_src>
import functools
import jax
import jax.numpy as jnp
from jax.experimental import pallas as pl
from jax.experimental.pallas import tpu as pltpu

# ---- model hyper-params (from the PyTorch module) ----
INPUT_SIZE = 6
HIDDEN_SIZE = 100
OUTPUT_SIZE = 2
NUM_LAYERS = 3

# ---- padded tile sizes ----
HP = 128   # padded hidden / input-feature width (lane)
OP = 128   # padded output width (lane)
BP = 8     # padded batch (sublane multiple)

# PyTorch gate row order is (i, f, g, o); repack lane blocks as (i, f, o, g) so the
# three sigmoid gates occupy one contiguous 3*HP slab.
GATE_SRC_ORDER = (0, 1, 3, 2)   # dest block g -> source gate index


def lstm_kernel(x_ref, wih_ref, whh_ref, b_ref, wo_ref, bo_ref, y_ref,
                seq_scr, gx_scr, *, seq_len):
    """Whole sequence + all layers in one invocation.

    seq_scr : (seq_len*BP, HP)    hidden sequence of current layer (input to next)
    gx_scr  : (seq_len*BP, 4*HP)  precomputed non-recurrent gate projections
    """
    seq_scr[...] = x_ref[...]

    for layer in range(NUM_LAYERS):
        # Non-recurrent half of the gates for all timesteps at once (M = seq*BP).
        gx_scr[...] = (
            jnp.dot(seq_scr[...], wih_ref[layer], preferred_element_type=jnp.float32)
            + b_ref[layer]                     # (1, 4*HP) broadcasts over rows
        )

        h = jnp.zeros((BP, HP), jnp.float32)
        c = jnp.zeros((BP, HP), jnp.float32)
        for t in range(seq_len):               # static trip count -> fully unrolled
            row = t * BP
            gates = gx_scr[row:row + BP, :] + jnp.dot(
                h, whh_ref[layer], preferred_element_type=jnp.float32)
            sig = jax.nn.sigmoid(gates[:, :3 * HP])     # i, f, o in one wide sigmoid
            i_g = sig[:, 0 * HP:1 * HP]
            f_g = sig[:, 1 * HP:2 * HP]
            o_g = sig[:, 2 * HP:3 * HP]
            g_g = jnp.tanh(gates[:, 3 * HP:4 * HP])
            c = f_g * c + i_g * g_g
            h = o_g * jnp.tanh(c)
            seq_scr[row:row + BP, :] = h        # becomes next layer's input

    # Final Linear over all timesteps in one matmul (M = seq*BP rows).
    y_ref[...] = (
        jnp.dot(seq_scr[...], wo_ref[...], preferred_element_type=jnp.float32)
        + bo_ref[...]
    )


@functools.partial(jax.jit, static_argnames=("seq_len",))
def lstm_pallas(x_pad, wih_pad, whh_pad, b_pad, wo_pad, bo_pad, *, seq_len):
    kernel = functools.partial(lstm_kernel, seq_len=seq_len)
    vmem = pl.BlockSpec(memory_space=pltpu.MemorySpace.VMEM)
    return pl.pallas_call(
        kernel,
        out_shape=jax.ShapeDtypeStruct((seq_len * BP, OP), jnp.float32),
        in_specs=[vmem] * 6,            # whole arrays resident in VMEM (~1.8 MiB total)
        out_specs=vmem,
        scratch_shapes=[
            pltpu.VMEM((seq_len * BP, HP), jnp.float32),       # per-layer hidden seq
            pltpu.VMEM((seq_len * BP, 4 * HP), jnp.float32),   # precomputed gate proj
        ],
    )(x_pad, wih_pad, whh_pad, b_pad, wo_pad, bo_pad)


# ---------------- parameter construction / padding (plain JAX glue) ----------------
def init_params(key):
    """Deterministic init mimicking PyTorch's uniform(-1/sqrt(H), 1/sqrt(H))."""
    bound = 1.0 / (HIDDEN_SIZE ** 0.5)
    layers = []
    for layer in range(NUM_LAYERS):
        in_dim = INPUT_SIZE if layer == 0 else HIDDEN_SIZE
        key, k1, k2, k3, k4 = jax.random.split(key, 5)
        w_ih = jax.random.uniform(k1, (4 * HIDDEN_SIZE, in_dim), jnp.float32, -bound, bound)
        w_hh = jax.random.uniform(k2, (4 * HIDDEN_SIZE, HIDDEN_SIZE), jnp.float32, -bound, bound)
        b_ih = jax.random.uniform(k3, (4 * HIDDEN_SIZE,), jnp.float32, -bound, bound)
        b_hh = jax.random.uniform(k4, (4 * HIDDEN_SIZE,), jnp.float32, -bound, bound)
        layers.append((w_ih, w_hh, b_ih, b_hh))
    key, k1, k2 = jax.random.split(key, 3)
    w_out = jax.random.uniform(k1, (OUTPUT_SIZE, HIDDEN_SIZE), jnp.float32, -bound, bound)
    b_out = jax.random.uniform(k2, (OUTPUT_SIZE,), jnp.float32, -bound, bound)
    return layers, w_out, b_out


def pad_gate_matrix(w):
    """(4H, in_dim) -> (HP, 4*HP): transpose, place each gate block in (i,f,o,g) order."""
    in_dim = w.shape[1]
    out = jnp.zeros((HP, 4 * HP), jnp.float32)
    for dst, src in enumerate(GATE_SRC_ORDER):
        blk = w[src * HIDDEN_SIZE:(src + 1) * HIDDEN_SIZE, :]     # (H, in_dim)
        out = out.at[:in_dim, dst * HP:dst * HP + HIDDEN_SIZE].set(blk.T)
    return out


def pad_gate_bias(b):
    """(4H,) -> (1, 4*HP) with per-gate placement in (i,f,o,g) order."""
    out = jnp.zeros((1, 4 * HP), jnp.float32)
    for dst, src in enumerate(GATE_SRC_ORDER):
        out = out.at[0, dst * HP:dst * HP + HIDDEN_SIZE].set(
            b[src * HIDDEN_SIZE:(src + 1) * HIDDEN_SIZE])
    return out


def pack_params(layers, w_out, b_out):
    wih_pad = jnp.stack([pad_gate_matrix(l[0]) for l in layers])            # (3, HP, 4HP)
    whh_pad = jnp.stack([pad_gate_matrix(l[1]) for l in layers])            # (3, HP, 4HP)
    b_pad = jnp.stack([pad_gate_bias(l[2] + l[3]) for l in layers])         # (3, 1, 4HP)
    wo_pad = jnp.zeros((HP, OP), jnp.float32).at[:HIDDEN_SIZE, :OUTPUT_SIZE].set(w_out.T)
    bo_pad = jnp.zeros((1, OP), jnp.float32).at[0, :OUTPUT_SIZE].set(b_out)
    return wih_pad, whh_pad, b_pad, wo_pad, bo_pad


def lstm_forward(x, layers, w_out, b_out):
    """x: (S, B, INPUT_SIZE) float32 -> (S, B, OUTPUT_SIZE) float32."""
    S, B, I = x.shape
    x_pad = jnp.zeros((S, BP, HP), jnp.float32).at[:, :B, :I].set(x).reshape(S * BP, HP)
    packed = pack_params(layers, w_out, b_out)
    y_pad = lstm_pallas(x_pad, *packed, seq_len=S)
    return y_pad.reshape(S, BP, OP)[:, :B, :OUTPUT_SIZE]


# ---------------- pure-JAX reference (sanity check) ----------------
def lstm_reference(x, layers, w_out, b_out):
    S, B, _ = x.shape
    out = x
    for (w_ih, w_hh, b_ih, b_hh) in layers:
        h = jnp.zeros((B, HIDDEN_SIZE), jnp.float32)
        c = jnp.zeros((B, HIDDEN_SIZE), jnp.float32)
        ys = []
        for t in range(S):
            gates = out[t] @ w_ih.T + b_ih + h @ w_hh.T + b_hh
            i = jax.nn.sigmoid(gates[:, :HIDDEN_SIZE])
            f = jax.nn.sigmoid(gates[:, HIDDEN_SIZE:2 * HIDDEN_SIZE])
            g = jnp.tanh(gates[:, 2 * HIDDEN_SIZE:3 * HIDDEN_SIZE])
            o = jax.nn.sigmoid(gates[:, 3 * HIDDEN_SIZE:4 * HIDDEN_SIZE])
            c = f * c + i * g
            h = o * jnp.tanh(c)
            ys.append(h)
        out = jnp.stack(ys)
    y = out.reshape(S * B, HIDDEN_SIZE) @ w_out.T + b_out
    return y.reshape(S, B, OUTPUT_SIZE)


if __name__ == "__main__":
    key = jax.random.PRNGKey(0)
    pkey, xkey = jax.random.split(key)
    layers, w_out, b_out = init_params(pkey)

    S, B = 8, 2  # PyTorch LSTM layout: (seq, batch, input)
    x = jax.random.normal(xkey, (S, B, INPUT_SIZE), jnp.float32)

    y = jax.block_until_ready(lstm_forward(x, layers, w_out, b_out))
    y_ref = jax.block_until_ready(lstm_reference(x, layers, w_out, b_out))

    assert y.shape == (S, B, OUTPUT_SIZE)
    assert jnp.allclose(y, y_ref, rtol=1e-4, atol=1e-5), "mismatch vs reference"

    print("KERNEL_OK")
</pallas_src>

<mosaic_0001>
module attributes {stable_mosaic.version = 11 : i64} {
  func.func @lstm_kernel(%arg0: memref<64x128xf32, #tpu.memory_space<vmem>>, %arg1: memref<3x128x512xf32, #tpu.memory_space<vmem>>, %arg2: memref<3x128x512xf32, #tpu.memory_space<vmem>>, %arg3: memref<3x1x512xf32, #tpu.memory_space<vmem>>, %arg4: memref<128x128xf32, #tpu.memory_space<vmem>>, %arg5: memref<1x128xf32, #tpu.memory_space<vmem>>, %arg6: memref<64x128xf32, #tpu.memory_space<vmem>>, %arg7: memref<64x128xf32, #tpu.memory_space<vmem>>, %arg8: memref<64x512xf32, #tpu.memory_space<vmem>>) attributes {dimension_semantics = [], scalar_prefetch = 0 : i64, scratch_operands = 2 : i64, tpu.core_type = #tpu.core_type<tc>} {
    %c0 = arith.constant 0 : index
    %c0_0 = arith.constant 0 : index
    %0 = vector.load %arg0[%c0, %c0_0] : memref<64x128xf32, #tpu.memory_space<vmem>>, vector<64x128xf32>
    %c0_1 = arith.constant 0 : index
    %c0_2 = arith.constant 0 : index
    %1 = vector.load %arg7[%c0_1, %c0_2] : memref<64x128xf32, #tpu.memory_space<vmem>>, vector<64x128xf32>
    tpu.vector_store %arg7[%c0_1, %c0_2], %0 {strides = array<i32>} : memref<64x128xf32, #tpu.memory_space<vmem>>, vector<64x128xf32>,
    %c0_3 = arith.constant 0 : index
    %c0_4 = arith.constant 0 : index
    %2 = vector.load %arg7[%c0_3, %c0_4] : memref<64x128xf32, #tpu.memory_space<vmem>>, vector<64x128xf32>
    %c0_5 = arith.constant 0 : index
    %c0_6 = arith.constant 0 : index
    %c0_7 = arith.constant 0 : index
    %3 = vector.load %arg1[%c0_5, %c0_6, %c0_7] : memref<3x128x512xf32, #tpu.memory_space<vmem>>, vector<1x128x512xf32>
    %4 = vector.shape_cast %3 : vector<1x128x512xf32> to vector<128x512xf32>
    %cst = arith.constant dense<0.000000e+00> : vector<64x512xf32>
    %5 = tpu.matmul %2, %4, %cst {dimension_numbers = #tpu.dot_dimension_numbers<[1], [0], [0], [1], [0, 0, 1, 1], [], []>} : vector<64x128xf32>, vector<128x512xf32>, vector<64x512xf32> -> vector<64x512xf32>
    %c0_8 = arith.constant 0 : index
    %c0_9 = arith.constant 0 : index
    %c0_10 = arith.constant 0 : index
    %6 = vector.load %arg3[%c0_8, %c0_9, %c0_10] : memref<3x1x512xf32, #tpu.memory_space<vmem>>, vector<1x1x512xf32>
    %7 = vector.shape_cast %6 : vector<1x1x512xf32> to vector<1x512xf32>
    %8 = vector.broadcast %7 : vector<1x512xf32> to vector<64x512xf32>
    %9 = arith.addf %5, %8 : vector<64x512xf32>
    %c0_11 = arith.constant 0 : index
    %c0_12 = arith.constant 0 : index
    %10 = vector.load %arg8[%c0_11, %c0_12] : memref<64x512xf32, #tpu.memory_space<vmem>>, vector<64x512xf32>
    tpu.vector_store %arg8[%c0_11, %c0_12], %9 {strides = array<i32>} : memref<64x512xf32, #tpu.memory_space<vmem>>, vector<64x512xf32>,
    %cst_13 = arith.constant 0.000000e+00 : f32
    %11 = vector.broadcast %cst_13 : f32 to vector<8x128xf32>
    %cst_14 = arith.constant 0.000000e+00 : f32
    %12 = vector.broadcast %cst_14 : f32 to vector<8x128xf32>
    %c0_15 = arith.constant 0 : index
    %c0_16 = arith.constant 0 : index
    %13 = vector.load %arg8[%c0_15, %c0_16] : memref<64x512xf32, #tpu.memory_space<vmem>>, vector<8x512xf32>
    %c0_17 = arith.constant 0 : index
    %c0_18 = arith.constant 0 : index
    %c0_19 = arith.constant 0 : index
    %14 = vector.load %arg2[%c0_17, %c0_18, %c0_19] : memref<3x128x512xf32, #tpu.memory_space<vmem>>, vector<1x128x512xf32>
    %15 = vector.shape_cast %14 : vector<1x128x512xf32> to vector<128x512xf32>
    %cst_20 = arith.constant dense<0.000000e+00> : vector<8x512xf32>
    %16 = tpu.matmul %11, %15, %cst_20 {dimension_numbers = #tpu.dot_dimension_numbers<[1], [0], [0], [1], [0, 0, 1, 1], [], []>} : vector<8x128xf32>, vector<128x512xf32>, vector<8x512xf32> -> vector<8x512xf32>
    %17 = arith.addf %13, %16 : vector<8x512xf32>
    %18 = vector.extract_strided_slice %17 {offsets = [0, 0], sizes = [8, 384], strides = [1, 1]} : vector<8x512xf32> to vector<8x384xf32>
    %19 = arith.negf %18 : vector<8x384xf32>
    %20 = math.exp %19 : vector<8x384xf32>
    %cst_21 = arith.constant 1.000000e+00 : f32
    %21 = vector.broadcast %cst_21 : f32 to vector<8x384xf32>
    %22 = arith.addf %21, %20 : vector<8x384xf32>
    %23 = arith.divf %21, %22 : vector<8x384xf32>
    %24 = vector.extract_strided_slice %23 {offsets = [0, 0], sizes = [8, 128], strides = [1, 1]} : vector<8x384xf32> to vector<8x128xf32>
    %25 = vector.extract_strided_slice %23 {offsets = [0, 128], sizes = [8, 128], strides = [1, 1]} : vector<8x384xf32> to vector<8x128xf32>
    %26 = vector.extract_strided_slice %23 {offsets = [0, 256], sizes = [8, 128], strides = [1, 1]} : vector<8x384xf32> to vector<8x128xf32>
    %27 = vector.extract_strided_slice %17 {offsets = [0, 384], sizes = [8, 128], strides = [1, 1]} : vector<8x512xf32> to vector<8x128xf32>
    %28 = math.tanh %27 : vector<8x128xf32>
    %29 = arith.mulf %25, %12 : vector<8x128xf32>
    %30 = arith.mulf %24, %28 : vector<8x128xf32>
    %31 = arith.addf %29, %30 : vector<8x128xf32>
    %32 = math.tanh %31 : vector<8x128xf32>
    %33 = arith.mulf %26, %32 : vector<8x128xf32>
    %c0_22 = arith.constant 0 : index
    %c0_23 = arith.constant 0 : index
    %34 = vector.load %arg7[%c0_22, %c0_23] : memref<64x128xf32, #tpu.memory_space<vmem>>, vector<8x128xf32>
    tpu.vector_store %arg7[%c0_22, %c0_23], %33 {strides = array<i32>} : memref<64x128xf32, #tpu.memory_space<vmem>>, vector<8x128xf32>,
    %c8 = arith.constant 8 : index
    %c0_24 = arith.constant 0 : index
    %35 = vector.load %arg8[%c8, %c0_24] : memref<64x512xf32, #tpu.memory_space<vmem>>, vector<8x512xf32>
    %c0_25 = arith.constant 0 : index
    %c0_26 = arith.constant 0 : index
    %c0_27 = arith.constant 0 : index
    %36 = vector.load %arg2[%c0_25, %c0_26, %c0_27] : memref<3x128x512xf32, #tpu.memory_space<vmem>>, vector<1x128x512xf32>
    %37 = vector.shape_cast %36 : vector<1x128x512xf32> to vector<128x512xf32>
    %cst_28 = arith.constant dense<0.000000e+00> : vector<8x512xf32>
    %38 = tpu.matmul %33, %37, %cst_28 {dimension_numbers = #tpu.dot_dimension_numbers<[1], [0], [0], [1], [0, 0, 1, 1], [], []>} : vector<8x128xf32>, vector<128x512xf32>, vector<8x512xf32> -> vector<8x512xf32>
    %39 = arith.addf %35, %38 : vector<8x512xf32>
    %40 = vector.extract_strided_slice %39 {offsets = [0, 0], sizes = [8, 384], strides = [1, 1]} : vector<8x512xf32> to vector<8x384xf32>
    %41 = arith.negf %40 : vector<8x384xf32>
    %42 = math.exp %41 : vector<8x384xf32>
    %cst_29 = arith.constant 1.000000e+00 : f32
    %43 = vector.broadcast %cst_29 : f32 to vector<8x384xf32>
    %44 = arith.addf %43, %42 : vector<8x384xf32>
    %45 = arith.divf %43, %44 : vector<8x384xf32>
    %46 = vector.extract_strided_slice %45 {offsets = [0, 0], sizes = [8, 128], strides = [1, 1]} : vector<8x384xf32> to vector<8x128xf32>
    %47 = vector.extract_strided_slice %45 {offsets = [0, 128], sizes = [8, 128], strides = [1, 1]} : vector<8x384xf32> to vector<8x128xf32>
    %48 = vector.extract_strided_slice %45 {offsets = [0, 256], sizes = [8, 128], strides = [1, 1]} : vector<8x384xf32> to vector<8x128xf32>
    %49 = vector.extract_strided_slice %39 {offsets = [0, 384], sizes = [8, 128], strides = [1, 1]} : vector<8x512xf32> to vector<8x128xf32>
    %50 = math.tanh %49 : vector<8x128xf32>
    %51 = arith.mulf %47, %31 : vector<8x128xf32>
    %52 = arith.mulf %46, %50 : vector<8x128xf32>
    %53 = arith.addf %51, %52 : vector<8x128xf32>
    %54 = math.tanh %53 : vector<8x128xf32>
    %55 = arith.mulf %48, %54 : vector<8x128xf32>
    %c8_30 = arith.constant 8 : index
    %c0_31 = arith.constant 0 : index
    %56 = vector.load %arg7[%c8_30, %c0_31] : memref<64x128xf32, #tpu.memory_space<vmem>>, vector<8x128xf32>
    tpu.vector_store %arg7[%c8_30, %c0_31], %55 {strides = array<i32>} : memref<64x128xf32, #tpu.memory_space<vmem>>, vector<8x128xf32>,
    %c16 = arith.constant 16 : index
    %c0_32 = arith.constant 0 : index
    %57 = vector.load %arg8[%c16, %c0_32] : memref<64x512xf32, #tpu.memory_space<vmem>>, vector<8x512xf32>
    %c0_33 = arith.constant 0 : index
    %c0_34 = arith.constant 0 : index
    %c0_35 = arith.constant 0 : index
    %58 = vector.load %arg2[%c0_33, %c0_34, %c0_35] : memref<3x128x512xf32, #tpu.memory_space<vmem>>, vector<1x128x512xf32>
    %59 = vector.shape_cast %58 : vector<1x128x512xf32> to vector<128x512xf32>
    %cst_36 = arith.constant dense<0.000000e+00> : vector<8x512xf32>
    %60 = tpu.matmul %55, %59, %cst_36 {dimension_numbers = #tpu.dot_dimension_numbers<[1], [0], [0], [1], [0, 0, 1, 1], [], []>} : vector<8x128xf32>, vector<128x512xf32>, vector<8x512xf32> -> vector<8x512xf32>
    %61 = arith.addf %57, %60 : vector<8x512xf32>
    %62 = vector.extract_strided_slice %61 {offsets = [0, 0], sizes = [8, 384], strides = [1, 1]} : vector<8x512xf32> to vector<8x384xf32>
    %63 = arith.negf %62 : vector<8x384xf32>
    %64 = math.exp %63 : vector<8x384xf32>
    %cst_37 = arith.constant 1.000000e+00 : f32
    %65 = vector.broadcast %cst_37 : f32 to vector<8x384xf32>
    %66 = arith.addf %65, %64 : vector<8x384xf32>
    %67 = arith.divf %65, %66 : vector<8x384xf32>
    %68 = vector.extract_strided_slice %67 {offsets = [0, 0], sizes = [8, 128], strides = [1, 1]} : vector<8x384xf32> to vector<8x128xf32>
    %69 = vector.extract_strided_slice %67 {offsets = [0, 128], sizes = [8, 128], strides = [1, 1]} : vector<8x384xf32> to vector<8x128xf32>
    %70 = vector.extract_strided_slice %67 {offsets = [0, 256], sizes = [8, 128], strides = [1, 1]} : vector<8x384xf32> to vector<8x128xf32>
    %71 = vector.extract_strided_slice %61 {offsets = [0, 384], sizes = [8, 128], strides = [1, 1]} : vector<8x512xf32> to vector<8x128xf32>
    %72 = math.tanh %71 : vector<8x128xf32>
    %73 = arith.mulf %69, %53 : vector<8x128xf32>
    %74 = arith.mulf %68, %72 : vector<8x128xf32>
    %75 = arith.addf %73, %74 : vector<8x128xf32>
    %76 = math.tanh %75 : vector<8x128xf32>
    %77 = arith.mulf %70, %76 : vector<8x128xf32>
    %c16_38 = arith.constant 16 : index
    %c0_39 = arith.constant 0 : index
    %78 = vector.load %arg7[%c16_38, %c0_39] : memref<64x128xf32, #tpu.memory_space<vmem>>, vector<8x128xf32>
    tpu.vector_store %arg7[%c16_38, %c0_39], %77 {strides = array<i32>} : memref<64x128xf32, #tpu.memory_space<vmem>>, vector<8x128xf32>,
    %c24 = arith.constant 24 : index
    %c0_40 = arith.constant 0 : index
    %79 = vector.load %arg8[%c24, %c0_40] : memref<64x512xf32, #tpu.memory_space<vmem>>, vector<8x512xf32>
    %c0_41 = arith.constant 0 : index
    %c0_42 = arith.constant 0 : index
    %c0_43 = arith.constant 0 : index
    %80 = vector.load %arg2[%c0_41, %c0_42, %c0_43] : memref<3x128x512xf32, #tpu.memory_space<vmem>>, vector<1x128x512xf32>
    %81 = vector.shape_cast %80 : vector<1x128x512xf32> to vector<128x512xf32>
    %cst_44 = arith.constant dense<0.000000e+00> : vector<8x512xf32>
    %82 = tpu.matmul %77, %81, %cst_44 {dimension_numbers = #tpu.dot_dimension_numbers<[1], [0], [0], [1], [0, 0, 1, 1], [], []>} : vector<8x128xf32>, vector<128x512xf32>, vector<8x512xf32> -> vector<8x512xf32>
    %83 = arith.addf %79, %82 : vector<8x512xf32>
    %84 = vector.extract_strided_slice %83 {offsets = [0, 0], sizes = [8, 384], strides = [1, 1]} : vector<8x512xf32> to vector<8x384xf32>
    %85 = arith.negf %84 : vector<8x384xf32>
    %86 = math.exp %85 : vector<8x384xf32>
    %cst_45 = arith.constant 1.000000e+00 : f32
    %87 = vector.broadcast %cst_45 : f32 to vector<8x384xf32>
    %88 = arith.addf %87, %86 : vector<8x384xf32>
    %89 = arith.divf %87, %88 : vector<8x384xf32>
    %90 = vector.extract_strided_slice %89 {offsets = [0, 0], sizes = [8, 128], strides = [1, 1]} : vector<8x384xf32> to vector<8x128xf32>
    %91 = vector.extract_strided_slice %89 {offsets = [0, 128], sizes = [8, 128], strides = [1, 1]} : vector<8x384xf32> to vector<8x128xf32>
    %92 = vector.extract_strided_slice %89 {offsets = [0, 256], sizes = [8, 128], strides = [1, 1]} : vector<8x384xf32> to vector<8x128xf32>
    %93 = vector.extract_strided_slice %83 {offsets = [0, 384], sizes = [8, 128], strides = [1, 1]} : vector<8x512xf32> to vector<8x128xf32>
    %94 = math.tanh %93 : vector<8x128xf32>
    %95 = arith.mulf %91, %75 : vector<8x128xf32>
    %96 = arith.mulf %90, %94 : vector<8x128xf32>
    %97 = arith.addf %95, %96 : vector<8x128xf32>
    %98 = math.tanh %97 : vector<8x128xf32>
    %99 = arith.mulf %92, %98 : vector<8x128xf32>
    %c24_46 = arith.constant 24 : index
    %c0_47 = arith.constant 0 : index
    %100 = vector.load %arg7[%c24_46, %c0_47] : memref<64x128xf32, #tpu.memory_space<vmem>>, vector<8x128xf32>
    tpu.vector_store %arg7[%c24_46, %c0_47], %99 {strides = array<i32>} : memref<64x128xf32, #tpu.memory_space<vmem>>, vector<8x128xf32>,
    %c32 = arith.constant 32 : index
    %c0_48 = arith.constant 0 : index
    %101 = vector.load %arg8[%c32, %c0_48] : memref<64x512xf32, #tpu.memory_space<vmem>>, vector<8x512xf32>
    %c0_49 = arith.constant 0 : index
    %c0_50 = arith.constant 0 : index
    %c0_51 = arith.constant 0 : index
    %102 = vector.load %arg2[%c0_49, %c0_50, %c0_51] : memref<3x128x512xf32, #tpu.memory_space<vmem>>, vector<1x128x512xf32>
    %103 = vector.shape_cast %102 : vector<1x128x512xf32> to vector<128x512xf32>
    %cst_52 = arith.constant dense<0.000000e+00> : vector<8x512xf32>
    %104 = tpu.matmul %99, %103, %cst_52 {dimension_numbers = #tpu.dot_dimension_numbers<[1], [0], [0], [1], [0, 0, 1, 1], [], []>} : vector<8x128xf32>, vector<128x512xf32>, vector<8x512xf32> -> vector<8x512xf32>
    %105 = arith.addf %101, %104 : vector<8x512xf32>
    %106 = vector.extract_strided_slice %105 {offsets = [0, 0], sizes = [8, 384], strides = [1, 1]} : vector<8x512xf32> to vector<8x384xf32>
    %107 = arith.negf %106 : vector<8x384xf32>
    %108 = math.exp %107 : vector<8x384xf32>
    %cst_53 = arith.constant 1.000000e+00 : f32
    %109 = vector.broadcast %cst_53 : f32 to vector<8x384xf32>
    %110 = arith.addf %109, %108 : vector<8x384xf32>
    %111 = arith.divf %109, %110 : vector<8x384xf32>
    %112 = vector.extract_strided_slice %111 {offsets = [0, 0], sizes = [8, 128], strides = [1, 1]} : vector<8x384xf32> to vector<8x128xf32>
    %113 = vector.extract_strided_slice %111 {offsets = [0, 128], sizes = [8, 128], strides = [1, 1]} : vector<8x384xf32> to vector<8x128xf32>
    %114 = vector.extract_strided_slice %111 {offsets = [0, 256], sizes = [8, 128], strides = [1, 1]} : vector<8x384xf32> to vector<8x128xf32>
    %115 = vector.extract_strided_slice %105 {offsets = [0, 384], sizes = [8, 128], strides = [1, 1]} : vector<8x512xf32> to vector<8x128xf32>
    %116 = math.tanh %115 : vector<8x128xf32>
    %117 = arith.mulf %113, %97 : vector<8x128xf32>
    %118 = arith.mulf %112, %116 : vector<8x128xf32>
    %119 = arith.addf %117, %118 : vector<8x128xf32>
    %120 = math.tanh %119 : vector<8x128xf32>
    %121 = arith.mulf %114, %120 : vector<8x128xf32>
    %c32_54 = arith.constant 32 : index
    %c0_55 = arith.constant 0 : index
    %122 = vector.load %arg7[%c32_54, %c0_55] : memref<64x128xf32, #tpu.memory_space<vmem>>, vector<8x128xf32>
    tpu.vector_store %arg7[%c32_54, %c0_55], %121 {strides = array<i32>} : memref<64x128xf32, #tpu.memory_space<vmem>>, vector<8x128xf32>,
    %c40 = arith.constant 40 : index
    %c0_56 = arith.constant 0 : index
    %123 = vector.load %arg8[%c40, %c0_56] : memref<64x512xf32, #tpu.memory_space<vmem>>, vector<8x512xf32>
    %c0_57 = arith.constant 0 : index
    %c0_58 = arith.constant 0 : index
    %c0_59 = arith.constant 0 : index
    %124 = vector.load %arg2[%c0_57, %c0_58, %c0_59] : memref<3x128x512xf32, #tpu.memory_space<vmem>>, vector<1x128x512xf32>
    %125 = vector.shape_cast %124 : vector<1x128x512xf32> to vector<128x512xf32>
    %cst_60 = arith.constant dense<0.000000e+00> : vector<8x512xf32>
    %126 = tpu.matmul %121, %125, %cst_60 {dimension_numbers = #tpu.dot_dimension_numbers<[1], [0], [0], [1], [0, 0, 1, 1], [], []>} : vector<8x128xf32>, vector<128x512xf32>, vector<8x512xf32> -> vector<8x512xf32>
    %127 = arith.addf %123, %126 : vector<8x512xf32>
    %128 = vector.extract_strided_slice %127 {offsets = [0, 0], sizes = [8, 384], strides = [1, 1]} : vector<8x512xf32> to vector<8x384xf32>
    %129 = arith.negf %128 : vector<8x384xf32>
    %130 = math.exp %129 : vector<8x384xf32>
    %cst_61 = arith.constant 1.000000e+00 : f32
    %131 = vector.broadcast %cst_61 : f32 to vector<8x384xf32>
    %132 = arith.addf %131, %130 : vector<8x384xf32>
    %133 = arith.divf %131, %132 : vector<8x384xf32>
    %134 = vector.extract_strided_slice %133 {offsets = [0, 0], sizes = [8, 128], strides = [1, 1]} : vector<8x384xf32> to vector<8x128xf32>
    %135 = vector.extract_strided_slice %133 {offsets = [0, 128], sizes = [8, 128], strides = [1, 1]} : vector<8x384xf32> to vector<8x128xf32>
    %136 = vector.extract_strided_slice %133 {offsets = [0, 256], sizes = [8, 128], strides = [1, 1]} : vector<8x384xf32> to vector<8x128xf32>
    %137 = vector.extract_strided_slice %127 {offsets = [0, 384], sizes = [8, 128], strides = [1, 1]} : vector<8x512xf32> to vector<8x128xf32>
    %138 = math.tanh %137 : vector<8x128xf32>
    %139 = arith.mulf %135, %119 : vector<8x128xf32>
    %140 = arith.mulf %134, %138 : vector<8x128xf32>
    %141 = arith.addf %139, %140 : vector<8x128xf32>
    %142 = math.tanh %141 : vector<8x128xf32>
    %143 = arith.mulf %136, %142 : vector<8x128xf32>
    %c40_62 = arith.constant 40 : index
    %c0_63 = arith.constant 0 : index
    %144 = vector.load %arg7[%c40_62, %c0_63] : memref<64x128xf32, #tpu.memory_space<vmem>>, vector<8x128xf32>
    tpu.vector_store %arg7[%c40_62, %c0_63], %143 {strides = array<i32>} : memref<64x128xf32, #tpu.memory_space<vmem>>, vector<8x128xf32>,
    %c48 = arith.constant 48 : index
    %c0_64 = arith.constant 0 : index
    %145 = vector.load %arg8[%c48, %c0_64] : memref<64x512xf32, #tpu.memory_space<vmem>>, vector<8x512xf32>
    %c0_65 = arith.constant 0 : index
    %c0_66 = arith.constant 0 : index
    %c0_67 = arith.constant 0 : index
    %146 = vector.load %arg2[%c0_65, %c0_66, %c0_67] : memref<3x128x512xf32, #tpu.memory_space<vmem>>, vector<1x128x512xf32>
    %147 = vector.shape_cast %146 : vector<1x128x512xf32> to vector<128x512xf32>
    %cst_68 = arith.constant dense<0.000000e+00> : vector<8x512xf32>
    %148 = tpu.matmul %143, %147, %cst_68 {dimension_numbers = #tpu.dot_dimension_numbers<[1], [0], [0], [1], [0, 0, 1, 1], [], []>} : vector<8x128xf32>, vector<128x512xf32>, vector<8x512xf32> -> vector<8x512xf32>
    %149 = arith.addf %145, %148 : vector<8x512xf32>
    %150 = vector.extract_strided_slice %149 {offsets = [0, 0], sizes = [8, 384], strides = [1, 1]} : vector<8x512xf32> to vector<8x384xf32>
    %151 = arith.negf %150 : vector<8x384xf32>
    %152 = math.exp %151 : vector<8x384xf32>
    %cst_69 = arith.constant 1.000000e+00 : f32
    %153 = vector.broadcast %cst_69 : f32 to vector<8x384xf32>
    %154 = arith.addf %153, %152 : vector<8x384xf32>
    %155 = arith.divf %153, %154 : vector<8x384xf32>
    %156 = vector.extract_strided_slice %155 {offsets = [0, 0], sizes = [8, 128], strides = [1, 1]} : vector<8x384xf32> to vector<8x128xf32>
    %157 = vector.extract_strided_slice %155 {offsets = [0, 128], sizes = [8, 128], strides = [1, 1]} : vector<8x384xf32> to vector<8x128xf32>
    %158 = vector.extract_strided_slice %155 {offsets = [0, 256], sizes = [8, 128], strides = [1, 1]} : vector<8x384xf32> to vector<8x128xf32>
    %159 = vector.extract_strided_slice %149 {offsets = [0, 384], sizes = [8, 128], strides = [1, 1]} : vector<8x512xf32> to vector<8x128xf32>
    %160 = math.tanh %159 : vector<8x128xf32>
    %161 = arith.mulf %157, %141 : vector<8x128xf32>
    %162 = arith.mulf %156, %160 : vector<8x128xf32>
    %163 = arith.addf %161, %162 : vector<8x128xf32>
    %164 = math.tanh %163 : vector<8x128xf32>
    %165 = arith.mulf %158, %164 : vector<8x128xf32>
    %c48_70 = arith.constant 48 : index
    %c0_71 = arith.constant 0 : index
    %166 = vector.load %arg7[%c48_70, %c0_71] : memref<64x128xf32, #tpu.memory_space<vmem>>, vector<8x128xf32>
    tpu.vector_store %arg7[%c48_70, %c0_71], %165 {strides = array<i32>} : memref<64x128xf32, #tpu.memory_space<vmem>>, vector<8x128xf32>,
    %c56 = arith.constant 56 : index
    %c0_72 = arith.constant 0 : index
    %167 = vector.load %arg8[%c56, %c0_72] : memref<64x512xf32, #tpu.memory_space<vmem>>, vector<8x512xf32>
    %c0_73 = arith.constant 0 : index
    %c0_74 = arith.constant 0 : index
    %c0_75 = arith.constant 0 : index
    %168 = vector.load %arg2[%c0_73, %c0_74, %c0_75] : memref<3x128x512xf32, #tpu.memory_space<vmem>>, vector<1x128x512xf32>
    %169 = vector.shape_cast %168 : vector<1x128x512xf32> to vector<128x512xf32>
    %cst_76 = arith.constant dense<0.000000e+00> : vector<8x512xf32>
    %170 = tpu.matmul %165, %169, %cst_76 {dimension_numbers = #tpu.dot_dimension_numbers<[1], [0], [0], [1], [0, 0, 1, 1], [], []>} : vector<8x128xf32>, vector<128x512xf32>, vector<8x512xf32> -> vector<8x512xf32>
    %171 = arith.addf %167, %170 : vector<8x512xf32>
    %172 = vector.extract_strided_slice %171 {offsets = [0, 0], sizes = [8, 384], strides = [1, 1]} : vector<8x512xf32> to vector<8x384xf32>
    %173 = arith.negf %172 : vector<8x384xf32>
    %174 = math.exp %173 : vector<8x384xf32>
    %cst_77 = arith.constant 1.000000e+00 : f32
    %175 = vector.broadcast %cst_77 : f32 to vector<8x384xf32>
    %176 = arith.addf %175, %174 : vector<8x384xf32>
    %177 = arith.divf %175, %176 : vector<8x384xf32>
    %178 = vector.extract_strided_slice %177 {offsets = [0, 0], sizes = [8, 128], strides = [1, 1]} : vector<8x384xf32> to vector<8x128xf32>
    %179 = vector.extract_strided_slice %177 {offsets = [0, 128], sizes = [8, 128], strides = [1, 1]} : vector<8x384xf32> to vector<8x128xf32>
    %180 = vector.extract_strided_slice %177 {offsets = [0, 256], sizes = [8, 128], strides = [1, 1]} : vector<8x384xf32> to vector<8x128xf32>
    %181 = vector.extract_strided_slice %171 {offsets = [0, 384], sizes = [8, 128], strides = [1, 1]} : vector<8x512xf32> to vector<8x128xf32>
    %182 = math.tanh %181 : vector<8x128xf32>
    %183 = arith.mulf %179, %163 : vector<8x128xf32>
    %184 = arith.mulf %178, %182 : vector<8x128xf32>
    %185 = arith.addf %183, %184 : vector<8x128xf32>
    %186 = math.tanh %185 : vector<8x128xf32>
    %187 = arith.mulf %180, %186 : vector<8x128xf32>
    %c56_78 = arith.constant 56 : index
    %c0_79 = arith.constant 0 : index
    %188 = vector.load %arg7[%c56_78, %c0_79] : memref<64x128xf32, #tpu.memory_space<vmem>>, vector<8x128xf32>
    tpu.vector_store %arg7[%c56_78, %c0_79], %187 {strides = array<i32>} : memref<64x128xf32, #tpu.memory_space<vmem>>, vector<8x128xf32>,
    %c0_80 = arith.constant 0 : index
    %c0_81 = arith.constant 0 : index
    %189 = vector.load %arg7[%c0_80, %c0_81] : memref<64x128xf32, #tpu.memory_space<vmem>>, vector<64x128xf32>
    %c1 = arith.constant 1 : index
    %c0_82 = arith.constant 0 : index
    %c0_83 = arith.constant 0 : index
    %190 = vector.load %arg1[%c1, %c0_82, %c0_83] : memref<3x128x512xf32, #tpu.memory_space<vmem>>, vector<1x128x512xf32>
    %191 = vector.shape_cast %190 : vector<1x128x512xf32> to vector<128x512xf32>
    %cst_84 = arith.constant dense<0.000000e+00> : vector<64x512xf32>
    %192 = tpu.matmul %189, %191, %cst_84 {dimension_numbers = #tpu.dot_dimension_numbers<[1], [0], [0], [1], [0, 0, 1, 1], [], []>} : vector<64x128xf32>, vector<128x512xf32>, vector<64x512xf32> -> vector<64x512xf32>
    %c1_85 = arith.constant 1 : index
    %c0_86 = arith.constant 0 : index
    %c0_87 = arith.constant 0 : index
    %193 = vector.load %arg3[%c1_85, %c0_86, %c0_87] : memref<3x1x512xf32, #tpu.memory_space<vmem>>, vector<1x1x512xf32>
    %194 = vector.shape_cast %193 : vector<1x1x512xf32> to vector<1x512xf32>
    %195 = vector.broadcast %194 : vector<1x512xf32> to vector<64x512xf32>
    %196 = arith.addf %192, %195 : vector<64x512xf32>
    %c0_88 = arith.constant 0 : index
    %c0_89 = arith.constant 0 : index
    %197 = vector.load %arg8[%c0_88, %c0_89] : memref<64x512xf32, #tpu.memory_space<vmem>>, vector<64x512xf32>
    tpu.vector_store %arg8[%c0_88, %c0_89], %196 {strides = array<i32>} : memref<64x512xf32, #tpu.memory_space<vmem>>, vector<64x512xf32>,
    %cst_90 = arith.constant 0.000000e+00 : f32
    %198 = vector.broadcast %cst_90 : f32 to vector<8x128xf32>
    %cst_91 = arith.constant 0.000000e+00 : f32
    %199 = vector.broadcast %cst_91 : f32 to vector<8x128xf32>
    %c0_92 = arith.constant 0 : index
    %c0_93 = arith.constant 0 : index
    %200 = vector.load %arg8[%c0_92, %c0_93] : memref<64x512xf32, #tpu.memory_space<vmem>>, vector<8x512xf32>
    %c1_94 = arith.constant 1 : index
    %c0_95 = arith.constant 0 : index
    %c0_96 = arith.constant 0 : index
    %201 = vector.load %arg2[%c1_94, %c0_95, %c0_96] : memref<3x128x512xf32, #tpu.memory_space<vmem>>, vector<1x128x512xf32>
    %202 = vector.shape_cast %201 : vector<1x128x512xf32> to vector<128x512xf32>
    %cst_97 = arith.constant dense<0.000000e+00> : vector<8x512xf32>
    %203 = tpu.matmul %198, %202, %cst_97 {dimension_numbers = #tpu.dot_dimension_numbers<[1], [0], [0], [1], [0, 0, 1, 1], [], []>} : vector<8x128xf32>, vector<128x512xf32>, vector<8x512xf32> -> vector<8x512xf32>
    %204 = arith.addf %200, %203 : vector<8x512xf32>
    %205 = vector.extract_strided_slice %204 {offsets = [0, 0], sizes = [8, 384], strides = [1, 1]} : vector<8x512xf32> to vector<8x384xf32>
    %206 = arith.negf %205 : vector<8x384xf32>
    %207 = math.exp %206 : vector<8x384xf32>
    %cst_98 = arith.constant 1.000000e+00 : f32
    %208 = vector.broadcast %cst_98 : f32 to vector<8x384xf32>
    %209 = arith.addf %208, %207 : vector<8x384xf32>
    %210 = arith.divf %208, %209 : vector<8x384xf32>
    %211 = vector.extract_strided_slice %210 {offsets = [0, 0], sizes = [8, 128], strides = [1, 1]} : vector<8x384xf32> to vector<8x128xf32>
    %212 = vector.extract_strided_slice %210 {offsets = [0, 128], sizes = [8, 128], strides = [1, 1]} : vector<8x384xf32> to vector<8x128xf32>
    %213 = vector.extract_strided_slice %210 {offsets = [0, 256], sizes = [8, 128], strides = [1, 1]} : vector<8x384xf32> to vector<8x128xf32>
    %214 = vector.extract_strided_slice %204 {offsets = [0, 384], sizes = [8, 128], strides = [1, 1]} : vector<8x512xf32> to vector<8x128xf32>
    %215 = math.tanh %214 : vector<8x128xf32>
    %216 = arith.mulf %212, %199 : vector<8x128xf32>
    %217 = arith.mulf %211, %215 : vector<8x128xf32>
    %218 = arith.addf %216, %217 : vector<8x128xf32>
    %219 = math.tanh %218 : vector<8x128xf32>
    %220 = arith.mulf %213, %219 : vector<8x128xf32>
    %c0_99 = arith.constant 0 : index
    %c0_100 = arith.constant 0 : index
    %221 = vector.load %arg7[%c0_99, %c0_100] : memref<64x128xf32, #tpu.memory_space<vmem>>, vector<8x128xf32>
    tpu.vector_store %arg7[%c0_99, %c0_100], %220 {strides = array<i32>} : memref<64x128xf32, #tpu.memory_space<vmem>>, vector<8x128xf32>,
    %c8_101 = arith.constant 8 : index
    %c0_102 = arith.constant 0 : index
    %222 = vector.load %arg8[%c8_101, %c0_102] : memref<64x512xf32, #tpu.memory_space<vmem>>, vector<8x512xf32>
    %c1_103 = arith.constant 1 : index
    %c0_104 = arith.constant 0 : index
    %c0_105 = arith.constant 0 : index
    %223 = vector.load %arg2[%c1_103, %c0_104, %c0_105] : memref<3x128x512xf32, #tpu.memory_space<vmem>>, vector<1x128x512xf32>
    %224 = vector.shape_cast %223 : vector<1x128x512xf32> to vector<128x512xf32>
    %cst_106 = arith.constant dense<0.000000e+00> : vector<8x512xf32>
    %225 = tpu.matmul %220, %224, %cst_106 {dimension_numbers = #tpu.dot_dimension_numbers<[1], [0], [0], [1], [0, 0, 1, 1], [], []>} : vector<8x128xf32>, vector<128x512xf32>, vector<8x512xf32> -> vector<8x512xf32>
    %226 = arith.addf %222, %225 : vector<8x512xf32>
    %227 = vector.extract_strided_slice %226 {offsets = [0, 0], sizes = [8, 384], strides = [1, 1]} : vector<8x512xf32> to vector<8x384xf32>
    %228 = arith.negf %227 : vector<8x384xf32>
    %229 = math.exp %228 : vector<8x384xf32>
    %cst_107 = arith.constant 1.000000e+00 : f32
    %230 = vector.broadcast %cst_107 : f32 to vector<8x384xf32>
    %231 = arith.addf %230, %229 : vector<8x384xf32>
    %232 = arith.divf %230, %231 : vector<8x384xf32>
    %233 = vector.extract_strided_slice %232 {offsets = [0, 0], sizes = [8, 128], strides = [1, 1]} : vector<8x384xf32> to vector<8x128xf32>
    %234 = vector.extract_strided_slice %232 {offsets = [0, 128], sizes = [8, 128], strides = [1, 1]} : vector<8x384xf32> to vector<8x128xf32>
    %235 = vector.extract_strided_slice %232 {offsets = [0, 256], sizes = [8, 128], strides = [1, 1]} : vector<8x384xf32> to vector<8x128xf32>
    %236 = vector.extract_strided_slice %226 {offsets = [0, 384], sizes = [8, 128], strides = [1, 1]} : vector<8x512xf32> to vector<8x128xf32>
    %237 = math.tanh %236 : vector<8x128xf32>
    %238 = arith.mulf %234, %218 : vector<8x128xf32>
    %239 = arith.mulf %233, %237 : vector<8x128xf32>
    %240 = arith.addf %238, %239 : vector<8x128xf32>
    %241 = math.tanh %240 : vector<8x128xf32>
    %242 = arith.mulf %235, %241 : vector<8x128xf32>
    %c8_108 = arith.constant 8 : index
    %c0_109 = arith.constant 0 : index
    %243 = vector.load %arg7[%c8_108, %c0_109] : memref<64x128xf32, #tpu.memory_space<vmem>>, vector<8x128xf32>
    tpu.vector_store %arg7[%c8_108, %c0_109], %242 {strides = array<i32>} : memref<64x128xf32, #tpu.memory_space<vmem>>, vector<8x128xf32>,
    %c16_110 = arith.constant 16 : index
    %c0_111 = arith.constant 0 : index
    %244 = vector.load %arg8[%c16_110, %c0_111] : memref<64x512xf32, #tpu.memory_space<vmem>>, vector<8x512xf32>
    %c1_112 = arith.constant 1 : index
    %c0_113 = arith.constant 0 : index
    %c0_114 = arith.constant 0 : index
    %245 = vector.load %arg2[%c1_112, %c0_113, %c0_114] : memref<3x128x512xf32, #tpu.memory_space<vmem>>, vector<1x128x512xf32>
    %246 = vector.shape_cast %245 : vector<1x128x512xf32> to vector<128x512xf32>
    %cst_115 = arith.constant dense<0.000000e+00> : vector<8x512xf32>
    %247 = tpu.matmul %242, %246, %cst_115 {dimension_numbers = #tpu.dot_dimension_numbers<[1], [0], [0], [1], [0, 0, 1, 1], [], []>} : vector<8x128xf32>, vector<128x512xf32>, vector<8x512xf32> -> vector<8x512xf32>
    %248 = arith.addf %244, %247 : vector<8x512xf32>
    %249 = vector.extract_strided_slice %248 {offsets = [0, 0], sizes = [8, 384], strides = [1, 1]} : vector<8x512xf32> to vector<8x384xf32>
    %250 = arith.negf %249 : vector<8x384xf32>
    %251 = math.exp %250 : vector<8x384xf32>
    %cst_116 = arith.constant 1.000000e+00 : f32
    %252 = vector.broadcast %cst_116 : f32 to vector<8x384xf32>
    %253 = arith.addf %252, %251 : vector<8x384xf32>
    %254 = arith.divf %252, %253 : vector<8x384xf32>
    %255 = vector.extract_strided_slice %254 {offsets = [0, 0], sizes = [8, 128], strides = [1, 1]} : vector<8x384xf32> to vector<8x128xf32>
    %256 = vector.extract_strided_slice %254 {offsets = [0, 128], sizes = [8, 128], strides = [1, 1]} : vector<8x384xf32> to vector<8x128xf32>
    %257 = vector.extract_strided_slice %254 {offsets = [0, 256], sizes = [8, 128], strides = [1, 1]} : vector<8x384xf32> to vector<8x128xf32>
    %258 = vector.extract_strided_slice %248 {offsets = [0, 384], sizes = [8, 128], strides = [1, 1]} : vector<8x512xf32> to vector<8x128xf32>
    %259 = math.tanh %258 : vector<8x128xf32>
    %260 = arith.mulf %256, %240 : vector<8x128xf32>
    %261 = arith.mulf %255, %259 : vector<8x128xf32>
    %262 = arith.addf %260, %261 : vector<8x128xf32>
    %263 = math.tanh %262 : vector<8x128xf32>
    %264 = arith.mulf %257, %263 : vector<8x128xf32>
    %c16_117 = arith.constant 16 : index
    %c0_118 = arith.constant 0 : index
    %265 = vector.load %arg7[%c16_117, %c0_118] : memref<64x128xf32, #tpu.memory_space<vmem>>, vector<8x128xf32>
    tpu.vector_store %arg7[%c16_117, %c0_118], %264 {strides = array<i32>} : memref<64x128xf32, #tpu.memory_space<vmem>>, vector<8x128xf32>,
    %c24_119 = arith.constant 24 : index
    %c0_120 = arith.constant 0 : index
    %266 = vector.load %arg8[%c24_119, %c0_120] : memref<64x512xf32, #tpu.memory_space<vmem>>, vector<8x512xf32>
    %c1_121 = arith.constant 1 : index
    %c0_122 = arith.constant 0 : index
    %c0_123 = arith.constant 0 : index
    %267 = vector.load %arg2[%c1_121, %c0_122, %c0_123] : memref<3x128x512xf32, #tpu.memory_space<vmem>>, vector<1x128x512xf32>
    %268 = vector.shape_cast %267 : vector<1x128x512xf32> to vector<128x512xf32>
    %cst_124 = arith.constant dense<0.000000e+00> : vector<8x512xf32>
    %269 = tpu.matmul %264, %268, %cst_124 {dimension_numbers = #tpu.dot_dimension_numbers<[1], [0], [0], [1], [0, 0, 1, 1], [], []>} : vector<8x128xf32>, vector<128x512xf32>, vector<8x512xf32> -> vector<8x512xf32>
    %270 = arith.addf %266, %269 : vector<8x512xf32>
    %271 = vector.extract_strided_slice %270 {offsets = [0, 0], sizes = [8, 384], strides = [1, 1]} : vector<8x512xf32> to vector<8x384xf32>
    %272 = arith.negf %271 : vector<8x384xf32>
    %273 = math.exp %272 : vector<8x384xf32>
    %cst_125 = arith.constant 1.000000e+00 : f32
    %274 = vector.broadcast %cst_125 : f32 to vector<8x384xf32>
    %275 = arith.addf %274, %273 : vector<8x384xf32>
    %276 = arith.divf %274, %275 : vector<8x384xf32>
    %277 = vector.extract_strided_slice %276 {offsets = [0, 0], sizes = [8, 128], strides = [1, 1]} : vector<8x384xf32> to vector<8x128xf32>
    %278 = vector.extract_strided_slice %276 {offsets = [0, 128], sizes = [8, 128], strides = [1, 1]} : vector<8x384xf32> to vector<8x128xf32>
    %279 = vector.extract_strided_slice %276 {offsets = [0, 256], sizes = [8, 128], strides = [1, 1]} : vector<8x384xf32> to vector<8x128xf32>
    %280 = vector.extract_strided_slice %270 {offsets = [0, 384], sizes = [8, 128], strides = [1, 1]} : vector<8x512xf32> to vector<8x128xf32>
    %281 = math.tanh %280 : vector<8x128xf32>
    %282 = arith.mulf %278, %262 : vector<8x128xf32>
    %283 = arith.mulf %277, %281 : vector<8x128xf32>
    %284 = arith.addf %282, %283 : vector<8x128xf32>
    %285 = math.tanh %284 : vector<8x128xf32>
    %286 = arith.mulf %279, %285 : vector<8x128xf32>
    %c24_126 = arith.constant 24 : index
    %c0_127 = arith.constant 0 : index
    %287 = vector.load %arg7[%c24_126, %c0_127] : memref<64x128xf32, #tpu.memory_space<vmem>>, vector<8x128xf32>
    tpu.vector_store %arg7[%c24_126, %c0_127], %286 {strides = array<i32>} : memref<64x128xf32, #tpu.memory_space<vmem>>, vector<8x128xf32>,
    %c32_128 = arith.constant 32 : index
    %c0_129 = arith.constant 0 : index
    %288 = vector.load %arg8[%c32_128, %c0_129] : memref<64x512xf32, #tpu.memory_space<vmem>>, vector<8x512xf32>
    %c1_130 = arith.constant 1 : index
    %c0_131 = arith.constant 0 : index
    %c0_132 = arith.constant 0 : index
    %289 = vector.load %arg2[%c1_130, %c0_131, %c0_132] : memref<3x128x512xf32, #tpu.memory_space<vmem>>, vector<1x128x512xf32>
    %290 = vector.shape_cast %289 : vector<1x128x512xf32> to vector<128x512xf32>
    %cst_133 = arith.constant dense<0.000000e+00> : vector<8x512xf32>
    %291 = tpu.matmul %286, %290, %cst_133 {dimension_numbers = #tpu.dot_dimension_numbers<[1], [0], [0], [1], [0, 0, 1, 1], [], []>} : vector<8x128xf32>, vector<128x512xf32>, vector<8x512xf32> -> vector<8x512xf32>
    %292 = arith.addf %288, %291 : vector<8x512xf32>
    %293 = vector.extract_strided_slice %292 {offsets = [0, 0], sizes = [8, 384], strides = [1, 1]} : vector<8x512xf32> to vector<8x384xf32>
    %294 = arith.negf %293 : vector<8x384xf32>
    %295 = math.exp %294 : vector<8x384xf32>
    %cst_134 = arith.constant 1.000000e+00 : f32
    %296 = vector.broadcast %cst_134 : f32 to vector<8x384xf32>
    %297 = arith.addf %296, %295 : vector<8x384xf32>
    %298 = arith.divf %296, %297 : vector<8x384xf32>
    %299 = vector.extract_strided_slice %298 {offsets = [0, 0], sizes = [8, 128], strides = [1, 1]} : vector<8x384xf32> to vector<8x128xf32>
    %300 = vector.extract_strided_slice %298 {offsets = [0, 128], sizes = [8, 128], strides = [1, 1]} : vector<8x384xf32> to vector<8x128xf32>
    %301 = vector.extract_strided_slice %298 {offsets = [0, 256], sizes = [8, 128], strides = [1, 1]} : vector<8x384xf32> to vector<8x128xf32>
    %302 = vector.extract_strided_slice %292 {offsets = [0, 384], sizes = [8, 128], strides = [1, 1]} : vector<8x512xf32> to vector<8x128xf32>
    %303 = math.tanh %302 : vector<8x128xf32>
    %304 = arith.mulf %300, %284 : vector<8x128xf32>
    %305 = arith.mulf %299, %303 : vector<8x128xf32>
    %306 = arith.addf %304, %305 : vector<8x128xf32>
    %307 = math.tanh %306 : vector<8x128xf32>
    %308 = arith.mulf %301, %307 : vector<8x128xf32>
    %c32_135 = arith.constant 32 : index
    %c0_136 = arith.constant 0 : index
    %309 = vector.load %arg7[%c32_135, %c0_136] : memref<64x128xf32, #tpu.memory_space<vmem>>, vector<8x128xf32>
    tpu.vector_store %arg7[%c32_135, %c0_136], %308 {strides = array<i32>} : memref<64x128xf32, #tpu.memory_space<vmem>>, vector<8x128xf32>,
    %c40_137 = arith.constant 40 : index
    %c0_138 = arith.constant 0 : index
    %310 = vector.load %arg8[%c40_137, %c0_138] : memref<64x512xf32, #tpu.memory_space<vmem>>, vector<8x512xf32>
    %c1_139 = arith.constant 1 : index
    %c0_140 = arith.constant 0 : index
    %c0_141 = arith.constant 0 : index
    %311 = vector.load %arg2[%c1_139, %c0_140, %c0_141] : memref<3x128x512xf32, #tpu.memory_space<vmem>>, vector<1x128x512xf32>
    %312 = vector.shape_cast %311 : vector<1x128x512xf32> to vector<128x512xf32>
    %cst_142 = arith.constant dense<0.000000e+00> : vector<8x512xf32>
    %313 = tpu.matmul %308, %312, %cst_142 {dimension_numbers = #tpu.dot_dimension_numbers<[1], [0], [0], [1], [0, 0, 1, 1], [], []>} : vector<8x128xf32>, vector<128x512xf32>, vector<8x512xf32> -> vector<8x512xf32>
    %314 = arith.addf %310, %313 : vector<8x512xf32>
    %315 = vector.extract_strided_slice %314 {offsets = [0, 0], sizes = [8, 384], strides = [1, 1]} : vector<8x512xf32> to vector<8x384xf32>
    %316 = arith.negf %315 : vector<8x384xf32>
    %317 = math.exp %316 : vector<8x384xf32>
    %cst_143 = arith.constant 1.000000e+00 : f32
    %318 = vector.broadcast %cst_143 : f32 to vector<8x384xf32>
    %319 = arith.addf %318, %317 : vector<8x384xf32>
    %320 = arith.divf %318, %319 : vector<8x384xf32>
    %321 = vector.extract_strided_slice %320 {offsets = [0, 0], sizes = [8, 128], strides = [1, 1]} : vector<8x384xf32> to vector<8x128xf32>
    %322 = vector.extract_strided_slice %320 {offsets = [0, 128], sizes = [8, 128], strides = [1, 1]} : vector<8x384xf32> to vector<8x128xf32>
    %323 = vector.extract_strided_slice %320 {offsets = [0, 256], sizes = [8, 128], strides = [1, 1]} : vector<8x384xf32> to vector<8x128xf32>
    %324 = vector.extract_strided_slice %314 {offsets = [0, 384], sizes = [8, 128], strides = [1, 1]} : vector<8x512xf32> to vector<8x128xf32>
    %325 = math.tanh %324 : vector<8x128xf32>
    %326 = arith.mulf %322, %306 : vector<8x128xf32>
    %327 = arith.mulf %321, %325 : vector<8x128xf32>
    %328 = arith.addf %326, %327 : vector<8x128xf32>
    %329 = math.tanh %328 : vector<8x128xf32>
    %330 = arith.mulf %323, %329 : vector<8x128xf32>
    %c40_144 = arith.constant 40 : index
    %c0_145 = arith.constant 0 : index
    %331 = vector.load %arg7[%c40_144, %c0_145] : memref<64x128xf32, #tpu.memory_space<vmem>>, vector<8x128xf32>
    tpu.vector_store %arg7[%c40_144, %c0_145], %330 {strides = array<i32>} : memref<64x128xf32, #tpu.memory_space<vmem>>, vector<8x128xf32>,
    %c48_146 = arith.constant 48 : index
    %c0_147 = arith.constant 0 : index
    %332 = vector.load %arg8[%c48_146, %c0_147] : memref<64x512xf32, #tpu.memory_space<vmem>>, vector<8x512xf32>
    %c1_148 = arith.constant 1 : index
    %c0_149 = arith.constant 0 : index
    %c0_150 = arith.constant 0 : index
    %333 = vector.load %arg2[%c1_148, %c0_149, %c0_150] : memref<3x128x512xf32, #tpu.memory_space<vmem>>, vector<1x128x512xf32>
    %334 = vector.shape_cast %333 : vector<1x128x512xf32> to vector<128x512xf32>
    %cst_151 = arith.constant dense<0.000000e+00> : vector<8x512xf32>
    %335 = tpu.matmul %330, %334, %cst_151 {dimension_numbers = #tpu.dot_dimension_numbers<[1], [0], [0], [1], [0, 0, 1, 1], [], []>} : vector<8x128xf32>, vector<128x512xf32>, vector<8x512xf32> -> vector<8x512xf32>
    %336 = arith.addf %332, %335 : vector<8x512xf32>
    %337 = vector.extract_strided_slice %336 {offsets = [0, 0], sizes = [8, 384], strides = [1, 1]} : vector<8x512xf32> to vector<8x384xf32>
    %338 = arith.negf %337 : vector<8x384xf32>
    %339 = math.exp %338 : vector<8x384xf32>
    %cst_152 = arith.constant 1.000000e+00 : f32
    %340 = vector.broadcast %cst_152 : f32 to vector<8x384xf32>
    %341 = arith.addf %340, %339 : vector<8x384xf32>
    %342 = arith.divf %340, %341 : vector<8x384xf32>
    %343 = vector.extract_strided_slice %342 {offsets = [0, 0], sizes = [8, 128], strides = [1, 1]} : vector<8x384xf32> to vector<8x128xf32>
    %344 = vector.extract_strided_slice %342 {offsets = [0, 128], sizes = [8, 128], strides = [1, 1]} : vector<8x384xf32> to vector<8x128xf32>
    %345 = vector.extract_strided_slice %342 {offsets = [0, 256], sizes = [8, 128], strides = [1, 1]} : vector<8x384xf32> to vector<8x128xf32>
    %346 = vector.extract_strided_slice %336 {offsets = [0, 384], sizes = [8, 128], strides = [1, 1]} : vector<8x512xf32> to vector<8x128xf32>
    %347 = math.tanh %346 : vector<8x128xf32>
    %348 = arith.mulf %344, %328 : vector<8x128xf32>
    %349 = arith.mulf %343, %347 : vector<8x128xf32>
    %350 = arith.addf %348, %349 : vector<8x128xf32>
    %351 = math.tanh %350 : vector<8x128xf32>
    %352 = arith.mulf %345, %351 : vector<8x128xf32>
    %c48_153 = arith.constant 48 : index
    %c0_154 = arith.constant 0 : index
    %353 = vector.load %arg7[%c48_153, %c0_154] : memref<64x128xf32, #tpu.memory_space<vmem>>, vector<8x128xf32>
    tpu.vector_store %arg7[%c48_153, %c0_154], %352 {strides = array<i32>} : memref<64x128xf32, #tpu.memory_space<vmem>>, vector<8x128xf32>,
    %c56_155 = arith.constant 56 : index
    %c0_156 = arith.constant 0 : index
    %354 = vector.load %arg8[%c56_155, %c0_156] : memref<64x512xf32, #tpu.memory_space<vmem>>, vector<8x512xf32>
    %c1_157 = arith.constant 1 : index
    %c0_158 = arith.constant 0 : index
    %c0_159 = arith.constant 0 : index
    %355 = vector.load %arg2[%c1_157, %c0_158, %c0_159] : memref<3x128x512xf32, #tpu.memory_space<vmem>>, vector<1x128x512xf32>
    %356 = vector.shape_cast %355 : vector<1x128x512xf32> to vector<128x512xf32>
    %cst_160 = arith.constant dense<0.000000e+00> : vector<8x512xf32>
    %357 = tpu.matmul %352, %356, %cst_160 {dimension_numbers = #tpu.dot_dimension_numbers<[1], [0], [0], [1], [0, 0, 1, 1], [], []>} : vector<8x128xf32>, vector<128x512xf32>, vector<8x512xf32> -> vector<8x512xf32>
    %358 = arith.addf %354, %357 : vector<8x512xf32>
    %359 = vector.extract_strided_slice %358 {offsets = [0, 0], sizes = [8, 384], strides = [1, 1]} : vector<8x512xf32> to vector<8x384xf32>
    %360 = arith.negf %359 : vector<8x384xf32>
    %361 = math.exp %360 : vector<8x384xf32>
    %cst_161 = arith.constant 1.000000e+00 : f32
    %362 = vector.broadcast %cst_161 : f32 to vector<8x384xf32>
    %363 = arith.addf %362, %361 : vector<8x384xf32>
    %364 = arith.divf %362, %363 : vector<8x384xf32>
    %365 = vector.extract_strided_slice %364 {offsets = [0, 0], sizes = [8, 128], strides = [1, 1]} : vector<8x384xf32> to vector<8x128xf32>
    %366 = vector.extract_strided_slice %364 {offsets = [0, 128], sizes = [8, 128], strides = [1, 1]} : vector<8x384xf32> to vector<8x128xf32>
    %367 = vector.extract_strided_slice %364 {offsets = [0, 256], sizes = [8, 128], strides = [1, 1]} : vector<8x384xf32> to vector<8x128xf32>
    %368 = vector.extract_strided_slice %358 {offsets = [0, 384], sizes = [8, 128], strides = [1, 1]} : vector<8x512xf32> to vector<8x128xf32>
    %369 = math.tanh %368 : vector<8x128xf32>
    %370 = arith.mulf %366, %350 : vector<8x128xf32>
    %371 = arith.mulf %365, %369 : vector<8x128xf32>
    %372 = arith.addf %370, %371 : vector<8x128xf32>
    %373 = math.tanh %372 : vector<8x128xf32>
    %374 = arith.mulf %367, %373 : vector<8x128xf32>
    %c56_162 = arith.constant 56 : index
    %c0_163 = arith.constant 0 : index
    %375 = vector.load %arg7[%c56_162, %c0_163] : memref<64x128xf32, #tpu.memory_space<vmem>>, vector<8x128xf32>
    tpu.vector_store %arg7[%c56_162, %c0_163], %374 {strides = array<i32>} : memref<64x128xf32, #tpu.memory_space<vmem>>, vector<8x128xf32>,
    %c0_164 = arith.constant 0 : index
    %c0_165 = arith.constant 0 : index
    %376 = vector.load %arg7[%c0_164, %c0_165] : memref<64x128xf32, #tpu.memory_space<vmem>>, vector<64x128xf32>
    %c2 = arith.constant 2 : index
    %c0_166 = arith.constant 0 : index
    %c0_167 = arith.constant 0 : index
    %377 = vector.load %arg1[%c2, %c0_166, %c0_167] : memref<3x128x512xf32, #tpu.memory_space<vmem>>, vector<1x128x512xf32>
    %378 = vector.shape_cast %377 : vector<1x128x512xf32> to vector<128x512xf32>
    %cst_168 = arith.constant dense<0.000000e+00> : vector<64x512xf32>
    %379 = tpu.matmul %376, %378, %cst_168 {dimension_numbers = #tpu.dot_dimension_numbers<[1], [0], [0], [1], [0, 0, 1, 1], [], []>} : vector<64x128xf32>, vector<128x512xf32>, vector<64x512xf32> -> vector<64x512xf32>
    %c2_169 = arith.constant 2 : index
    %c0_170 = arith.constant 0 : index
    %c0_171 = arith.constant 0 : index
    %380 = vector.load %arg3[%c2_169, %c0_170, %c0_171] : memref<3x1x512xf32, #tpu.memory_space<vmem>>, vector<1x1x512xf32>
    %381 = vector.shape_cast %380 : vector<1x1x512xf32> to vector<1x512xf32>
    %382 = vector.broadcast %381 : vector<1x512xf32> to vector<64x512xf32>
    %383 = arith.addf %379, %382 : vector<64x512xf32>
    %c0_172 = arith.constant 0 : index
    %c0_173 = arith.constant 0 : index
    %384 = vector.load %arg8[%c0_172, %c0_173] : memref<64x512xf32, #tpu.memory_space<vmem>>, vector<64x512xf32>
    tpu.vector_store %arg8[%c0_172, %c0_173], %383 {strides = array<i32>} : memref<64x512xf32, #tpu.memory_space<vmem>>, vector<64x512xf32>,
    %cst_174 = arith.constant 0.000000e+00 : f32
    %385 = vector.broadcast %cst_174 : f32 to vector<8x128xf32>
    %cst_175 = arith.constant 0.000000e+00 : f32
    %386 = vector.broadcast %cst_175 : f32 to vector<8x128xf32>
    %c0_176 = arith.constant 0 : index
    %c0_177 = arith.constant 0 : index
    %387 = vector.load %arg8[%c0_176, %c0_177] : memref<64x512xf32, #tpu.memory_space<vmem>>, vector<8x512xf32>
    %c2_178 = arith.constant 2 : index
    %c0_179 = arith.constant 0 : index
    %c0_180 = arith.constant 0 : index
    %388 = vector.load %arg2[%c2_178, %c0_179, %c0_180] : memref<3x128x512xf32, #tpu.memory_space<vmem>>, vector<1x128x512xf32>
    %389 = vector.shape_cast %388 : vector<1x128x512xf32> to vector<128x512xf32>
    %cst_181 = arith.constant dense<0.000000e+00> : vector<8x512xf32>
    %390 = tpu.matmul %385, %389, %cst_181 {dimension_numbers = #tpu.dot_dimension_numbers<[1], [0], [0], [1], [0, 0, 1, 1], [], []>} : vector<8x128xf32>, vector<128x512xf32>, vector<8x512xf32> -> vector<8x512xf32>
    %391 = arith.addf %387, %390 : vector<8x512xf32>
    %392 = vector.extract_strided_slice %391 {offsets = [0, 0], sizes = [8, 384], strides = [1, 1]} : vector<8x512xf32> to vector<8x384xf32>
    %393 = arith.negf %392 : vector<8x384xf32>
    %394 = math.exp %393 : vector<8x384xf32>
    %cst_182 = arith.constant 1.000000e+00 : f32
    %395 = vector.broadcast %cst_182 : f32 to vector<8x384xf32>
    %396 = arith.addf %395, %394 : vector<8x384xf32>
    %397 = arith.divf %395, %396 : vector<8x384xf32>
    %398 = vector.extract_strided_slice %397 {offsets = [0, 0], sizes = [8, 128], strides = [1, 1]} : vector<8x384xf32> to vector<8x128xf32>
    %399 = vector.extract_strided_slice %397 {offsets = [0, 128], sizes = [8, 128], strides = [1, 1]} : vector<8x384xf32> to vector<8x128xf32>
    %400 = vector.extract_strided_slice %397 {offsets = [0, 256], sizes = [8, 128], strides = [1, 1]} : vector<8x384xf32> to vector<8x128xf32>
    %401 = vector.extract_strided_slice %391 {offsets = [0, 384], sizes = [8, 128], strides = [1, 1]} : vector<8x512xf32> to vector<8x128xf32>
    %402 = math.tanh %401 : vector<8x128xf32>
    %403 = arith.mulf %399, %386 : vector<8x128xf32>
    %404 = arith.mulf %398, %402 : vector<8x128xf32>
    %405 = arith.addf %403, %404 : vector<8x128xf32>
    %406 = math.tanh %405 : vector<8x128xf32>
    %407 = arith.mulf %400, %406 : vector<8x128xf32>
    %c0_183 = arith.constant 0 : index
    %c0_184 = arith.constant 0 : index
    %408 = vector.load %arg7[%c0_183, %c0_184] : memref<64x128xf32, #tpu.memory_space<vmem>>, vector<8x128xf32>
    tpu.vector_store %arg7[%c0_183, %c0_184], %407 {strides = array<i32>} : memref<64x128xf32, #tpu.memory_space<vmem>>, vector<8x128xf32>,
    %c8_185 = arith.constant 8 : index
    %c0_186 = arith.constant 0 : index
    %409 = vector.load %arg8[%c8_185, %c0_186] : memref<64x512xf32, #tpu.memory_space<vmem>>, vector<8x512xf32>
    %c2_187 = arith.constant 2 : index
    %c0_188 = arith.constant 0 : index
    %c0_189 = arith.constant 0 : index
    %410 = vector.load %arg2[%c2_187, %c0_188, %c0_189] : memref<3x128x512xf32, #tpu.memory_space<vmem>>, vector<1x128x512xf32>
    %411 = vector.shape_cast %410 : vector<1x128x512xf32> to vector<128x512xf32>
    %cst_190 = arith.constant dense<0.000000e+00> : vector<8x512xf32>
    %412 = tpu.matmul %407, %411, %cst_190 {dimension_numbers = #tpu.dot_dimension_numbers<[1], [0], [0], [1], [0, 0, 1, 1], [], []>} : vector<8x128xf32>, vector<128x512xf32>, vector<8x512xf32> -> vector<8x512xf32>
    %413 = arith.addf %409, %412 : vector<8x512xf32>
    %414 = vector.extract_strided_slice %413 {offsets = [0, 0], sizes = [8, 384], strides = [1, 1]} : vector<8x512xf32> to vector<8x384xf32>
    %415 = arith.negf %414 : vector<8x384xf32>
    %416 = math.exp %415 : vector<8x384xf32>
    %cst_191 = arith.constant 1.000000e+00 : f32
    %417 = vector.broadcast %cst_191 : f32 to vector<8x384xf32>
    %418 = arith.addf %417, %416 : vector<8x384xf32>
    %419 = arith.divf %417, %418 : vector<8x384xf32>
    %420 = vector.extract_strided_slice %419 {offsets = [0, 0], sizes = [8, 128], strides = [1, 1]} : vector<8x384xf32> to vector<8x128xf32>
    %421 = vector.extract_strided_slice %419 {offsets = [0, 128], sizes = [8, 128], strides = [1, 1]} : vector<8x384xf32> to vector<8x128xf32>
    %422 = vector.extract_strided_slice %419 {offsets = [0, 256], sizes = [8, 128], strides = [1, 1]} : vector<8x384xf32> to vector<8x128xf32>
    %423 = vector.extract_strided_slice %413 {offsets = [0, 384], sizes = [8, 128], strides = [1, 1]} : vector<8x512xf32> to vector<8x128xf32>
    %424 = math.tanh %423 : vector<8x128xf32>
    %425 = arith.mulf %421, %405 : vector<8x128xf32>
    %426 = arith.mulf %420, %424 : vector<8x128xf32>
    %427 = arith.addf %425, %426 : vector<8x128xf32>
    %428 = math.tanh %427 : vector<8x128xf32>
    %429 = arith.mulf %422, %428 : vector<8x128xf32>
    %c8_192 = arith.constant 8 : index
    %c0_193 = arith.constant 0 : index
    %430 = vector.load %arg7[%c8_192, %c0_193] : memref<64x128xf32, #tpu.memory_space<vmem>>, vector<8x128xf32>
    tpu.vector_store %arg7[%c8_192, %c0_193], %429 {strides = array<i32>} : memref<64x128xf32, #tpu.memory_space<vmem>>, vector<8x128xf32>,
    %c16_194 = arith.constant 16 : index
    %c0_195 = arith.constant 0 : index
    %431 = vector.load %arg8[%c16_194, %c0_195] : memref<64x512xf32, #tpu.memory_space<vmem>>, vector<8x512xf32>
    %c2_196 = arith.constant 2 : index
    %c0_197 = arith.constant 0 : index
    %c0_198 = arith.constant 0 : index
    %432 = vector.load %arg2[%c2_196, %c0_197, %c0_198] : memref<3x128x512xf32, #tpu.memory_space<vmem>>, vector<1x128x512xf32>
    %433 = vector.shape_cast %432 : vector<1x128x512xf32> to vector<128x512xf32>
    %cst_199 = arith.constant dense<0.000000e+00> : vector<8x512xf32>
    %434 = tpu.matmul %429, %433, %cst_199 {dimension_numbers = #tpu.dot_dimension_numbers<[1], [0], [0], [1], [0, 0, 1, 1], [], []>} : vector<8x128xf32>, vector<128x512xf32>, vector<8x512xf32> -> vector<8x512xf32>
    %435 = arith.addf %431, %434 : vector<8x512xf32>
    %436 = vector.extract_strided_slice %435 {offsets = [0, 0], sizes = [8, 384], strides = [1, 1]} : vector<8x512xf32> to vector<8x384xf32>
    %437 = arith.negf %436 : vector<8x384xf32>
    %438 = math.exp %437 : vector<8x384xf32>
    %cst_200 = arith.constant 1.000000e+00 : f32
    %439 = vector.broadcast %cst_200 : f32 to vector<8x384xf32>
    %440 = arith.addf %439, %438 : vector<8x384xf32>
    %441 = arith.divf %439, %440 : vector<8x384xf32>
    %442 = vector.extract_strided_slice %441 {offsets = [0, 0], sizes = [8, 128], strides = [1, 1]} : vector<8x384xf32> to vector<8x128xf32>
    %443 = vector.extract_strided_slice %441 {offsets = [0, 128], sizes = [8, 128], strides = [1, 1]} : vector<8x384xf32> to vector<8x128xf32>
    %444 = vector.extract_strided_slice %441 {offsets = [0, 256], sizes = [8, 128], strides = [1, 1]} : vector<8x384xf32> to vector<8x128xf32>
    %445 = vector.extract_strided_slice %435 {offsets = [0, 384], sizes = [8, 128], strides = [1, 1]} : vector<8x512xf32> to vector<8x128xf32>
    %446 = math.tanh %445 : vector<8x128xf32>
    %447 = arith.mulf %443, %427 : vector<8x128xf32>
    %448 = arith.mulf %442, %446 : vector<8x128xf32>
    %449 = arith.addf %447, %448 : vector<8x128xf32>
    %450 = math.tanh %449 : vector<8x128xf32>
    %451 = arith.mulf %444, %450 : vector<8x128xf32>
    %c16_201 = arith.constant 16 : index
    %c0_202 = arith.constant 0 : index
    %452 = vector.load %arg7[%c16_201, %c0_202] : memref<64x128xf32, #tpu.memory_space<vmem>>, vector<8x128xf32>
    tpu.vector_store %arg7[%c16_201, %c0_202], %451 {strides = array<i32>} : memref<64x128xf32, #tpu.memory_space<vmem>>, vector<8x128xf32>,
    %c24_203 = arith.constant 24 : index
    %c0_204 = arith.constant 0 : index
    %453 = vector.load %arg8[%c24_203, %c0_204] : memref<64x512xf32, #tpu.memory_space<vmem>>, vector<8x512xf32>
    %c2_205 = arith.constant 2 : index
    %c0_206 = arith.constant 0 : index
    %c0_207 = arith.constant 0 : index
    %454 = vector.load %arg2[%c2_205, %c0_206, %c0_207] : memref<3x128x512xf32, #tpu.memory_space<vmem>>, vector<1x128x512xf32>
    %455 = vector.shape_cast %454 : vector<1x128x512xf32> to vector<128x512xf32>
    %cst_208 = arith.constant dense<0.000000e+00> : vector<8x512xf32>
    %456 = tpu.matmul %451, %455, %cst_208 {dimension_numbers = #tpu.dot_dimension_numbers<[1], [0], [0], [1], [0, 0, 1, 1], [], []>} : vector<8x128xf32>, vector<128x512xf32>, vector<8x512xf32> -> vector<8x512xf32>
    %457 = arith.addf %453, %456 : vector<8x512xf32>
    %458 = vector.extract_strided_slice %457 {offsets = [0, 0], sizes = [8, 384], strides = [1, 1]} : vector<8x512xf32> to vector<8x384xf32>
    %459 = arith.negf %458 : vector<8x384xf32>
    %460 = math.exp %459 : vector<8x384xf32>
    %cst_209 = arith.constant 1.000000e+00 : f32
    %461 = vector.broadcast %cst_209 : f32 to vector<8x384xf32>
    %462 = arith.addf %461, %460 : vector<8x384xf32>
    %463 = arith.divf %461, %462 : vector<8x384xf32>
    %464 = vector.extract_strided_slice %463 {offsets = [0, 0], sizes = [8, 128], strides = [1, 1]} : vector<8x384xf32> to vector<8x128xf32>
    %465 = vector.extract_strided_slice %463 {offsets = [0, 128], sizes = [8, 128], strides = [1, 1]} : vector<8x384xf32> to vector<8x128xf32>
    %466 = vector.extract_strided_slice %463 {offsets = [0, 256], sizes = [8, 128], strides = [1, 1]} : vector<8x384xf32> to vector<8x128xf32>
    %467 = vector.extract_strided_slice %457 {offsets = [0, 384], sizes = [8, 128], strides = [1, 1]} : vector<8x512xf32> to vector<8x128xf32>
    %468 = math.tanh %467 : vector<8x128xf32>
    %469 = arith.mulf %465, %449 : vector<8x128xf32>
    %470 = arith.mulf %464, %468 : vector<8x128xf32>
    %471 = arith.addf %469, %470 : vector<8x128xf32>
    %472 = math.tanh %471 : vector<8x128xf32>
    %473 = arith.mulf %466, %472 : vector<8x128xf32>
    %c24_210 = arith.constant 24 : index
    %c0_211 = arith.constant 0 : index
    %474 = vector.load %arg7[%c24_210, %c0_211] : memref<64x128xf32, #tpu.memory_space<vmem>>, vector<8x128xf32>
    tpu.vector_store %arg7[%c24_210, %c0_211], %473 {strides = array<i32>} : memref<64x128xf32, #tpu.memory_space<vmem>>, vector<8x128xf32>,
    %c32_212 = arith.constant 32 : index
    %c0_213 = arith.constant 0 : index
    %475 = vector.load %arg8[%c32_212, %c0_213] : memref<64x512xf32, #tpu.memory_space<vmem>>, vector<8x512xf32>
    %c2_214 = arith.constant 2 : index
    %c0_215 = arith.constant 0 : index
    %c0_216 = arith.constant 0 : index
    %476 = vector.load %arg2[%c2_214, %c0_215, %c0_216] : memref<3x128x512xf32, #tpu.memory_space<vmem>>, vector<1x128x512xf32>
    %477 = vector.shape_cast %476 : vector<1x128x512xf32> to vector<128x512xf32>
    %cst_217 = arith.constant dense<0.000000e+00> : vector<8x512xf32>
    %478 = tpu.matmul %473, %477, %cst_217 {dimension_numbers = #tpu.dot_dimension_numbers<[1], [0], [0], [1], [0, 0, 1, 1], [], []>} : vector<8x128xf32>, vector<128x512xf32>, vector<8x512xf32> -> vector<8x512xf32>
    %479 = arith.addf %475, %478 : vector<8x512xf32>
    %480 = vector.extract_strided_slice %479 {offsets = [0, 0], sizes = [8, 384], strides = [1, 1]} : vector<8x512xf32> to vector<8x384xf32>
    %481 = arith.negf %480 : vector<8x384xf32>
    %482 = math.exp %481 : vector<8x384xf32>
    %cst_218 = arith.constant 1.000000e+00 : f32
    %483 = vector.broadcast %cst_218 : f32 to vector<8x384xf32>
    %484 = arith.addf %483, %482 : vector<8x384xf32>
    %485 = arith.divf %483, %484 : vector<8x384xf32>
    %486 = vector.extract_strided_slice %485 {offsets = [0, 0], sizes = [8, 128], strides = [1, 1]} : vector<8x384xf32> to vector<8x128xf32>
    %487 = vector.extract_strided_slice %485 {offsets = [0, 128], sizes = [8, 128], strides = [1, 1]} : vector<8x384xf32> to vector<8x128xf32>
    %488 = vector.extract_strided_slice %485 {offsets = [0, 256], sizes = [8, 128], strides = [1, 1]} : vector<8x384xf32> to vector<8x128xf32>
    %489 = vector.extract_strided_slice %479 {offsets = [0, 384], sizes = [8, 128], strides = [1, 1]} : vector<8x512xf32> to vector<8x128xf32>
    %490 = math.tanh %489 : vector<8x128xf32>
    %491 = arith.mulf %487, %471 : vector<8x128xf32>
    %492 = arith.mulf %486, %490 : vector<8x128xf32>
    %493 = arith.addf %491, %492 : vector<8x128xf32>
    %494 = math.tanh %493 : vector<8x128xf32>
    %495 = arith.mulf %488, %494 : vector<8x128xf32>
    %c32_219 = arith.constant 32 : index
    %c0_220 = arith.constant 0 : index
    %496 = vector.load %arg7[%c32_219, %c0_220] : memref<64x128xf32, #tpu.memory_space<vmem>>, vector<8x128xf32>
    tpu.vector_store %arg7[%c32_219, %c0_220], %495 {strides = array<i32>} : memref<64x128xf32, #tpu.memory_space<vmem>>, vector<8x128xf32>,
    %c40_221 = arith.constant 40 : index
    %c0_222 = arith.constant 0 : index
    %497 = vector.load %arg8[%c40_221, %c0_222] : memref<64x512xf32, #tpu.memory_space<vmem>>, vector<8x512xf32>
    %c2_223 = arith.constant 2 : index
    %c0_224 = arith.constant 0 : index
    %c0_225 = arith.constant 0 : index
    %498 = vector.load %arg2[%c2_223, %c0_224, %c0_225] : memref<3x128x512xf32, #tpu.memory_space<vmem>>, vector<1x128x512xf32>
    %499 = vector.shape_cast %498 : vector<1x128x512xf32> to vector<128x512xf32>
    %cst_226 = arith.constant dense<0.000000e+00> : vector<8x512xf32>
    %500 = tpu.matmul %495, %499, %cst_226 {dimension_numbers = #tpu.dot_dimension_numbers<[1], [0], [0], [1], [0, 0, 1, 1], [], []>} : vector<8x128xf32>, vector<128x512xf32>, vector<8x512xf32> -> vector<8x512xf32>
    %501 = arith.addf %497, %500 : vector<8x512xf32>
    %502 = vector.extract_strided_slice %501 {offsets = [0, 0], sizes = [8, 384], strides = [1, 1]} : vector<8x512xf32> to vector<8x384xf32>
    %503 = arith.negf %502 : vector<8x384xf32>
    %504 = math.exp %503 : vector<8x384xf32>
    %cst_227 = arith.constant 1.000000e+00 : f32
    %505 = vector.broadcast %cst_227 : f32 to vector<8x384xf32>
    %506 = arith.addf %505, %504 : vector<8x384xf32>
    %507 = arith.divf %505, %506 : vector<8x384xf32>
    %508 = vector.extract_strided_slice %507 {offsets = [0, 0], sizes = [8, 128], strides = [1, 1]} : vector<8x384xf32> to vector<8x128xf32>
    %509 = vector.extract_strided_slice %507 {offsets = [0, 128], sizes = [8, 128], strides = [1, 1]} : vector<8x384xf32> to vector<8x128xf32>
    %510 = vector.extract_strided_slice %507 {offsets = [0, 256], sizes = [8, 128], strides = [1, 1]} : vector<8x384xf32> to vector<8x128xf32>
    %511 = vector.extract_strided_slice %501 {offsets = [0, 384], sizes = [8, 128], strides = [1, 1]} : vector<8x512xf32> to vector<8x128xf32>
    %512 = math.tanh %511 : vector<8x128xf32>
    %513 = arith.mulf %509, %493 : vector<8x128xf32>
    %514 = arith.mulf %508, %512 : vector<8x128xf32>
    %515 = arith.addf %513, %514 : vector<8x128xf32>
    %516 = math.tanh %515 : vector<8x128xf32>
    %517 = arith.mulf %510, %516 : vector<8x128xf32>
    %c40_228 = arith.constant 40 : index
    %c0_229 = arith.constant 0 : index
    %518 = vector.load %arg7[%c40_228, %c0_229] : memref<64x128xf32, #tpu.memory_space<vmem>>, vector<8x128xf32>
    tpu.vector_store %arg7[%c40_228, %c0_229], %517 {strides = array<i32>} : memref<64x128xf32, #tpu.memory_space<vmem>>, vector<8x128xf32>,
    %c48_230 = arith.constant 48 : index
    %c0_231 = arith.constant 0 : index
    %519 = vector.load %arg8[%c48_230, %c0_231] : memref<64x512xf32, #tpu.memory_space<vmem>>, vector<8x512xf32>
    %c2_232 = arith.constant 2 : index
    %c0_233 = arith.constant 0 : index
    %c0_234 = arith.constant 0 : index
    %520 = vector.load %arg2[%c2_232, %c0_233, %c0_234] : memref<3x128x512xf32, #tpu.memory_space<vmem>>, vector<1x128x512xf32>
    %521 = vector.shape_cast %520 : vector<1x128x512xf32> to vector<128x512xf32>
    %cst_235 = arith.constant dense<0.000000e+00> : vector<8x512xf32>
    %522 = tpu.matmul %517, %521, %cst_235 {dimension_numbers = #tpu.dot_dimension_numbers<[1], [0], [0], [1], [0, 0, 1, 1], [], []>} : vector<8x128xf32>, vector<128x512xf32>, vector<8x512xf32> -> vector<8x512xf32>
    %523 = arith.addf %519, %522 : vector<8x512xf32>
    %524 = vector.extract_strided_slice %523 {offsets = [0, 0], sizes = [8, 384], strides = [1, 1]} : vector<8x512xf32> to vector<8x384xf32>
    %525 = arith.negf %524 : vector<8x384xf32>
    %526 = math.exp %525 : vector<8x384xf32>
    %cst_236 = arith.constant 1.000000e+00 : f32
    %527 = vector.broadcast %cst_236 : f32 to vector<8x384xf32>
    %528 = arith.addf %527, %526 : vector<8x384xf32>
    %529 = arith.divf %527, %528 : vector<8x384xf32>
    %530 = vector.extract_strided_slice %529 {offsets = [0, 0], sizes = [8, 128], strides = [1, 1]} : vector<8x384xf32> to vector<8x128xf32>
    %531 = vector.extract_strided_slice %529 {offsets = [0, 128], sizes = [8, 128], strides = [1, 1]} : vector<8x384xf32> to vector<8x128xf32>
    %532 = vector.extract_strided_slice %529 {offsets = [0, 256], sizes = [8, 128], strides = [1, 1]} : vector<8x384xf32> to vector<8x128xf32>
    %533 = vector.extract_strided_slice %523 {offsets = [0, 384], sizes = [8, 128], strides = [1, 1]} : vector<8x512xf32> to vector<8x128xf32>
    %534 = math.tanh %533 : vector<8x128xf32>
    %535 = arith.mulf %531, %515 : vector<8x128xf32>
    %536 = arith.mulf %530, %534 : vector<8x128xf32>
    %537 = arith.addf %535, %536 : vector<8x128xf32>
    %538 = math.tanh %537 : vector<8x128xf32>
    %539 = arith.mulf %532, %538 : vector<8x128xf32>
    %c48_237 = arith.constant 48 : index
    %c0_238 = arith.constant 0 : index
    %540 = vector.load %arg7[%c48_237, %c0_238] : memref<64x128xf32, #tpu.memory_space<vmem>>, vector<8x128xf32>
    tpu.vector_store %arg7[%c48_237, %c0_238], %539 {strides = array<i32>} : memref<64x128xf32, #tpu.memory_space<vmem>>, vector<8x128xf32>,
    %c56_239 = arith.constant 56 : index
    %c0_240 = arith.constant 0 : index
    %541 = vector.load %arg8[%c56_239, %c0_240] : memref<64x512xf32, #tpu.memory_space<vmem>>, vector<8x512xf32>
    %c2_241 = arith.constant 2 : index
    %c0_242 = arith.constant 0 : index
    %c0_243 = arith.constant 0 : index
    %542 = vector.load %arg2[%c2_241, %c0_242, %c0_243] : memref<3x128x512xf32, #tpu.memory_space<vmem>>, vector<1x128x512xf32>
    %543 = vector.shape_cast %542 : vector<1x128x512xf32> to vector<128x512xf32>
    %cst_244 = arith.constant dense<0.000000e+00> : vector<8x512xf32>
    %544 = tpu.matmul %539, %543, %cst_244 {dimension_numbers = #tpu.dot_dimension_numbers<[1], [0], [0], [1], [0, 0, 1, 1], [], []>} : vector<8x128xf32>, vector<128x512xf32>, vector<8x512xf32> -> vector<8x512xf32>
    %545 = arith.addf %541, %544 : vector<8x512xf32>
    %546 = vector.extract_strided_slice %545 {offsets = [0, 0], sizes = [8, 384], strides = [1, 1]} : vector<8x512xf32> to vector<8x384xf32>
    %547 = arith.negf %546 : vector<8x384xf32>
    %548 = math.exp %547 : vector<8x384xf32>
    %cst_245 = arith.constant 1.000000e+00 : f32
    %549 = vector.broadcast %cst_245 : f32 to vector<8x384xf32>
    %550 = arith.addf %549, %548 : vector<8x384xf32>
    %551 = arith.divf %549, %550 : vector<8x384xf32>
    %552 = vector.extract_strided_slice %551 {offsets = [0, 0], sizes = [8, 128], strides = [1, 1]} : vector<8x384xf32> to vector<8x128xf32>
    %553 = vector.extract_strided_slice %551 {offsets = [0, 128], sizes = [8, 128], strides = [1, 1]} : vector<8x384xf32> to vector<8x128xf32>
    %554 = vector.extract_strided_slice %551 {offsets = [0, 256], sizes = [8, 128], strides = [1, 1]} : vector<8x384xf32> to vector<8x128xf32>
    %555 = vector.extract_strided_slice %545 {offsets = [0, 384], sizes = [8, 128], strides = [1, 1]} : vector<8x512xf32> to vector<8x128xf32>
    %556 = math.tanh %555 : vector<8x128xf32>
    %557 = arith.mulf %553, %537 : vector<8x128xf32>
    %558 = arith.mulf %552, %556 : vector<8x128xf32>
    %559 = arith.addf %557, %558 : vector<8x128xf32>
    %560 = math.tanh %559 : vector<8x128xf32>
    %561 = arith.mulf %554, %560 : vector<8x128xf32>
    %c56_246 = arith.constant 56 : index
    %c0_247 = arith.constant 0 : index
    %562 = vector.load %arg7[%c56_246, %c0_247] : memref<64x128xf32, #tpu.memory_space<vmem>>, vector<8x128xf32>
    tpu.vector_store %arg7[%c56_246, %c0_247], %561 {strides = array<i32>} : memref<64x128xf32, #tpu.memory_space<vmem>>, vector<8x128xf32>,
    %c0_248 = arith.constant 0 : index
    %c0_249 = arith.constant 0 : index
    %563 = vector.load %arg7[%c0_248, %c0_249] : memref<64x128xf32, #tpu.memory_space<vmem>>, vector<64x128xf32>
    %c0_250 = arith.constant 0 : index
    %c0_251 = arith.constant 0 : index
    %564 = vector.load %arg4[%c0_250, %c0_251] : memref<128x128xf32, #tpu.memory_space<vmem>>, vector<128x128xf32>
    %cst_252 = arith.constant dense<0.000000e+00> : vector<64x128xf32>
    %565 = tpu.matmul %563, %564, %cst_252 {dimension_numbers = #tpu.dot_dimension_numbers<[1], [0], [0], [1], [0, 0, 1, 1], [], []>} : vector<64x128xf32>, vector<128x128xf32>, vector<64x128xf32> -> vector<64x128xf32>
    %c0_253 = arith.constant 0 : index
    %c0_254 = arith.constant 0 : index
    %566 = vector.load %arg5[%c0_253, %c0_254] : memref<1x128xf32, #tpu.memory_space<vmem>>, vector<1x128xf32>
    %567 = vector.broadcast %566 : vector<1x128xf32> to vector<64x128xf32>
    %568 = arith.addf %565, %567 : vector<64x128xf32>
    %c0_255 = arith.constant 0 : index
    %c0_256 = arith.constant 0 : index
    %569 = vector.load %arg6[%c0_255, %c0_256] : memref<64x128xf32, #tpu.memory_space<vmem>>, vector<64x128xf32>
    tpu.vector_store %arg6[%c0_255, %c0_256], %568 {strides = array<i32>} : memref<64x128xf32, #tpu.memory_space<vmem>>, vector<64x128xf32>,
    return
  }
}

</mosaic_0001>

<llo_original>
// kernel: lstm_pallas.1
$region0: #{lstm_pallas.1}
  #allocation0 [shape = 'u32[]', space=smem, size = 0x4, offset = 0x4, fixed_abs, tag = 'smem constant byte address 0x4 - core index']
  #allocation1 [shape = 'u32[144,128]{1,0:T(1,128)}', space=vmem, size = 0x12000, scoped, tag = 'internal scratch']
  #allocation2 [shape = 'f32[64,128]{1,0:T(8,128)}', space=vmem, size = 0x8000, scoped, tag = 'scratch operand']
  #allocation3 [shape = 'f32[64,512]{1,0:T(8,128)}', space=vmem, size = 0x20000, scoped, tag = 'scratch operand']
  %s0 = inlined_call_operand.hbm [shape: f32[64,128], index: 0, kind: input, shape index: {}]
  %s1 = inlined_call_operand.hbm [shape: f32[3,128,512], index: 1, kind: input, shape index: {}]
  %s2 = inlined_call_operand.hbm [shape: f32[3,128,512], index: 2, kind: input, shape index: {}]
  %s3 = inlined_call_operand.hbm [shape: f32[3,1,512], index: 3, kind: input, shape index: {}]
  %s4 = inlined_call_operand.hbm [shape: f32[128,128], index: 4, kind: input, shape index: {}]
  %s5 = inlined_call_operand.vmem [shape: f32[1,128], index: 5, kind: input, shape index: {}]
  %s6 = inlined_call_operand.hbm [shape: f32[64,128], index: 6, kind: output, shape index: {}]
  %s7 = sld [smem:[#allocation0]]
  $region54: #{lstm_pallas.1} parent=0
    _
  %s9 = ssub.s32 1, %s7
  %s10 = scalar_select 0, %s9, %s7
  $region1: #{lstm_pallas.1} parent=0
    #allocation4 [shape = 'u8[32768]{0}', space=vmem, size = 0x8000, scoped, tag = 'input window, operand 0, single buffered']
    #allocation5 [shape = 's32[1]{0}', space=sflag, size = 0x4, scoped, tag = 'scoped memory for lstm_pallas.1']
    #allocation6 [shape = 's32[1]{0}', space=sflag, size = 0x4, scoped, tag = 'scoped memory for lstm_pallas.1']
    #allocation7 [shape = 'u8[786432]{0}', space=vmem, size = 0xc0000, scoped, tag = 'input window, operand 1, single buffered']
    #allocation8 [shape = 's32[1]{0}', space=sflag, size = 0x4, scoped, tag = 'scoped memory for lstm_pallas.1']
    #allocation9 [shape = 'u8[786432]{0}', space=vmem, size = 0xc0000, scoped, tag = 'input window, operand 2, single buffered']
    #allocation10 [shape = 'u8[6144]{0}', space=vmem, size = 0x1800, scoped, tag = 'input window, operand 3, single buffered']
    #allocation11 [shape = 's32[1]{0}', space=sflag, size = 0x4, scoped, tag = 'scoped memory for lstm_pallas.1']
    #allocation12 [shape = 'u8[65536]{0}', space=vmem, size = 0x10000, scoped, tag = 'input window, operand 4, single buffered']
    #allocation13 [shape = 'u8[32768]{0}', space=vmem, size = 0x8000, scoped, tag = 'output window, operand 0, single buffered']
    %11 = vsyncpa [#allocation5], 0
    %12 = vsyncpa [#allocation8], 0
    %13 = vsyncpa [#allocation11], 0
    %14 = vsyncpa [#allocation6], 0
    // Predicated region
    $region2: #{lstm_pallas.1} parent=1 // pred_check
      _
    $region3: #{lstm_pallas.1} parent=1 // pred_check_branch
      %16 = sbr.rel (0) target = $region5
    $region4: #{lstm_pallas.1} parent=1 // pred_region
      %s18 = ssub.s32 1024, 1024
      %19 = vsyncadd [#allocation5], %s18
      %s20 = sshll.u32 [#allocation4], 4
      %s21 = int_to_ptr.vmem [resolvable:$true] %s20
      %26 = dma.hbm_to_vmem [thread:$0]  %s0, 1024, %s21, [#allocation5], 128, 128, 8
    $region5: #{lstm_pallas.1} parent=1 // pred_fallthru
      _
    // Predicated region
    $region6: #{lstm_pallas.1} parent=1 // pred_check
      _
    $region7: #{lstm_pallas.1} parent=1 // pred_check_branch
      %28 = sbr.rel (0) target = $region9
    $region8: #{lstm_pallas.1} parent=1 // pred_region
      %s30 = ssub.s32 24576, 24576
      %31 = vsyncadd [#allocation8], %s30
      %s32 = sshll.u32 [#allocation7], 4
      %s33 = int_to_ptr.vmem [resolvable:$true] %s32
      %38 = dma.hbm_to_vmem [thread:$0]  %s1, 24576, %s33, [#allocation8], 512, 512, 32
    $region9: #{lstm_pallas.1} parent=1 // pred_fallthru
      _
    // Predicated region
    $region10: #{lstm_pallas.1} parent=1 // pred_check
      _
    $region11: #{lstm_pallas.1} parent=1 // pred_check_branch
      %40 = sbr.rel (0) target = $region13
    $region12: #{lstm_pallas.1} parent=1 // pred_region
      %s42 = ssub.s32 24576, 24576
      %43 = vsyncadd [#allocation8], %s42
      %s44 = sshll.u32 [#allocation9], 4
      %s45 = int_to_ptr.vmem [resolvable:$true] %s44
      %50 = dma.hbm_to_vmem [thread:$0]  %s2, 24576, %s45, [#allocation8], 512, 512, 32
    $region13: #{lstm_pallas.1} parent=1 // pred_fallthru
      _
    // Predicated region
    $region14: #{lstm_pallas.1} parent=1 // pred_check
      _
    $region15: #{lstm_pallas.1} parent=1 // pred_check_branch
      %52 = sbr.rel (0) target = $region17
    $region16: #{lstm_pallas.1} parent=1 // pred_region
      %s54 = ssub.s32 192, 192
      %55 = vsyncadd [#allocation11], %s54
      %s56 = sshll.u32 [#allocation10], 4
      %s57 = int_to_ptr.vmem [resolvable:$true] %s56
      %62 = dma.hbm_to_vmem [thread:$0]  %s3, 192, %s57, [#allocation11], 64, 64, 4
    $region17: #{lstm_pallas.1} parent=1 // pred_fallthru
      _
    // Predicated region
    $region18: #{lstm_pallas.1} parent=1 // pred_check
      _
    $region19: #{lstm_pallas.1} parent=1 // pred_check_branch
      %64 = sbr.rel (0) target = $region21
    $region20: #{lstm_pallas.1} parent=1 // pred_region
      %s66 = ssub.s32 2048, 2048
      %67 = vsyncadd [#allocation11], %s66
      %s68 = sshll.u32 [#allocation12], 4
      %s69 = int_to_ptr.vmem [resolvable:$true] %s68
      %74 = dma.hbm_to_vmem [thread:$0]  %s4, 2048, %s69, [#allocation11], 128, 128, 8
    $region21: #{lstm_pallas.1} parent=1 // pred_fallthru
      _
    // Predicated region
    $region22: #{lstm_pallas.1} parent=1 // pred_check
      _
    $region23: #{lstm_pallas.1} parent=1 // pred_check_branch
      %76 = sbr.rel (0) target = $region25
    $region24: #{lstm_pallas.1} parent=1 // pred_region
      _
    $region25: #{lstm_pallas.1} parent=1 // pred_fallthru
      _
    // Predicated region
    $region26: #{lstm_pallas.1} parent=1 // pred_check
      _
    $region27: #{lstm_pallas.1} parent=1 // pred_check_branch
      %78 = sbr.rel (0) target = $region29
    $region28: #{lstm_pallas.1} parent=1 // pred_region
      %79 = dma.done [#allocation5], 1024
    $region29: #{lstm_pallas.1} parent=1 // pred_fallthru
      _
    // Predicated region
    $region30: #{lstm_pallas.1} parent=1 // pred_check
      _
    $region31: #{lstm_pallas.1} parent=1 // pred_check_branch
      %81 = sbr.rel (0) target = $region33
    $region32: #{lstm_pallas.1} parent=1 // pred_region
      %82 = dma.done [#allocation8], 24576
    $region33: #{lstm_pallas.1} parent=1 // pred_fallthru
      _
    // Predicated region
    $region34: #{lstm_pallas.1} parent=1 // pred_check
      _
    $region35: #{lstm_pallas.1} parent=1 // pred_check_branch
      %84 = sbr.rel (0) target = $region37
    $region36: #{lstm_pallas.1} parent=1 // pred_region
      %85 = dma.done [#allocation8], 24576
    $region37: #{lstm_pallas.1} parent=1 // pred_fallthru
      _
    // Predicated region
    $region38: #{lstm_pallas.1} parent=1 // pred_check
      _
    $region39: #{lstm_pallas.1} parent=1 // pred_check_branch
      %87 = sbr.rel (0) target = $region41
    $region40: #{lstm_pallas.1} parent=1 // pred_region
      %88 = dma.done [#allocation11], 192
    $region41: #{lstm_pallas.1} parent=1 // pred_fallthru
      _
    // Predicated region
    $region42: #{lstm_pallas.1} parent=1 // pred_check
      _
    $region43: #{lstm_pallas.1} parent=1 // pred_check_branch
      %90 = sbr.rel (0) target = $region45
    $region44: #{lstm_pallas.1} parent=1 // pred_region
      %91 = dma.done [#allocation11], 2048
    $region45: #{lstm_pallas.1} parent=1 // pred_fallthru
      _
    %v92 = vld [vmem:[#allocation4] sm:$0xff]
    %v93 = vld [vmem:[#allocation4 + $0x8] sm:$0xff]
    %v94 = vld [vmem:[#allocation4 + $0x10] sm:$0xff]
    %v95 = vld [vmem:[#allocation4 + $0x18] sm:$0xff]
    %v96 = vld [vmem:[#allocation4 + $0x20] sm:$0xff]
    %v97 = vld [vmem:[#allocation4 + $0x28] sm:$0xff]
    %v98 = vld [vmem:[#allocation4 + $0x30] sm:$0xff]
    %v99 = vld [vmem:[#allocation4 + $0x38] sm:$0xff]
    %100 = vst [vmem:[#allocation2] sm:$0xff] %v92
    %101 = vst [vmem:[#allocation2 + $0x8] sm:$0xff] %v93
    %102 = vst [vmem:[#allocation2 + $0x10] sm:$0xff] %v94
    %103 = vst [vmem:[#allocation2 + $0x18] sm:$0xff] %v95
    %104 = vst [vmem:[#allocation2 + $0x20] sm:$0xff] %v96
    %105 = vst [vmem:[#allocation2 + $0x28] sm:$0xff] %v97
    %106 = vst [vmem:[#allocation2 + $0x30] sm:$0xff] %v98
    %107 = vst [vmem:[#allocation2 + $0x38] sm:$0xff] %v99
    %v108 = vld [vmem:[#allocation2] sm:$0xff]
    %v109 = vld [vmem:[#allocation2 + $0x8] sm:$0xff]
    %v110 = vld [vmem:[#allocation2 + $0x10] sm:$0xff]
    %v111 = vld [vmem:[#allocation2 + $0x18] sm:$0xff]
    %v112 = vld [vmem:[#allocation2 + $0x20] sm:$0xff]
    %v113 = vld [vmem:[#allocation2 + $0x28] sm:$0xff]
    %v114 = vld [vmem:[#allocation2 + $0x30] sm:$0xff]
    %v115 = vld [vmem:[#allocation2 + $0x38] sm:$0xff]
    %v116 = vld [vmem:[#allocation7] sm:$0xff]
    %v117 = vld [vmem:[#allocation7 + $0x8] sm:$0xff]
    %v118 = vld [vmem:[#allocation7 + $0x10] sm:$0xff]
    %v119 = vld [vmem:[#allocation7 + $0x18] sm:$0xff]
    %v120 = vld [vmem:[#allocation7 + $0x20] sm:$0xff]
    %v121 = vld [vmem:[#allocation7 + $0x28] sm:$0xff]
    %v122 = vld [vmem:[#allocation7 + $0x30] sm:$0xff]
    %v123 = vld [vmem:[#allocation7 + $0x38] sm:$0xff]
    %v124 = vld [vmem:[#allocation7 + $0x40] sm:$0xff]
    %v125 = vld [vmem:[#allocation7 + $0x48] sm:$0xff]
    %v126 = vld [vmem:[#allocation7 + $0x50] sm:$0xff]
    %v127 = vld [vmem:[#allocation7 + $0x58] sm:$0xff]
    %v128 = vld [vmem:[#allocation7 + $0x60] sm:$0xff]
    %v129 = vld [vmem:[#allocation7 + $0x68] sm:$0xff]
    %v130 = vld [vmem:[#allocation7 + $0x70] sm:$0xff]
    %v131 = vld [vmem:[#allocation7 + $0x78] sm:$0xff]
    %v132 = vld [vmem:[#allocation7 + $0x80] sm:$0xff]
    %v133 = vld [vmem:[#allocation7 + $0x88] sm:$0xff]
    %v134 = vld [vmem:[#allocation7 + $0x90] sm:$0xff]
    %v135 = vld [vmem:[#allocation7 + $0x98] sm:$0xff]
    %v136 = vld [vmem:[#allocation7 + $0xa0] sm:$0xff]
    %v137 = vld [vmem:[#allocation7 + $0xa8] sm:$0xff]
    %v138 = vld [vmem:[#allocation7 + $0xb0] sm:$0xff]
    %v139 = vld [vmem:[#allocation7 + $0xb8] sm:$0xff]
    %v140 = vld [vmem:[#allocation7 + $0xc0] sm:$0xff]
    %v141 = vld [vmem:[#allocation7 + $0xc8] sm:$0xff]
    %v142 = vld [vmem:[#allocation7 + $0xd0] sm:$0xff]
    %v143 = vld [vmem:[#allocation7 + $0xd8] sm:$0xff]
    %v144 = vld [vmem:[#allocation7 + $0xe0] sm:$0xff]
    %v145 = vld [vmem:[#allocation7 + $0xe8] sm:$0xff]
    %v146 = vld [vmem:[#allocation7 + $0xf0] sm:$0xff]
    %v147 = vld [vmem:[#allocation7 + $0xf8] sm:$0xff]
    %v148 = vld [vmem:[#allocation7 + $0x100] sm:$0xff]
    %v149 = vld [vmem:[#allocation7 + $0x108] sm:$0xff]
    %v150 = vld [vmem:[#allocation7 + $0x110] sm:$0xff]
    %v151 = vld [vmem:[#allocation7 + $0x118] sm:$0xff]
    %v152 = vld [vmem:[#allocation7 + $0x120] sm:$0xff]
    %v153 = vld [vmem:[#allocation7 + $0x128] sm:$0xff]
    %v154 = vld [vmem:[#allocation7 + $0x130] sm:$0xff]
    %v155 = vld [vmem:[#allocation7 + $0x138] sm:$0xff]
    %v156 = vld [vmem:[#allocation7 + $0x140] sm:$0xff]
    %v157 = vld [vmem:[#allocation7 + $0x148] sm:$0xff]
    %v158 = vld [vmem:[#allocation7 + $0x150] sm:$0xff]
    %v159 = vld [vmem:[#allocation7 + $0x158] sm:$0xff]
    %v160 = vld [vmem:[#allocation7 + $0x160] sm:$0xff]
    %v161 = vld [vmem:[#allocation7 + $0x168] sm:$0xff]
    %v162 = vld [vmem:[#allocation7 + $0x170] sm:$0xff]
    %v163 = vld [vmem:[#allocation7 + $0x178] sm:$0xff]
    %v164 = vld [vmem:[#allocation7 + $0x180] sm:$0xff]
    %v165 = vld [vmem:[#allocation7 + $0x188] sm:$0xff]
    %v166 = vld [vmem:[#allocation7 + $0x190] sm:$0xff]
    %v167 = vld [vmem:[#allocation7 + $0x198] sm:$0xff]
    %v168 = vld [vmem:[#allocation7 + $0x1a0] sm:$0xff]
    %v169 = vld [vmem:[#allocation7 + $0x1a8] sm:$0xff]
    %v170 = vld [vmem:[#allocation7 + $0x1b0] sm:$0xff]
    %v171 = vld [vmem:[#allocation7 + $0x1b8] sm:$0xff]
    %v172 = vld [vmem:[#allocation7 + $0x1c0] sm:$0xff]
    %v173 = vld [vmem:[#allocation7 + $0x1c8] sm:$0xff]
    %v174 = vld [vmem:[#allocation7 + $0x1d0] sm:$0xff]
    %v175 = vld [vmem:[#allocation7 + $0x1d8] sm:$0xff]
    %v176 = vld [vmem:[#allocation7 + $0x1e0] sm:$0xff]
    %v177 = vld [vmem:[#allocation7 + $0x1e8] sm:$0xff]
    %v178 = vld [vmem:[#allocation7 + $0x1f0] sm:$0xff]
    %v179 = vld [vmem:[#allocation7 + $0x1f8] sm:$0xff]
    %v180 = vld [vmem:[#allocation10] sm:$0xf]
    %v182 = vlaneseq
    %v183 = vshrl.u32 %v182, 7
    %v184 = vsub.s32 0, %v183
    %v185 = vrot.slane %v180, %v184
    %v186 = vlaneseq
    %v187 = vshrl.u32 %v186, 7
    %v188 = vsub.s32 1, %v187
    %v189 = vrot.slane %v180, %v188
    %v190 = vlaneseq
    %v191 = vshrl.u32 %v190, 7
    %v192 = vsub.s32 2, %v191
    %v193 = vrot.slane %v180, %v192
    %v194 = vlaneseq
    %v195 = vshrl.u32 %v194, 7
    %v196 = vsub.s32 3, %v195
    %v197 = vrot.slane %v180, %v196
    %202 = vmatprep.subr.mxu0 %v117
    %203 = vmatpush1.msra.mxu0 %v116
    %204 = vmatprep.subr.mxu0 %v121
    %205 = vmatpush1.msra.mxu0 %v120
    %206 = vmatprep.subr.mxu0 %v125
    %207 = vmatpush1.msra.mxu0 %v124
    %208 = vmatprep.subr.mxu0 %v129
    %209 = vmatpush1.msra.mxu0 %v128
    %210 = vmatprep.subr.mxu0 %v133
    %211 = vmatpush1.msra.mxu0 %v132
    %212 = vmatprep.subr.mxu0 %v137
    %213 = vmatpush1.msra.mxu0 %v136
    %214 = vmatprep.subr.mxu0 %v141
    %215 = vmatpush1.msra.mxu0 %v140
    %216 = vmatprep.subr.mxu0 %v145
    %217 = vmatpush1.msra.mxu0 %v144
    %218 = vmatprep.subr.mxu0 %v149
    %219 = vmatpush1.msra.mxu0 %v148
    %220 = vmatprep.subr.mxu0 %v153
    %221 = vmatpush1.msra.mxu0 %v152
    %222 = vmatprep.subr.mxu0 %v157
    %223 = vmatpush1.msra.mxu0 %v156
    %224 = vmatprep.subr.mxu0 %v161
    %225 = vmatpush1.msra.mxu0 %v160
    %226 = vmatprep.subr.mxu0 %v165
    %227 = vmatpush1.msra.mxu0 %v164
    %228 = vmatprep.subr.mxu0 %v169
    %229 = vmatpush1.msra.mxu0 %v168
    %230 = vmatprep.subr.mxu0 %v173
    %231 = vmatpush1.msra.mxu0 %v172
    %232 = vmatprep.subr.mxu0 %v177
    %233 = vmatpush1.msra.mxu0 %v176
    %234 = vmatprep.subr.mxu0 0.0
    %235 = vmatpush1.msra.mxu0 0.0
    %236 = vmatprep.subr.mxu0 0.0
    %237 = vmatpush1.msra.mxu0 0.0
    %238 = vmatprep.subr.mxu0 0.0
    %239 = vmatpush1.msra.mxu0 0.0
    %240 = vmatprep.subr.mxu0 0.0
    %241 = vmatpush1.msra.mxu0 0.0
    %242 = vmatprep.subr.mxu0 0.0
    %243 = vmatpush1.msra.mxu0 0.0
    %244 = vmatprep.subr.mxu0 0.0
    %245 = vmatpush1.msra.mxu0 0.0
    %246 = vmatprep.subr.mxu0 0.0
    %247 = vmatpush1.msra.mxu0 0.0
    %248 = vmatprep.subr.mxu0 0.0
    %249 = vmatpush1.msra.mxu0 0.0
    %250 = vmatprep.subr.mxu0 0.0
    %251 = vmatpush1.msra.mxu0 0.0
    %252 = vmatprep.subr.mxu0 0.0
    %253 = vmatpush1.msra.mxu0 0.0
    %254 = vmatprep.subr.mxu0 0.0
    %255 = vmatpush1.msra.mxu0 0.0
    %256 = vmatprep.subr.mxu0 0.0
    %257 = vmatpush1.msra.mxu0 0.0
    %258 = vmatprep.subr.mxu0 0.0
    %259 = vmatpush1.msra.mxu0 0.0
    %260 = vmatprep.subr.mxu0 0.0
    %261 = vmatpush1.msra.mxu0 0.0
    %262 = vmatprep.subr.mxu0 0.0
    %263 = vmatpush1.msra.mxu0 0.0
    %264 = vmatprep.subr.mxu0 0.0
    %265 = vmatpush1.msra.mxu0 0.0
    %266 = vmatprep.mubr.f32.mxu0 0.0
    %267 = vmatmul.mubr.f32.gmra.mrb[0].mxu0 %v108
    %v268 = vpop.f32.mrb[0].mxu0
    %v269 = vadd.f32 %v185, %v268
    %v270 = vpop.f32.mrb[0].mxu0
    %v271 = vadd.f32 %v189, %v270
    %272 = vmatprep.mubr.f32.mxu0 0.0
    %273 = vmatmul.mubr.f32.gmra.mrb[0].mxu0 %v109
    %v274 = vpop.f32.mrb[0].mxu0
    %v275 = vadd.f32 %v185, %v274
    %v276 = vpop.f32.mrb[0].mxu0
    %v277 = vadd.f32 %v189, %v276
    %278 = vmatprep.mubr.f32.mxu0 0.0
    %279 = vmatmul.mubr.f32.gmra.mrb[0].mxu0 %v110
    %v280 = vpop.f32.mrb[0].mxu0
    %v281 = vadd.f32 %v185, %v280
    %v282 = vpop.f32.mrb[0].mxu0
    %v283 = vadd.f32 %v189, %v282
    %284 = vmatprep.mubr.f32.mxu0 0.0
    %285 = vmatmul.mubr.f32.gmra.mrb[0].mxu0 %v111
    %v286 = vpop.f32.mrb[0].mxu0
    %v287 = vadd.f32 %v185, %v286
    %v288 = vpop.f32.mrb[0].mxu0
    %v289 = vadd.f32 %v189, %v288
    %290 = vmatprep.mubr.f32.mxu0 0.0
    %291 = vmatmul.mubr.f32.gmra.mrb[0].mxu0 %v112
    %v292 = vpop.f32.mrb[0].mxu0
    %v293 = vadd.f32 %v185, %v292
    %v294 = vpop.f32.mrb[0].mxu0
    %v295 = vadd.f32 %v189, %v294
    %296 = vmatprep.mubr.f32.mxu0 0.0
    %297 = vmatmul.mubr.f32.gmra.mrb[0].mxu0 %v113
    %v298 = vpop.f32.mrb[0].mxu0
    %v299 = vadd.f32 %v185, %v298
    %v300 = vpop.f32.mrb[0].mxu0
    %v301 = vadd.f32 %v189, %v300
    %302 = vmatprep.mubr.f32.mxu0 0.0
    %303 = vmatmul.mubr.f32.gmra.mrb[0].mxu0 %v114
    %v304 = vpop.f32.mrb[0].mxu0
    %v305 = vadd.f32 %v185, %v304
    %v306 = vpop.f32.mrb[0].mxu0
    %v307 = vadd.f32 %v189, %v306
    %308 = vmatprep.mubr.f32.mxu0 0.0
    %309 = vmatmul.mubr.f32.gmra.mrb[0].mxu0 %v115
    %v310 = vpop.f32.mrb[0].mxu0
    %v311 = vadd.f32 %v185, %v310
    %v312 = vpop.f32.mrb[0].mxu0
    %v313 = vadd.f32 %v189, %v312
    %314 = vdwg.mxu0
    %315 = vmatprep.subr.mxu0 %v119
    %316 = vmatpush1.msra.mxu0 %v118
    %317 = vmatprep.subr.mxu0 %v123
    %318 = vmatpush1.msra.mxu0 %v122
    %319 = vmatprep.subr.mxu0 %v127
    %320 = vmatpush1.msra.mxu0 %v126
    %321 = vmatprep.subr.mxu0 %v131
    %322 = vmatpush1.msra.mxu0 %v130
    %323 = vmatprep.subr.mxu0 %v135
    %324 = vmatpush1.msra.mxu0 %v134
    %325 = vmatprep.subr.mxu0 %v139
    %326 = vmatpush1.msra.mxu0 %v138
    %327 = vmatprep.subr.mxu0 %v143
    %328 = vmatpush1.msra.mxu0 %v142
    %329 = vmatprep.subr.mxu0 %v147
    %330 = vmatpush1.msra.mxu0 %v146
    %331 = vmatprep.subr.mxu0 %v151
    %332 = vmatpush1.msra.mxu0 %v150
    %333 = vmatprep.subr.mxu0 %v155
    %334 = vmatpush1.msra.mxu0 %v154
    %335 = vmatprep.subr.mxu0 %v159
    %336 = vmatpush1.msra.mxu0 %v158
    %337 = vmatprep.subr.mxu0 %v163
    %338 = vmatpush1.msra.mxu0 %v162
    %339 = vmatprep.subr.mxu0 %v167
    %340 = vmatpush1.msra.mxu0 %v166
    %341 = vmatprep.subr.mxu0 %v171
    %342 = vmatpush1.msra.mxu0 %v170
    %343 = vmatprep.subr.mxu0 %v175
    %344 = vmatpush1.msra.mxu0 %v174
    %345 = vmatprep.subr.mxu0 %v179
    %346 = vmatpush1.msra.mxu0 %v178
    %347 = vmatprep.subr.mxu0 0.0
    %348 = vmatpush1.msra.mxu0 0.0
    %349 = vmatprep.subr.mxu0 0.0
    %350 = vmatpush1.msra.mxu0 0.0
    %351 = vmatprep.subr.mxu0 0.0
    %352 = vmatpush1.msra.mxu0 0.0
    %353 = vmatprep.subr.mxu0 0.0
    %354 = vmatpush1.msra.mxu0 0.0
    %355 = vmatprep.subr.mxu0 0.0
    %356 = vmatpush1.msra.mxu0 0.0
    %357 = vmatprep.subr.mxu0 0.0
    %358 = vmatpush1.msra.mxu0 0.0
    %359 = vmatprep.subr.mxu0 0.0
    %360 = vmatpush1.msra.mxu0 0.0
    %361 = vmatprep.subr.mxu0 0.0
    %362 = vmatpush1.msra.mxu0 0.0
    %363 = vmatprep.subr.mxu0 0.0
    %364 = vmatpush1.msra.mxu0 0.0
    %365 = vmatprep.subr.mxu0 0.0
    %366 = vmatpush1.msra.mxu0 0.0
    %367 = vmatprep.subr.mxu0 0.0
    %368 = vmatpush1.msra.mxu0 0.0
    %369 = vmatprep.subr.mxu0 0.0
    %370 = vmatpush1.msra.mxu0 0.0
    %371 = vmatprep.subr.mxu0 0.0
    %372 = vmatpush1.msra.mxu0 0.0
    %373 = vmatprep.subr.mxu0 0.0
    %374 = vmatpush1.msra.mxu0 0.0
    %375 = vmatprep.subr.mxu0 0.0
    %376 = vmatpush1.msra.mxu0 0.0
    %377 = vmatprep.subr.mxu0 0.0
    %378 = vmatpush1.msra.mxu0 0.0
    %379 = vmatprep.mubr.f32.mxu0 0.0
    %380 = vmatmul.mubr.f32.gmra.mrb[0].mxu0 %v108
    %v381 = vpop.f32.mrb[0].mxu0
    %v382 = vadd.f32 %v193, %v381
    %v383 = vpop.f32.mrb[0].mxu0
    %v384 = vadd.f32 %v197, %v383
    %385 = vmatprep.mubr.f32.mxu0 0.0
    %386 = vmatmul.mubr.f32.gmra.mrb[0].mxu0 %v109
    %v387 = vpop.f32.mrb[0].mxu0
    %v388 = vadd.f32 %v193, %v387
    %v389 = vpop.f32.mrb[0].mxu0
    %v390 = vadd.f32 %v197, %v389
    %391 = vmatprep.mubr.f32.mxu0 0.0
    %392 = vmatmul.mubr.f32.gmra.mrb[0].mxu0 %v110
    %v393 = vpop.f32.mrb[0].mxu0
    %v394 = vadd.f32 %v193, %v393
    %v395 = vpop.f32.mrb[0].mxu0
    %v396 = vadd.f32 %v197, %v395
    %397 = vmatprep.mubr.f32.mxu0 0.0
    %398 = vmatmul.mubr.f32.gmra.mrb[0].mxu0 %v111
    %v399 = vpop.f32.mrb[0].mxu0
    %v400 = vadd.f32 %v193, %v399
    %v401 = vpop.f32.mrb[0].mxu0
    %v402 = vadd.f32 %v197, %v401
    %403 = vmatprep.mubr.f32.mxu0 0.0
    %404 = vmatmul.mubr.f32.gmra.mrb[0].mxu0 %v112
    %v405 = vpop.f32.mrb[0].mxu0
    %v406 = vadd.f32 %v193, %v405
    %v407 = vpop.f32.mrb[0].mxu0
    %v408 = vadd.f32 %v197, %v407
    %409 = vmatprep.mubr.f32.mxu0 0.0
    %410 = vmatmul.mubr.f32.gmra.mrb[0].mxu0 %v113
    %v411 = vpop.f32.mrb[0].mxu0
    %v412 = vadd.f32 %v193, %v411
    %v413 = vpop.f32.mrb[0].mxu0
    %v414 = vadd.f32 %v197, %v413
    %415 = vmatprep.mubr.f32.mxu0 0.0
    %416 = vmatmul.mubr.f32.gmra.mrb[0].mxu0 %v114
    %v417 = vpop.f32.mrb[0].mxu0
    %v418 = vadd.f32 %v193, %v417
    %v419 = vpop.f32.mrb[0].mxu0
    %v420 = vadd.f32 %v197, %v419
    %421 = vmatprep.mubr.f32.mxu0 0.0
    %422 = vmatmul.mubr.f32.gmra.mrb[0].mxu0 %v115
    %v423 = vpop.f32.mrb[0].mxu0
    %v424 = vadd.f32 %v193, %v423
    %v425 = vpop.f32.mrb[0].mxu0
    %v426 = vadd.f32 %v197, %v425
    %427 = vdwg.mxu0
    %428 = vst [vmem:[#allocation3] sm:$0xff] %v269
    %429 = vst [vmem:[#allocation3 + $0x8] sm:$0xff] %v271
    %430 = vst [vmem:[#allocation3 + $0x10] sm:$0xff] %v382
    %431 = vst [vmem:[#allocation3 + $0x18] sm:$0xff] %v384
    %432 = vst [vmem:[#allocation3 + $0x20] sm:$0xff] %v275
    %433 = vst [vmem:[#allocation3 + $0x28] sm:$0xff] %v277
    %434 = vst [vmem:[#allocation3 + $0x30] sm:$0xff] %v388
    %435 = vst [vmem:[#allocation3 + $0x38] sm:$0xff] %v390
    %436 = vst [vmem:[#allocation3 + $0x40] sm:$0xff] %v281
    %437 = vst [vmem:[#allocation3 + $0x48] sm:$0xff] %v283
    %438 = vst [vmem:[#allocation3 + $0x50] sm:$0xff] %v394
    %439 = vst [vmem:[#allocation3 + $0x58] sm:$0xff] %v396
    %440 = vst [vmem:[#allocation3 + $0x60] sm:$0xff] %v287
    %441 = vst [vmem:[#allocation3 + $0x68] sm:$0xff] %v289
    %442 = vst [vmem:[#allocation3 + $0x70] sm:$0xff] %v400
    %443 = vst [vmem:[#allocation3 + $0x78] sm:$0xff] %v402
    %444 = vst [vmem:[#allocation3 + $0x80] sm:$0xff] %v293
    %445 = vst [vmem:[#allocation3 + $0x88] sm:$0xff] %v295
    %446 = vst [vmem:[#allocation3 + $0x90] sm:$0xff] %v406
    %447 = vst [vmem:[#allocation3 + $0x98] sm:$0xff] %v408
    %448 = vst [vmem:[#allocation3 + $0xa0] sm:$0xff] %v299
    %449 = vst [vmem:[#allocation3 + $0xa8] sm:$0xff] %v301
    %450 = vst [vmem:[#allocation3 + $0xb0] sm:$0xff] %v412
    %451 = vst [vmem:[#allocation3 + $0xb8] sm:$0xff] %v414
    %452 = vst [vmem:[#allocation3 + $0xc0] sm:$0xff] %v305
    %453 = vst [vmem:[#allocation3 + $0xc8] sm:$0xff] %v307
    %454 = vst [vmem:[#allocation3 + $0xd0] sm:$0xff] %v418
    %455 = vst [vmem:[#allocation3 + $0xd8] sm:$0xff] %v420
    %456 = vst [vmem:[#allocation3 + $0xe0] sm:$0xff] %v311
    %457 = vst [vmem:[#allocation3 + $0xe8] sm:$0xff] %v313
    %458 = vst [vmem:[#allocation3 + $0xf0] sm:$0xff] %v424
    %459 = vst [vmem:[#allocation3 + $0xf8] sm:$0xff] %v426
    %v460 = vld [vmem:[#allocation3] sm:$0xff]
    %v461 = vld [vmem:[#allocation3 + $0x8] sm:$0xff]
    %v462 = vld [vmem:[#allocation3 + $0x10] sm:$0xff]
    %v463 = vld [vmem:[#allocation3 + $0x18] sm:$0xff]
    %v464 = vld [vmem:[#allocation9] sm:$0xff]
    %v465 = vld [vmem:[#allocation9 + $0x8] sm:$0xff]
    %v466 = vld [vmem:[#allocation9 + $0x10] sm:$0xff]
    %v467 = vld [vmem:[#allocation9 + $0x18] sm:$0xff]
    %v468 = vld [vmem:[#allocation9 + $0x20] sm:$0xff]
    %v469 = vld [vmem:[#allocation9 + $0x28] sm:$0xff]
    %v470 = vld [vmem:[#allocation9 + $0x30] sm:$0xff]
    %v471 = vld [vmem:[#allocation9 + $0x38] sm:$0xff]
    %v472 = vld [vmem:[#allocation9 + $0x40] sm:$0xff]
    %v473 = vld [vmem:[#allocation9 + $0x48] sm:$0xff]
    %v474 = vld [vmem:[#allocation9 + $0x50] sm:$0xff]
    %v475 = vld [vmem:[#allocation9 + $0x58] sm:$0xff]
    %v476 = vld [vmem:[#allocation9 + $0x60] sm:$0xff]
    %v477 = vld [vmem:[#allocation9 + $0x68] sm:$0xff]
    %v478 = vld [vmem:[#allocation9 + $0x70] sm:$0xff]
    %v479 = vld [vmem:[#allocation9 + $0x78] sm:$0xff]
    %v480 = vld [vmem:[#allocation9 + $0x80] sm:$0xff]
    %v481 = vld [vmem:[#allocation9 + $0x88] sm:$0xff]
    %v482 = vld [vmem:[#allocation9 + $0x90] sm:$0xff]
    %v483 = vld [vmem:[#allocation9 + $0x98] sm:$0xff]
    %v484 = vld [vmem:[#allocation9 + $0xa0] sm:$0xff]
    %v485 = vld [vmem:[#allocation9 + $0xa8] sm:$0xff]
    %v486 = vld [vmem:[#allocation9 + $0xb0] sm:$0xff]
    %v487 = vld [vmem:[#allocation9 + $0xb8] sm:$0xff]
    %v488 = vld [vmem:[#allocation9 + $0xc0] sm:$0xff]
    %v489 = vld [vmem:[#allocation9 + $0xc8] sm:$0xff]
    %v490 = vld [vmem:[#allocation9 + $0xd0] sm:$0xff]
    %v491 = vld [vmem:[#allocation9 + $0xd8] sm:$0xff]
    %v492 = vld [vmem:[#allocation9 + $0xe0] sm:$0xff]
    %v493 = vld [vmem:[#allocation9 + $0xe8] sm:$0xff]
    %v494 = vld [vmem:[#allocation9 + $0xf0] sm:$0xff]
    %v495 = vld [vmem:[#allocation9 + $0xf8] sm:$0xff]
    %v496 = vld [vmem:[#allocation9 + $0x100] sm:$0xff]
    %v497 = vld [vmem:[#allocation9 + $0x108] sm:$0xff]
    %v498 = vld [vmem:[#allocation9 + $0x110] sm:$0xff]
    %v499 = vld [vmem:[#allocation9 + $0x118] sm:$0xff]
    %v500 = vld [vmem:[#allocation9 + $0x120] sm:$0xff]
    %v501 = vld [vmem:[#allocation9 + $0x128] sm:$0xff]
    %v502 = vld [vmem:[#allocation9 + $0x130] sm:$0xff]
    %v503 = vld [vmem:[#allocation9 + $0x138] sm:$0xff]
    %v504 = vld [vmem:[#allocation9 + $0x140] sm:$0xff]
    %v505 = vld [vmem:[#allocation9 + $0x148] sm:$0xff]
    %v506 = vld [vmem:[#allocation9 + $0x150] sm:$0xff]
    %v507 = vld [vmem:[#allocation9 + $0x158] sm:$0xff]
    %v508 = vld [vmem:[#allocation9 + $0x160] sm:$0xff]
    %v509 = vld [vmem:[#allocation9 + $0x168] sm:$0xff]
    %v510 = vld [vmem:[#allocation9 + $0x170] sm:$0xff]
    %v511 = vld [vmem:[#allocation9 + $0x178] sm:$0xff]
    %v512 = vld [vmem:[#allocation9 + $0x180] sm:$0xff]
    %v513 = vld [vmem:[#allocation9 + $0x188] sm:$0xff]
    %v514 = vld [vmem:[#allocation9 + $0x190] sm:$0xff]
    %v515 = vld [vmem:[#allocation9 + $0x198] sm:$0xff]
    %v516 = vld [vmem:[#allocation9 + $0x1a0] sm:$0xff]
    %v517 = vld [vmem:[#allocation9 + $0x1a8] sm:$0xff]
    %v518 = vld [vmem:[#allocation9 + $0x1b0] sm:$0xff]
    %v519 = vld [vmem:[#allocation9 + $0x1b8] sm:$0xff]
    %v520 = vld [vmem:[#allocation9 + $0x1c0] sm:$0xff]
    %v521 = vld [vmem:[#allocation9 + $0x1c8] sm:$0xff]
    %v522 = vld [vmem:[#allocation9 + $0x1d0] sm:$0xff]
    %v523 = vld [vmem:[#allocation9 + $0x1d8] sm:$0xff]
    %v524 = vld [vmem:[#allocation9 + $0x1e0] sm:$0xff]
    %v525 = vld [vmem:[#allocation9 + $0x1e8] sm:$0xff]
    %v526 = vld [vmem:[#allocation9 + $0x1f0] sm:$0xff]
    %v527 = vld [vmem:[#allocation9 + $0x1f8] sm:$0xff]
    %528 = vmatprep.subr.mxu0 %v465
    %529 = vmatpush1.msra.mxu0 %v464
    %530 = vmatprep.subr.mxu0 %v469
    %531 = vmatpush1.msra.mxu0 %v468
    %532 = vmatprep.subr.mxu0 %v473
    %533 = vmatpush1.msra.mxu0 %v472
    %534 = vmatprep.subr.mxu0 %v477
    %535 = vmatpush1.msra.mxu0 %v476
    %536 = vmatprep.subr.mxu0 %v481
    %537 = vmatpush1.msra.mxu0 %v480
    %538 = vmatprep.subr.mxu0 %v485
    %539 = vmatpush1.msra.mxu0 %v484
    %540 = vmatprep.subr.mxu0 %v489
    %541 = vmatpush1.msra.mxu0 %v488
    %542 = vmatprep.subr.mxu0 %v493
    %543 = vmatpush1.msra.mxu0 %v492
    %544 = vmatprep.subr.mxu0 %v497
    %545 = vmatpush1.msra.mxu0 %v496
    %546 = vmatprep.subr.mxu0 %v501
    %547 = vmatpush1.msra.mxu0 %v500
    %548 = vmatprep.subr.mxu0 %v505
    %549 = vmatpush1.msra.mxu0 %v504
    %550 = vmatprep.subr.mxu0 %v509
    %551 = vmatpush1.msra.mxu0 %v508
    %552 = vmatprep.subr.mxu0 %v513
    %553 = vmatpush1.msra.mxu0 %v512
    %554 = vmatprep.subr.mxu0 %v517
    %555 = vmatpush1.msra.mxu0 %v516
    %556 = vmatprep.subr.mxu0 %v521
    %557 = vmatpush1.msra.mxu0 %v520
    %558 = vmatprep.subr.mxu0 %v525
    %559 = vmatpush1.msra.mxu0 %v524
    %560 = vmatprep.subr.mxu0 0.0
    %561 = vmatpush1.msra.mxu0 0.0
    %562 = vmatprep.subr.mxu0 0.0
    %563 = vmatpush1.msra.mxu0 0.0
    %564 = vmatprep.subr.mxu0 0.0
    %565 = vmatpush1.msra.mxu0 0.0
    %566 = vmatprep.subr.mxu0 0.0
    %567 = vmatpush1.msra.mxu0 0.0
    %568 = vmatprep.subr.mxu0 0.0
    %569 = vmatpush1.msra.mxu0 0.0
    %570 = vmatprep.subr.mxu0 0.0
    %571 = vmatpush1.msra.mxu0 0.0
    %572 = vmatprep.subr.mxu0 0.0
    %573 = vmatpush1.msra.mxu0 0.0
    %574 = vmatprep.subr.mxu0 0.0
    %575 = vmatpush1.msra.mxu0 0.0
    %576 = vmatprep.subr.mxu0 0.0
    %577 = vmatpush1.msra.mxu0 0.0
    %578 = vmatprep.subr.mxu0 0.0
    %579 = vmatpush1.msra.mxu0 0.0
    %580 = vmatprep.subr.mxu0 0.0
    %581 = vmatpush1.msra.mxu0 0.0
    %582 = vmatprep.subr.mxu0 0.0
    %583 = vmatpush1.msra.mxu0 0.0
    %584 = vmatprep.subr.mxu0 0.0
    %585 = vmatpush1.msra.mxu0 0.0
    %586 = vmatprep.subr.mxu0 0.0
    %587 = vmatpush1.msra.mxu0 0.0
    %588 = vmatprep.subr.mxu0 0.0
    %589 = vmatpush1.msra.mxu0 0.0
    %590 = vmatprep.subr.mxu0 0.0
    %591 = vmatpush1.msra.mxu0 0.0
    %592 = vmatprep.mubr.f32.mxu0 0.0
    %593 = vmatmul.mubr.f32.gmra.mrb[0].mxu0 0.0
    %v594 = vpop.f32.mrb[0].mxu0
    %v595 = vadd.f32 0.0, %v594
    %v596 = vpop.f32.mrb[0].mxu0
    %v597 = vadd.f32 0.0, %v596
    %598 = vdwg.mxu0
    %599 = vmatprep.subr.mxu0 %v467
    %600 = vmatpush1.msra.mxu0 %v466
    %601 = vmatprep.subr.mxu0 %v471
    %602 = vmatpush1.msra.mxu0 %v470
    %603 = vmatprep.subr.mxu0 %v475
    %604 = vmatpush1.msra.mxu0 %v474
    %605 = vmatprep.subr.mxu0 %v479
    %606 = vmatpush1.msra.mxu0 %v478
    %607 = vmatprep.subr.mxu0 %v483
    %608 = vmatpush1.msra.mxu0 %v482
    %609 = vmatprep.subr.mxu0 %v487
    %610 = vmatpush1.msra.mxu0 %v486
    %611 = vmatprep.subr.mxu0 %v491
    %612 = vmatpush1.msra.mxu0 %v490
    %613 = vmatprep.subr.mxu0 %v495
    %614 = vmatpush1.msra.mxu0 %v494
    %615 = vmatprep.subr.mxu0 %v499
    %616 = vmatpush1.msra.mxu0 %v498
    %617 = vmatprep.subr.mxu0 %v503
    %618 = vmatpush1.msra.mxu0 %v502
    %619 = vmatprep.subr.mxu0 %v507
    %620 = vmatpush1.msra.mxu0 %v506
    %621 = vmatprep.subr.mxu0 %v511
    %622 = vmatpush1.msra.mxu0 %v510
    %623 = vmatprep.subr.mxu0 %v515
    %624 = vmatpush1.msra.mxu0 %v514
    %625 = vmatprep.subr.mxu0 %v519
    %626 = vmatpush1.msra.mxu0 %v518
    %627 = vmatprep.subr.mxu0 %v523
    %628 = vmatpush1.msra.mxu0 %v522
    %629 = vmatprep.subr.mxu0 %v527
    %630 = vmatpush1.msra.mxu0 %v526
    %631 = vmatprep.subr.mxu0 0.0
    %632 = vmatpush1.msra.mxu0 0.0
    %633 = vmatprep.subr.mxu0 0.0
    %634 = vmatpush1.msra.mxu0 0.0
    %635 = vmatprep.subr.mxu0 0.0
    %636 = vmatpush1.msra.mxu0 0.0
    %637 = vmatprep.subr.mxu0 0.0
    %638 = vmatpush1.msra.mxu0 0.0
    %639 = vmatprep.subr.mxu0 0.0
    %640 = vmatpush1.msra.mxu0 0.0
    %641 = vmatprep.subr.mxu0 0.0
    %642 = vmatpush1.msra.mxu0 0.0
    %643 = vmatprep.subr.mxu0 0.0
    %644 = vmatpush1.msra.mxu0 0.0
    %645 = vmatprep.subr.mxu0 0.0
    %646 = vmatpush1.msra.mxu0 0.0
    %647 = vmatprep.subr.mxu0 0.0
    %648 = vmatpush1.msra.mxu0 0.0
    %649 = vmatprep.subr.mxu0 0.0
    %650 = vmatpush1.msra.mxu0 0.0
    %651 = vmatprep.subr.mxu0 0.0
    %652 = vmatpush1.msra.mxu0 0.0
    %653 = vmatprep.subr.mxu0 0.0
    %654 = vmatpush1.msra.mxu0 0.0
    %655 = vmatprep.subr.mxu0 0.0
    %656 = vmatpush1.msra.mxu0 0.0
    %657 = vmatprep.subr.mxu0 0.0
    %658 = vmatpush1.msra.mxu0 0.0
    %659 = vmatprep.subr.mxu0 0.0
    %660 = vmatpush1.msra.mxu0 0.0
    %661 = vmatprep.subr.mxu0 0.0
    %662 = vmatpush1.msra.mxu0 0.0
    %663 = vmatprep.mubr.f32.mxu0 0.0
    %664 = vmatmul.mubr.f32.gmra.mrb[0].mxu0 0.0
    %v665 = vpop.f32.mrb[0].mxu0
    %v666 = vadd.f32 0.0, %v665
    %v667 = vpop.f32.mrb[0].mxu0
    %v668 = vadd.f32 0.0, %v667
    %669 = vdwg.mxu0
    %v670 = vadd.f32 %v460, %v595
    %v671 = vadd.f32 %v461, %v597
    %v672 = vadd.f32 %v462, %v666
    %v673 = vadd.f32 %v463, %v668
    %v674 = vxor.u32 %v670, 2147483648
    %v675 = vxor.u32 %v671, 2147483648
    %v676 = vxor.u32 %v672, 2147483648
    %v677 = vmul.f32 %v674, 1.442695
    %v678 = vpow.pop %v677
    %v679 = vmul.f32 %v675, 1.442695
    %v680 = vpow.pop %v679
    %v681 = vmul.f32 %v676, 1.442695
    %v682 = vpow.pop %v681
    %v683 = vadd.f32 %v678, 1.0
    %v684 = vadd.f32 %v680, 1.0
    %v685 = vadd.f32 %v682, 1.0
    %v686 = vrcp.pop %v683
    %v687 = vmul.f32 1.0, %v686
    %v688 = vrcp.pop %v684
    %v689 = vmul.f32 1.0, %v688
    %v690 = vrcp.pop %v685
    %v691 = vmul.f32 1.0, %v690
    %v692 = vtanh.pop %v673
    %v693 = vmul.f32 %v689, 0.0
    %v694 = vmul.f32 %v687, %v692
    %v695 = vadd.f32 %v693, %v694
    %v696 = vtanh.pop %v695
    %v697 = vmul.f32 %v691, %v696
    %698 = vst [vmem:[#allocation2] sm:$0xff] %v697
    %v699 = vld [vmem:[#allocation3 + $0x20] sm:$0xff]
    %v700 = vld [vmem:[#allocation3 + $0x28] sm:$0xff]
    %v701 = vld [vmem:[#allocation3 + $0x30] sm:$0xff]
    %v702 = vld [vmem:[#allocation3 + $0x38] sm:$0xff]
    %v703 = vld [vmem:[#allocation9] sm:$0xff]
    %v704 = vld [vmem:[#allocation9 + $0x8] sm:$0xff]
    %v705 = vld [vmem:[#allocation9 + $0x10] sm:$0xff]
    %v706 = vld [vmem:[#allocation9 + $0x18] sm:$0xff]
    %v707 = vld [vmem:[#allocation9 + $0x20] sm:$0xff]
    %v708 = vld [vmem:[#allocation9 + $0x28] sm:$0xff]
    %v709 = vld [vmem:[#allocation9 + $0x30] sm:$0xff]
    %v710 = vld [vmem:[#allocation9 + $0x38] sm:$0xff]
    %v711 = vld [vmem:[#allocation9 + $0x40] sm:$0xff]
    %v712 = vld [vmem:[#allocation9 + $0x48] sm:$0xff]
    %v713 = vld [vmem:[#allocation9 + $0x50] sm:$0xff]
    %v714 = vld [vmem:[#allocation9 + $0x58] sm:$0xff]
    %v715 = vld [vmem:[#allocation9 + $0x60] sm:$0xff]
    %v716 = vld [vmem:[#allocation9 + $0x68] sm:$0xff]
    %v717 = vld [vmem:[#allocation9 + $0x70] sm:$0xff]
    %v718 = vld [vmem:[#allocation9 + $0x78] sm:$0xff]
    %v719 = vld [vmem:[#allocation9 + $0x80] sm:$0xff]
    %v720 = vld [vmem:[#allocation9 + $0x88] sm:$0xff]
    %v721 = vld [vmem:[#allocation9 + $0x90] sm:$0xff]
    %v722 = vld [vmem:[#allocation9 + $0x98] sm:$0xff]
    %v723 = vld [vmem:[#allocation9 + $0xa0] sm:$0xff]
    %v724 = vld [vmem:[#allocation9 + $0xa8] sm:$0xff]
    %v725 = vld [vmem:[#allocation9 + $0xb0] sm:$0xff]
    %v726 = vld [vmem:[#allocation9 + $0xb8] sm:$0xff]
    %v727 = vld [vmem:[#allocation9 + $0xc0] sm:$0xff]
    %v728 = vld [vmem:[#allocation9 + $0xc8] sm:$0xff]
    %v729 = vld [vmem:[#allocation9 + $0xd0] sm:$0xff]
    %v730 = vld [vmem:[#allocation9 + $0xd8] sm:$0xff]
    %v731 = vld [vmem:[#allocation9 + $0xe0] sm:$0xff]
    %v732 = vld [vmem:[#allocation9 + $0xe8] sm:$0xff]
    %v733 = vld [vmem:[#allocation9 + $0xf0] sm:$0xff]
    %v734 = vld [vmem:[#allocation9 + $0xf8] sm:$0xff]
    %v735 = vld [vmem:[#allocation9 + $0x100] sm:$0xff]
    %v736 = vld [vmem:[#allocation9 + $0x108] sm:$0xff]
    %v737 = vld [vmem:[#allocation9 + $0x110] sm:$0xff]
    %v738 = vld [vmem:[#allocation9 + $0x118] sm:$0xff]
    %v739 = vld [vmem:[#allocation9 + $0x120] sm:$0xff]
    %v740 = vld [vmem:[#allocation9 + $0x128] sm:$0xff]
    %v741 = vld [vmem:[#allocation9 + $0x130] sm:$0xff]
    %v742 = vld [vmem:[#allocation9 + $0x138] sm:$0xff]
    %v743 = vld [vmem:[#allocation9 + $0x140] sm:$0xff]
    %v744 = vld [vmem:[#allocation9 + $0x148] sm:$0xff]
    %v745 = vld [vmem:[#allocation9 + $0x150] sm:$0xff]
    %v746 = vld [vmem:[#allocation9 + $0x158] sm:$0xff]
    %v747 = vld [vmem:[#allocation9 + $0x160] sm:$0xff]
    %v748 = vld [vmem:[#allocation9 + $0x168] sm:$0xff]
    %v749 = vld [vmem:[#allocation9 + $0x170] sm:$0xff]
    %v750 = vld [vmem:[#allocation9 + $0x178] sm:$0xff]
    %v751 = vld [vmem:[#allocation9 + $0x180] sm:$0xff]
    %v752 = vld [vmem:[#allocation9 + $0x188] sm:$0xff]
    %v753 = vld [vmem:[#allocation9 + $0x190] sm:$0xff]
    %v754 = vld [vmem:[#allocation9 + $0x198] sm:$0xff]
    %v755 = vld [vmem:[#allocation9 + $0x1a0] sm:$0xff]
    %v756 = vld [vmem:[#allocation9 + $0x1a8] sm:$0xff]
    %v757 = vld [vmem:[#allocation9 + $0x1b0] sm:$0xff]
    %v758 = vld [vmem:[#allocation9 + $0x1b8] sm:$0xff]
    %v759 = vld [vmem:[#allocation9 + $0x1c0] sm:$0xff]
    %v760 = vld [vmem:[#allocation9 + $0x1c8] sm:$0xff]
    %v761 = vld [vmem:[#allocation9 + $0x1d0] sm:$0xff]
    %v762 = vld [vmem:[#allocation9 + $0x1d8] sm:$0xff]
    %v763 = vld [vmem:[#allocation9 + $0x1e0] sm:$0xff]
    %v764 = vld [vmem:[#allocation9 + $0x1e8] sm:$0xff]
    %v765 = vld [vmem:[#allocation9 + $0x1f0] sm:$0xff]
    %v766 = vld [vmem:[#allocation9 + $0x1f8] sm:$0xff]
    %767 = vmatprep.subr.mxu0 %v704
    %768 = vmatpush1.msra.mxu0 %v703
    %769 = vmatprep.subr.mxu0 %v708
    %770 = vmatpush1.msra.mxu0 %v707
    %771 = vmatprep.subr.mxu0 %v712
    %772 = vmatpush1.msra.mxu0 %v711
    %773 = vmatprep.subr.mxu0 %v716
    %774 = vmatpush1.msra.mxu0 %v715
    %775 = vmatprep.subr.mxu0 %v720
    %776 = vmatpush1.msra.mxu0 %v719
    %777 = vmatprep.subr.mxu0 %v724
    %778 = vmatpush1.msra.mxu0 %v723
    %779 = vmatprep.subr.mxu0 %v728
    %780 = vmatpush1.msra.mxu0 %v727
    %781 = vmatprep.subr.mxu0 %v732
    %782 = vmatpush1.msra.mxu0 %v731
    %783 = vmatprep.subr.mxu0 %v736
    %784 = vmatpush1.msra.mxu0 %v735
    %785 = vmatprep.subr.mxu0 %v740
    %786 = vmatpush1.msra.mxu0 %v739
    %787 = vmatprep.subr.mxu0 %v744
    %788 = vmatpush1.msra.mxu0 %v743
    %789 = vmatprep.subr.mxu0 %v748
    %790 = vmatpush1.msra.mxu0 %v747
    %791 = vmatprep.subr.mxu0 %v752
    %792 = vmatpush1.msra.mxu0 %v751
    %793 = vmatprep.subr.mxu0 %v756
    %794 = vmatpush1.msra.mxu0 %v755
    %795 = vmatprep.subr.mxu0 %v760
    %796 = vmatpush1.msra.mxu0 %v759
    %797 = vmatprep.subr.mxu0 %v764
    %798 = vmatpush1.msra.mxu0 %v763
    %799 = vmatprep.subr.mxu0 0.0
    %800 = vmatpush1.msra.mxu0 0.0
    %801 = vmatprep.subr.mxu0 0.0
    %802 = vmatpush1.msra.mxu0 0.0
    %803 = vmatprep.subr.mxu0 0.0
    %804 = vmatpush1.msra.mxu0 0.0
    %805 = vmatprep.subr.mxu0 0.0
    %806 = vmatpush1.msra.mxu0 0.0
    %807 = vmatprep.subr.mxu0 0.0
    %808 = vmatpush1.msra.mxu0 0.0
    %809 = vmatprep.subr.mxu0 0.0
    %810 = vmatpush1.msra.mxu0 0.0
    %811 = vmatprep.subr.mxu0 0.0
    %812 = vmatpush1.msra.mxu0 0.0
    %813 = vmatprep.subr.mxu0 0.0
    %814 = vmatpush1.msra.mxu0 0.0
    %815 = vmatprep.subr.mxu0 0.0
    %816 = vmatpush1.msra.mxu0 0.0
    %817 = vmatprep.subr.mxu0 0.0
    %818 = vmatpush1.msra.mxu0 0.0
    %819 = vmatprep.subr.mxu0 0.0
    %820 = vmatpush1.msra.mxu0 0.0
    %821 = vmatprep.subr.mxu0 0.0
    %822 = vmatpush1.msra.mxu0 0.0
    %823 = vmatprep.subr.mxu0 0.0
    %824 = vmatpush1.msra.mxu0 0.0
    %825 = vmatprep.subr.mxu0 0.0
    %826 = vmatpush1.msra.mxu0 0.0
    %827 = vmatprep.subr.mxu0 0.0
    %828 = vmatpush1.msra.mxu0 0.0
    %829 = vmatprep.subr.mxu0 0.0
    %830 = vmatpush1.msra.mxu0 0.0
    %831 = vmatprep.mubr.f32.mxu0 0.0
    %832 = vmatmul.mubr.f32.gmra.mrb[0].mxu0 %v697
    %v833 = vpop.f32.mrb[0].mxu0
    %v834 = vadd.f32 0.0, %v833
    %v835 = vpop.f32.mrb[0].mxu0
    %v836 = vadd.f32 0.0, %v835
    %837 = vdwg.mxu0
    %838 = vmatprep.subr.mxu0 %v706
    %839 = vmatpush1.msra.mxu0 %v705
    %840 = vmatprep.subr.mxu0 %v710
    %841 = vmatpush1.msra.mxu0 %v709
    %842 = vmatprep.subr.mxu0 %v714
    %843 = vmatpush1.msra.mxu0 %v713
    %844 = vmatprep.subr.mxu0 %v718
    %845 = vmatpush1.msra.mxu0 %v717
    %846 = vmatprep.subr.mxu0 %v722
    %847 = vmatpush1.msra.mxu0 %v721
    %848 = vmatprep.subr.mxu0 %v726
    %849 = vmatpush1.msra.mxu0 %v725
    %850 = vmatprep.subr.mxu0 %v730
    %851 = vmatpush1.msra.mxu0 %v729
    %852 = vmatprep.subr.mxu0 %v734
    %853 = vmatpush1.msra.mxu0 %v733
    %854 = vmatprep.subr.mxu0 %v738
    %855 = vmatpush1.msra.mxu0 %v737
    %856 = vmatprep.subr.mxu0 %v742
    %857 = vmatpush1.msra.mxu0 %v741
    %858 = vmatprep.subr.mxu0 %v746
    %859 = vmatpush1.msra.mxu0 %v745
    %860 = vmatprep.subr.mxu0 %v750
    %861 = vmatpush1.msra.mxu0 %v749
    %862 = vmatprep.subr.mxu0 %v754
    %863 = vmatpush1.msra.mxu0 %v753
    %864 = vmatprep.subr.mxu0 %v758
    %865 = vmatpush1.msra.mxu0 %v757
    %866 = vmatprep.subr.mxu0 %v762
    %867 = vmatpush1.msra.mxu0 %v761
    %868 = vmatprep.subr.mxu0 %v766
    %869 = vmatpush1.msra.mxu0 %v765
    %870 = vmatprep.subr.mxu0 0.0
    %871 = vmatpush1.msra.mxu0 0.0
    %872 = vmatprep.subr.mxu0 0.0
    %873 = vmatpush1.msra.mxu0 0.0
    %874 = vmatprep.subr.mxu0 0.0
    %875 = vmatpush1.msra.mxu0 0.0
    %876 = vmatprep.subr.mxu0 0.0
    %877 = vmatpush1.msra.mxu0 0.0
    %878 = vmatprep.subr.mxu0 0.0
    %879 = vmatpush1.msra.mxu0 0.0
    %880 = vmatprep.subr.mxu0 0.0
    %881 = vmatpush1.msra.mxu0 0.0
    %882 = vmatprep.subr.mxu0 0.0
    %883 = vmatpush1.msra.mxu0 0.0
    %884 = vmatprep.subr.mxu0 0.0
    %885 = vmatpush1.msra.mxu0 0.0
    %886 = vmatprep.subr.mxu0 0.0
    %887 = vmatpush1.msra.mxu0 0.0
    %888 = vmatprep.subr.mxu0 0.0
    %889 = vmatpush1.msra.mxu0 0.0
    %890 = vmatprep.subr.mxu0 0.0
    %891 = vmatpush1.msra.mxu0 0.0
    %892 = vmatprep.subr.mxu0 0.0
    %893 = vmatpush1.msra.mxu0 0.0
    %894 = vmatprep.subr.mxu0 0.0
    %895 = vmatpush1.msra.mxu0 0.0
    %896 = vmatprep.subr.mxu0 0.0
    %897 = vmatpush1.msra.mxu0 0.0
    %898 = vmatprep.subr.mxu0 0.0
    %899 = vmatpush1.msra.mxu0 0.0
    %900 = vmatprep.subr.mxu0 0.0
    %901 = vmatpush1.msra.mxu0 0.0
    %902 = vmatprep.mubr.f32.mxu0 0.0
    %903 = vmatmul.mubr.f32.gmra.mrb[0].mxu0 %v697
    %v904 = vpop.f32.mrb[0].mxu0
    %v905 = vadd.f32 0.0, %v904
    %v906 = vpop.f32.mrb[0].mxu0
    %v907 = vadd.f32 0.0, %v906
    %908 = vdwg.mxu0
    %v909 = vadd.f32 %v699, %v834
    %v910 = vadd.f32 %v700, %v836
    %v911 = vadd.f32 %v701, %v905
    %v912 = vadd.f32 %v702, %v907
    %v913 = vxor.u32 %v909, 2147483648
    %v914 = vxor.u32 %v910, 2147483648
    %v915 = vxor.u32 %v911, 2147483648
    %v916 = vmul.f32 %v913, 1.442695
    %v917 = vpow.pop %v916
    %v918 = vmul.f32 %v914, 1.442695
    %v919 = vpow.pop %v918
    %v920 = vmul.f32 %v915, 1.442695
    %v921 = vpow.pop %v920
    %v922 = vadd.f32 %v917, 1.0
    %v923 = vadd.f32 %v919, 1.0
    %v924 = vadd.f32 %v921, 1.0
    %v925 = vrcp.pop %v922
    %v926 = vmul.f32 1.0, %v925
    %v927 = vrcp.pop %v923
    %v928 = vmul.f32 1.0, %v927
    %v929 = vrcp.pop %v924
    %v930 = vmul.f32 1.0, %v929
    %v931 = vtanh.pop %v912
    %v932 = vmul.f32 %v928, %v695
    %v933 = vmul.f32 %v926, %v931
    %v934 = vadd.f32 %v932, %v933
    %v935 = vtanh.pop %v934
    %v936 = vmul.f32 %v930, %v935
    %937 = vst [vmem:[#allocation2 + $0x8] sm:$0xff] %v936
    %v938 = vld [vmem:[#allocation3 + $0x40] sm:$0xff]
    %v939 = vld [vmem:[#allocation3 + $0x48] sm:$0xff]
    %v940 = vld [vmem:[#allocation3 + $0x50] sm:$0xff]
    %v941 = vld [vmem:[#allocation3 + $0x58] sm:$0xff]
    %v942 = vld [vmem:[#allocation9] sm:$0xff]
    %v943 = vld [vmem:[#allocation9 + $0x8] sm:$0xff]
    %v944 = vld [vmem:[#allocation9 + $0x10] sm:$0xff]
    %v945 = vld [vmem:[#allocation9 + $0x18] sm:$0xff]
    %v946 = vld [vmem:[#allocation9 + $0x20] sm:$0xff]
    %v947 = vld [vmem:[#allocation9 + $0x28] sm:$0xff]
    %v948 = vld [vmem:[#allocation9 + $0x30] sm:$0xff]
    %v949 = vld [vmem:[#allocation9 + $0x38] sm:$0xff]
    %v950 = vld [vmem:[#allocation9 + $0x40] sm:$0xff]
    %v951 = vld [vmem:[#allocation9 + $0x48] sm:$0xff]
    %v952 = vld [vmem:[#allocation9 + $0x50] sm:$0xff]
    %v953 = vld [vmem:[#allocation9 + $0x58] sm:$0xff]
    %v954 = vld [vmem:[#allocation9 + $0x60] sm:$0xff]
    %v955 = vld [vmem:[#allocation9 + $0x68] sm:$0xff]
    %v956 = vld [vmem:[#allocation9 + $0x70] sm:$0xff]
    %v957 = vld [vmem:[#allocation9 + $0x78] sm:$0xff]
    %v958 = vld [vmem:[#allocation9 + $0x80] sm:$0xff]
    %v959 = vld [vmem:[#allocation9 + $0x88] sm:$0xff]
    %v960 = vld [vmem:[#allocation9 + $0x90] sm:$0xff]
    %v961 = vld [vmem:[#allocation9 + $0x98] sm:$0xff]
    %v962 = vld [vmem:[#allocation9 + $0xa0] sm:$0xff]
    %v963 = vld [vmem:[#allocation9 + $0xa8] sm:$0xff]
    %v964 = vld [vmem:[#allocation9 + $0xb0] sm:$0xff]
    %v965 = vld [vmem:[#allocation9 + $0xb8] sm:$0xff]
    %v966 = vld [vmem:[#allocation9 + $0xc0] sm:$0xff]
    %v967 = vld [vmem:[#allocation9 + $0xc8] sm:$0xff]
    %v968 = vld [vmem:[#allocation9 + $0xd0] sm:$0xff]
    %v969 = vld [vmem:[#allocation9 + $0xd8] sm:$0xff]
    %v970 = vld [vmem:[#allocation9 + $0xe0] sm:$0xff]
    %v971 = vld [vmem:[#allocation9 + $0xe8] sm:$0xff]
    %v972 = vld [vmem:[#allocation9 + $0xf0] sm:$0xff]
    %v973 = vld [vmem:[#allocation9 + $0xf8] sm:$0xff]
    %v974 = vld [vmem:[#allocation9 + $0x100] sm:$0xff]
    %v975 = vld [vmem:[#allocation9 + $0x108] sm:$0xff]
    %v976 = vld [vmem:[#allocation9 + $0x110] sm:$0xff]
    %v977 = vld [vmem:[#allocation9 + $0x118] sm:$0xff]
    %v978 = vld [vmem:[#allocation9 + $0x120] sm:$0xff]
    %v979 = vld [vmem:[#allocation9 + $0x128] sm:$0xff]
    %v980 = vld [vmem:[#allocation9 + $0x130] sm:$0xff]
    %v981 = vld [vmem:[#allocation9 + $0x138] sm:$0xff]
    %v982 = vld [vmem:[#allocation9 + $0x140] sm:$0xff]
    %v983 = vld [vmem:[#allocation9 + $0x148] sm:$0xff]
    %v984 = vld [vmem:[#allocation9 + $0x150] sm:$0xff]
    %v985 = vld [vmem:[#allocation9 + $0x158] sm:$0xff]
    %v986 = vld [vmem:[#allocation9 + $0x160] sm:$0xff]
    %v987 = vld [vmem:[#allocation9 + $0x168] sm:$0xff]
    %v988 = vld [vmem:[#allocation9 + $0x170] sm:$0xff]
    %v989 = vld [vmem:[#allocation9 + $0x178] sm:$0xff]
    %v990 = vld [vmem:[#allocation9 + $0x180] sm:$0xff]
    %v991 = vld [vmem:[#allocation9 + $0x188] sm:$0xff]
    %v992 = vld [vmem:[#allocation9 + $0x190] sm:$0xff]
    %v993 = vld [vmem:[#allocation9 + $0x198] sm:$0xff]
    %v994 = vld [vmem:[#allocation9 + $0x1a0] sm:$0xff]
    %v995 = vld [vmem:[#allocation9 + $0x1a8] sm:$0xff]
    %v996 = vld [vmem:[#allocation9 + $0x1b0] sm:$0xff]
    %v997 = vld [vmem:[#allocation9 + $0x1b8] sm:$0xff]
    %v998 = vld [vmem:[#allocation9 + $0x1c0] sm:$0xff]
    %v999 = vld [vmem:[#allocation9 + $0x1c8] sm:$0xff]
    %v1000 = vld [vmem:[#allocation9 + $0x1d0] sm:$0xff]
    %v1001 = vld [vmem:[#allocation9 + $0x1d8] sm:$0xff]
    %v1002 = vld [vmem:[#allocation9 + $0x1e0] sm:$0xff]
    %v1003 = vld [vmem:[#allocation9 + $0x1e8] sm:$0xff]
    %v1004 = vld [vmem:[#allocation9 + $0x1f0] sm:$0xff]
    %v1005 = vld [vmem:[#allocation9 + $0x1f8] sm:$0xff]
    %1006 = vmatprep.subr.mxu0 %v943
    %1007 = vmatpush1.msra.mxu0 %v942
    %1008 = vmatprep.subr.mxu0 %v947
    %1009 = vmatpush1.msra.mxu0 %v946
    %1010 = vmatprep.subr.mxu0 %v951
    %1011 = vmatpush1.msra.mxu0 %v950
    %1012 = vmatprep.subr.mxu0 %v955
    %1013 = vmatpush1.msra.mxu0 %v954
    %1014 = vmatprep.subr.mxu0 %v959
    %1015 = vmatpush1.msra.mxu0 %v958
    %1016 = vmatprep.subr.mxu0 %v963
    %1017 = vmatpush1.msra.mxu0 %v962
    %1018 = vmatprep.subr.mxu0 %v967
    %1019 = vmatpush1.msra.mxu0 %v966
    %1020 = vmatprep.subr.mxu0 %v971
    %1021 = vmatpush1.msra.mxu0 %v970
    %1022 = vmatprep.subr.mxu0 %v975
    %1023 = vmatpush1.msra.mxu0 %v974
    %1024 = vmatprep.subr.mxu0 %v979
    %1025 = vmatpush1.msra.mxu0 %v978
    %1026 = vmatprep.subr.mxu0 %v983
    %1027 = vmatpush1.msra.mxu0 %v982
    %1028 = vmatprep.subr.mxu0 %v987
    %1029 = vmatpush1.msra.mxu0 %v986
    %1030 = vmatprep.subr.mxu0 %v991
    %1031 = vmatpush1.msra.mxu0 %v990
    %1032 = vmatprep.subr.mxu0 %v995
    %1033 = vmatpush1.msra.mxu0 %v994
    %1034 = vmatprep.subr.mxu0 %v999
    %1035 = vmatpush1.msra.mxu0 %v998
    %1036 = vmatprep.subr.mxu0 %v1003
    %1037 = vmatpush1.msra.mxu0 %v1002
    %1038 = vmatprep.subr.mxu0 0.0
    %1039 = vmatpush1.msra.mxu0 0.0
    %1040 = vmatprep.subr.mxu0 0.0
    %1041 = vmatpush1.msra.mxu0 0.0
    %1042 = vmatprep.subr.mxu0 0.0
    %1043 = vmatpush1.msra.mxu0 0.0
    %1044 = vmatprep.subr.mxu0 0.0
    %1045 = vmatpush1.msra.mxu0 0.0
    %1046 = vmatprep.subr.mxu0 0.0
    %1047 = vmatpush1.msra.mxu0 0.0
    %1048 = vmatprep.subr.mxu0 0.0
    %1049 = vmatpush1.msra.mxu0 0.0
    %1050 = vmatprep.subr.mxu0 0.0
    %1051 = vmatpush1.msra.mxu0 0.0
    %1052 = vmatprep.subr.mxu0 0.0
    %1053 = vmatpush1.msra.mxu0 0.0
    %1054 = vmatprep.subr.mxu0 0.0
    %1055 = vmatpush1.msra.mxu0 0.0
    %1056 = vmatprep.subr.mxu0 0.0
    %1057 = vmatpush1.msra.mxu0 0.0
    %1058 = vmatprep.subr.mxu0 0.0
    %1059 = vmatpush1.msra.mxu0 0.0
    %1060 = vmatprep.subr.mxu0 0.0
    %1061 = vmatpush1.msra.mxu0 0.0
    %1062 = vmatprep.subr.mxu0 0.0
    %1063 = vmatpush1.msra.mxu0 0.0
    %1064 = vmatprep.subr.mxu0 0.0
    %1065 = vmatpush1.msra.mxu0 0.0
    %1066 = vmatprep.subr.mxu0 0.0
    %1067 = vmatpush1.msra.mxu0 0.0
    %1068 = vmatprep.subr.mxu0 0.0
    %1069 = vmatpush1.msra.mxu0 0.0
    %1070 = vmatprep.mubr.f32.mxu0 0.0
    %1071 = vmatmul.mubr.f32.gmra.mrb[0].mxu0 %v936
    %v1072 = vpop.f32.mrb[0].mxu0
    %v1073 = vadd.f32 0.0, %v1072
    %v1074 = vpop.f32.mrb[0].mxu0
    %v1075 = vadd.f32 0.0, %v1074
    %1076 = vdwg.mxu0
    %1077 = vmatprep.subr.mxu0 %v945
    %1078 = vmatpush1.msra.mxu0 %v944
    %1079 = vmatprep.subr.mxu0 %v949
    %1080 = vmatpush1.msra.mxu0 %v948
    %1081 = vmatprep.subr.mxu0 %v953
    %1082 = vmatpush1.msra.mxu0 %v952
    %1083 = vmatprep.subr.mxu0 %v957
    %1084 = vmatpush1.msra.mxu0 %v956
    %1085 = vmatprep.subr.mxu0 %v961
    %1086 = vmatpush1.msra.mxu0 %v960
    %1087 = vmatprep.subr.mxu0 %v965
    %1088 = vmatpush1.msra.mxu0 %v964
    %1089 = vmatprep.subr.mxu0 %v969
    %1090 = vmatpush1.msra.mxu0 %v968
    %1091 = vmatprep.subr.mxu0 %v973
    %1092 = vmatpush1.msra.mxu0 %v972
    %1093 = vmatprep.subr.mxu0 %v977
    %1094 = vmatpush1.msra.mxu0 %v976
    %1095 = vmatprep.subr.mxu0 %v981
    %1096 = vmatpush1.msra.mxu0 %v980
    %1097 = vmatprep.subr.mxu0 %v985
    %1098 = vmatpush1.msra.mxu0 %v984
    %1099 = vmatprep.subr.mxu0 %v989
    %1100 = vmatpush1.msra.mxu0 %v988
    %1101 = vmatprep.subr.mxu0 %v993
    %1102 = vmatpush1.msra.mxu0 %v992
    %1103 = vmatprep.subr.mxu0 %v997
    %1104 = vmatpush1.msra.mxu0 %v996
    %1105 = vmatprep.subr.mxu0 %v1001
    %1106 = vmatpush1.msra.mxu0 %v1000
    %1107 = vmatprep.subr.mxu0 %v1005
    %1108 = vmatpush1.msra.mxu0 %v1004
    %1109 = vmatprep.subr.mxu0 0.0
    %1110 = vmatpush1.msra.mxu0 0.0
    %1111 = vmatprep.subr.mxu0 0.0
    %1112 = vmatpush1.msra.mxu0 0.0
    %1113 = vmatprep.subr.mxu0 0.0
    %1114 = vmatpush1.msra.mxu0 0.0
    %1115 = vmatprep.subr.mxu0 0.0
    %1116 = vmatpush1.msra.mxu0 0.0
    %1117 = vmatprep.subr.mxu0 0.0
    %1118 = vmatpush1.msra.mxu0 0.0
    %1119 = vmatprep.subr.mxu0 0.0
    %1120 = vmatpush1.msra.mxu0 0.0
    %1121 = vmatprep.subr.mxu0 0.0
    %1122 = vmatpush1.msra.mxu0 0.0
    %1123 = vmatprep.subr.mxu0 0.0
    %1124 = vmatpush1.msra.mxu0 0.0
    %1125 = vmatprep.subr.mxu0 0.0
    %1126 = vmatpush1.msra.mxu0 0.0
    %1127 = vmatprep.subr.mxu0 0.0
    %1128 = vmatpush1.msra.mxu0 0.0
    %1129 = vmatprep.subr.mxu0 0.0
    %1130 = vmatpush1.msra.mxu0 0.0
    %1131 = vmatprep.subr.mxu0 0.0
    %1132 = vmatpush1.msra.mxu0 0.0
    %1133 = vmatprep.subr.mxu0 0.0
    %1134 = vmatpush1.msra.mxu0 0.0
    %1135 = vmatprep.subr.mxu0 0.0
    %1136 = vmatpush1.msra.mxu0 0.0
    %1137 = vmatprep.subr.mxu0 0.0
    %1138 = vmatpush1.msra.mxu0 0.0
    %1139 = vmatprep.subr.mxu0 0.0
    %1140 = vmatpush1.msra.mxu0 0.0
    %1141 = vmatprep.mubr.f32.mxu0 0.0
    %1142 = vmatmul.mubr.f32.gmra.mrb[0].mxu0 %v936
    %v1143 = vpop.f32.mrb[0].mxu0
    %v1144 = vadd.f32 0.0, %v1143
    %v1145 = vpop.f32.mrb[0].mxu0
    %v1146 = vadd.f32 0.0, %v1145
    %1147 = vdwg.mxu0
    %v1148 = vadd.f32 %v938, %v1073
    %v1149 = vadd.f32 %v939, %v1075
    %v1150 = vadd.f32 %v940, %v1144
    %v1151 = vadd.f32 %v941, %v1146
    %v1152 = vxor.u32 %v1148, 2147483648
    %v1153 = vxor.u32 %v1149, 2147483648
    %v1154 = vxor.u32 %v1150, 2147483648
    %v1155 = vmul.f32 %v1152, 1.442695
    %v1156 = vpow.pop %v1155
    %v1157 = vmul.f32 %v1153, 1.442695
    %v1158 = vpow.pop %v1157
    %v1159 = vmul.f32 %v1154, 1.442695
    %v1160 = vpow.pop %v1159
    %v1161 = vadd.f32 %v1156, 1.0
    %v1162 = vadd.f32 %v1158, 1.0
    %v1163 = vadd.f32 %v1160, 1.0
    %v1164 = vrcp.pop %v1161
    %v1165 = vmul.f32 1.0, %v1164
    %v1166 = vrcp.pop %v1162
    %v1167 = vmul.f32 1.0, %v1166
    %v1168 = vrcp.pop %v1163
    %v1169 = vmul.f32 1.0, %v1168
    %v1170 = vtanh.pop %v1151
    %v1171 = vmul.f32 %v1167, %v934
    %v1172 = vmul.f32 %v1165, %v1170
    %v1173 = vadd.f32 %v1171, %v1172
    %v1174 = vtanh.pop %v1173
    %v1175 = vmul.f32 %v1169, %v1174
    %1176 = vst [vmem:[#allocation2 + $0x10] sm:$0xff] %v1175
    %v1177 = vld [vmem:[#allocation3 + $0x60] sm:$0xff]
    %v1178 = vld [vmem:[#allocation3 + $0x68] sm:$0xff]
    %v1179 = vld [vmem:[#allocation3 + $0x70] sm:$0xff]
    %v1180 = vld [vmem:[#allocation3 + $0x78] sm:$0xff]
    %v1181 = vld [vmem:[#allocation9] sm:$0xff]
    %v1182 = vld [vmem:[#allocation9 + $0x8] sm:$0xff]
    %v1183 = vld [vmem:[#allocation9 + $0x10] sm:$0xff]
    %v1184 = vld [vmem:[#allocation9 + $0x18] sm:$0xff]
    %v1185 = vld [vmem:[#allocation9 + $0x20] sm:$0xff]
    %v1186 = vld [vmem:[#allocation9 + $0x28] sm:$0xff]
    %v1187 = vld [vmem:[#allocation9 + $0x30] sm:$0xff]
    %v1188 = vld [vmem:[#allocation9 + $0x38] sm:$0xff]
    %v1189 = vld [vmem:[#allocation9 + $0x40] sm:$0xff]
    %v1190 = vld [vmem:[#allocation9 + $0x48] sm:$0xff]
    %v1191 = vld [vmem:[#allocation9 + $0x50] sm:$0xff]
    %v1192 = vld [vmem:[#allocation9 + $0x58] sm:$0xff]
    %v1193 = vld [vmem:[#allocation9 + $0x60] sm:$0xff]
    %v1194 = vld [vmem:[#allocation9 + $0x68] sm:$0xff]
    %v1195 = vld [vmem:[#allocation9 + $0x70] sm:$0xff]
    %v1196 = vld [vmem:[#allocation9 + $0x78] sm:$0xff]
    %v1197 = vld [vmem:[#allocation9 + $0x80] sm:$0xff]
    %v1198 = vld [vmem:[#allocation9 + $0x88] sm:$0xff]
    %v1199 = vld [vmem:[#allocation9 + $0x90] sm:$0xff]
    %v1200 = vld [vmem:[#allocation9 + $0x98] sm:$0xff]
    %v1201 = vld [vmem:[#allocation9 + $0xa0] sm:$0xff]
    %v1202 = vld [vmem:[#allocation9 + $0xa8] sm:$0xff]
    %v1203 = vld [vmem:[#allocation9 + $0xb0] sm:$0xff]
    %v1204 = vld [vmem:[#allocation9 + $0xb8] sm:$0xff]
    %v1205 = vld [vmem:[#allocation9 + $0xc0] sm:$0xff]
    %v1206 = vld [vmem:[#allocation9 + $0xc8] sm:$0xff]
    %v1207 = vld [vmem:[#allocation9 + $0xd0] sm:$0xff]
    %v1208 = vld [vmem:[#allocation9 + $0xd8] sm:$0xff]
    %v1209 = vld [vmem:[#allocation9 + $0xe0] sm:$0xff]
    %v1210 = vld [vmem:[#allocation9 + $0xe8] sm:$0xff]
    %v1211 = vld [vmem:[#allocation9 + $0xf0] sm:$0xff]
    %v1212 = vld [vmem:[#allocation9 + $0xf8] sm:$0xff]
    %v1213 = vld [vmem:[#allocation9 + $0x100] sm:$0xff]
    %v1214 = vld [vmem:[#allocation9 + $0x108] sm:$0xff]
    %v1215 = vld [vmem:[#allocation9 + $0x110] sm:$0xff]
    %v1216 = vld [vmem:[#allocation9 + $0x118] sm:$0xff]
    %v1217 = vld [vmem:[#allocation9 + $0x120] sm:$0xff]
    %v1218 = vld [vmem:[#allocation9 + $0x128] sm:$0xff]
    %v1219 = vld [vmem:[#allocation9 + $0x130] sm:$0xff]
    %v1220 = vld [vmem:[#allocation9 + $0x138] sm:$0xff]
    %v1221 = vld [vmem:[#allocation9 + $0x140] sm:$0xff]
    %v1222 = vld [vmem:[#allocation9 + $0x148] sm:$0xff]
    %v1223 = vld [vmem:[#allocation9 + $0x150] sm:$0xff]
    %v1224 = vld [vmem:[#allocation9 + $0x158] sm:$0xff]
    %v1225 = vld [vmem:[#allocation9 + $0x160] sm:$0xff]
    %v1226 = vld [vmem:[#allocation9 + $0x168] sm:$0xff]
    %v1227 = vld [vmem:[#allocation9 + $0x170] sm:$0xff]
    %v1228 = vld [vmem:[#allocation9 + $0x178] sm:$0xff]
    %v1229 = vld [vmem:[#allocation9 + $0x180] sm:$0xff]
    %v1230 = vld [vmem:[#allocation9 + $0x188] sm:$0xff]
    %v1231 = vld [vmem:[#allocation9 + $0x190] sm:$0xff]
    %v1232 = vld [vmem:[#allocation9 + $0x198] sm:$0xff]
    %v1233 = vld [vmem:[#allocation9 + $0x1a0] sm:$0xff]
    %v1234 = vld [vmem:[#allocation9 + $0x1a8] sm:$0xff]
    %v1235 = vld [vmem:[#allocation9 + $0x1b0] sm:$0xff]
    %v1236 = vld [vmem:[#allocation9 + $0x1b8] sm:$0xff]
    %v1237 = vld [vmem:[#allocation9 + $0x1c0] sm:$0xff]
    %v1238 = vld [vmem:[#allocation9 + $0x1c8] sm:$0xff]
    %v1239 = vld [vmem:[#allocation9 + $0x1d0] sm:$0xff]
    %v1240 = vld [vmem:[#allocation9 + $0x1d8] sm:$0xff]
    %v1241 = vld [vmem:[#allocation9 + $0x1e0] sm:$0xff]
    %v1242 = vld [vmem:[#allocation9 + $0x1e8] sm:$0xff]
    %v1243 = vld [vmem:[#allocation9 + $0x1f0] sm:$0xff]
    %v1244 = vld [vmem:[#allocation9 + $0x1f8] sm:$0xff]
    %1245 = vmatprep.subr.mxu0 %v1182
    %1246 = vmatpush1.msra.mxu0 %v1181
    %1247 = vmatprep.subr.mxu0 %v1186
    %1248 = vmatpush1.msra.mxu0 %v1185
    %1249 = vmatprep.subr.mxu0 %v1190
    %1250 = vmatpush1.msra.mxu0 %v1189
    %1251 = vmatprep.subr.mxu0 %v1194
    %1252 = vmatpush1.msra.mxu0 %v1193
    %1253 = vmatprep.subr.mxu0 %v1198
    %1254 = vmatpush1.msra.mxu0 %v1197
    %1255 = vmatprep.subr.mxu0 %v1202
    %1256 = vmatpush1.msra.mxu0 %v1201
    %1257 = vmatprep.subr.mxu0 %v1206
    %1258 = vmatpush1.msra.mxu0 %v1205
    %1259 = vmatprep.subr.mxu0 %v1210
    %1260 = vmatpush1.msra.mxu0 %v1209
    %1261 = vmatprep.subr.mxu0 %v1214
    %1262 = vmatpush1.msra.mxu0 %v1213
    %1263 = vmatprep.subr.mxu0 %v1218
    %1264 = vmatpush1.msra.mxu0 %v1217
    %1265 = vmatprep.subr.mxu0 %v1222
    %1266 = vmatpush1.msra.mxu0 %v1221
    %1267 = vmatprep.subr.mxu0 %v1226
    %1268 = vmatpush1.msra.mxu0 %v1225
    %1269 = vmatprep.subr.mxu0 %v1230
    %1270 = vmatpush1.msra.mxu0 %v1229
    %1271 = vmatprep.subr.mxu0 %v1234
    %1272 = vmatpush1.msra.mxu0 %v1233
    %1273 = vmatprep.subr.mxu0 %v1238
    %1274 = vmatpush1.msra.mxu0 %v1237
    %1275 = vmatprep.subr.mxu0 %v1242
    %1276 = vmatpush1.msra.mxu0 %v1241
    %1277 = vmatprep.subr.mxu0 0.0
    %1278 = vmatpush1.msra.mxu0 0.0
    %1279 = vmatprep.subr.mxu0 0.0
    %1280 = vmatpush1.msra.mxu0 0.0
    %1281 = vmatprep.subr.mxu0 0.0
    %1282 = vmatpush1.msra.mxu0 0.0
    %1283 = vmatprep.subr.mxu0 0.0
    %1284 = vmatpush1.msra.mxu0 0.0
    %1285 = vmatprep.subr.mxu0 0.0
    %1286 = vmatpush1.msra.mxu0 0.0
    %1287 = vmatprep.subr.mxu0 0.0
    %1288 = vmatpush1.msra.mxu0 0.0
    %1289 = vmatprep.subr.mxu0 0.0
    %1290 = vmatpush1.msra.mxu0 0.0
    %1291 = vmatprep.subr.mxu0 0.0
    %1292 = vmatpush1.msra.mxu0 0.0
    %1293 = vmatprep.subr.mxu0 0.0
    %1294 = vmatpush1.msra.mxu0 0.0
    %1295 = vmatprep.subr.mxu0 0.0
    %1296 = vmatpush1.msra.mxu0 0.0
    %1297 = vmatprep.subr.mxu0 0.0
    %1298 = vmatpush1.msra.mxu0 0.0
    %1299 = vmatprep.subr.mxu0 0.0
    %1300 = vmatpush1.msra.mxu0 0.0
    %1301 = vmatprep.subr.mxu0 0.0
    %1302 = vmatpush1.msra.mxu0 0.0
    %1303 = vmatprep.subr.mxu0 0.0
    %1304 = vmatpush1.msra.mxu0 0.0
    %1305 = vmatprep.subr.mxu0 0.0
    %1306 = vmatpush1.msra.mxu0 0.0
    %1307 = vmatprep.subr.mxu0 0.0
    %1308 = vmatpush1.msra.mxu0 0.0
    %1309 = vmatprep.mubr.f32.mxu0 0.0
    %1310 = vmatmul.mubr.f32.gmra.mrb[0].mxu0 %v1175
    %v1311 = vpop.f32.mrb[0].mxu0
    %v1312 = vadd.f32 0.0, %v1311
    %v1313 = vpop.f32.mrb[0].mxu0
    %v1314 = vadd.f32 0.0, %v1313
    %1315 = vdwg.mxu0
    %1316 = vmatprep.subr.mxu0 %v1184
    %1317 = vmatpush1.msra.mxu0 %v1183
    %1318 = vmatprep.subr.mxu0 %v1188
    %1319 = vmatpush1.msra.mxu0 %v1187
    %1320 = vmatprep.subr.mxu0 %v1192
    %1321 = vmatpush1.msra.mxu0 %v1191
    %1322 = vmatprep.subr.mxu0 %v1196
    %1323 = vmatpush1.msra.mxu0 %v1195
    %1324 = vmatprep.subr.mxu0 %v1200
    %1325 = vmatpush1.msra.mxu0 %v1199
    %1326 = vmatprep.subr.mxu0 %v1204
    %1327 = vmatpush1.msra.mxu0 %v1203
    %1328 = vmatprep.subr.mxu0 %v1208
    %1329 = vmatpush1.msra.mxu0 %v1207
    %1330 = vmatprep.subr.mxu0 %v1212
    %1331 = vmatpush1.msra.mxu0 %v1211
    %1332 = vmatprep.subr.mxu0 %v1216
    %1333 = vmatpush1.msra.mxu0 %v1215
    %1334 = vmatprep.subr.mxu0 %v1220
    %1335 = vmatpush1.msra.mxu0 %v1219
    %1336 = vmatprep.subr.mxu0 %v1224
    %1337 = vmatpush1.msra.mxu0 %v1223
    %1338 = vmatprep.subr.mxu0 %v1228
    %1339 = vmatpush1.msra.mxu0 %v1227
    %1340 = vmatprep.subr.mxu0 %v1232
    %1341 = vmatpush1.msra.mxu0 %v1231
    %1342 = vmatprep.subr.mxu0 %v1236
    %1343 = vmatpush1.msra.mxu0 %v1235
    %1344 = vmatprep.subr.mxu0 %v1240
    %1345 = vmatpush1.msra.mxu0 %v1239
    %1346 = vmatprep.subr.mxu0 %v1244
    %1347 = vmatpush1.msra.mxu0 %v1243
    %1348 = vmatprep.subr.mxu0 0.0
    %1349 = vmatpush1.msra.mxu0 0.0
    %1350 = vmatprep.subr.mxu0 0.0
    %1351 = vmatpush1.msra.mxu0 0.0
    %1352 = vmatprep.subr.mxu0 0.0
    %1353 = vmatpush1.msra.mxu0 0.0
    %1354 = vmatprep.subr.mxu0 0.0
    %1355 = vmatpush1.msra.mxu0 0.0
    %1356 = vmatprep.subr.mxu0 0.0
    %1357 = vmatpush1.msra.mxu0 0.0
    %1358 = vmatprep.subr.mxu0 0.0
    %1359 = vmatpush1.msra.mxu0 0.0
    %1360 = vmatprep.subr.mxu0 0.0
    %1361 = vmatpush1.msra.mxu0 0.0
    %1362 = vmatprep.subr.mxu0 0.0
    %1363 = vmatpush1.msra.mxu0 0.0
    %1364 = vmatprep.subr.mxu0 0.0
    %1365 = vmatpush1.msra.mxu0 0.0
    %1366 = vmatprep.subr.mxu0 0.0
    %1367 = vmatpush1.msra.mxu0 0.0
    %1368 = vmatprep.subr.mxu0 0.0
    %1369 = vmatpush1.msra.mxu0 0.0
    %1370 = vmatprep.subr.mxu0 0.0
    %1371 = vmatpush1.msra.mxu0 0.0
    %1372 = vmatprep.subr.mxu0 0.0
    %1373 = vmatpush1.msra.mxu0 0.0
    %1374 = vmatprep.subr.mxu0 0.0
    %1375 = vmatpush1.msra.mxu0 0.0
    %1376 = vmatprep.subr.mxu0 0.0
    %1377 = vmatpush1.msra.mxu0 0.0
    %1378 = vmatprep.subr.mxu0 0.0
    %1379 = vmatpush1.msra.mxu0 0.0
    %1380 = vmatprep.mubr.f32.mxu0 0.0
    %1381 = vmatmul.mubr.f32.gmra.mrb[0].mxu0 %v1175
    %v1382 = vpop.f32.mrb[0].mxu0
    %v1383 = vadd.f32 0.0, %v1382
    %v1384 = vpop.f32.mrb[0].mxu0
    %v1385 = vadd.f32 0.0, %v1384
    %1386 = vdwg.mxu0
    %v1387 = vadd.f32 %v1177, %v1312
    %v1388 = vadd.f32 %v1178, %v1314
    %v1389 = vadd.f32 %v1179, %v1383
    %v1390 = vadd.f32 %v1180, %v1385
    %v1391 = vxor.u32 %v1387, 2147483648
    %v1392 = vxor.u32 %v1388, 2147483648
    %v1393 = vxor.u32 %v1389, 2147483648
    %v1394 = vmul.f32 %v1391, 1.442695
    %v1395 = vpow.pop %v1394
    %v1396 = vmul.f32 %v1392, 1.442695
    %v1397 = vpow.pop %v1396
    %v1398 = vmul.f32 %v1393, 1.442695
    %v1399 = vpow.pop %v1398
    %v1400 = vadd.f32 %v1395, 1.0
    %v1401 = vadd.f32 %v1397, 1.0
    %v1402 = vadd.f32 %v1399, 1.0
    %v1403 = vrcp.pop %v1400
    %v1404 = vmul.f32 1.0, %v1403
    %v1405 = vrcp.pop %v1401
    %v1406 = vmul.f32 1.0, %v1405
    %v1407 = vrcp.pop %v1402
    %v1408 = vmul.f32 1.0, %v1407
    %v1409 = vtanh.pop %v1390
    %v1410 = vmul.f32 %v1406, %v1173
    %v1411 = vmul.f32 %v1404, %v1409
    %v1412 = vadd.f32 %v1410, %v1411
    %v1413 = vtanh.pop %v1412
    %v1414 = vmul.f32 %v1408, %v1413
    %1415 = vst [vmem:[#allocation2 + $0x18] sm:$0xff] %v1414
    %v1416 = vld [vmem:[#allocation3 + $0x80] sm:$0xff]
    %v1417 = vld [vmem:[#allocation3 + $0x88] sm:$0xff]
    %v1418 = vld [vmem:[#allocation3 + $0x90] sm:$0xff]
    %v1419 = vld [vmem:[#allocation3 + $0x98] sm:$0xff]
    %v1420 = vld [vmem:[#allocation9] sm:$0xff]
    %v1421 = vld [vmem:[#allocation9 + $0x8] sm:$0xff]
    %v1422 = vld [vmem:[#allocation9 + $0x10] sm:$0xff]
    %v1423 = vld [vmem:[#allocation9 + $0x18] sm:$0xff]
    %v1424 = vld [vmem:[#allocation9 + $0x20] sm:$0xff]
    %v1425 = vld [vmem:[#allocation9 + $0x28] sm:$0xff]
    %v1426 = vld [vmem:[#allocation9 + $0x30] sm:$0xff]
    %v1427 = vld [vmem:[#allocation9 + $0x38] sm:$0xff]
    %v1428 = vld [vmem:[#allocation9 + $0x40] sm:$0xff]
    %v1429 = vld [vmem:[#allocation9 + $0x48] sm:$0xff]
    %v1430 = vld [vmem:[#allocation9 + $0x50] sm:$0xff]
    %v1431 = vld [vmem:[#allocation9 + $0x58] sm:$0xff]
    %v1432 = vld [vmem:[#allocation9 + $0x60] sm:$0xff]
    %v1433 = vld [vmem:[#allocation9 + $0x68] sm:$0xff]
    %v1434 = vld [vmem:[#allocation9 + $0x70] sm:$0xff]
    %v1435 = vld [vmem:[#allocation9 + $0x78] sm:$0xff]
    %v1436 = vld [vmem:[#allocation9 + $0x80] sm:$0xff]
    %v1437 = vld [vmem:[#allocation9 + $0x88] sm:$0xff]
    %v1438 = vld [vmem:[#allocation9 + $0x90] sm:$0xff]
    %v1439 = vld [vmem:[#allocation9 + $0x98] sm:$0xff]
    %v1440 = vld [vmem:[#allocation9 + $0xa0] sm:$0xff]
    %v1441 = vld [vmem:[#allocation9 + $0xa8] sm:$0xff]
    %v1442 = vld [vmem:[#allocation9 + $0xb0] sm:$0xff]
    %v1443 = vld [vmem:[#allocation9 + $0xb8] sm:$0xff]
    %v1444 = vld [vmem:[#allocation9 + $0xc0] sm:$0xff]
    %v1445 = vld [vmem:[#allocation9 + $0xc8] sm:$0xff]
    %v1446 = vld [vmem:[#allocation9 + $0xd0] sm:$0xff]
    %v1447 = vld [vmem:[#allocation9 + $0xd8] sm:$0xff]
    %v1448 = vld [vmem:[#allocation9 + $0xe0] sm:$0xff]
    %v1449 = vld [vmem:[#allocation9 + $0xe8] sm:$0xff]
    %v1450 = vld [vmem:[#allocation9 + $0xf0] sm:$0xff]
    %v1451 = vld [vmem:[#allocation9 + $0xf8] sm:$0xff]
    %v1452 = vld [vmem:[#allocation9 + $0x100] sm:$0xff]
    %v1453 = vld [vmem:[#allocation9 + $0x108] sm:$0xff]
    %v1454 = vld [vmem:[#allocation9 + $0x110] sm:$0xff]
    %v1455 = vld [vmem:[#allocation9 + $0x118] sm:$0xff]
    %v1456 = vld [vmem:[#allocation9 + $0x120] sm:$0xff]
    %v1457 = vld [vmem:[#allocation9 + $0x128] sm:$0xff]
    %v1458 = vld [vmem:[#allocation9 + $0x130] sm:$0xff]
    %v1459 = vld [vmem:[#allocation9 + $0x138] sm:$0xff]
    %v1460 = vld [vmem:[#allocation9 + $0x140] sm:$0xff]
    %v1461 = vld [vmem:[#allocation9 + $0x148] sm:$0xff]
    %v1462 = vld [vmem:[#allocation9 + $0x150] sm:$0xff]
    %v1463 = vld [vmem:[#allocation9 + $0x158] sm:$0xff]
    %v1464 = vld [vmem:[#allocation9 + $0x160] sm:$0xff]
    %v1465 = vld [vmem:[#allocation9 + $0x168] sm:$0xff]
    %v1466 = vld [vmem:[#allocation9 + $0x170] sm:$0xff]
    %v1467 = vld [vmem:[#allocation9 + $0x178] sm:$0xff]
    %v1468 = vld [vmem:[#allocation9 + $0x180] sm:$0xff]
    %v1469 = vld [vmem:[#allocation9 + $0x188] sm:$0xff]
    %v1470 = vld [vmem:[#allocation9 + $0x190] sm:$0xff]
    %v1471 = vld [vmem:[#allocation9 + $0x198] sm:$0xff]
    %v1472 = vld [vmem:[#allocation9 + $0x1a0] sm:$0xff]
    %v1473 = vld [vmem:[#allocation9 + $0x1a8] sm:$0xff]
    %v1474 = vld [vmem:[#allocation9 + $0x1b0] sm:$0xff]
    %v1475 = vld [vmem:[#allocation9 + $0x1b8] sm:$0xff]
    %v1476 = vld [vmem:[#allocation9 + $0x1c0] sm:$0xff]
    %v1477 = vld [vmem:[#allocation9 + $0x1c8] sm:$0xff]
    %v1478 = vld [vmem:[#allocation9 + $0x1d0] sm:$0xff]
    %v1479 = vld [vmem:[#allocation9 + $0x1d8] sm:$0xff]
    %v1480 = vld [vmem:[#allocation9 + $0x1e0] sm:$0xff]
    %v1481 = vld [vmem:[#allocation9 + $0x1e8] sm:$0xff]
    %v1482 = vld [vmem:[#allocation9 + $0x1f0] sm:$0xff]
    %v1483 = vld [vmem:[#allocation9 + $0x1f8] sm:$0xff]
    %1484 = vmatprep.subr.mxu0 %v1421
    %1485 = vmatpush1.msra.mxu0 %v1420
    %1486 = vmatprep.subr.mxu0 %v1425
    %1487 = vmatpush1.msra.mxu0 %v1424
    %1488 = vmatprep.subr.mxu0 %v1429
    %1489 = vmatpush1.msra.mxu0 %v1428
    %1490 = vmatprep.subr.mxu0 %v1433
    %1491 = vmatpush1.msra.mxu0 %v1432
    %1492 = vmatprep.subr.mxu0 %v1437
    %1493 = vmatpush1.msra.mxu0 %v1436
    %1494 = vmatprep.subr.mxu0 %v1441
    %1495 = vmatpush1.msra.mxu0 %v1440
    %1496 = vmatprep.subr.mxu0 %v1445
    %1497 = vmatpush1.msra.mxu0 %v1444
    %1498 = vmatprep.subr.mxu0 %v1449
    %1499 = vmatpush1.msra.mxu0 %v1448
    %1500 = vmatprep.subr.mxu0 %v1453
    %1501 = vmatpush1.msra.mxu0 %v1452
    %1502 = vmatprep.subr.mxu0 %v1457
    %1503 = vmatpush1.msra.mxu0 %v1456
    %1504 = vmatprep.subr.mxu0 %v1461
    %1505 = vmatpush1.msra.mxu0 %v1460
    %1506 = vmatprep.subr.mxu0 %v1465
    %1507 = vmatpush1.msra.mxu0 %v1464
    %1508 = vmatprep.subr.mxu0 %v1469
    %1509 = vmatpush1.msra.mxu0 %v1468
    %1510 = vmatprep.subr.mxu0 %v1473
    %1511 = vmatpush1.msra.mxu0 %v1472
    %1512 = vmatprep.subr.mxu0 %v1477
    %1513 = vmatpush1.msra.mxu0 %v1476
    %1514 = vmatprep.subr.mxu0 %v1481
    %1515 = vmatpush1.msra.mxu0 %v1480
    %1516 = vmatprep.subr.mxu0 0.0
    %1517 = vmatpush1.msra.mxu0 0.0
    %1518 = vmatprep.subr.mxu0 0.0
    %1519 = vmatpush1.msra.mxu0 0.0
    %1520 = vmatprep.subr.mxu0 0.0
    %1521 = vmatpush1.msra.mxu0 0.0
    %1522 = vmatprep.subr.mxu0 0.0
    %1523 = vmatpush1.msra.mxu0 0.0
    %1524 = vmatprep.subr.mxu0 0.0
    %1525 = vmatpush1.msra.mxu0 0.0
    %1526 = vmatprep.subr.mxu0 0.0
    %1527 = vmatpush1.msra.mxu0 0.0
    %1528 = vmatprep.subr.mxu0 0.0
    %1529 = vmatpush1.msra.mxu0 0.0
    %1530 = vmatprep.subr.mxu0 0.0
    %1531 = vmatpush1.msra.mxu0 0.0
    %1532 = vmatprep.subr.mxu0 0.0
    %1533 = vmatpush1.msra.mxu0 0.0
    %1534 = vmatprep.subr.mxu0 0.0
    %1535 = vmatpush1.msra.mxu0 0.0
    %1536 = vmatprep.subr.mxu0 0.0
    %1537 = vmatpush1.msra.mxu0 0.0
    %1538 = vmatprep.subr.mxu0 0.0
    %1539 = vmatpush1.msra.mxu0 0.0
    %1540 = vmatprep.subr.mxu0 0.0
    %1541 = vmatpush1.msra.mxu0 0.0
    %1542 = vmatprep.subr.mxu0 0.0
    %1543 = vmatpush1.msra.mxu0 0.0
    %1544 = vmatprep.subr.mxu0 0.0
    %1545 = vmatpush1.msra.mxu0 0.0
    %1546 = vmatprep.subr.mxu0 0.0
    %1547 = vmatpush1.msra.mxu0 0.0
    %1548 = vmatprep.mubr.f32.mxu0 0.0
    %1549 = vmatmul.mubr.f32.gmra.mrb[0].mxu0 %v1414
    %v1550 = vpop.f32.mrb[0].mxu0
    %v1551 = vadd.f32 0.0, %v1550
    %v1552 = vpop.f32.mrb[0].mxu0
    %v1553 = vadd.f32 0.0, %v1552
    %1554 = vdwg.mxu0
    %1555 = vmatprep.subr.mxu0 %v1423
    %1556 = vmatpush1.msra.mxu0 %v1422
    %1557 = vmatprep.subr.mxu0 %v1427
    %1558 = vmatpush1.msra.mxu0 %v1426
    %1559 = vmatprep.subr.mxu0 %v1431
    %1560 = vmatpush1.msra.mxu0 %v1430
    %1561 = vmatprep.subr.mxu0 %v1435
    %1562 = vmatpush1.msra.mxu0 %v1434
    %1563 = vmatprep.subr.mxu0 %v1439
    %1564 = vmatpush1.msra.mxu0 %v1438
    %1565 = vmatprep.subr.mxu0 %v1443
    %1566 = vmatpush1.msra.mxu0 %v1442
    %1567 = vmatprep.subr.mxu0 %v1447
    %1568 = vmatpush1.msra.mxu0 %v1446
    %1569 = vmatprep.subr.mxu0 %v1451
    %1570 = vmatpush1.msra.mxu0 %v1450
    %1571 = vmatprep.subr.mxu0 %v1455
    %1572 = vmatpush1.msra.mxu0 %v1454
    %1573 = vmatprep.subr.mxu0 %v1459
    %1574 = vmatpush1.msra.mxu0 %v1458
    %1575 = vmatprep.subr.mxu0 %v1463
    %1576 = vmatpush1.msra.mxu0 %v1462
    %1577 = vmatprep.subr.mxu0 %v1467
    %1578 = vmatpush1.msra.mxu0 %v1466
    %1579 = vmatprep.subr.mxu0 %v1471
    %1580 = vmatpush1.msra.mxu0 %v1470
    %1581 = vmatprep.subr.mxu0 %v1475
    %1582 = vmatpush1.msra.mxu0 %v1474
    %1583 = vmatprep.subr.mxu0 %v1479
    %1584 = vmatpush1.msra.mxu0 %v1478
    %1585 = vmatprep.subr.mxu0 %v1483
    %1586 = vmatpush1.msra.mxu0 %v1482
    %1587 = vmatprep.subr.mxu0 0.0
    %1588 = vmatpush1.msra.mxu0 0.0
    %1589 = vmatprep.subr.mxu0 0.0
    %1590 = vmatpush1.msra.mxu0 0.0
    %1591 = vmatprep.subr.mxu0 0.0
    %1592 = vmatpush1.msra.mxu0 0.0
    %1593 = vmatprep.subr.mxu0 0.0
    %1594 = vmatpush1.msra.mxu0 0.0
    %1595 = vmatprep.subr.mxu0 0.0
    %1596 = vmatpush1.msra.mxu0 0.0
    %1597 = vmatprep.subr.mxu0 0.0
    %1598 = vmatpush1.msra.mxu0 0.0
    %1599 = vmatprep.subr.mxu0 0.0
    %1600 = vmatpush1.msra.mxu0 0.0
    %1601 = vmatprep.subr.mxu0 0.0
    %1602 = vmatpush1.msra.mxu0 0.0
    %1603 = vmatprep.subr.mxu0 0.0
    %1604 = vmatpush1.msra.mxu0 0.0
    %1605 = vmatprep.subr.mxu0 0.0
    %1606 = vmatpush1.msra.mxu0 0.0
    %1607 = vmatprep.subr.mxu0 0.0
    %1608 = vmatpush1.msra.mxu0 0.0
    %1609 = vmatprep.subr.mxu0 0.0
    %1610 = vmatpush1.msra.mxu0 0.0
    %1611 = vmatprep.subr.mxu0 0.0
    %1612 = vmatpush1.msra.mxu0 0.0
    %1613 = vmatprep.subr.mxu0 0.0
    %1614 = vmatpush1.msra.mxu0 0.0
    %1615 = vmatprep.subr.mxu0 0.0
    %1616 = vmatpush1.msra.mxu0 0.0
    %1617 = vmatprep.subr.mxu0 0.0
    %1618 = vmatpush1.msra.mxu0 0.0
    %1619 = vmatprep.mubr.f32.mxu0 0.0
    %1620 = vmatmul.mubr.f32.gmra.mrb[0].mxu0 %v1414
    %v1621 = vpop.f32.mrb[0].mxu0
    %v1622 = vadd.f32 0.0, %v1621
    %v1623 = vpop.f32.mrb[0].mxu0
    %v1624 = vadd.f32 0.0, %v1623
    %1625 = vdwg.mxu0
    %v1626 = vadd.f32 %v1416, %v1551
    %v1627 = vadd.f32 %v1417, %v1553
    %v1628 = vadd.f32 %v1418, %v1622
    %v1629 = vadd.f32 %v1419, %v1624
    %v1630 = vxor.u32 %v1626, 2147483648
    %v1631 = vxor.u32 %v1627, 2147483648
    %v1632 = vxor.u32 %v1628, 2147483648
    %v1633 = vmul.f32 %v1630, 1.442695
    %v1634 = vpow.pop %v1633
    %v1635 = vmul.f32 %v1631, 1.442695
    %v1636 = vpow.pop %v1635
    %v1637 = vmul.f32 %v1632, 1.442695
    %v1638 = vpow.pop %v1637
    %v1639 = vadd.f32 %v1634, 1.0
    %v1640 = vadd.f32 %v1636, 1.0
    %v1641 = vadd.f32 %v1638, 1.0
    %v1642 = vrcp.pop %v1639
    %v1643 = vmul.f32 1.0, %v1642
    %v1644 = vrcp.pop %v1640
    %v1645 = vmul.f32 1.0, %v1644
    %v1646 = vrcp.pop %v1641
    %v1647 = vmul.f32 1.0, %v1646
    %v1648 = vtanh.pop %v1629
    %v1649 = vmul.f32 %v1645, %v1412
    %v1650 = vmul.f32 %v1643, %v1648
    %v1651 = vadd.f32 %v1649, %v1650
    %v1652 = vtanh.pop %v1651
    %v1653 = vmul.f32 %v1647, %v1652
    %1654 = vst [vmem:[#allocation2 + $0x20] sm:$0xff] %v1653
    %v1655 = vld [vmem:[#allocation3 + $0xa0] sm:$0xff]
    %v1656 = vld [vmem:[#allocation3 + $0xa8] sm:$0xff]
    %v1657 = vld [vmem:[#allocation3 + $0xb0] sm:$0xff]
    %v1658 = vld [vmem:[#allocation3 + $0xb8] sm:$0xff]
    %v1659 = vld [vmem:[#allocation9] sm:$0xff]
    %v1660 = vld [vmem:[#allocation9 + $0x8] sm:$0xff]
    %v1661 = vld [vmem:[#allocation9 + $0x10] sm:$0xff]
    %v1662 = vld [vmem:[#allocation9 + $0x18] sm:$0xff]
    %v1663 = vld [vmem:[#allocation9 + $0x20] sm:$0xff]
    %v1664 = vld [vmem:[#allocation9 + $0x28] sm:$0xff]
    %v1665 = vld [vmem:[#allocation9 + $0x30] sm:$0xff]
    %v1666 = vld [vmem:[#allocation9 + $0x38] sm:$0xff]
    %v1667 = vld [vmem:[#allocation9 + $0x40] sm:$0xff]
    %v1668 = vld [vmem:[#allocation9 + $0x48] sm:$0xff]
    %v1669 = vld [vmem:[#allocation9 + $0x50] sm:$0xff]
    %v1670 = vld [vmem:[#allocation9 + $0x58] sm:$0xff]
    %v1671 = vld [vmem:[#allocation9 + $0x60] sm:$0xff]
    %v1672 = vld [vmem:[#allocation9 + $0x68] sm:$0xff]
    %v1673 = vld [vmem:[#allocation9 + $0x70] sm:$0xff]
    %v1674 = vld [vmem:[#allocation9 + $0x78] sm:$0xff]
    %v1675 = vld [vmem:[#allocation9 + $0x80] sm:$0xff]
    %v1676 = vld [vmem:[#allocation9 + $0x88] sm:$0xff]
    %v1677 = vld [vmem:[#allocation9 + $0x90] sm:$0xff]
    %v1678 = vld [vmem:[#allocation9 + $0x98] sm:$0xff]
    %v1679 = vld [vmem:[#allocation9 + $0xa0] sm:$0xff]
    %v1680 = vld [vmem:[#allocation9 + $0xa8] sm:$0xff]
    %v1681 = vld [vmem:[#allocation9 + $0xb0] sm:$0xff]
    %v1682 = vld [vmem:[#allocation9 + $0xb8] sm:$0xff]
    %v1683 = vld [vmem:[#allocation9 + $0xc0] sm:$0xff]
    %v1684 = vld [vmem:[#allocation9 + $0xc8] sm:$0xff]
    %v1685 = vld [vmem:[#allocation9 + $0xd0] sm:$0xff]
    %v1686 = vld [vmem:[#allocation9 + $0xd8] sm:$0xff]
    %v1687 = vld [vmem:[#allocation9 + $0xe0] sm:$0xff]
    %v1688 = vld [vmem:[#allocation9 + $0xe8] sm:$0xff]
    %v1689 = vld [vmem:[#allocation9 + $0xf0] sm:$0xff]
    %v1690 = vld [vmem:[#allocation9 + $0xf8] sm:$0xff]
    %v1691 = vld [vmem:[#allocation9 + $0x100] sm:$0xff]
    %v1692 = vld [vmem:[#allocation9 + $0x108] sm:$0xff]
    %v1693 = vld [vmem:[#allocation9 + $0x110] sm:$0xff]
    %v1694 = vld [vmem:[#allocation9 + $0x118] sm:$0xff]
    %v1695 = vld [vmem:[#allocation9 + $0x120] sm:$0xff]
    %v1696 = vld [vmem:[#allocation9 + $0x128] sm:$0xff]
    %v1697 = vld [vmem:[#allocation9 + $0x130] sm:$0xff]
    %v1698 = vld [vmem:[#allocation9 + $0x138] sm:$0xff]
    %v1699 = vld [vmem:[#allocation9 + $0x140] sm:$0xff]
    %v1700 = vld [vmem:[#allocation9 + $0x148] sm:$0xff]
    %v1701 = vld [vmem:[#allocation9 + $0x150] sm:$0xff]
    %v1702 = vld [vmem:[#allocation9 + $0x158] sm:$0xff]
    %v1703 = vld [vmem:[#allocation9 + $0x160] sm:$0xff]
    %v1704 = vld [vmem:[#allocation9 + $0x168] sm:$0xff]
    %v1705 = vld [vmem:[#allocation9 + $0x170] sm:$0xff]
    %v1706 = vld [vmem:[#allocation9 + $0x178] sm:$0xff]
    %v1707 = vld [vmem:[#allocation9 + $0x180] sm:$0xff]
    %v1708 = vld [vmem:[#allocation9 + $0x188] sm:$0xff]
    %v1709 = vld [vmem:[#allocation9 + $0x190] sm:$0xff]
    %v1710 = vld [vmem:[#allocation9 + $0x198] sm:$0xff]
    %v1711 = vld [vmem:[#allocation9 + $0x1a0] sm:$0xff]
    %v1712 = vld [vmem:[#allocation9 + $0x1a8] sm:$0xff]
    %v1713 = vld [vmem:[#allocation9 + $0x1b0] sm:$0xff]
    %v1714 = vld [vmem:[#allocation9 + $0x1b8] sm:$0xff]
    %v1715 = vld [vmem:[#allocation9 + $0x1c0] sm:$0xff]
    %v1716 = vld [vmem:[#allocation9 + $0x1c8] sm:$0xff]
    %v1717 = vld [vmem:[#allocation9 + $0x1d0] sm:$0xff]
    %v1718 = vld [vmem:[#allocation9 + $0x1d8] sm:$0xff]
    %v1719 = vld [vmem:[#allocation9 + $0x1e0] sm:$0xff]
    %v1720 = vld [vmem:[#allocation9 + $0x1e8] sm:$0xff]
    %v1721 = vld [vmem:[#allocation9 + $0x1f0] sm:$0xff]
    %v1722 = vld [vmem:[#allocation9 + $0x1f8] sm:$0xff]
    %1723 = vmatprep.subr.mxu0 %v1660
    %1724 = vmatpush1.msra.mxu0 %v1659
    %1725 = vmatprep.subr.mxu0 %v1664
    %1726 = vmatpush1.msra.mxu0 %v1663
    %1727 = vmatprep.subr.mxu0 %v1668
    %1728 = vmatpush1.msra.mxu0 %v1667
    %1729 = vmatprep.subr.mxu0 %v1672
    %1730 = vmatpush1.msra.mxu0 %v1671
    %1731 = vmatprep.subr.mxu0 %v1676
    %1732 = vmatpush1.msra.mxu0 %v1675
    %1733 = vmatprep.subr.mxu0 %v1680
    %1734 = vmatpush1.msra.mxu0 %v1679
    %1735 = vmatprep.subr.mxu0 %v1684
    %1736 = vmatpush1.msra.mxu0 %v1683
    %1737 = vmatprep.subr.mxu0 %v1688
    %1738 = vmatpush1.msra.mxu0 %v1687
    %1739 = vmatprep.subr.mxu0 %v1692
    %1740 = vmatpush1.msra.mxu0 %v1691
    %1741 = vmatprep.subr.mxu0 %v1696
    %1742 = vmatpush1.msra.mxu0 %v1695
    %1743 = vmatprep.subr.mxu0 %v1700
    %1744 = vmatpush1.msra.mxu0 %v1699
    %1745 = vmatprep.subr.mxu0 %v1704
    %1746 = vmatpush1.msra.mxu0 %v1703
    %1747 = vmatprep.subr.mxu0 %v1708
    %1748 = vmatpush1.msra.mxu0 %v1707
    %1749 = vmatprep.subr.mxu0 %v1712
    %1750 = vmatpush1.msra.mxu0 %v1711
    %1751 = vmatprep.subr.mxu0 %v1716
    %1752 = vmatpush1.msra.mxu0 %v1715
    %1753 = vmatprep.subr.mxu0 %v1720
    %1754 = vmatpush1.msra.mxu0 %v1719
    %1755 = vmatprep.subr.mxu0 0.0
    %1756 = vmatpush1.msra.mxu0 0.0
    %1757 = vmatprep.subr.mxu0 0.0
    %1758 = vmatpush1.msra.mxu0 0.0
    %1759 = vmatprep.subr.mxu0 0.0
    %1760 = vmatpush1.msra.mxu0 0.0
    %1761 = vmatprep.subr.mxu0 0.0
    %1762 = vmatpush1.msra.mxu0 0.0
    %1763 = vmatprep.subr.mxu0 0.0
    %1764 = vmatpush1.msra.mxu0 0.0
    %1765 = vmatprep.subr.mxu0 0.0
    %1766 = vmatpush1.msra.mxu0 0.0
    %1767 = vmatprep.subr.mxu0 0.0
    %1768 = vmatpush1.msra.mxu0 0.0
    %1769 = vmatprep.subr.mxu0 0.0
    %1770 = vmatpush1.msra.mxu0 0.0
    %1771 = vmatprep.subr.mxu0 0.0
    %1772 = vmatpush1.msra.mxu0 0.0
    %1773 = vmatprep.subr.mxu0 0.0
    %1774 = vmatpush1.msra.mxu0 0.0
    %1775 = vmatprep.subr.mxu0 0.0
    %1776 = vmatpush1.msra.mxu0 0.0
    %1777 = vmatprep.subr.mxu0 0.0
    %1778 = vmatpush1.msra.mxu0 0.0
    %1779 = vmatprep.subr.mxu0 0.0
    %1780 = vmatpush1.msra.mxu0 0.0
    %1781 = vmatprep.subr.mxu0 0.0
    %1782 = vmatpush1.msra.mxu0 0.0
    %1783 = vmatprep.subr.mxu0 0.0
    %1784 = vmatpush1.msra.mxu0 0.0
    %1785 = vmatprep.subr.mxu0 0.0
    %1786 = vmatpush1.msra.mxu0 0.0
    %1787 = vmatprep.mubr.f32.mxu0 0.0
    %1788 = vmatmul.mubr.f32.gmra.mrb[0].mxu0 %v1653
    %v1789 = vpop.f32.mrb[0].mxu0
    %v1790 = vadd.f32 0.0, %v1789
    %v1791 = vpop.f32.mrb[0].mxu0
    %v1792 = vadd.f32 0.0, %v1791
    %1793 = vdwg.mxu0
    %1794 = vmatprep.subr.mxu0 %v1662
    %1795 = vmatpush1.msra.mxu0 %v1661
    %1796 = vmatprep.subr.mxu0 %v1666
    %1797 = vmatpush1.msra.mxu0 %v1665
    %1798 = vmatprep.subr.mxu0 %v1670
    %1799 = vmatpush1.msra.mxu0 %v1669
    %1800 = vmatprep.subr.mxu0 %v1674
    %1801 = vmatpush1.msra.mxu0 %v1673
    %1802 = vmatprep.subr.mxu0 %v1678
    %1803 = vmatpush1.msra.mxu0 %v1677
    %1804 = vmatprep.subr.mxu0 %v1682
    %1805 = vmatpush1.msra.mxu0 %v1681
    %1806 = vmatprep.subr.mxu0 %v1686
    %1807 = vmatpush1.msra.mxu0 %v1685
    %1808 = vmatprep.subr.mxu0 %v1690
    %1809 = vmatpush1.msra.mxu0 %v1689
    %1810 = vmatprep.subr.mxu0 %v1694
    %1811 = vmatpush1.msra.mxu0 %v1693
    %1812 = vmatprep.subr.mxu0 %v1698
    %1813 = vmatpush1.msra.mxu0 %v1697
    %1814 = vmatprep.subr.mxu0 %v1702
    %1815 = vmatpush1.msra.mxu0 %v1701
    %1816 = vmatprep.subr.mxu0 %v1706
    %1817 = vmatpush1.msra.mxu0 %v1705
    %1818 = vmatprep.subr.mxu0 %v1710
    %1819 = vmatpush1.msra.mxu0 %v1709
    %1820 = vmatprep.subr.mxu0 %v1714
    %1821 = vmatpush1.msra.mxu0 %v1713
    %1822 = vmatprep.subr.mxu0 %v1718
    %1823 = vmatpush1.msra.mxu0 %v1717
    %1824 = vmatprep.subr.mxu0 %v1722
    %1825 = vmatpush1.msra.mxu0 %v1721
    %1826 = vmatprep.subr.mxu0 0.0
    %1827 = vmatpush1.msra.mxu0 0.0
    %1828 = vmatprep.subr.mxu0 0.0
    %1829 = vmatpush1.msra.mxu0 0.0
    %1830 = vmatprep.subr.mxu0 0.0
    %1831 = vmatpush1.msra.mxu0 0.0
    %1832 = vmatprep.subr.mxu0 0.0
    %1833 = vmatpush1.msra.mxu0 0.0
    %1834 = vmatprep.subr.mxu0 0.0
    %1835 = vmatpush1.msra.mxu0 0.0
    %1836 = vmatprep.subr.mxu0 0.0
    %1837 = vmatpush1.msra.mxu0 0.0
    %1838 = vmatprep.subr.mxu0 0.0
    %1839 = vmatpush1.msra.mxu0 0.0
    %1840 = vmatprep.subr.mxu0 0.0
    %1841 = vmatpush1.msra.mxu0 0.0
    %1842 = vmatprep.subr.mxu0 0.0
    %1843 = vmatpush1.msra.mxu0 0.0
    %1844 = vmatprep.subr.mxu0 0.0
    %1845 = vmatpush1.msra.mxu0 0.0
    %1846 = vmatprep.subr.mxu0 0.0
    %1847 = vmatpush1.msra.mxu0 0.0
    %1848 = vmatprep.subr.mxu0 0.0
    %1849 = vmatpush1.msra.mxu0 0.0
    %1850 = vmatprep.subr.mxu0 0.0
    %1851 = vmatpush1.msra.mxu0 0.0
    %1852 = vmatprep.subr.mxu0 0.0
    %1853 = vmatpush1.msra.mxu0 0.0
    %1854 = vmatprep.subr.mxu0 0.0
    %1855 = vmatpush1.msra.mxu0 0.0
    %1856 = vmatprep.subr.mxu0 0.0
    %1857 = vmatpush1.msra.mxu0 0.0
    %1858 = vmatprep.mubr.f32.mxu0 0.0
    %1859 = vmatmul.mubr.f32.gmra.mrb[0].mxu0 %v1653
    %v1860 = vpop.f32.mrb[0].mxu0
    %v1861 = vadd.f32 0.0, %v1860
    %v1862 = vpop.f32.mrb[0].mxu0
    %v1863 = vadd.f32 0.0, %v1862
    %1864 = vdwg.mxu0
    %v1865 = vadd.f32 %v1655, %v1790
    %v1866 = vadd.f32 %v1656, %v1792
    %v1867 = vadd.f32 %v1657, %v1861
    %v1868 = vadd.f32 %v1658, %v1863
    %v1869 = vxor.u32 %v1865, 2147483648
    %v1870 = vxor.u32 %v1866, 2147483648
    %v1871 = vxor.u32 %v1867, 2147483648
    %v1872 = vmul.f32 %v1869, 1.442695
    %v1873 = vpow.pop %v1872
    %v1874 = vmul.f32 %v1870, 1.442695
    %v1875 = vpow.pop %v1874
    %v1876 = vmul.f32 %v1871, 1.442695
    %v1877 = vpow.pop %v1876
    %v1878 = vadd.f32 %v1873, 1.0
    %v1879 = vadd.f32 %v1875, 1.0
    %v1880 = vadd.f32 %v1877, 1.0
    %v1881 = vrcp.pop %v1878
    %v1882 = vmul.f32 1.0, %v1881
    %v1883 = vrcp.pop %v1879
    %v1884 = vmul.f32 1.0, %v1883
    %v1885 = vrcp.pop %v1880
    %v1886 = vmul.f32 1.0, %v1885
    %v1887 = vtanh.pop %v1868
    %v1888 = vmul.f32 %v1884, %v1651
    %v1889 = vmul.f32 %v1882, %v1887
    %v1890 = vadd.f32 %v1888, %v1889
    %v1891 = vtanh.pop %v1890
    %v1892 = vmul.f32 %v1886, %v1891
    %1893 = vst [vmem:[#allocation2 + $0x28] sm:$0xff] %v1892
    %v1894 = vld [vmem:[#allocation3 + $0xc0] sm:$0xff]
    %v1895 = vld [vmem:[#allocation3 + $0xc8] sm:$0xff]
    %v1896 = vld [vmem:[#allocation3 + $0xd0] sm:$0xff]
    %v1897 = vld [vmem:[#allocation3 + $0xd8] sm:$0xff]
    %v1898 = vld [vmem:[#allocation9] sm:$0xff]
    %v1899 = vld [vmem:[#allocation9 + $0x8] sm:$0xff]
    %v1900 = vld [vmem:[#allocation9 + $0x10] sm:$0xff]
    %v1901 = vld [vmem:[#allocation9 + $0x18] sm:$0xff]
    %v1902 = vld [vmem:[#allocation9 + $0x20] sm:$0xff]
    %v1903 = vld [vmem:[#allocation9 + $0x28] sm:$0xff]
    %v1904 = vld [vmem:[#allocation9 + $0x30] sm:$0xff]
    %v1905 = vld [vmem:[#allocation9 + $0x38] sm:$0xff]
    %v1906 = vld [vmem:[#allocation9 + $0x40] sm:$0xff]
    %v1907 = vld [vmem:[#allocation9 + $0x48] sm:$0xff]
    %v1908 = vld [vmem:[#allocation9 + $0x50] sm:$0xff]
    %v1909 = vld [vmem:[#allocation9 + $0x58] sm:$0xff]
    %v1910 = vld [vmem:[#allocation9 + $0x60] sm:$0xff]
    %v1911 = vld [vmem:[#allocation9 + $0x68] sm:$0xff]
    %v1912 = vld [vmem:[#allocation9 + $0x70] sm:$0xff]
    %v1913 = vld [vmem:[#allocation9 + $0x78] sm:$0xff]
    %v1914 = vld [vmem:[#allocation9 + $0x80] sm:$0xff]
    %v1915 = vld [vmem:[#allocation9 + $0x88] sm:$0xff]
    %v1916 = vld [vmem:[#allocation9 + $0x90] sm:$0xff]
    %v1917 = vld [vmem:[#allocation9 + $0x98] sm:$0xff]
    %v1918 = vld [vmem:[#allocation9 + $0xa0] sm:$0xff]
    %v1919 = vld [vmem:[#allocation9 + $0xa8] sm:$0xff]
    %v1920 = vld [vmem:[#allocation9 + $0xb0] sm:$0xff]
    %v1921 = vld [vmem:[#allocation9 + $0xb8] sm:$0xff]
    %v1922 = vld [vmem:[#allocation9 + $0xc0] sm:$0xff]
    %v1923 = vld [vmem:[#allocation9 + $0xc8] sm:$0xff]
    %v1924 = vld [vmem:[#allocation9 + $0xd0] sm:$0xff]
    %v1925 = vld [vmem:[#allocation9 + $0xd8] sm:$0xff]
    %v1926 = vld [vmem:[#allocation9 + $0xe0] sm:$0xff]
    %v1927 = vld [vmem:[#allocation9 + $0xe8] sm:$0xff]
    %v1928 = vld [vmem:[#allocation9 + $0xf0] sm:$0xff]
    %v1929 = vld [vmem:[#allocation9 + $0xf8] sm:$0xff]
    %v1930 = vld [vmem:[#allocation9 + $0x100] sm:$0xff]
    %v1931 = vld [vmem:[#allocation9 + $0x108] sm:$0xff]
    %v1932 = vld [vmem:[#allocation9 + $0x110] sm:$0xff]
    %v1933 = vld [vmem:[#allocation9 + $0x118] sm:$0xff]
    %v1934 = vld [vmem:[#allocation9 + $0x120] sm:$0xff]
    %v1935 = vld [vmem:[#allocation9 + $0x128] sm:$0xff]
    %v1936 = vld [vmem:[#allocation9 + $0x130] sm:$0xff]
    %v1937 = vld [vmem:[#allocation9 + $0x138] sm:$0xff]
    %v1938 = vld [vmem:[#allocation9 + $0x140] sm:$0xff]
    %v1939 = vld [vmem:[#allocation9 + $0x148] sm:$0xff]
    %v1940 = vld [vmem:[#allocation9 + $0x150] sm:$0xff]
    %v1941 = vld [vmem:[#allocation9 + $0x158] sm:$0xff]
    %v1942 = vld [vmem:[#allocation9 + $0x160] sm:$0xff]
    %v1943 = vld [vmem:[#allocation9 + $0x168] sm:$0xff]
    %v1944 = vld [vmem:[#allocation9 + $0x170] sm:$0xff]
    %v1945 = vld [vmem:[#allocation9 + $0x178] sm:$0xff]
    %v1946 = vld [vmem:[#allocation9 + $0x180] sm:$0xff]
    %v1947 = vld [vmem:[#allocation9 + $0x188] sm:$0xff]
    %v1948 = vld [vmem:[#allocation9 + $0x190] sm:$0xff]
    %v1949 = vld [vmem:[#allocation9 + $0x198] sm:$0xff]
    %v1950 = vld [vmem:[#allocation9 + $0x1a0] sm:$0xff]
    %v1951 = vld [vmem:[#allocation9 + $0x1a8] sm:$0xff]
    %v1952 = vld [vmem:[#allocation9 + $0x1b0] sm:$0xff]
    %v1953 = vld [vmem:[#allocation9 + $0x1b8] sm:$0xff]
    %v1954 = vld [vmem:[#allocation9 + $0x1c0] sm:$0xff]
    %v1955 = vld [vmem:[#allocation9 + $0x1c8] sm:$0xff]
    %v1956 = vld [vmem:[#allocation9 + $0x1d0] sm:$0xff]
    %v1957 = vld [vmem:[#allocation9 + $0x1d8] sm:$0xff]
    %v1958 = vld [vmem:[#allocation9 + $0x1e0] sm:$0xff]
    %v1959 = vld [vmem:[#allocation9 + $0x1e8] sm:$0xff]
    %v1960 = vld [vmem:[#allocation9 + $0x1f0] sm:$0xff]
    %v1961 = vld [vmem:[#allocation9 + $0x1f8] sm:$0xff]
    %1962 = vmatprep.subr.mxu0 %v1899
    %1963 = vmatpush1.msra.mxu0 %v1898
    %1964 = vmatprep.subr.mxu0 %v1903
    %1965 = vmatpush1.msra.mxu0 %v1902
    %1966 = vmatprep.subr.mxu0 %v1907
    %1967 = vmatpush1.msra.mxu0 %v1906
    %1968 = vmatprep.subr.mxu0 %v1911
    %1969 = vmatpush1.msra.mxu0 %v1910
    %1970 = vmatprep.subr.mxu0 %v1915
    %1971 = vmatpush1.msra.mxu0 %v1914
    %1972 = vmatprep.subr.mxu0 %v1919
    %1973 = vmatpush1.msra.mxu0 %v1918
    %1974 = vmatprep.subr.mxu0 %v1923
    %1975 = vmatpush1.msra.mxu0 %v1922
    %1976 = vmatprep.subr.mxu0 %v1927
    %1977 = vmatpush1.msra.mxu0 %v1926
    %1978 = vmatprep.subr.mxu0 %v1931
    %1979 = vmatpush1.msra.mxu0 %v1930
    %1980 = vmatprep.subr.mxu0 %v1935
    %1981 = vmatpush1.msra.mxu0 %v1934
    %1982 = vmatprep.subr.mxu0 %v1939
    %1983 = vmatpush1.msra.mxu0 %v1938
    %1984 = vmatprep.subr.mxu0 %v1943
    %1985 = vmatpush1.msra.mxu0 %v1942
    %1986 = vmatprep.subr.mxu0 %v1947
    %1987 = vmatpush1.msra.mxu0 %v1946
    %1988 = vmatprep.subr.mxu0 %v1951
    %1989 = vmatpush1.msra.mxu0 %v1950
    %1990 = vmatprep.subr.mxu0 %v1955
    %1991 = vmatpush1.msra.mxu0 %v1954
    %1992 = vmatprep.subr.mxu0 %v1959
    %1993 = vmatpush1.msra.mxu0 %v1958
    %1994 = vmatprep.subr.mxu0 0.0
    %1995 = vmatpush1.msra.mxu0 0.0
    %1996 = vmatprep.subr.mxu0 0.0
    %1997 = vmatpush1.msra.mxu0 0.0
    %1998 = vmatprep.subr.mxu0 0.0
    %1999 = vmatpush1.msra.mxu0 0.0
    %2000 = vmatprep.subr.mxu0 0.0
    %2001 = vmatpush1.msra.mxu0 0.0
    %2002 = vmatprep.subr.mxu0 0.0
    %2003 = vmatpush1.msra.mxu0 0.0
    %2004 = vmatprep.subr.mxu0 0.0
    %2005 = vmatpush1.msra.mxu0 0.0
    %2006 = vmatprep.subr.mxu0 0.0
    %2007 = vmatpush1.msra.mxu0 0.0
    %2008 = vmatprep.subr.mxu0 0.0
    %2009 = vmatpush1.msra.mxu0 0.0
    %2010 = vmatprep.subr.mxu0 0.0
    %2011 = vmatpush1.msra.mxu0 0.0
    %2012 = vmatprep.subr.mxu0 0.0
    %2013 = vmatpush1.msra.mxu0 0.0
    %2014 = vmatprep.subr.mxu0 0.0
    %2015 = vmatpush1.msra.mxu0 0.0
    %2016 = vmatprep.subr.mxu0 0.0
    %2017 = vmatpush1.msra.mxu0 0.0
    %2018 = vmatprep.subr.mxu0 0.0
    %2019 = vmatpush1.msra.mxu0 0.0
    %2020 = vmatprep.subr.mxu0 0.0
    %2021 = vmatpush1.msra.mxu0 0.0
    %2022 = vmatprep.subr.mxu0 0.0
    %2023 = vmatpush1.msra.mxu0 0.0
    %2024 = vmatprep.subr.mxu0 0.0
    %2025 = vmatpush1.msra.mxu0 0.0
    %2026 = vmatprep.mubr.f32.mxu0 0.0
    %2027 = vmatmul.mubr.f32.gmra.mrb[0].mxu0 %v1892
    %v2028 = vpop.f32.mrb[0].mxu0
    %v2029 = vadd.f32 0.0, %v2028
    %v2030 = vpop.f32.mrb[0].mxu0
    %v2031 = vadd.f32 0.0, %v2030
    %2032 = vdwg.mxu0
    %2033 = vmatprep.subr.mxu0 %v1901
    %2034 = vmatpush1.msra.mxu0 %v1900
    %2035 = vmatprep.subr.mxu0 %v1905
    %2036 = vmatpush1.msra.mxu0 %v1904
    %2037 = vmatprep.subr.mxu0 %v1909
    %2038 = vmatpush1.msra.mxu0 %v1908
    %2039 = vmatprep.subr.mxu0 %v1913
    %2040 = vmatpush1.msra.mxu0 %v1912
    %2041 = vmatprep.subr.mxu0 %v1917
    %2042 = vmatpush1.msra.mxu0 %v1916
    %2043 = vmatprep.subr.mxu0 %v1921
    %2044 = vmatpush1.msra.mxu0 %v1920
    %2045 = vmatprep.subr.mxu0 %v1925
    %2046 = vmatpush1.msra.mxu0 %v1924
    %2047 = vmatprep.subr.mxu0 %v1929
    %2048 = vmatpush1.msra.mxu0 %v1928
    %2049 = vmatprep.subr.mxu0 %v1933
    %2050 = vmatpush1.msra.mxu0 %v1932
    %2051 = vmatprep.subr.mxu0 %v1937
    %2052 = vmatpush1.msra.mxu0 %v1936
    %2053 = vmatprep.subr.mxu0 %v1941
    %2054 = vmatpush1.msra.mxu0 %v1940
    %2055 = vmatprep.subr.mxu0 %v1945
    %2056 = vmatpush1.msra.mxu0 %v1944
    %2057 = vmatprep.subr.mxu0 %v1949
    %2058 = vmatpush1.msra.mxu0 %v1948
    %2059 = vmatprep.subr.mxu0 %v1953
    %2060 = vmatpush1.msra.mxu0 %v1952
    %2061 = vmatprep.subr.mxu0 %v1957
    %2062 = vmatpush1.msra.mxu0 %v1956
    %2063 = vmatprep.subr.mxu0 %v1961
    %2064 = vmatpush1.msra.mxu0 %v1960
    %2065 = vmatprep.subr.mxu0 0.0
    %2066 = vmatpush1.msra.mxu0 0.0
    %2067 = vmatprep.subr.mxu0 0.0
    %2068 = vmatpush1.msra.mxu0 0.0
    %2069 = vmatprep.subr.mxu0 0.0
    %2070 = vmatpush1.msra.mxu0 0.0
    %2071 = vmatprep.subr.mxu0 0.0
    %2072 = vmatpush1.msra.mxu0 0.0
    %2073 = vmatprep.subr.mxu0 0.0
    %2074 = vmatpush1.msra.mxu0 0.0
    %2075 = vmatprep.subr.mxu0 0.0
    %2076 = vmatpush1.msra.mxu0 0.0
    %2077 = vmatprep.subr.mxu0 0.0
    %2078 = vmatpush1.msra.mxu0 0.0
    %2079 = vmatprep.subr.mxu0 0.0
    %2080 = vmatpush1.msra.mxu0 0.0
    %2081 = vmatprep.subr.mxu0 0.0
    %2082 = vmatpush1.msra.mxu0 0.0
    %2083 = vmatprep.subr.mxu0 0.0
    %2084 = vmatpush1.msra.mxu0 0.0
    %2085 = vmatprep.subr.mxu0 0.0
    %2086 = vmatpush1.msra.mxu0 0.0
    %2087 = vmatprep.subr.mxu0 0.0
    %2088 = vmatpush1.msra.mxu0 0.0
    %2089 = vmatprep.subr.mxu0 0.0
    %2090 = vmatpush1.msra.mxu0 0.0
    %2091 = vmatprep.subr.mxu0 0.0
    %2092 = vmatpush1.msra.mxu0 0.0
    %2093 = vmatprep.subr.mxu0 0.0
    %2094 = vmatpush1.msra.mxu0 0.0
    %2095 = vmatprep.subr.mxu0 0.0
    %2096 = vmatpush1.msra.mxu0 0.0
    %2097 = vmatprep.mubr.f32.mxu0 0.0
    %2098 = vmatmul.mubr.f32.gmra.mrb[0].mxu0 %v1892
    %v2099 = vpop.f32.mrb[0].mxu0
    %v2100 = vadd.f32 0.0, %v2099
    %v2101 = vpop.f32.mrb[0].mxu0
    %v2102 = vadd.f32 0.0, %v2101
    %2103 = vdwg.mxu0
    %v2104 = vadd.f32 %v1894, %v2029
    %v2105 = vadd.f32 %v1895, %v2031
    %v2106 = vadd.f32 %v1896, %v2100
    %v2107 = vadd.f32 %v1897, %v2102
    %v2108 = vxor.u32 %v2104, 2147483648
    %v2109 = vxor.u32 %v2105, 2147483648
    %v2110 = vxor.u32 %v2106, 2147483648
    %v2111 = vmul.f32 %v2108, 1.442695
    %v2112 = vpow.pop %v2111
    %v2113 = vmul.f32 %v2109, 1.442695
    %v2114 = vpow.pop %v2113
    %v2115 = vmul.f32 %v2110, 1.442695
    %v2116 = vpow.pop %v2115
    %v2117 = vadd.f32 %v2112, 1.0
    %v2118 = vadd.f32 %v2114, 1.0
    %v2119 = vadd.f32 %v2116, 1.0
    %v2120 = vrcp.pop %v2117
    %v2121 = vmul.f32 1.0, %v2120
    %v2122 = vrcp.pop %v2118
    %v2123 = vmul.f32 1.0, %v2122
    %v2124 = vrcp.pop %v2119
    %v2125 = vmul.f32 1.0, %v2124
    %v2126 = vtanh.pop %v2107
    %v2127 = vmul.f32 %v2123, %v1890
    %v2128 = vmul.f32 %v2121, %v2126
    %v2129 = vadd.f32 %v2127, %v2128
    %v2130 = vtanh.pop %v2129
    %v2131 = vmul.f32 %v2125, %v2130
    %2132 = vst [vmem:[#allocation2 + $0x30] sm:$0xff] %v2131
    %v2133 = vld [vmem:[#allocation3 + $0xe0] sm:$0xff]
    %v2134 = vld [vmem:[#allocation3 + $0xe8] sm:$0xff]
    %v2135 = vld [vmem:[#allocation3 + $0xf0] sm:$0xff]
    %v2136 = vld [vmem:[#allocation3 + $0xf8] sm:$0xff]
    %v2137 = vld [vmem:[#allocation9] sm:$0xff]
    %v2138 = vld [vmem:[#allocation9 + $0x8] sm:$0xff]
    %v2139 = vld [vmem:[#allocation9 + $0x10] sm:$0xff]
    %v2140 = vld [vmem:[#allocation9 + $0x18] sm:$0xff]
    %v2141 = vld [vmem:[#allocation9 + $0x20] sm:$0xff]
    %v2142 = vld [vmem:[#allocation9 + $0x28] sm:$0xff]
    %v2143 = vld [vmem:[#allocation9 + $0x30] sm:$0xff]
    %v2144 = vld [vmem:[#allocation9 + $0x38] sm:$0xff]
    %v2145 = vld [vmem:[#allocation9 + $0x40] sm:$0xff]
    %v2146 = vld [vmem:[#allocation9 + $0x48] sm:$0xff]
    %v2147 = vld [vmem:[#allocation9 + $0x50] sm:$0xff]
    %v2148 = vld [vmem:[#allocation9 + $0x58] sm:$0xff]
    %v2149 = vld [vmem:[#allocation9 + $0x60] sm:$0xff]
    %v2150 = vld [vmem:[#allocation9 + $0x68] sm:$0xff]
    %v2151 = vld [vmem:[#allocation9 + $0x70] sm:$0xff]
    %v2152 = vld [vmem:[#allocation9 + $0x78] sm:$0xff]
    %v2153 = vld [vmem:[#allocation9 + $0x80] sm:$0xff]
    %v2154 = vld [vmem:[#allocation9 + $0x88] sm:$0xff]
    %v2155 = vld [vmem:[#allocation9 + $0x90] sm:$0xff]
    %v2156 = vld [vmem:[#allocation9 + $0x98] sm:$0xff]
    %v2157 = vld [vmem:[#allocation9 + $0xa0] sm:$0xff]
    %v2158 = vld [vmem:[#allocation9 + $0xa8] sm:$0xff]
    %v2159 = vld [vmem:[#allocation9 + $0xb0] sm:$0xff]
    %v2160 = vld [vmem:[#allocation9 + $0xb8] sm:$0xff]
    %v2161 = vld [vmem:[#allocation9 + $0xc0] sm:$0xff]
    %v2162 = vld [vmem:[#allocation9 + $0xc8] sm:$0xff]
    %v2163 = vld [vmem:[#allocation9 + $0xd0] sm:$0xff]
    %v2164 = vld [vmem:[#allocation9 + $0xd8] sm:$0xff]
    %v2165 = vld [vmem:[#allocation9 + $0xe0] sm:$0xff]
    %v2166 = vld [vmem:[#allocation9 + $0xe8] sm:$0xff]
    %v2167 = vld [vmem:[#allocation9 + $0xf0] sm:$0xff]
    %v2168 = vld [vmem:[#allocation9 + $0xf8] sm:$0xff]
    %v2169 = vld [vmem:[#allocation9 + $0x100] sm:$0xff]
    %v2170 = vld [vmem:[#allocation9 + $0x108] sm:$0xff]
    %v2171 = vld [vmem:[#allocation9 + $0x110] sm:$0xff]
    %v2172 = vld [vmem:[#allocation9 + $0x118] sm:$0xff]
    %v2173 = vld [vmem:[#allocation9 + $0x120] sm:$0xff]
    %v2174 = vld [vmem:[#allocation9 + $0x128] sm:$0xff]
    %v2175 = vld [vmem:[#allocation9 + $0x130] sm:$0xff]
    %v2176 = vld [vmem:[#allocation9 + $0x138] sm:$0xff]
    %v2177 = vld [vmem:[#allocation9 + $0x140] sm:$0xff]
    %v2178 = vld [vmem:[#allocation9 + $0x148] sm:$0xff]
    %v2179 = vld [vmem:[#allocation9 + $0x150] sm:$0xff]
    %v2180 = vld [vmem:[#allocation9 + $0x158] sm:$0xff]
    %v2181 = vld [vmem:[#allocation9 + $0x160] sm:$0xff]
    %v2182 = vld [vmem:[#allocation9 + $0x168] sm:$0xff]
    %v2183 = vld [vmem:[#allocation9 + $0x170] sm:$0xff]
    %v2184 = vld [vmem:[#allocation9 + $0x178] sm:$0xff]
    %v2185 = vld [vmem:[#allocation9 + $0x180] sm:$0xff]
    %v2186 = vld [vmem:[#allocation9 + $0x188] sm:$0xff]
    %v2187 = vld [vmem:[#allocation9 + $0x190] sm:$0xff]
    %v2188 = vld [vmem:[#allocation9 + $0x198] sm:$0xff]
    %v2189 = vld [vmem:[#allocation9 + $0x1a0] sm:$0xff]
    %v2190 = vld [vmem:[#allocation9 + $0x1a8] sm:$0xff]
    %v2191 = vld [vmem:[#allocation9 + $0x1b0] sm:$0xff]
    %v2192 = vld [vmem:[#allocation9 + $0x1b8] sm:$0xff]
    %v2193 = vld [vmem:[#allocation9 + $0x1c0] sm:$0xff]
    %v2194 = vld [vmem:[#allocation9 + $0x1c8] sm:$0xff]
    %v2195 = vld [vmem:[#allocation9 + $0x1d0] sm:$0xff]
    %v2196 = vld [vmem:[#allocation9 + $0x1d8] sm:$0xff]
    %v2197 = vld [vmem:[#allocation9 + $0x1e0] sm:$0xff]
    %v2198 = vld [vmem:[#allocation9 + $0x1e8] sm:$0xff]
    %v2199 = vld [vmem:[#allocation9 + $0x1f0] sm:$0xff]
    %v2200 = vld [vmem:[#allocation9 + $0x1f8] sm:$0xff]
    %2201 = vmatprep.subr.mxu0 %v2138
    %2202 = vmatpush1.msra.mxu0 %v2137
    %2203 = vmatprep.subr.mxu0 %v2142
    %2204 = vmatpush1.msra.mxu0 %v2141
    %2205 = vmatprep.subr.mxu0 %v2146
    %2206 = vmatpush1.msra.mxu0 %v2145
    %2207 = vmatprep.subr.mxu0 %v2150
    %2208 = vmatpush1.msra.mxu0 %v2149
    %2209 = vmatprep.subr.mxu0 %v2154
    %2210 = vmatpush1.msra.mxu0 %v2153
    %2211 = vmatprep.subr.mxu0 %v2158
    %2212 = vmatpush1.msra.mxu0 %v2157
    %2213 = vmatprep.subr.mxu0 %v2162
    %2214 = vmatpush1.msra.mxu0 %v2161
    %2215 = vmatprep.subr.mxu0 %v2166
    %2216 = vmatpush1.msra.mxu0 %v2165
    %2217 = vmatprep.subr.mxu0 %v2170
    %2218 = vmatpush1.msra.mxu0 %v2169
    %2219 = vmatprep.subr.mxu0 %v2174
    %2220 = vmatpush1.msra.mxu0 %v2173
    %2221 = vmatprep.subr.mxu0 %v2178
    %2222 = vmatpush1.msra.mxu0 %v2177
    %2223 = vmatprep.subr.mxu0 %v2182
    %2224 = vmatpush1.msra.mxu0 %v2181
    %2225 = vmatprep.subr.mxu0 %v2186
    %2226 = vmatpush1.msra.mxu0 %v2185
    %2227 = vmatprep.subr.mxu0 %v2190
    %2228 = vmatpush1.msra.mxu0 %v2189
    %2229 = vmatprep.subr.mxu0 %v2194
    %2230 = vmatpush1.msra.mxu0 %v2193
    %2231 = vmatprep.subr.mxu0 %v2198
    %2232 = vmatpush1.msra.mxu0 %v2197
    %2233 = vmatprep.subr.mxu0 0.0
    %2234 = vmatpush1.msra.mxu0 0.0
    %2235 = vmatprep.subr.mxu0 0.0
    %2236 = vmatpush1.msra.mxu0 0.0
    %2237 = vmatprep.subr.mxu0 0.0
    %2238 = vmatpush1.msra.mxu0 0.0
    %2239 = vmatprep.subr.mxu0 0.0
    %2240 = vmatpush1.msra.mxu0 0.0
    %2241 = vmatprep.subr.mxu0 0.0
    %2242 = vmatpush1.msra.mxu0 0.0
    %2243 = vmatprep.subr.mxu0 0.0
    %2244 = vmatpush1.msra.mxu0 0.0
    %2245 = vmatprep.subr.mxu0 0.0
    %2246 = vmatpush1.msra.mxu0 0.0
    %2247 = vmatprep.subr.mxu0 0.0
    %2248 = vmatpush1.msra.mxu0 0.0
    %2249 = vmatprep.subr.mxu0 0.0
    %2250 = vmatpush1.msra.mxu0 0.0
    %2251 = vmatprep.subr.mxu0 0.0
    %2252 = vmatpush1.msra.mxu0 0.0
    %2253 = vmatprep.subr.mxu0 0.0
    %2254 = vmatpush1.msra.mxu0 0.0
    %2255 = vmatprep.subr.mxu0 0.0
    %2256 = vmatpush1.msra.mxu0 0.0
    %2257 = vmatprep.subr.mxu0 0.0
    %2258 = vmatpush1.msra.mxu0 0.0
    %2259 = vmatprep.subr.mxu0 0.0
    %2260 = vmatpush1.msra.mxu0 0.0
    %2261 = vmatprep.subr.mxu0 0.0
    %2262 = vmatpush1.msra.mxu0 0.0
    %2263 = vmatprep.subr.mxu0 0.0
    %2264 = vmatpush1.msra.mxu0 0.0
    %2265 = vmatprep.mubr.f32.mxu0 0.0
    %2266 = vmatmul.mubr.f32.gmra.mrb[0].mxu0 %v2131
    %v2267 = vpop.f32.mrb[0].mxu0
    %v2268 = vadd.f32 0.0, %v2267
    %v2269 = vpop.f32.mrb[0].mxu0
    %v2270 = vadd.f32 0.0, %v2269
    %2271 = vdwg.mxu0
    %2272 = vmatprep.subr.mxu0 %v2140
    %2273 = vmatpush1.msra.mxu0 %v2139
    %2274 = vmatprep.subr.mxu0 %v2144
    %2275 = vmatpush1.msra.mxu0 %v2143
    %2276 = vmatprep.subr.mxu0 %v2148
    %2277 = vmatpush1.msra.mxu0 %v2147
    %2278 = vmatprep.subr.mxu0 %v2152
    %2279 = vmatpush1.msra.mxu0 %v2151
    %2280 = vmatprep.subr.mxu0 %v2156
    %2281 = vmatpush1.msra.mxu0 %v2155
    %2282 = vmatprep.subr.mxu0 %v2160
    %2283 = vmatpush1.msra.mxu0 %v2159
    %2284 = vmatprep.subr.mxu0 %v2164
    %2285 = vmatpush1.msra.mxu0 %v2163
    %2286 = vmatprep.subr.mxu0 %v2168
    %2287 = vmatpush1.msra.mxu0 %v2167
    %2288 = vmatprep.subr.mxu0 %v2172
    %2289 = vmatpush1.msra.mxu0 %v2171
    %2290 = vmatprep.subr.mxu0 %v2176
    %2291 = vmatpush1.msra.mxu0 %v2175
    %2292 = vmatprep.subr.mxu0 %v2180
    %2293 = vmatpush1.msra.mxu0 %v2179
    %2294 = vmatprep.subr.mxu0 %v2184
    %2295 = vmatpush1.msra.mxu0 %v2183
    %2296 = vmatprep.subr.mxu0 %v2188
    %2297 = vmatpush1.msra.mxu0 %v2187
    %2298 = vmatprep.subr.mxu0 %v2192
    %2299 = vmatpush1.msra.mxu0 %v2191
    %2300 = vmatprep.subr.mxu0 %v2196
    %2301 = vmatpush1.msra.mxu0 %v2195
    %2302 = vmatprep.subr.mxu0 %v2200
    %2303 = vmatpush1.msra.mxu0 %v2199
    %2304 = vmatprep.subr.mxu0 0.0
    %2305 = vmatpush1.msra.mxu0 0.0
    %2306 = vmatprep.subr.mxu0 0.0
    %2307 = vmatpush1.msra.mxu0 0.0
    %2308 = vmatprep.subr.mxu0 0.0
    %2309 = vmatpush1.msra.mxu0 0.0
    %2310 = vmatprep.subr.mxu0 0.0
    %2311 = vmatpush1.msra.mxu0 0.0
    %2312 = vmatprep.subr.mxu0 0.0
    %2313 = vmatpush1.msra.mxu0 0.0
    %2314 = vmatprep.subr.mxu0 0.0
    %2315 = vmatpush1.msra.mxu0 0.0
    %2316 = vmatprep.subr.mxu0 0.0
    %2317 = vmatpush1.msra.mxu0 0.0
    %2318 = vmatprep.subr.mxu0 0.0
    %2319 = vmatpush1.msra.mxu0 0.0
    %2320 = vmatprep.subr.mxu0 0.0
    %2321 = vmatpush1.msra.mxu0 0.0
    %2322 = vmatprep.subr.mxu0 0.0
    %2323 = vmatpush1.msra.mxu0 0.0
    %2324 = vmatprep.subr.mxu0 0.0
    %2325 = vmatpush1.msra.mxu0 0.0
    %2326 = vmatprep.subr.mxu0 0.0
    %2327 = vmatpush1.msra.mxu0 0.0
    %2328 = vmatprep.subr.mxu0 0.0
    %2329 = vmatpush1.msra.mxu0 0.0
    %2330 = vmatprep.subr.mxu0 0.0
    %2331 = vmatpush1.msra.mxu0 0.0
    %2332 = vmatprep.subr.mxu0 0.0
    %2333 = vmatpush1.msra.mxu0 0.0
    %2334 = vmatprep.subr.mxu0 0.0
    %2335 = vmatpush1.msra.mxu0 0.0
    %2336 = vmatprep.mubr.f32.mxu0 0.0
    %2337 = vmatmul.mubr.f32.gmra.mrb[0].mxu0 %v2131
    %v2338 = vpop.f32.mrb[0].mxu0
    %v2339 = vadd.f32 0.0, %v2338
    %v2340 = vpop.f32.mrb[0].mxu0
    %v2341 = vadd.f32 0.0, %v2340
    %2342 = vdwg.mxu0
    %v2343 = vadd.f32 %v2133, %v2268
    %v2344 = vadd.f32 %v2134, %v2270
    %v2345 = vadd.f32 %v2135, %v2339
    %v2346 = vadd.f32 %v2136, %v2341
    %v2347 = vxor.u32 %v2343, 2147483648
    %v2348 = vxor.u32 %v2344, 2147483648
    %v2349 = vxor.u32 %v2345, 2147483648
    %v2350 = vmul.f32 %v2347, 1.442695
    %v2351 = vpow.pop %v2350
    %v2352 = vmul.f32 %v2348, 1.442695
    %v2353 = vpow.pop %v2352
    %v2354 = vmul.f32 %v2349, 1.442695
    %v2355 = vpow.pop %v2354
    %v2356 = vadd.f32 %v2351, 1.0
    %v2357 = vadd.f32 %v2353, 1.0
    %v2358 = vadd.f32 %v2355, 1.0
    %v2359 = vrcp.pop %v2356
    %v2360 = vmul.f32 1.0, %v2359
    %v2361 = vrcp.pop %v2357
    %v2362 = vmul.f32 1.0, %v2361
    %v2363 = vrcp.pop %v2358
    %v2364 = vmul.f32 1.0, %v2363
    %v2365 = vtanh.pop %v2346
    %v2366 = vmul.f32 %v2362, %v2129
    %v2367 = vmul.f32 %v2360, %v2365
    %v2368 = vadd.f32 %v2366, %v2367
    %v2369 = vtanh.pop %v2368
    %v2370 = vmul.f32 %v2364, %v2369
    %2371 = vst [vmem:[#allocation2 + $0x38] sm:$0xff] %v2370
    %v2372 = vld [vmem:[#allocation2] sm:$0xff]
    %v2373 = vld [vmem:[#allocation2 + $0x8] sm:$0xff]
    %v2374 = vld [vmem:[#allocation2 + $0x10] sm:$0xff]
    %v2375 = vld [vmem:[#allocation2 + $0x18] sm:$0xff]
    %v2376 = vld [vmem:[#allocation2 + $0x20] sm:$0xff]
    %v2377 = vld [vmem:[#allocation2 + $0x28] sm:$0xff]
    %v2378 = vld [vmem:[#allocation2 + $0x30] sm:$0xff]
    %v2379 = vld [vmem:[#allocation2 + $0x38] sm:$0xff]
    %s2380 = scalar_lea.vmem [#allocation7], 512
    %v2381 = vld [vmem:[%s2380] sm:$0xff]
    %v2382 = vld [vmem:[%s2380 + $0x8] sm:$0xff]
    %v2383 = vld [vmem:[%s2380 + $0x10] sm:$0xff]
    %v2384 = vld [vmem:[%s2380 + $0x18] sm:$0xff]
    %v2385 = vld [vmem:[%s2380 + $0x20] sm:$0xff]
    %v2386 = vld [vmem:[%s2380 + $0x28] sm:$0xff]
    %v2387 = vld [vmem:[%s2380 + $0x30] sm:$0xff]
    %v2388 = vld [vmem:[%s2380 + $0x38] sm:$0xff]
    %v2389 = vld [vmem:[%s2380 + $0x40] sm:$0xff]
    %v2390 = vld [vmem:[%s2380 + $0x48] sm:$0xff]
    %v2391 = vld [vmem:[%s2380 + $0x50] sm:$0xff]
    %v2392 = vld [vmem:[%s2380 + $0x58] sm:$0xff]
    %v2393 = vld [vmem:[%s2380 + $0x60] sm:$0xff]
    %v2394 = vld [vmem:[%s2380 + $0x68] sm:$0xff]
    %v2395 = vld [vmem:[%s2380 + $0x70] sm:$0xff]
    %v2396 = vld [vmem:[%s2380 + $0x78] sm:$0xff]
    %v2397 = vld [vmem:[%s2380 + $0x80] sm:$0xff]
    %v2398 = vld [vmem:[%s2380 + $0x88] sm:$0xff]
    %v2399 = vld [vmem:[%s2380 + $0x90] sm:$0xff]
    %v2400 = vld [vmem:[%s2380 + $0x98] sm:$0xff]
    %v2401 = vld [vmem:[%s2380 + $0xa0] sm:$0xff]
    %v2402 = vld [vmem:[%s2380 + $0xa8] sm:$0xff]
    %v2403 = vld [vmem:[%s2380 + $0xb0] sm:$0xff]
    %v2404 = vld [vmem:[%s2380 + $0xb8] sm:$0xff]
    %v2405 = vld [vmem:[%s2380 + $0xc0] sm:$0xff]
    %v2406 = vld [vmem:[%s2380 + $0xc8] sm:$0xff]
    %v2407 = vld [vmem:[%s2380 + $0xd0] sm:$0xff]
    %v2408 = vld [vmem:[%s2380 + $0xd8] sm:$0xff]
    %v2409 = vld [vmem:[%s2380 + $0xe0] sm:$0xff]
    %v2410 = vld [vmem:[%s2380 + $0xe8] sm:$0xff]
    %v2411 = vld [vmem:[%s2380 + $0xf0] sm:$0xff]
    %v2412 = vld [vmem:[%s2380 + $0xf8] sm:$0xff]
    %v2413 = vld [vmem:[%s2380 + $0x100] sm:$0xff]
    %v2414 = vld [vmem:[%s2380 + $0x108] sm:$0xff]
    %v2415 = vld [vmem:[%s2380 + $0x110] sm:$0xff]
    %v2416 = vld [vmem:[%s2380 + $0x118] sm:$0xff]
    %v2417 = vld [vmem:[%s2380 + $0x120] sm:$0xff]
    %v2418 = vld [vmem:[%s2380 + $0x128] sm:$0xff]
    %v2419 = vld [vmem:[%s2380 + $0x130] sm:$0xff]
    %v2420 = vld [vmem:[%s2380 + $0x138] sm:$0xff]
    %v2421 = vld [vmem:[%s2380 + $0x140] sm:$0xff]
    %v2422 = vld [vmem:[%s2380 + $0x148] sm:$0xff]
    %v2423 = vld [vmem:[%s2380 + $0x150] sm:$0xff]
    %v2424 = vld [vmem:[%s2380 + $0x158] sm:$0xff]
    %v2425 = vld [vmem:[%s2380 + $0x160] sm:$0xff]
    %v2426 = vld [vmem:[%s2380 + $0x168] sm:$0xff]
    %v2427 = vld [vmem:[%s2380 + $0x170] sm:$0xff]
    %v2428 = vld [vmem:[%s2380 + $0x178] sm:$0xff]
    %v2429 = vld [vmem:[%s2380 + $0x180] sm:$0xff]
    %v2430 = vld [vmem:[%s2380 + $0x188] sm:$0xff]
    %v2431 = vld [vmem:[%s2380 + $0x190] sm:$0xff]
    %v2432 = vld [vmem:[%s2380 + $0x198] sm:$0xff]
    %v2433 = vld [vmem:[%s2380 + $0x1a0] sm:$0xff]
    %v2434 = vld [vmem:[%s2380 + $0x1a8] sm:$0xff]
    %v2435 = vld [vmem:[%s2380 + $0x1b0] sm:$0xff]
    %v2436 = vld [vmem:[%s2380 + $0x1b8] sm:$0xff]
    %v2437 = vld [vmem:[%s2380 + $0x1c0] sm:$0xff]
    %v2438 = vld [vmem:[%s2380 + $0x1c8] sm:$0xff]
    %v2439 = vld [vmem:[%s2380 + $0x1d0] sm:$0xff]
    %v2440 = vld [vmem:[%s2380 + $0x1d8] sm:$0xff]
    %v2441 = vld [vmem:[%s2380 + $0x1e0] sm:$0xff]
    %v2442 = vld [vmem:[%s2380 + $0x1e8] sm:$0xff]
    %v2443 = vld [vmem:[%s2380 + $0x1f0] sm:$0xff]
    %v2444 = vld [vmem:[%s2380 + $0x1f8] sm:$0xff]
    %s2445 = scalar_lea.vmem [#allocation10], 4
    %v2446 = vld [vmem:[%s2445] sm:$0xf]
    %v2448 = vlaneseq
    %v2449 = vshrl.u32 %v2448, 7
    %v2450 = vsub.s32 0, %v2449
    %v2451 = vrot.slane %v2446, %v2450
    %v2452 = vlaneseq
    %v2453 = vshrl.u32 %v2452, 7
    %v2454 = vsub.s32 1, %v2453
    %v2455 = vrot.slane %v2446, %v2454
    %v2456 = vlaneseq
    %v2457 = vshrl.u32 %v2456, 7
    %v2458 = vsub.s32 2, %v2457
    %v2459 = vrot.slane %v2446, %v2458
    %v2460 = vlaneseq
    %v2461 = vshrl.u32 %v2460, 7
    %v2462 = vsub.s32 3, %v2461
    %v2463 = vrot.slane %v2446, %v2462
    %2468 = vmatprep.subr.mxu0 %v2382
    %2469 = vmatpush1.msra.mxu0 %v2381
    %2470 = vmatprep.subr.mxu0 %v2386
    %2471 = vmatpush1.msra.mxu0 %v2385
    %2472 = vmatprep.subr.mxu0 %v2390
    %2473 = vmatpush1.msra.mxu0 %v2389
    %2474 = vmatprep.subr.mxu0 %v2394
    %2475 = vmatpush1.msra.mxu0 %v2393
    %2476 = vmatprep.subr.mxu0 %v2398
    %2477 = vmatpush1.msra.mxu0 %v2397
    %2478 = vmatprep.subr.mxu0 %v2402
    %2479 = vmatpush1.msra.mxu0 %v2401
    %2480 = vmatprep.subr.mxu0 %v2406
    %2481 = vmatpush1.msra.mxu0 %v2405
    %2482 = vmatprep.subr.mxu0 %v2410
    %2483 = vmatpush1.msra.mxu0 %v2409
    %2484 = vmatprep.subr.mxu0 %v2414
    %2485 = vmatpush1.msra.mxu0 %v2413
    %2486 = vmatprep.subr.mxu0 %v2418
    %2487 = vmatpush1.msra.mxu0 %v2417
    %2488 = vmatprep.subr.mxu0 %v2422
    %2489 = vmatpush1.msra.mxu0 %v2421
    %2490 = vmatprep.subr.mxu0 %v2426
    %2491 = vmatpush1.msra.mxu0 %v2425
    %2492 = vmatprep.subr.mxu0 %v2430
    %2493 = vmatpush1.msra.mxu0 %v2429
    %2494 = vmatprep.subr.mxu0 %v2434
    %2495 = vmatpush1.msra.mxu0 %v2433
    %2496 = vmatprep.subr.mxu0 %v2438
    %2497 = vmatpush1.msra.mxu0 %v2437
    %2498 = vmatprep.subr.mxu0 %v2442
    %2499 = vmatpush1.msra.mxu0 %v2441
    %2500 = vmatprep.subr.mxu0 0.0
    %2501 = vmatpush1.msra.mxu0 0.0
    %2502 = vmatprep.subr.mxu0 0.0
    %2503 = vmatpush1.msra.mxu0 0.0
    %2504 = vmatprep.subr.mxu0 0.0
    %2505 = vmatpush1.msra.mxu0 0.0
    %2506 = vmatprep.subr.mxu0 0.0
    %2507 = vmatpush1.msra.mxu0 0.0
    %2508 = vmatprep.subr.mxu0 0.0
    %2509 = vmatpush1.msra.mxu0 0.0
    %2510 = vmatprep.subr.mxu0 0.0
    %2511 = vmatpush1.msra.mxu0 0.0
    %2512 = vmatprep.subr.mxu0 0.0
    %2513 = vmatpush1.msra.mxu0 0.0
    %2514 = vmatprep.subr.mxu0 0.0
    %2515 = vmatpush1.msra.mxu0 0.0
    %2516 = vmatprep.subr.mxu0 0.0
    %2517 = vmatpush1.msra.mxu0 0.0
    %2518 = vmatprep.subr.mxu0 0.0
    %2519 = vmatpush1.msra.mxu0 0.0
    %2520 = vmatprep.subr.mxu0 0.0
    %2521 = vmatpush1.msra.mxu0 0.0
    %2522 = vmatprep.subr.mxu0 0.0
    %2523 = vmatpush1.msra.mxu0 0.0
    %2524 = vmatprep.subr.mxu0 0.0
    %2525 = vmatpush1.msra.mxu0 0.0
    %2526 = vmatprep.subr.mxu0 0.0
    %2527 = vmatpush1.msra.mxu0 0.0
    %2528 = vmatprep.subr.mxu0 0.0
    %2529 = vmatpush1.msra.mxu0 0.0
    %2530 = vmatprep.subr.mxu0 0.0
    %2531 = vmatpush1.msra.mxu0 0.0
    %2532 = vmatprep.mubr.f32.mxu0 0.0
    %2533 = vmatmul.mubr.f32.gmra.mrb[0].mxu0 %v2372
    %v2534 = vpop.f32.mrb[0].mxu0
    %v2535 = vadd.f32 %v2451, %v2534
    %v2536 = vpop.f32.mrb[0].mxu0
    %v2537 = vadd.f32 %v2455, %v2536
    %2538 = vmatprep.mubr.f32.mxu0 0.0
    %2539 = vmatmul.mubr.f32.gmra.mrb[0].mxu0 %v2373
    %v2540 = vpop.f32.mrb[0].mxu0
    %v2541 = vadd.f32 %v2451, %v2540
    %v2542 = vpop.f32.mrb[0].mxu0
    %v2543 = vadd.f32 %v2455, %v2542
    %2544 = vmatprep.mubr.f32.mxu0 0.0
    %2545 = vmatmul.mubr.f32.gmra.mrb[0].mxu0 %v2374
    %v2546 = vpop.f32.mrb[0].mxu0
    %v2547 = vadd.f32 %v2451, %v2546
    %v2548 = vpop.f32.mrb[0].mxu0
    %v2549 = vadd.f32 %v2455, %v2548
    %2550 = vmatprep.mubr.f32.mxu0 0.0
    %2551 = vmatmul.mubr.f32.gmra.mrb[0].mxu0 %v2375
    %v2552 = vpop.f32.mrb[0].mxu0
    %v2553 = vadd.f32 %v2451, %v2552
    %v2554 = vpop.f32.mrb[0].mxu0
    %v2555 = vadd.f32 %v2455, %v2554
    %2556 = vmatprep.mubr.f32.mxu0 0.0
    %2557 = vmatmul.mubr.f32.gmra.mrb[0].mxu0 %v2376
    %v2558 = vpop.f32.mrb[0].mxu0
    %v2559 = vadd.f32 %v2451, %v2558
    %v2560 = vpop.f32.mrb[0].mxu0
    %v2561 = vadd.f32 %v2455, %v2560
    %2562 = vmatprep.mubr.f32.mxu0 0.0
    %2563 = vmatmul.mubr.f32.gmra.mrb[0].mxu0 %v2377
    %v2564 = vpop.f32.mrb[0].mxu0
    %v2565 = vadd.f32 %v2451, %v2564
    %v2566 = vpop.f32.mrb[0].mxu0
    %v2567 = vadd.f32 %v2455, %v2566
    %2568 = vmatprep.mubr.f32.mxu0 0.0
    %2569 = vmatmul.mubr.f32.gmra.mrb[0].mxu0 %v2378
    %v2570 = vpop.f32.mrb[0].mxu0
    %v2571 = vadd.f32 %v2451, %v2570
    %v2572 = vpop.f32.mrb[0].mxu0
    %v2573 = vadd.f32 %v2455, %v2572
    %2574 = vmatprep.mubr.f32.mxu0 0.0
    %2575 = vmatmul.mubr.f32.gmra.mrb[0].mxu0 %v2379
    %v2576 = vpop.f32.mrb[0].mxu0
    %v2577 = vadd.f32 %v2451, %v2576
    %v2578 = vpop.f32.mrb[0].mxu0
    %v2579 = vadd.f32 %v2455, %v2578
    %2580 = vdwg.mxu0
    %2581 = vmatprep.subr.mxu0 %v2384
    %2582 = vmatpush1.msra.mxu0 %v2383
    %2583 = vmatprep.subr.mxu0 %v2388
    %2584 = vmatpush1.msra.mxu0 %v2387
    %2585 = vmatprep.subr.mxu0 %v2392
    %2586 = vmatpush1.msra.mxu0 %v2391
    %2587 = vmatprep.subr.mxu0 %v2396
    %2588 = vmatpush1.msra.mxu0 %v2395
    %2589 = vmatprep.subr.mxu0 %v2400
    %2590 = vmatpush1.msra.mxu0 %v2399
    %2591 = vmatprep.subr.mxu0 %v2404
    %2592 = vmatpush1.msra.mxu0 %v2403
    %2593 = vmatprep.subr.mxu0 %v2408
    %2594 = vmatpush1.msra.mxu0 %v2407
    %2595 = vmatprep.subr.mxu0 %v2412
    %2596 = vmatpush1.msra.mxu0 %v2411
    %2597 = vmatprep.subr.mxu0 %v2416
    %2598 = vmatpush1.msra.mxu0 %v2415
    %2599 = vmatprep.subr.mxu0 %v2420
    %2600 = vmatpush1.msra.mxu0 %v2419
    %2601 = vmatprep.subr.mxu0 %v2424
    %2602 = vmatpush1.msra.mxu0 %v2423
    %2603 = vmatprep.subr.mxu0 %v2428
    %2604 = vmatpush1.msra.mxu0 %v2427
    %2605 = vmatprep.subr.mxu0 %v2432
    %2606 = vmatpush1.msra.mxu0 %v2431
    %2607 = vmatprep.subr.mxu0 %v2436
    %2608 = vmatpush1.msra.mxu0 %v2435
    %2609 = vmatprep.subr.mxu0 %v2440
    %2610 = vmatpush1.msra.mxu0 %v2439
    %2611 = vmatprep.subr.mxu0 %v2444
    %2612 = vmatpush1.msra.mxu0 %v2443
    %2613 = vmatprep.subr.mxu0 0.0
    %2614 = vmatpush1.msra.mxu0 0.0
    %2615 = vmatprep.subr.mxu0 0.0
    %2616 = vmatpush1.msra.mxu0 0.0
    %2617 = vmatprep.subr.mxu0 0.0
    %2618 = vmatpush1.msra.mxu0 0.0
    %2619 = vmatprep.subr.mxu0 0.0
    %2620 = vmatpush1.msra.mxu0 0.0
    %2621 = vmatprep.subr.mxu0 0.0
    %2622 = vmatpush1.msra.mxu0 0.0
    %2623 = vmatprep.subr.mxu0 0.0
    %2624 = vmatpush1.msra.mxu0 0.0
    %2625 = vmatprep.subr.mxu0 0.0
    %2626 = vmatpush1.msra.mxu0 0.0
    %2627 = vmatprep.subr.mxu0 0.0
    %2628 = vmatpush1.msra.mxu0 0.0
    %2629 = vmatprep.subr.mxu0 0.0
    %2630 = vmatpush1.msra.mxu0 0.0
    %2631 = vmatprep.subr.mxu0 0.0
    %2632 = vmatpush1.msra.mxu0 0.0
    %2633 = vmatprep.subr.mxu0 0.0
    %2634 = vmatpush1.msra.mxu0 0.0
    %2635 = vmatprep.subr.mxu0 0.0
    %2636 = vmatpush1.msra.mxu0 0.0
    %2637 = vmatprep.subr.mxu0 0.0
    %2638 = vmatpush1.msra.mxu0 0.0
    %2639 = vmatprep.subr.mxu0 0.0
    %2640 = vmatpush1.msra.mxu0 0.0
    %2641 = vmatprep.subr.mxu0 0.0
    %2642 = vmatpush1.msra.mxu0 0.0
    %2643 = vmatprep.subr.mxu0 0.0
    %2644 = vmatpush1.msra.mxu0 0.0
    %2645 = vmatprep.mubr.f32.mxu0 0.0
    %2646 = vmatmul.mubr.f32.gmra.mrb[0].mxu0 %v2372
    %v2647 = vpop.f32.mrb[0].mxu0
    %v2648 = vadd.f32 %v2459, %v2647
    %v2649 = vpop.f32.mrb[0].mxu0
    %v2650 = vadd.f32 %v2463, %v2649
    %2651 = vmatprep.mubr.f32.mxu0 0.0
    %2652 = vmatmul.mubr.f32.gmra.mrb[0].mxu0 %v2373
    %v2653 = vpop.f32.mrb[0].mxu0
    %v2654 = vadd.f32 %v2459, %v2653
    %v2655 = vpop.f32.mrb[0].mxu0
    %v2656 = vadd.f32 %v2463, %v2655
    %2657 = vmatprep.mubr.f32.mxu0 0.0
    %2658 = vmatmul.mubr.f32.gmra.mrb[0].mxu0 %v2374
    %v2659 = vpop.f32.mrb[0].mxu0
    %v2660 = vadd.f32 %v2459, %v2659
    %v2661 = vpop.f32.mrb[0].mxu0
    %v2662 = vadd.f32 %v2463, %v2661
    %2663 = vmatprep.mubr.f32.mxu0 0.0
    %2664 = vmatmul.mubr.f32.gmra.mrb[0].mxu0 %v2375
    %v2665 = vpop.f32.mrb[0].mxu0
    %v2666 = vadd.f32 %v2459, %v2665
    %v2667 = vpop.f32.mrb[0].mxu0
    %v2668 = vadd.f32 %v2463, %v2667
    %2669 = vmatprep.mubr.f32.mxu0 0.0
    %2670 = vmatmul.mubr.f32.gmra.mrb[0].mxu0 %v2376
    %v2671 = vpop.f32.mrb[0].mxu0
    %v2672 = vadd.f32 %v2459, %v2671
    %v2673 = vpop.f32.mrb[0].mxu0
    %v2674 = vadd.f32 %v2463, %v2673
    %2675 = vmatprep.mubr.f32.mxu0 0.0
    %2676 = vmatmul.mubr.f32.gmra.mrb[0].mxu0 %v2377
    %v2677 = vpop.f32.mrb[0].mxu0
    %v2678 = vadd.f32 %v2459, %v2677
    %v2679 = vpop.f32.mrb[0].mxu0
    %v2680 = vadd.f32 %v2463, %v2679
    %2681 = vmatprep.mubr.f32.mxu0 0.0
    %2682 = vmatmul.mubr.f32.gmra.mrb[0].mxu0 %v2378
    %v2683 = vpop.f32.mrb[0].mxu0
    %v2684 = vadd.f32 %v2459, %v2683
    %v2685 = vpop.f32.mrb[0].mxu0
    %v2686 = vadd.f32 %v2463, %v2685
    %2687 = vmatprep.mubr.f32.mxu0 0.0
    %2688 = vmatmul.mubr.f32.gmra.mrb[0].mxu0 %v2379
    %v2689 = vpop.f32.mrb[0].mxu0
    %v2690 = vadd.f32 %v2459, %v2689
    %v2691 = vpop.f32.mrb[0].mxu0
    %v2692 = vadd.f32 %v2463, %v2691
    %2693 = vdwg.mxu0
    %2694 = vst [vmem:[#allocation3] sm:$0xff] %v2535
    %2695 = vst [vmem:[#allocation3 + $0x8] sm:$0xff] %v2537
    %2696 = vst [vmem:[#allocation3 + $0x10] sm:$0xff] %v2648
    %2697 = vst [vmem:[#allocation3 + $0x18] sm:$0xff] %v2650
    %2698 = vst [vmem:[#allocation3 + $0x20] sm:$0xff] %v2541
    %2699 = vst [vmem:[#allocation3 + $0x28] sm:$0xff] %v2543
    %2700 = vst [vmem:[#allocation3 + $0x30] sm:$0xff] %v2654
    %2701 = vst [vmem:[#allocation3 + $0x38] sm:$0xff] %v2656
    %2702 = vst [vmem:[#allocation3 + $0x40] sm:$0xff] %v2547
    %2703 = vst [vmem:[#allocation3 + $0x48] sm:$0xff] %v2549
    %2704 = vst [vmem:[#allocation3 + $0x50] sm:$0xff] %v2660
    %2705 = vst [vmem:[#allocation3 + $0x58] sm:$0xff] %v2662
    %2706 = vst [vmem:[#allocation3 + $0x60] sm:$0xff] %v2553
    %2707 = vst [vmem:[#allocation3 + $0x68] sm:$0xff] %v2555
    %2708 = vst [vmem:[#allocation3 + $0x70] sm:$0xff] %v2666
    %2709 = vst [vmem:[#allocation3 + $0x78] sm:$0xff] %v2668
    %2710 = vst [vmem:[#allocation3 + $0x80] sm:$0xff] %v2559
    %2711 = vst [vmem:[#allocation3 + $0x88] sm:$0xff] %v2561
    %2712 = vst [vmem:[#allocation3 + $0x90] sm:$0xff] %v2672
    %2713 = vst [vmem:[#allocation3 + $0x98] sm:$0xff] %v2674
    %2714 = vst [vmem:[#allocation3 + $0xa0] sm:$0xff] %v2565
    %2715 = vst [vmem:[#allocation3 + $0xa8] sm:$0xff] %v2567
    %2716 = vst [vmem:[#allocation3 + $0xb0] sm:$0xff] %v2678
    %2717 = vst [vmem:[#allocation3 + $0xb8] sm:$0xff] %v2680
    %2718 = vst [vmem:[#allocation3 + $0xc0] sm:$0xff] %v2571
    %2719 = vst [vmem:[#allocation3 + $0xc8] sm:$0xff] %v2573
    %2720 = vst [vmem:[#allocation3 + $0xd0] sm:$0xff] %v2684
    %2721 = vst [vmem:[#allocation3 + $0xd8] sm:$0xff] %v2686
    %2722 = vst [vmem:[#allocation3 + $0xe0] sm:$0xff] %v2577
    %2723 = vst [vmem:[#allocation3 + $0xe8] sm:$0xff] %v2579
    %2724 = vst [vmem:[#allocation3 + $0xf0] sm:$0xff] %v2690
    %2725 = vst [vmem:[#allocation3 + $0xf8] sm:$0xff] %v2692
    %v2726 = vld [vmem:[#allocation3] sm:$0xff]
    %v2727 = vld [vmem:[#allocation3 + $0x8] sm:$0xff]
    %v2728 = vld [vmem:[#allocation3 + $0x10] sm:$0xff]
    %v2729 = vld [vmem:[#allocation3 + $0x18] sm:$0xff]
    %s2730 = scalar_lea.vmem [#allocation9], 512
    %v2731 = vld [vmem:[%s2730] sm:$0xff]
    %v2732 = vld [vmem:[%s2730 + $0x8] sm:$0xff]
    %v2733 = vld [vmem:[%s2730 + $0x10] sm:$0xff]
    %v2734 = vld [vmem:[%s2730 + $0x18] sm:$0xff]
    %v2735 = vld [vmem:[%s2730 + $0x20] sm:$0xff]
    %v2736 = vld [vmem:[%s2730 + $0x28] sm:$0xff]
    %v2737 = vld [vmem:[%s2730 + $0x30] sm:$0xff]
    %v2738 = vld [vmem:[%s2730 + $0x38] sm:$0xff]
    %v2739 = vld [vmem:[%s2730 + $0x40] sm:$0xff]
    %v2740 = vld [vmem:[%s2730 + $0x48] sm:$0xff]
    %v2741 = vld [vmem:[%s2730 + $0x50] sm:$0xff]
    %v2742 = vld [vmem:[%s2730 + $0x58] sm:$0xff]
    %v2743 = vld [vmem:[%s2730 + $0x60] sm:$0xff]
    %v2744 = vld [vmem:[%s2730 + $0x68] sm:$0xff]
    %v2745 = vld [vmem:[%s2730 + $0x70] sm:$0xff]
    %v2746 = vld [vmem:[%s2730 + $0x78] sm:$0xff]
    %v2747 = vld [vmem:[%s2730 + $0x80] sm:$0xff]
    %v2748 = vld [vmem:[%s2730 + $0x88] sm:$0xff]
    %v2749 = vld [vmem:[%s2730 + $0x90] sm:$0xff]
    %v2750 = vld [vmem:[%s2730 + $0x98] sm:$0xff]
    %v2751 = vld [vmem:[%s2730 + $0xa0] sm:$0xff]
    %v2752 = vld [vmem:[%s2730 + $0xa8] sm:$0xff]
    %v2753 = vld [vmem:[%s2730 + $0xb0] sm:$0xff]
    %v2754 = vld [vmem:[%s2730 + $0xb8] sm:$0xff]
    %v2755 = vld [vmem:[%s2730 + $0xc0] sm:$0xff]
    %v2756 = vld [vmem:[%s2730 + $0xc8] sm:$0xff]
    %v2757 = vld [vmem:[%s2730 + $0xd0] sm:$0xff]
    %v2758 = vld [vmem:[%s2730 + $0xd8] sm:$0xff]
    %v2759 = vld [vmem:[%s2730 + $0xe0] sm:$0xff]
    %v2760 = vld [vmem:[%s2730 + $0xe8] sm:$0xff]
    %v2761 = vld [vmem:[%s2730 + $0xf0] sm:$0xff]
    %v2762 = vld [vmem:[%s2730 + $0xf8] sm:$0xff]
    %v2763 = vld [vmem:[%s2730 + $0x100] sm:$0xff]
    %v2764 = vld [vmem:[%s2730 + $0x108] sm:$0xff]
    %v2765 = vld [vmem:[%s2730 + $0x110] sm:$0xff]
    %v2766 = vld [vmem:[%s2730 + $0x118] sm:$0xff]
    %v2767 = vld [vmem:[%s2730 + $0x120] sm:$0xff]
    %v2768 = vld [vmem:[%s2730 + $0x128] sm:$0xff]
    %v2769 = vld [vmem:[%s2730 + $0x130] sm:$0xff]
    %v2770 = vld [vmem:[%s2730 + $0x138] sm:$0xff]
    %v2771 = vld [vmem:[%s2730 + $0x140] sm:$0xff]
    %v2772 = vld [vmem:[%s2730 + $0x148] sm:$0xff]
    %v2773 = vld [vmem:[%s2730 + $0x150] sm:$0xff]
    %v2774 = vld [vmem:[%s2730 + $0x158] sm:$0xff]
    %v2775 = vld [vmem:[%s2730 + $0x160] sm:$0xff]
    %v2776 = vld [vmem:[%s2730 + $0x168] sm:$0xff]
    %v2777 = vld [vmem:[%s2730 + $0x170] sm:$0xff]
    %v2778 = vld [vmem:[%s2730 + $0x178] sm:$0xff]
    %v2779 = vld [vmem:[%s2730 + $0x180] sm:$0xff]
    %v2780 = vld [vmem:[%s2730 + $0x188] sm:$0xff]
    %v2781 = vld [vmem:[%s2730 + $0x190] sm:$0xff]
    %v2782 = vld [vmem:[%s2730 + $0x198] sm:$0xff]
    %v2783 = vld [vmem:[%s2730 + $0x1a0] sm:$0xff]
    %v2784 = vld [vmem:[%s2730 + $0x1a8] sm:$0xff]
    %v2785 = vld [vmem:[%s2730 + $0x1b0] sm:$0xff]
    %v2786 = vld [vmem:[%s2730 + $0x1b8] sm:$0xff]
    %v2787 = vld [vmem:[%s2730 + $0x1c0] sm:$0xff]
    %v2788 = vld [vmem:[%s2730 + $0x1c8] sm:$0xff]
    %v2789 = vld [vmem:[%s2730 + $0x1d0] sm:$0xff]
    %v2790 = vld [vmem:[%s2730 + $0x1d8] sm:$0xff]
    %v2791 = vld [vmem:[%s2730 + $0x1e0] sm:$0xff]
    %v2792 = vld [vmem:[%s2730 + $0x1e8] sm:$0xff]
    %v2793 = vld [vmem:[%s2730 + $0x1f0] sm:$0xff]
    %v2794 = vld [vmem:[%s2730 + $0x1f8] sm:$0xff]
    %2795 = vmatprep.subr.mxu0 %v2732
    %2796 = vmatpush1.msra.mxu0 %v2731
    %2797 = vmatprep.subr.mxu0 %v2736
    %2798 = vmatpush1.msra.mxu0 %v2735
    %2799 = vmatprep.subr.mxu0 %v2740
    %2800 = vmatpush1.msra.mxu0 %v2739
    %2801 = vmatprep.subr.mxu0 %v2744
    %2802 = vmatpush1.msra.mxu0 %v2743
    %2803 = vmatprep.subr.mxu0 %v2748
    %2804 = vmatpush1.msra.mxu0 %v2747
    %2805 = vmatprep.subr.mxu0 %v2752
    %2806 = vmatpush1.msra.mxu0 %v2751
    %2807 = vmatprep.subr.mxu0 %v2756
    %2808 = vmatpush1.msra.mxu0 %v2755
    %2809 = vmatprep.subr.mxu0 %v2760
    %2810 = vmatpush1.msra.mxu0 %v2759
    %2811 = vmatprep.subr.mxu0 %v2764
    %2812 = vmatpush1.msra.mxu0 %v2763
    %2813 = vmatprep.subr.mxu0 %v2768
    %2814 = vmatpush1.msra.mxu0 %v2767
    %2815 = vmatprep.subr.mxu0 %v2772
    %2816 = vmatpush1.msra.mxu0 %v2771
    %2817 = vmatprep.subr.mxu0 %v2776
    %2818 = vmatpush1.msra.mxu0 %v2775
    %2819 = vmatprep.subr.mxu0 %v2780
    %2820 = vmatpush1.msra.mxu0 %v2779
    %2821 = vmatprep.subr.mxu0 %v2784
    %2822 = vmatpush1.msra.mxu0 %v2783
    %2823 = vmatprep.subr.mxu0 %v2788
    %2824 = vmatpush1.msra.mxu0 %v2787
    %2825 = vmatprep.subr.mxu0 %v2792
    %2826 = vmatpush1.msra.mxu0 %v2791
    %2827 = vmatprep.subr.mxu0 0.0
    %2828 = vmatpush1.msra.mxu0 0.0
    %2829 = vmatprep.subr.mxu0 0.0
    %2830 = vmatpush1.msra.mxu0 0.0
    %2831 = vmatprep.subr.mxu0 0.0
    %2832 = vmatpush1.msra.mxu0 0.0
    %2833 = vmatprep.subr.mxu0 0.0
    %2834 = vmatpush1.msra.mxu0 0.0
    %2835 = vmatprep.subr.mxu0 0.0
    %2836 = vmatpush1.msra.mxu0 0.0
    %2837 = vmatprep.subr.mxu0 0.0
    %2838 = vmatpush1.msra.mxu0 0.0
    %2839 = vmatprep.subr.mxu0 0.0
    %2840 = vmatpush1.msra.mxu0 0.0
    %2841 = vmatprep.subr.mxu0 0.0
    %2842 = vmatpush1.msra.mxu0 0.0
    %2843 = vmatprep.subr.mxu0 0.0
    %2844 = vmatpush1.msra.mxu0 0.0
    %2845 = vmatprep.subr.mxu0 0.0
    %2846 = vmatpush1.msra.mxu0 0.0
    %2847 = vmatprep.subr.mxu0 0.0
    %2848 = vmatpush1.msra.mxu0 0.0
    %2849 = vmatprep.subr.mxu0 0.0
    %2850 = vmatpush1.msra.mxu0 0.0
    %2851 = vmatprep.subr.mxu0 0.0
    %2852 = vmatpush1.msra.mxu0 0.0
    %2853 = vmatprep.subr.mxu0 0.0
    %2854 = vmatpush1.msra.mxu0 0.0
    %2855 = vmatprep.subr.mxu0 0.0
    %2856 = vmatpush1.msra.mxu0 0.0
    %2857 = vmatprep.subr.mxu0 0.0
    %2858 = vmatpush1.msra.mxu0 0.0
    %2859 = vmatprep.mubr.f32.mxu0 0.0
    %2860 = vmatmul.mubr.f32.gmra.mrb[0].mxu0 0.0
    %v2861 = vpop.f32.mrb[0].mxu0
    %v2862 = vadd.f32 0.0, %v2861
    %v2863 = vpop.f32.mrb[0].mxu0
    %v2864 = vadd.f32 0.0, %v2863
    %2865 = vdwg.mxu0
    %2866 = vmatprep.subr.mxu0 %v2734
    %2867 = vmatpush1.msra.mxu0 %v2733
    %2868 = vmatprep.subr.mxu0 %v2738
    %2869 = vmatpush1.msra.mxu0 %v2737
    %2870 = vmatprep.subr.mxu0 %v2742
    %2871 = vmatpush1.msra.mxu0 %v2741
    %2872 = vmatprep.subr.mxu0 %v2746
    %2873 = vmatpush1.msra.mxu0 %v2745
    %2874 = vmatprep.subr.mxu0 %v2750
    %2875 = vmatpush1.msra.mxu0 %v2749
    %2876 = vmatprep.subr.mxu0 %v2754
    %2877 = vmatpush1.msra.mxu0 %v2753
    %2878 = vmatprep.subr.mxu0 %v2758
    %2879 = vmatpush1.msra.mxu0 %v2757
    %2880 = vmatprep.subr.mxu0 %v2762
    %2881 = vmatpush1.msra.mxu0 %v2761
    %2882 = vmatprep.subr.mxu0 %v2766
    %2883 = vmatpush1.msra.mxu0 %v2765
    %2884 = vmatprep.subr.mxu0 %v2770
    %2885 = vmatpush1.msra.mxu0 %v2769
    %2886 = vmatprep.subr.mxu0 %v2774
    %2887 = vmatpush1.msra.mxu0 %v2773
    %2888 = vmatprep.subr.mxu0 %v2778
    %2889 = vmatpush1.msra.mxu0 %v2777
    %2890 = vmatprep.subr.mxu0 %v2782
    %2891 = vmatpush1.msra.mxu0 %v2781
    %2892 = vmatprep.subr.mxu0 %v2786
    %2893 = vmatpush1.msra.mxu0 %v2785
    %2894 = vmatprep.subr.mxu0 %v2790
    %2895 = vmatpush1.msra.mxu0 %v2789
    %2896 = vmatprep.subr.mxu0 %v2794
    %2897 = vmatpush1.msra.mxu0 %v2793
    %2898 = vmatprep.subr.mxu0 0.0
    %2899 = vmatpush1.msra.mxu0 0.0
    %2900 = vmatprep.subr.mxu0 0.0
    %2901 = vmatpush1.msra.mxu0 0.0
    %2902 = vmatprep.subr.mxu0 0.0
    %2903 = vmatpush1.msra.mxu0 0.0
    %2904 = vmatprep.subr.mxu0 0.0
    %2905 = vmatpush1.msra.mxu0 0.0
    %2906 = vmatprep.subr.mxu0 0.0
    %2907 = vmatpush1.msra.mxu0 0.0
    %2908 = vmatprep.subr.mxu0 0.0
    %2909 = vmatpush1.msra.mxu0 0.0
    %2910 = vmatprep.subr.mxu0 0.0
    %2911 = vmatpush1.msra.mxu0 0.0
    %2912 = vmatprep.subr.mxu0 0.0
    %2913 = vmatpush1.msra.mxu0 0.0
    %2914 = vmatprep.subr.mxu0 0.0
    %2915 = vmatpush1.msra.mxu0 0.0
    %2916 = vmatprep.subr.mxu0 0.0
    %2917 = vmatpush1.msra.mxu0 0.0
    %2918 = vmatprep.subr.mxu0 0.0
    %2919 = vmatpush1.msra.mxu0 0.0
    %2920 = vmatprep.subr.mxu0 0.0
    %2921 = vmatpush1.msra.mxu0 0.0
    %2922 = vmatprep.subr.mxu0 0.0
    %2923 = vmatpush1.msra.mxu0 0.0
    %2924 = vmatprep.subr.mxu0 0.0
    %2925 = vmatpush1.msra.mxu0 0.0
    %2926 = vmatprep.subr.mxu0 0.0
    %2927 = vmatpush1.msra.mxu0 0.0
    %2928 = vmatprep.subr.mxu0 0.0
    %2929 = vmatpush1.msra.mxu0 0.0
    %2930 = vmatprep.mubr.f32.mxu0 0.0
    %2931 = vmatmul.mubr.f32.gmra.mrb[0].mxu0 0.0
    %v2932 = vpop.f32.mrb[0].mxu0
    %v2933 = vadd.f32 0.0, %v2932
    %v2934 = vpop.f32.mrb[0].mxu0
    %v2935 = vadd.f32 0.0, %v2934
    %2936 = vdwg.mxu0
    %v2937 = vadd.f32 %v2726, %v2862
    %v2938 = vadd.f32 %v2727, %v2864
    %v2939 = vadd.f32 %v2728, %v2933
    %v2940 = vadd.f32 %v2729, %v2935
    %v2941 = vxor.u32 %v2937, 2147483648
    %v2942 = vxor.u32 %v2938, 2147483648
    %v2943 = vxor.u32 %v2939, 2147483648
    %v2944 = vmul.f32 %v2941, 1.442695
    %v2945 = vpow.pop %v2944
    %v2946 = vmul.f32 %v2942, 1.442695
    %v2947 = vpow.pop %v2946
    %v2948 = vmul.f32 %v2943, 1.442695
    %v2949 = vpow.pop %v2948
    %v2950 = vadd.f32 %v2945, 1.0
    %v2951 = vadd.f32 %v2947, 1.0
    %v2952 = vadd.f32 %v2949, 1.0
    %v2953 = vrcp.pop %v2950
    %v2954 = vmul.f32 1.0, %v2953
    %v2955 = vrcp.pop %v2951
    %v2956 = vmul.f32 1.0, %v2955
    %v2957 = vrcp.pop %v2952
    %v2958 = vmul.f32 1.0, %v2957
    %v2959 = vtanh.pop %v2940
    %v2960 = vmul.f32 %v2956, 0.0
    %v2961 = vmul.f32 %v2954, %v2959
    %v2962 = vadd.f32 %v2960, %v2961
    %v2963 = vtanh.pop %v2962
    %v2964 = vmul.f32 %v2958, %v2963
    %2965 = vst [vmem:[#allocation2] sm:$0xff] %v2964
    %v2966 = vld [vmem:[#allocation3 + $0x20] sm:$0xff]
    %v2967 = vld [vmem:[#allocation3 + $0x28] sm:$0xff]
    %v2968 = vld [vmem:[#allocation3 + $0x30] sm:$0xff]
    %v2969 = vld [vmem:[#allocation3 + $0x38] sm:$0xff]
    %v2970 = vld [vmem:[%s2730] sm:$0xff]
    %v2971 = vld [vmem:[%s2730 + $0x8] sm:$0xff]
    %v2972 = vld [vmem:[%s2730 + $0x10] sm:$0xff]
    %v2973 = vld [vmem:[%s2730 + $0x18] sm:$0xff]
    %v2974 = vld [vmem:[%s2730 + $0x20] sm:$0xff]
    %v2975 = vld [vmem:[%s2730 + $0x28] sm:$0xff]
    %v2976 = vld [vmem:[%s2730 + $0x30] sm:$0xff]
    %v2977 = vld [vmem:[%s2730 + $0x38] sm:$0xff]
    %v2978 = vld [vmem:[%s2730 + $0x40] sm:$0xff]
    %v2979 = vld [vmem:[%s2730 + $0x48] sm:$0xff]
    %v2980 = vld [vmem:[%s2730 + $0x50] sm:$0xff]
    %v2981 = vld [vmem:[%s2730 + $0x58] sm:$0xff]
    %v2982 = vld [vmem:[%s2730 + $0x60] sm:$0xff]
    %v2983 = vld [vmem:[%s2730 + $0x68] sm:$0xff]
    %v2984 = vld [vmem:[%s2730 + $0x70] sm:$0xff]
    %v2985 = vld [vmem:[%s2730 + $0x78] sm:$0xff]
    %v2986 = vld [vmem:[%s2730 + $0x80] sm:$0xff]
    %v2987 = vld [vmem:[%s2730 + $0x88] sm:$0xff]
    %v2988 = vld [vmem:[%s2730 + $0x90] sm:$0xff]
    %v2989 = vld [vmem:[%s2730 + $0x98] sm:$0xff]
    %v2990 = vld [vmem:[%s2730 + $0xa0] sm:$0xff]
    %v2991 = vld [vmem:[%s2730 + $0xa8] sm:$0xff]
    %v2992 = vld [vmem:[%s2730 + $0xb0] sm:$0xff]
    %v2993 = vld [vmem:[%s2730 + $0xb8] sm:$0xff]
    %v2994 = vld [vmem:[%s2730 + $0xc0] sm:$0xff]
    %v2995 = vld [vmem:[%s2730 + $0xc8] sm:$0xff]
    %v2996 = vld [vmem:[%s2730 + $0xd0] sm:$0xff]
    %v2997 = vld [vmem:[%s2730 + $0xd8] sm:$0xff]
    %v2998 = vld [vmem:[%s2730 + $0xe0] sm:$0xff]
    %v2999 = vld [vmem:[%s2730 + $0xe8] sm:$0xff]
    %v3000 = vld [vmem:[%s2730 + $0xf0] sm:$0xff]
    %v3001 = vld [vmem:[%s2730 + $0xf8] sm:$0xff]
    %v3002 = vld [vmem:[%s2730 + $0x100] sm:$0xff]
    %v3003 = vld [vmem:[%s2730 + $0x108] sm:$0xff]
    %v3004 = vld [vmem:[%s2730 + $0x110] sm:$0xff]
    %v3005 = vld [vmem:[%s2730 + $0x118] sm:$0xff]
    %v3006 = vld [vmem:[%s2730 + $0x120] sm:$0xff]
    %v3007 = vld [vmem:[%s2730 + $0x128] sm:$0xff]
    %v3008 = vld [vmem:[%s2730 + $0x130] sm:$0xff]
    %v3009 = vld [vmem:[%s2730 + $0x138] sm:$0xff]
    %v3010 = vld [vmem:[%s2730 + $0x140] sm:$0xff]
    %v3011 = vld [vmem:[%s2730 + $0x148] sm:$0xff]
    %v3012 = vld [vmem:[%s2730 + $0x150] sm:$0xff]
    %v3013 = vld [vmem:[%s2730 + $0x158] sm:$0xff]
    %v3014 = vld [vmem:[%s2730 + $0x160] sm:$0xff]
    %v3015 = vld [vmem:[%s2730 + $0x168] sm:$0xff]
    %v3016 = vld [vmem:[%s2730 + $0x170] sm:$0xff]
    %v3017 = vld [vmem:[%s2730 + $0x178] sm:$0xff]
    %v3018 = vld [vmem:[%s2730 + $0x180] sm:$0xff]
    %v3019 = vld [vmem:[%s2730 + $0x188] sm:$0xff]
    %v3020 = vld [vmem:[%s2730 + $0x190] sm:$0xff]
    %v3021 = vld [vmem:[%s2730 + $0x198] sm:$0xff]
    %v3022 = vld [vmem:[%s2730 + $0x1a0] sm:$0xff]
    %v3023 = vld [vmem:[%s2730 + $0x1a8] sm:$0xff]
    %v3024 = vld [vmem:[%s2730 + $0x1b0] sm:$0xff]
    %v3025 = vld [vmem:[%s2730 + $0x1b8] sm:$0xff]
    %v3026 = vld [vmem:[%s2730 + $0x1c0] sm:$0xff]
    %v3027 = vld [vmem:[%s2730 + $0x1c8] sm:$0xff]
    %v3028 = vld [vmem:[%s2730 + $0x1d0] sm:$0xff]
    %v3029 = vld [vmem:[%s2730 + $0x1d8] sm:$0xff]
    %v3030 = vld [vmem:[%s2730 + $0x1e0] sm:$0xff]
    %v3031 = vld [vmem:[%s2730 + $0x1e8] sm:$0xff]
    %v3032 = vld [vmem:[%s2730 + $0x1f0] sm:$0xff]
    %v3033 = vld [vmem:[%s2730 + $0x1f8] sm:$0xff]
    %3034 = vmatprep.subr.mxu0 %v2971
    %3035 = vmatpush1.msra.mxu0 %v2970
    %3036 = vmatprep.subr.mxu0 %v2975
    %3037 = vmatpush1.msra.mxu0 %v2974
    %3038 = vmatprep.subr.mxu0 %v2979
    %3039 = vmatpush1.msra.mxu0 %v2978
    %3040 = vmatprep.subr.mxu0 %v2983
    %3041 = vmatpush1.msra.mxu0 %v2982
    %3042 = vmatprep.subr.mxu0 %v2987
    %3043 = vmatpush1.msra.mxu0 %v2986
    %3044 = vmatprep.subr.mxu0 %v2991
    %3045 = vmatpush1.msra.mxu0 %v2990
    %3046 = vmatprep.subr.mxu0 %v2995
    %3047 = vmatpush1.msra.mxu0 %v2994
    %3048 = vmatprep.subr.mxu0 %v2999
    %3049 = vmatpush1.msra.mxu0 %v2998
    %3050 = vmatprep.subr.mxu0 %v3003
    %3051 = vmatpush1.msra.mxu0 %v3002
    %3052 = vmatprep.subr.mxu0 %v3007
    %3053 = vmatpush1.msra.mxu0 %v3006
    %3054 = vmatprep.subr.mxu0 %v3011
    %3055 = vmatpush1.msra.mxu0 %v3010
    %3056 = vmatprep.subr.mxu0 %v3015
    %3057 = vmatpush1.msra.mxu0 %v3014
    %3058 = vmatprep.subr.mxu0 %v3019
    %3059 = vmatpush1.msra.mxu0 %v3018
    %3060 = vmatprep.subr.mxu0 %v3023
    %3061 = vmatpush1.msra.mxu0 %v3022
    %3062 = vmatprep.subr.mxu0 %v3027
    %3063 = vmatpush1.msra.mxu0 %v3026
    %3064 = vmatprep.subr.mxu0 %v3031
    %3065 = vmatpush1.msra.mxu0 %v3030
    %3066 = vmatprep.subr.mxu0 0.0
    %3067 = vmatpush1.msra.mxu0 0.0
    %3068 = vmatprep.subr.mxu0 0.0
    %3069 = vmatpush1.msra.mxu0 0.0
    %3070 = vmatprep.subr.mxu0 0.0
    %3071 = vmatpush1.msra.mxu0 0.0
    %3072 = vmatprep.subr.mxu0 0.0
    %3073 = vmatpush1.msra.mxu0 0.0
    %3074 = vmatprep.subr.mxu0 0.0
    %3075 = vmatpush1.msra.mxu0 0.0
    %3076 = vmatprep.subr.mxu0 0.0
    %3077 = vmatpush1.msra.mxu0 0.0
    %3078 = vmatprep.subr.mxu0 0.0
    %3079 = vmatpush1.msra.mxu0 0.0
    %3080 = vmatprep.subr.mxu0 0.0
    %3081 = vmatpush1.msra.mxu0 0.0
    %3082 = vmatprep.subr.mxu0 0.0
    %3083 = vmatpush1.msra.mxu0 0.0
    %3084 = vmatprep.subr.mxu0 0.0
    %3085 = vmatpush1.msra.mxu0 0.0
    %3086 = vmatprep.subr.mxu0 0.0
    %3087 = vmatpush1.msra.mxu0 0.0
    %3088 = vmatprep.subr.mxu0 0.0
    %3089 = vmatpush1.msra.mxu0 0.0
    %3090 = vmatprep.subr.mxu0 0.0
    %3091 = vmatpush1.msra.mxu0 0.0
    %3092 = vmatprep.subr.mxu0 0.0
    %3093 = vmatpush1.msra.mxu0 0.0
    %3094 = vmatprep.subr.mxu0 0.0
    %3095 = vmatpush1.msra.mxu0 0.0
    %3096 = vmatprep.subr.mxu0 0.0
    %3097 = vmatpush1.msra.mxu0 0.0
    %3098 = vmatprep.mubr.f32.mxu0 0.0
    %3099 = vmatmul.mubr.f32.gmra.mrb[0].mxu0 %v2964
    %v3100 = vpop.f32.mrb[0].mxu0
    %v3101 = vadd.f32 0.0, %v3100
    %v3102 = vpop.f32.mrb[0].mxu0
    %v3103 = vadd.f32 0.0, %v3102
    %3104 = vdwg.mxu0
    %3105 = vmatprep.subr.mxu0 %v2973
    %3106 = vmatpush1.msra.mxu0 %v2972
    %3107 = vmatprep.subr.mxu0 %v2977
    %3108 = vmatpush1.msra.mxu0 %v2976
    %3109 = vmatprep.subr.mxu0 %v2981
    %3110 = vmatpush1.msra.mxu0 %v2980
    %3111 = vmatprep.subr.mxu0 %v2985
    %3112 = vmatpush1.msra.mxu0 %v2984
    %3113 = vmatprep.subr.mxu0 %v2989
    %3114 = vmatpush1.msra.mxu0 %v2988
    %3115 = vmatprep.subr.mxu0 %v2993
    %3116 = vmatpush1.msra.mxu0 %v2992
    %3117 = vmatprep.subr.mxu0 %v2997
    %3118 = vmatpush1.msra.mxu0 %v2996
    %3119 = vmatprep.subr.mxu0 %v3001
    %3120 = vmatpush1.msra.mxu0 %v3000
    %3121 = vmatprep.subr.mxu0 %v3005
    %3122 = vmatpush1.msra.mxu0 %v3004
    %3123 = vmatprep.subr.mxu0 %v3009
    %3124 = vmatpush1.msra.mxu0 %v3008
    %3125 = vmatprep.subr.mxu0 %v3013
    %3126 = vmatpush1.msra.mxu0 %v3012
    %3127 = vmatprep.subr.mxu0 %v3017
    %3128 = vmatpush1.msra.mxu0 %v3016
    %3129 = vmatprep.subr.mxu0 %v3021
    %3130 = vmatpush1.msra.mxu0 %v3020
    %3131 = vmatprep.subr.mxu0 %v3025
    %3132 = vmatpush1.msra.mxu0 %v3024
    %3133 = vmatprep.subr.mxu0 %v3029
    %3134 = vmatpush1.msra.mxu0 %v3028
    %3135 = vmatprep.subr.mxu0 %v3033
    %3136 = vmatpush1.msra.mxu0 %v3032
    %3137 = vmatprep.subr.mxu0 0.0
    %3138 = vmatpush1.msra.mxu0 0.0
    %3139 = vmatprep.subr.mxu0 0.0
    %3140 = vmatpush1.msra.mxu0 0.0
    %3141 = vmatprep.subr.mxu0 0.0
    %3142 = vmatpush1.msra.mxu0 0.0
    %3143 = vmatprep.subr.mxu0 0.0
    %3144 = vmatpush1.msra.mxu0 0.0
    %3145 = vmatprep.subr.mxu0 0.0
    %3146 = vmatpush1.msra.mxu0 0.0
    %3147 = vmatprep.subr.mxu0 0.0
    %3148 = vmatpush1.msra.mxu0 0.0
    %3149 = vmatprep.subr.mxu0 0.0
    %3150 = vmatpush1.msra.mxu0 0.0
    %3151 = vmatprep.subr.mxu0 0.0
    %3152 = vmatpush1.msra.mxu0 0.0
    %3153 = vmatprep.subr.mxu0 0.0
    %3154 = vmatpush1.msra.mxu0 0.0
    %3155 = vmatprep.subr.mxu0 0.0
    %3156 = vmatpush1.msra.mxu0 0.0
    %3157 = vmatprep.subr.mxu0 0.0
    %3158 = vmatpush1.msra.mxu0 0.0
    %3159 = vmatprep.subr.mxu0 0.0
    %3160 = vmatpush1.msra.mxu0 0.0
    %3161 = vmatprep.subr.mxu0 0.0
    %3162 = vmatpush1.msra.mxu0 0.0
    %3163 = vmatprep.subr.mxu0 0.0
    %3164 = vmatpush1.msra.mxu0 0.0
    %3165 = vmatprep.subr.mxu0 0.0
    %3166 = vmatpush1.msra.mxu0 0.0
    %3167 = vmatprep.subr.mxu0 0.0
    %3168 = vmatpush1.msra.mxu0 0.0
    %3169 = vmatprep.mubr.f32.mxu0 0.0
    %3170 = vmatmul.mubr.f32.gmra.mrb[0].mxu0 %v2964
    %v3171 = vpop.f32.mrb[0].mxu0
    %v3172 = vadd.f32 0.0, %v3171
    %v3173 = vpop.f32.mrb[0].mxu0
    %v3174 = vadd.f32 0.0, %v3173
    %3175 = vdwg.mxu0
    %v3176 = vadd.f32 %v2966, %v3101
    %v3177 = vadd.f32 %v2967, %v3103
    %v3178 = vadd.f32 %v2968, %v3172
    %v3179 = vadd.f32 %v2969, %v3174
    %v3180 = vxor.u32 %v3176, 2147483648
    %v3181 = vxor.u32 %v3177, 2147483648
    %v3182 = vxor.u32 %v3178, 2147483648
    %v3183 = vmul.f32 %v3180, 1.442695
    %v3184 = vpow.pop %v3183
    %v3185 = vmul.f32 %v3181, 1.442695
    %v3186 = vpow.pop %v3185
    %v3187 = vmul.f32 %v3182, 1.442695
    %v3188 = vpow.pop %v3187
    %v3189 = vadd.f32 %v3184, 1.0
    %v3190 = vadd.f32 %v3186, 1.0
    %v3191 = vadd.f32 %v3188, 1.0
    %v3192 = vrcp.pop %v3189
    %v3193 = vmul.f32 1.0, %v3192
    %v3194 = vrcp.pop %v3190
    %v3195 = vmul.f32 1.0, %v3194
    %v3196 = vrcp.pop %v3191
    %v3197 = vmul.f32 1.0, %v3196
    %v3198 = vtanh.pop %v3179
    %v3199 = vmul.f32 %v3195, %v2962
    %v3200 = vmul.f32 %v3193, %v3198
    %v3201 = vadd.f32 %v3199, %v3200
    %v3202 = vtanh.pop %v3201
    %v3203 = vmul.f32 %v3197, %v3202
    %3204 = vst [vmem:[#allocation2 + $0x8] sm:$0xff] %v3203
    %v3205 = vld [vmem:[#allocation3 + $0x40] sm:$0xff]
    %v3206 = vld [vmem:[#allocation3 + $0x48] sm:$0xff]
    %v3207 = vld [vmem:[#allocation3 + $0x50] sm:$0xff]
    %v3208 = vld [vmem:[#allocation3 + $0x58] sm:$0xff]
    %v3209 = vld [vmem:[%s2730] sm:$0xff]
    %v3210 = vld [vmem:[%s2730 + $0x8] sm:$0xff]
    %v3211 = vld [vmem:[%s2730 + $0x10] sm:$0xff]
    %v3212 = vld [vmem:[%s2730 + $0x18] sm:$0xff]
    %v3213 = vld [vmem:[%s2730 + $0x20] sm:$0xff]
    %v3214 = vld [vmem:[%s2730 + $0x28] sm:$0xff]
    %v3215 = vld [vmem:[%s2730 + $0x30] sm:$0xff]
    %v3216 = vld [vmem:[%s2730 + $0x38] sm:$0xff]
    %v3217 = vld [vmem:[%s2730 + $0x40] sm:$0xff]
    %v3218 = vld [vmem:[%s2730 + $0x48] sm:$0xff]
    %v3219 = vld [vmem:[%s2730 + $0x50] sm:$0xff]
    %v3220 = vld [vmem:[%s2730 + $0x58] sm:$0xff]
    %v3221 = vld [vmem:[%s2730 + $0x60] sm:$0xff]
    %v3222 = vld [vmem:[%s2730 + $0x68] sm:$0xff]
    %v3223 = vld [vmem:[%s2730 + $0x70] sm:$0xff]
    %v3224 = vld [vmem:[%s2730 + $0x78] sm:$0xff]
    %v3225 = vld [vmem:[%s2730 + $0x80] sm:$0xff]
    %v3226 = vld [vmem:[%s2730 + $0x88] sm:$0xff]
    %v3227 = vld [vmem:[%s2730 + $0x90] sm:$0xff]
    %v3228 = vld [vmem:[%s2730 + $0x98] sm:$0xff]
    %v3229 = vld [vmem:[%s2730 + $0xa0] sm:$0xff]
    %v3230 = vld [vmem:[%s2730 + $0xa8] sm:$0xff]
    %v3231 = vld [vmem:[%s2730 + $0xb0] sm:$0xff]
    %v3232 = vld [vmem:[%s2730 + $0xb8] sm:$0xff]
    %v3233 = vld [vmem:[%s2730 + $0xc0] sm:$0xff]
    %v3234 = vld [vmem:[%s2730 + $0xc8] sm:$0xff]
    %v3235 = vld [vmem:[%s2730 + $0xd0] sm:$0xff]
    %v3236 = vld [vmem:[%s2730 + $0xd8] sm:$0xff]
    %v3237 = vld [vmem:[%s2730 + $0xe0] sm:$0xff]
    %v3238 = vld [vmem:[%s2730 + $0xe8] sm:$0xff]
    %v3239 = vld [vmem:[%s2730 + $0xf0] sm:$0xff]
    %v3240 = vld [vmem:[%s2730 + $0xf8] sm:$0xff]
    %v3241 = vld [vmem:[%s2730 + $0x100] sm:$0xff]
    %v3242 = vld [vmem:[%s2730 + $0x108] sm:$0xff]
    %v3243 = vld [vmem:[%s2730 + $0x110] sm:$0xff]
    %v3244 = vld [vmem:[%s2730 + $0x118] sm:$0xff]
    %v3245 = vld [vmem:[%s2730 + $0x120] sm:$0xff]
    %v3246 = vld [vmem:[%s2730 + $0x128] sm:$0xff]
    %v3247 = vld [vmem:[%s2730 + $0x130] sm:$0xff]
    %v3248 = vld [vmem:[%s2730 + $0x138] sm:$0xff]
    %v3249 = vld [vmem:[%s2730 + $0x140] sm:$0xff]
    %v3250 = vld [vmem:[%s2730 + $0x148] sm:$0xff]
    %v3251 = vld [vmem:[%s2730 + $0x150] sm:$0xff]
    %v3252 = vld [vmem:[%s2730 + $0x158] sm:$0xff]
    %v3253 = vld [vmem:[%s2730 + $0x160] sm:$0xff]
    %v3254 = vld [vmem:[%s2730 + $0x168] sm:$0xff]
    %v3255 = vld [vmem:[%s2730 + $0x170] sm:$0xff]
    %v3256 = vld [vmem:[%s2730 + $0x178] sm:$0xff]
    %v3257 = vld [vmem:[%s2730 + $0x180] sm:$0xff]
    %v3258 = vld [vmem:[%s2730 + $0x188] sm:$0xff]
    %v3259 = vld [vmem:[%s2730 + $0x190] sm:$0xff]
    %v3260 = vld [vmem:[%s2730 + $0x198] sm:$0xff]
    %v3261 = vld [vmem:[%s2730 + $0x1a0] sm:$0xff]
    %v3262 = vld [vmem:[%s2730 + $0x1a8] sm:$0xff]
    %v3263 = vld [vmem:[%s2730 + $0x1b0] sm:$0xff]
    %v3264 = vld [vmem:[%s2730 + $0x1b8] sm:$0xff]
    %v3265 = vld [vmem:[%s2730 + $0x1c0] sm:$0xff]
    %v3266 = vld [vmem:[%s2730 + $0x1c8] sm:$0xff]
    %v3267 = vld [vmem:[%s2730 + $0x1d0] sm:$0xff]
    %v3268 = vld [vmem:[%s2730 + $0x1d8] sm:$0xff]
    %v3269 = vld [vmem:[%s2730 + $0x1e0] sm:$0xff]
    %v3270 = vld [vmem:[%s2730 + $0x1e8] sm:$0xff]
    %v3271 = vld [vmem:[%s2730 + $0x1f0] sm:$0xff]
    %v3272 = vld [vmem:[%s2730 + $0x1f8] sm:$0xff]
    %3273 = vmatprep.subr.mxu0 %v3210
    %3274 = vmatpush1.msra.mxu0 %v3209
    %3275 = vmatprep.subr.mxu0 %v3214
    %3276 = vmatpush1.msra.mxu0 %v3213
    %3277 = vmatprep.subr.mxu0 %v3218
    %3278 = vmatpush1.msra.mxu0 %v3217
    %3279 = vmatprep.subr.mxu0 %v3222
    %3280 = vmatpush1.msra.mxu0 %v3221
    %3281 = vmatprep.subr.mxu0 %v3226
    %3282 = vmatpush1.msra.mxu0 %v3225
    %3283 = vmatprep.subr.mxu0 %v3230
    %3284 = vmatpush1.msra.mxu0 %v3229
    %3285 = vmatprep.subr.mxu0 %v3234
    %3286 = vmatpush1.msra.mxu0 %v3233
    %3287 = vmatprep.subr.mxu0 %v3238
    %3288 = vmatpush1.msra.mxu0 %v3237
    %3289 = vmatprep.subr.mxu0 %v3242
    %3290 = vmatpush1.msra.mxu0 %v3241
    %3291 = vmatprep.subr.mxu0 %v3246
    %3292 = vmatpush1.msra.mxu0 %v3245
    %3293 = vmatprep.subr.mxu0 %v3250
    %3294 = vmatpush1.msra.mxu0 %v3249
    %3295 = vmatprep.subr.mxu0 %v3254
    %3296 = vmatpush1.msra.mxu0 %v3253
    %3297 = vmatprep.subr.mxu0 %v3258
    %3298 = vmatpush1.msra.mxu0 %v3257
    %3299 = vmatprep.subr.mxu0 %v3262
    %3300 = vmatpush1.msra.mxu0 %v3261
    %3301 = vmatprep.subr.mxu0 %v3266
    %3302 = vmatpush1.msra.mxu0 %v3265
    %3303 = vmatprep.subr.mxu0 %v3270
    %3304 = vmatpush1.msra.mxu0 %v3269
    %3305 = vmatprep.subr.mxu0 0.0
    %3306 = vmatpush1.msra.mxu0 0.0
    %3307 = vmatprep.subr.mxu0 0.0
    %3308 = vmatpush1.msra.mxu0 0.0
    %3309 = vmatprep.subr.mxu0 0.0
    %3310 = vmatpush1.msra.mxu0 0.0
    %3311 = vmatprep.subr.mxu0 0.0
    %3312 = vmatpush1.msra.mxu0 0.0
    %3313 = vmatprep.subr.mxu0 0.0
    %3314 = vmatpush1.msra.mxu0 0.0
    %3315 = vmatprep.subr.mxu0 0.0
    %3316 = vmatpush1.msra.mxu0 0.0
    %3317 = vmatprep.subr.mxu0 0.0
    %3318 = vmatpush1.msra.mxu0 0.0
    %3319 = vmatprep.subr.mxu0 0.0
    %3320 = vmatpush1.msra.mxu0 0.0
    %3321 = vmatprep.subr.mxu0 0.0
    %3322 = vmatpush1.msra.mxu0 0.0
    %3323 = vmatprep.subr.mxu0 0.0
    %3324 = vmatpush1.msra.mxu0 0.0
    %3325 = vmatprep.subr.mxu0 0.0
    %3326 = vmatpush1.msra.mxu0 0.0
    %3327 = vmatprep.subr.mxu0 0.0
    %3328 = vmatpush1.msra.mxu0 0.0
    %3329 = vmatprep.subr.mxu0 0.0
    %3330 = vmatpush1.msra.mxu0 0.0
    %3331 = vmatprep.subr.mxu0 0.0
    %3332 = vmatpush1.msra.mxu0 0.0
    %3333 = vmatprep.subr.mxu0 0.0
    %3334 = vmatpush1.msra.mxu0 0.0
    %3335 = vmatprep.subr.mxu0 0.0
    %3336 = vmatpush1.msra.mxu0 0.0
    %3337 = vmatprep.mubr.f32.mxu0 0.0
    %3338 = vmatmul.mubr.f32.gmra.mrb[0].mxu0 %v3203
    %v3339 = vpop.f32.mrb[0].mxu0
    %v3340 = vadd.f32 0.0, %v3339
    %v3341 = vpop.f32.mrb[0].mxu0
    %v3342 = vadd.f32 0.0, %v3341
    %3343 = vdwg.mxu0
    %3344 = vmatprep.subr.mxu0 %v3212
    %3345 = vmatpush1.msra.mxu0 %v3211
    %3346 = vmatprep.subr.mxu0 %v3216
    %3347 = vmatpush1.msra.mxu0 %v3215
    %3348 = vmatprep.subr.mxu0 %v3220
    %3349 = vmatpush1.msra.mxu0 %v3219
    %3350 = vmatprep.subr.mxu0 %v3224
    %3351 = vmatpush1.msra.mxu0 %v3223
    %3352 = vmatprep.subr.mxu0 %v3228
    %3353 = vmatpush1.msra.mxu0 %v3227
    %3354 = vmatprep.subr.mxu0 %v3232
    %3355 = vmatpush1.msra.mxu0 %v3231
    %3356 = vmatprep.subr.mxu0 %v3236
    %3357 = vmatpush1.msra.mxu0 %v3235
    %3358 = vmatprep.subr.mxu0 %v3240
    %3359 = vmatpush1.msra.mxu0 %v3239
    %3360 = vmatprep.subr.mxu0 %v3244
    %3361 = vmatpush1.msra.mxu0 %v3243
    %3362 = vmatprep.subr.mxu0 %v3248
    %3363 = vmatpush1.msra.mxu0 %v3247
    %3364 = vmatprep.subr.mxu0 %v3252
    %3365 = vmatpush1.msra.mxu0 %v3251
    %3366 = vmatprep.subr.mxu0 %v3256
    %3367 = vmatpush1.msra.mxu0 %v3255
    %3368 = vmatprep.subr.mxu0 %v3260
    %3369 = vmatpush1.msra.mxu0 %v3259
    %3370 = vmatprep.subr.mxu0 %v3264
    %3371 = vmatpush1.msra.mxu0 %v3263
    %3372 = vmatprep.subr.mxu0 %v3268
    %3373 = vmatpush1.msra.mxu0 %v3267
    %3374 = vmatprep.subr.mxu0 %v3272
    %3375 = vmatpush1.msra.mxu0 %v3271
    %3376 = vmatprep.subr.mxu0 0.0
    %3377 = vmatpush1.msra.mxu0 0.0
    %3378 = vmatprep.subr.mxu0 0.0
    %3379 = vmatpush1.msra.mxu0 0.0
    %3380 = vmatprep.subr.mxu0 0.0
    %3381 = vmatpush1.msra.mxu0 0.0
    %3382 = vmatprep.subr.mxu0 0.0
    %3383 = vmatpush1.msra.mxu0 0.0
    %3384 = vmatprep.subr.mxu0 0.0
    %3385 = vmatpush1.msra.mxu0 0.0
    %3386 = vmatprep.subr.mxu0 0.0
    %3387 = vmatpush1.msra.mxu0 0.0
    %3388 = vmatprep.subr.mxu0 0.0
    %3389 = vmatpush1.msra.mxu0 0.0
    %3390 = vmatprep.subr.mxu0 0.0
    %3391 = vmatpush1.msra.mxu0 0.0
    %3392 = vmatprep.subr.mxu0 0.0
    %3393 = vmatpush1.msra.mxu0 0.0
    %3394 = vmatprep.subr.mxu0 0.0
    %3395 = vmatpush1.msra.mxu0 0.0
    %3396 = vmatprep.subr.mxu0 0.0
    %3397 = vmatpush1.msra.mxu0 0.0
    %3398 = vmatprep.subr.mxu0 0.0
    %3399 = vmatpush1.msra.mxu0 0.0
    %3400 = vmatprep.subr.mxu0 0.0
    %3401 = vmatpush1.msra.mxu0 0.0
    %3402 = vmatprep.subr.mxu0 0.0
    %3403 = vmatpush1.msra.mxu0 0.0
    %3404 = vmatprep.subr.mxu0 0.0
    %3405 = vmatpush1.msra.mxu0 0.0
    %3406 = vmatprep.subr.mxu0 0.0
    %3407 = vmatpush1.msra.mxu0 0.0
    %3408 = vmatprep.mubr.f32.mxu0 0.0
    %3409 = vmatmul.mubr.f32.gmra.mrb[0].mxu0 %v3203
    %v3410 = vpop.f32.mrb[0].mxu0
    %v3411 = vadd.f32 0.0, %v3410
    %v3412 = vpop.f32.mrb[0].mxu0
    %v3413 = vadd.f32 0.0, %v3412
    %3414 = vdwg.mxu0
    %v3415 = vadd.f32 %v3205, %v3340
    %v3416 = vadd.f32 %v3206, %v3342
    %v3417 = vadd.f32 %v3207, %v3411
    %v3418 = vadd.f32 %v3208, %v3413
    %v3419 = vxor.u32 %v3415, 2147483648
    %v3420 = vxor.u32 %v3416, 2147483648
    %v3421 = vxor.u32 %v3417, 2147483648
    %v3422 = vmul.f32 %v3419, 1.442695
    %v3423 = vpow.pop %v3422
    %v3424 = vmul.f32 %v3420, 1.442695
    %v3425 = vpow.pop %v3424
    %v3426 = vmul.f32 %v3421, 1.442695
    %v3427 = vpow.pop %v3426
    %v3428 = vadd.f32 %v3423, 1.0
    %v3429 = vadd.f32 %v3425, 1.0
    %v3430 = vadd.f32 %v3427, 1.0
    %v3431 = vrcp.pop %v3428
    %v3432 = vmul.f32 1.0, %v3431
    %v3433 = vrcp.pop %v3429
    %v3434 = vmul.f32 1.0, %v3433
    %v3435 = vrcp.pop %v3430
    %v3436 = vmul.f32 1.0, %v3435
    %v3437 = vtanh.pop %v3418
    %v3438 = vmul.f32 %v3434, %v3201
    %v3439 = vmul.f32 %v3432, %v3437
    %v3440 = vadd.f32 %v3438, %v3439
    %v3441 = vtanh.pop %v3440
    %v3442 = vmul.f32 %v3436, %v3441
    %3443 = vst [vmem:[#allocation2 + $0x10] sm:$0xff] %v3442
    %v3444 = vld [vmem:[#allocation3 + $0x60] sm:$0xff]
    %v3445 = vld [vmem:[#allocation3 + $0x68] sm:$0xff]
    %v3446 = vld [vmem:[#allocation3 + $0x70] sm:$0xff]
    %v3447 = vld [vmem:[#allocation3 + $0x78] sm:$0xff]
    %v3448 = vld [vmem:[%s2730] sm:$0xff]
    %v3449 = vld [vmem:[%s2730 + $0x8] sm:$0xff]
    %v3450 = vld [vmem:[%s2730 + $0x10] sm:$0xff]
    %v3451 = vld [vmem:[%s2730 + $0x18] sm:$0xff]
    %v3452 = vld [vmem:[%s2730 + $0x20] sm:$0xff]
    %v3453 = vld [vmem:[%s2730 + $0x28] sm:$0xff]
    %v3454 = vld [vmem:[%s2730 + $0x30] sm:$0xff]
    %v3455 = vld [vmem:[%s2730 + $0x38] sm:$0xff]
    %v3456 = vld [vmem:[%s2730 + $0x40] sm:$0xff]
    %v3457 = vld [vmem:[%s2730 + $0x48] sm:$0xff]
    %v3458 = vld [vmem:[%s2730 + $0x50] sm:$0xff]
    %v3459 = vld [vmem:[%s2730 + $0x58] sm:$0xff]
    %v3460 = vld [vmem:[%s2730 + $0x60] sm:$0xff]
    %v3461 = vld [vmem:[%s2730 + $0x68] sm:$0xff]
    %v3462 = vld [vmem:[%s2730 + $0x70] sm:$0xff]
    %v3463 = vld [vmem:[%s2730 + $0x78] sm:$0xff]
    %v3464 = vld [vmem:[%s2730 + $0x80] sm:$0xff]
    %v3465 = vld [vmem:[%s2730 + $0x88] sm:$0xff]
    %v3466 = vld [vmem:[%s2730 + $0x90] sm:$0xff]
    %v3467 = vld [vmem:[%s2730 + $0x98] sm:$0xff]
    %v3468 = vld [vmem:[%s2730 + $0xa0] sm:$0xff]
    %v3469 = vld [vmem:[%s2730 + $0xa8] sm:$0xff]
    %v3470 = vld [vmem:[%s2730 + $0xb0] sm:$0xff]
    %v3471 = vld [vmem:[%s2730 + $0xb8] sm:$0xff]
    %v3472 = vld [vmem:[%s2730 + $0xc0] sm:$0xff]
    %v3473 = vld [vmem:[%s2730 + $0xc8] sm:$0xff]
    %v3474 = vld [vmem:[%s2730 + $0xd0] sm:$0xff]
    %v3475 = vld [vmem:[%s2730 + $0xd8] sm:$0xff]
    %v3476 = vld [vmem:[%s2730 + $0xe0] sm:$0xff]
    %v3477 = vld [vmem:[%s2730 + $0xe8] sm:$0xff]
    %v3478 = vld [vmem:[%s2730 + $0xf0] sm:$0xff]
    %v3479 = vld [vmem:[%s2730 + $0xf8] sm:$0xff]
    %v3480 = vld [vmem:[%s2730 + $0x100] sm:$0xff]
    %v3481 = vld [vmem:[%s2730 + $0x108] sm:$0xff]
    %v3482 = vld [vmem:[%s2730 + $0x110] sm:$0xff]
    %v3483 = vld [vmem:[%s2730 + $0x118] sm:$0xff]
    %v3484 = vld [vmem:[%s2730 + $0x120] sm:$0xff]
    %v3485 = vld [vmem:[%s2730 + $0x128] sm:$0xff]
    %v3486 = vld [vmem:[%s2730 + $0x130] sm:$0xff]
    %v3487 = vld [vmem:[%s2730 + $0x138] sm:$0xff]
    %v3488 = vld [vmem:[%s2730 + $0x140] sm:$0xff]
    %v3489 = vld [vmem:[%s2730 + $0x148] sm:$0xff]
    %v3490 = vld [vmem:[%s2730 + $0x150] sm:$0xff]
    %v3491 = vld [vmem:[%s2730 + $0x158] sm:$0xff]
    %v3492 = vld [vmem:[%s2730 + $0x160] sm:$0xff]
    %v3493 = vld [vmem:[%s2730 + $0x168] sm:$0xff]
    %v3494 = vld [vmem:[%s2730 + $0x170] sm:$0xff]
    %v3495 = vld [vmem:[%s2730 + $0x178] sm:$0xff]
    %v3496 = vld [vmem:[%s2730 + $0x180] sm:$0xff]
    %v3497 = vld [vmem:[%s2730 + $0x188] sm:$0xff]
    %v3498 = vld [vmem:[%s2730 + $0x190] sm:$0xff]
    %v3499 = vld [vmem:[%s2730 + $0x198] sm:$0xff]
    %v3500 = vld [vmem:[%s2730 + $0x1a0] sm:$0xff]
    %v3501 = vld [vmem:[%s2730 + $0x1a8] sm:$0xff]
    %v3502 = vld [vmem:[%s2730 + $0x1b0] sm:$0xff]
    %v3503 = vld [vmem:[%s2730 + $0x1b8] sm:$0xff]
    %v3504 = vld [vmem:[%s2730 + $0x1c0] sm:$0xff]
    %v3505 = vld [vmem:[%s2730 + $0x1c8] sm:$0xff]
    %v3506 = vld [vmem:[%s2730 + $0x1d0] sm:$0xff]
    %v3507 = vld [vmem:[%s2730 + $0x1d8] sm:$0xff]
    %v3508 = vld [vmem:[%s2730 + $0x1e0] sm:$0xff]
    %v3509 = vld [vmem:[%s2730 + $0x1e8] sm:$0xff]
    %v3510 = vld [vmem:[%s2730 + $0x1f0] sm:$0xff]
    %v3511 = vld [vmem:[%s2730 + $0x1f8] sm:$0xff]
    %3512 = vmatprep.subr.mxu0 %v3449
    %3513 = vmatpush1.msra.mxu0 %v3448
    %3514 = vmatprep.subr.mxu0 %v3453
    %3515 = vmatpush1.msra.mxu0 %v3452
    %3516 = vmatprep.subr.mxu0 %v3457
    %3517 = vmatpush1.msra.mxu0 %v3456
    %3518 = vmatprep.subr.mxu0 %v3461
    %3519 = vmatpush1.msra.mxu0 %v3460
    %3520 = vmatprep.subr.mxu0 %v3465
    %3521 = vmatpush1.msra.mxu0 %v3464
    %3522 = vmatprep.subr.mxu0 %v3469
    %3523 = vmatpush1.msra.mxu0 %v3468
    %3524 = vmatprep.subr.mxu0 %v3473
    %3525 = vmatpush1.msra.mxu0 %v3472
    %3526 = vmatprep.subr.mxu0 %v3477
    %3527 = vmatpush1.msra.mxu0 %v3476
    %3528 = vmatprep.subr.mxu0 %v3481
    %3529 = vmatpush1.msra.mxu0 %v3480
    %3530 = vmatprep.subr.mxu0 %v3485
    %3531 = vmatpush1.msra.mxu0 %v3484
    %3532 = vmatprep.subr.mxu0 %v3489
    %3533 = vmatpush1.msra.mxu0 %v3488
    %3534 = vmatprep.subr.mxu0 %v3493
    %3535 = vmatpush1.msra.mxu0 %v3492
    %3536 = vmatprep.subr.mxu0 %v3497
    %3537 = vmatpush1.msra.mxu0 %v3496
    %3538 = vmatprep.subr.mxu0 %v3501
    %3539 = vmatpush1.msra.mxu0 %v3500
    %3540 = vmatprep.subr.mxu0 %v3505
    %3541 = vmatpush1.msra.mxu0 %v3504
    %3542 = vmatprep.subr.mxu0 %v3509
    %3543 = vmatpush1.msra.mxu0 %v3508
    %3544 = vmatprep.subr.mxu0 0.0
    %3545 = vmatpush1.msra.mxu0 0.0
    %3546 = vmatprep.subr.mxu0 0.0
    %3547 = vmatpush1.msra.mxu0 0.0
    %3548 = vmatprep.subr.mxu0 0.0
    %3549 = vmatpush1.msra.mxu0 0.0
    %3550 = vmatprep.subr.mxu0 0.0
    %3551 = vmatpush1.msra.mxu0 0.0
    %3552 = vmatprep.subr.mxu0 0.0
    %3553 = vmatpush1.msra.mxu0 0.0
    %3554 = vmatprep.subr.mxu0 0.0
    %3555 = vmatpush1.msra.mxu0 0.0
    %3556 = vmatprep.subr.mxu0 0.0
    %3557 = vmatpush1.msra.mxu0 0.0
    %3558 = vmatprep.subr.mxu0 0.0
    %3559 = vmatpush1.msra.mxu0 0.0
    %3560 = vmatprep.subr.mxu0 0.0
    %3561 = vmatpush1.msra.mxu0 0.0
    %3562 = vmatprep.subr.mxu0 0.0
    %3563 = vmatpush1.msra.mxu0 0.0
    %3564 = vmatprep.subr.mxu0 0.0
    %3565 = vmatpush1.msra.mxu0 0.0
    %3566 = vmatprep.subr.mxu0 0.0
    %3567 = vmatpush1.msra.mxu0 0.0
    %3568 = vmatprep.subr.mxu0 0.0
    %3569 = vmatpush1.msra.mxu0 0.0
    %3570 = vmatprep.subr.mxu0 0.0
    %3571 = vmatpush1.msra.mxu0 0.0
    %3572 = vmatprep.subr.mxu0 0.0
    %3573 = vmatpush1.msra.mxu0 0.0
    %3574 = vmatprep.subr.mxu0 0.0
    %3575 = vmatpush1.msra.mxu0 0.0
    %3576 = vmatprep.mubr.f32.mxu0 0.0
    %3577 = vmatmul.mubr.f32.gmra.mrb[0].mxu0 %v3442
    %v3578 = vpop.f32.mrb[0].mxu0
    %v3579 = vadd.f32 0.0, %v3578
    %v3580 = vpop.f32.mrb[0].mxu0
    %v3581 = vadd.f32 0.0, %v3580
    %3582 = vdwg.mxu0
    %3583 = vmatprep.subr.mxu0 %v3451
    %3584 = vmatpush1.msra.mxu0 %v3450
    %3585 = vmatprep.subr.mxu0 %v3455
    %3586 = vmatpush1.msra.mxu0 %v3454
    %3587 = vmatprep.subr.mxu0 %v3459
    %3588 = vmatpush1.msra.mxu0 %v3458
    %3589 = vmatprep.subr.mxu0 %v3463
    %3590 = vmatpush1.msra.mxu0 %v3462
    %3591 = vmatprep.subr.mxu0 %v3467
    %3592 = vmatpush1.msra.mxu0 %v3466
    %3593 = vmatprep.subr.mxu0 %v3471
    %3594 = vmatpush1.msra.mxu0 %v3470
    %3595 = vmatprep.subr.mxu0 %v3475
    %3596 = vmatpush1.msra.mxu0 %v3474
    %3597 = vmatprep.subr.mxu0 %v3479
    %3598 = vmatpush1.msra.mxu0 %v3478
    %3599 = vmatprep.subr.mxu0 %v3483
    %3600 = vmatpush1.msra.mxu0 %v3482
    %3601 = vmatprep.subr.mxu0 %v3487
    %3602 = vmatpush1.msra.mxu0 %v3486
    %3603 = vmatprep.subr.mxu0 %v3491
    %3604 = vmatpush1.msra.mxu0 %v3490
    %3605 = vmatprep.subr.mxu0 %v3495
    %3606 = vmatpush1.msra.mxu0 %v3494
    %3607 = vmatprep.subr.mxu0 %v3499
    %3608 = vmatpush1.msra.mxu0 %v3498
    %3609 = vmatprep.subr.mxu0 %v3503
    %3610 = vmatpush1.msra.mxu0 %v3502
    %3611 = vmatprep.subr.mxu0 %v3507
    %3612 = vmatpush1.msra.mxu0 %v3506
    %3613 = vmatprep.subr.mxu0 %v3511
    %3614 = vmatpush1.msra.mxu0 %v3510
    %3615 = vmatprep.subr.mxu0 0.0
    %3616 = vmatpush1.msra.mxu0 0.0
    %3617 = vmatprep.subr.mxu0 0.0
    %3618 = vmatpush1.msra.mxu0 0.0
    %3619 = vmatprep.subr.mxu0 0.0
    %3620 = vmatpush1.msra.mxu0 0.0
    %3621 = vmatprep.subr.mxu0 0.0
    %3622 = vmatpush1.msra.mxu0 0.0
    %3623 = vmatprep.subr.mxu0 0.0
    %3624 = vmatpush1.msra.mxu0 0.0
    %3625 = vmatprep.subr.mxu0 0.0
    %3626 = vmatpush1.msra.mxu0 0.0
    %3627 = vmatprep.subr.mxu0 0.0
    %3628 = vmatpush1.msra.mxu0 0.0
    %3629 = vmatprep.subr.mxu0 0.0
    %3630 = vmatpush1.msra.mxu0 0.0
    %3631 = vmatprep.subr.mxu0 0.0
    %3632 = vmatpush1.msra.mxu0 0.0
    %3633 = vmatprep.subr.mxu0 0.0
    %3634 = vmatpush1.msra.mxu0 0.0
    %3635 = vmatprep.subr.mxu0 0.0
    %3636 = vmatpush1.msra.mxu0 0.0
    %3637 = vmatprep.subr.mxu0 0.0
    %3638 = vmatpush1.msra.mxu0 0.0
    %3639 = vmatprep.subr.mxu0 0.0
    %3640 = vmatpush1.msra.mxu0 0.0
    %3641 = vmatprep.subr.mxu0 0.0
    %3642 = vmatpush1.msra.mxu0 0.0
    %3643 = vmatprep.subr.mxu0 0.0
    %3644 = vmatpush1.msra.mxu0 0.0
    %3645 = vmatprep.subr.mxu0 0.0
    %3646 = vmatpush1.msra.mxu0 0.0
    %3647 = vmatprep.mubr.f32.mxu0 0.0
    %3648 = vmatmul.mubr.f32.gmra.mrb[0].mxu0 %v3442
    %v3649 = vpop.f32.mrb[0].mxu0
    %v3650 = vadd.f32 0.0, %v3649
    %v3651 = vpop.f32.mrb[0].mxu0
    %v3652 = vadd.f32 0.0, %v3651
    %3653 = vdwg.mxu0
    %v3654 = vadd.f32 %v3444, %v3579
    %v3655 = vadd.f32 %v3445, %v3581
    %v3656 = vadd.f32 %v3446, %v3650
    %v3657 = vadd.f32 %v3447, %v3652
    %v3658 = vxor.u32 %v3654, 2147483648
    %v3659 = vxor.u32 %v3655, 2147483648
    %v3660 = vxor.u32 %v3656, 2147483648
    %v3661 = vmul.f32 %v3658, 1.442695
    %v3662 = vpow.pop %v3661
    %v3663 = vmul.f32 %v3659, 1.442695
    %v3664 = vpow.pop %v3663
    %v3665 = vmul.f32 %v3660, 1.442695
    %v3666 = vpow.pop %v3665
    %v3667 = vadd.f32 %v3662, 1.0
    %v3668 = vadd.f32 %v3664, 1.0
    %v3669 = vadd.f32 %v3666, 1.0
    %v3670 = vrcp.pop %v3667
    %v3671 = vmul.f32 1.0, %v3670
    %v3672 = vrcp.pop %v3668
    %v3673 = vmul.f32 1.0, %v3672
    %v3674 = vrcp.pop %v3669
    %v3675 = vmul.f32 1.0, %v3674
    %v3676 = vtanh.pop %v3657
    %v3677 = vmul.f32 %v3673, %v3440
    %v3678 = vmul.f32 %v3671, %v3676
    %v3679 = vadd.f32 %v3677, %v3678
    %v3680 = vtanh.pop %v3679
    %v3681 = vmul.f32 %v3675, %v3680
    %3682 = vst [vmem:[#allocation2 + $0x18] sm:$0xff] %v3681
    %v3683 = vld [vmem:[#allocation3 + $0x80] sm:$0xff]
    %v3684 = vld [vmem:[#allocation3 + $0x88] sm:$0xff]
    %v3685 = vld [vmem:[#allocation3 + $0x90] sm:$0xff]
    %v3686 = vld [vmem:[#allocation3 + $0x98] sm:$0xff]
    %v3687 = vld [vmem:[%s2730] sm:$0xff]
    %v3688 = vld [vmem:[%s2730 + $0x8] sm:$0xff]
    %v3689 = vld [vmem:[%s2730 + $0x10] sm:$0xff]
    %v3690 = vld [vmem:[%s2730 + $0x18] sm:$0xff]
    %v3691 = vld [vmem:[%s2730 + $0x20] sm:$0xff]
    %v3692 = vld [vmem:[%s2730 + $0x28] sm:$0xff]
    %v3693 = vld [vmem:[%s2730 + $0x30] sm:$0xff]
    %v3694 = vld [vmem:[%s2730 + $0x38] sm:$0xff]
    %v3695 = vld [vmem:[%s2730 + $0x40] sm:$0xff]
    %v3696 = vld [vmem:[%s2730 + $0x48] sm:$0xff]
    %v3697 = vld [vmem:[%s2730 + $0x50] sm:$0xff]
    %v3698 = vld [vmem:[%s2730 + $0x58] sm:$0xff]
    %v3699 = vld [vmem:[%s2730 + $0x60] sm:$0xff]
    %v3700 = vld [vmem:[%s2730 + $0x68] sm:$0xff]
    %v3701 = vld [vmem:[%s2730 + $0x70] sm:$0xff]
    %v3702 = vld [vmem:[%s2730 + $0x78] sm:$0xff]
    %v3703 = vld [vmem:[%s2730 + $0x80] sm:$0xff]
    %v3704 = vld [vmem:[%s2730 + $0x88] sm:$0xff]
    %v3705 = vld [vmem:[%s2730 + $0x90] sm:$0xff]
    %v3706 = vld [vmem:[%s2730 + $0x98] sm:$0xff]
    %v3707 = vld [vmem:[%s2730 + $0xa0] sm:$0xff]
    %v3708 = vld [vmem:[%s2730 + $0xa8] sm:$0xff]
    %v3709 = vld [vmem:[%s2730 + $0xb0] sm:$0xff]
    %v3710 = vld [vmem:[%s2730 + $0xb8] sm:$0xff]
    %v3711 = vld [vmem:[%s2730 + $0xc0] sm:$0xff]
    %v3712 = vld [vmem:[%s2730 + $0xc8] sm:$0xff]
    %v3713 = vld [vmem:[%s2730 + $0xd0] sm:$0xff]
    %v3714 = vld [vmem:[%s2730 + $0xd8] sm:$0xff]
    %v3715 = vld [vmem:[%s2730 + $0xe0] sm:$0xff]
    %v3716 = vld [vmem:[%s2730 + $0xe8] sm:$0xff]
    %v3717 = vld [vmem:[%s2730 + $0xf0] sm:$0xff]
    %v3718 = vld [vmem:[%s2730 + $0xf8] sm:$0xff]
    %v3719 = vld [vmem:[%s2730 + $0x100] sm:$0xff]
    %v3720 = vld [vmem:[%s2730 + $0x108] sm:$0xff]
    %v3721 = vld [vmem:[%s2730 + $0x110] sm:$0xff]
    %v3722 = vld [vmem:[%s2730 + $0x118] sm:$0xff]
    %v3723 = vld [vmem:[%s2730 + $0x120] sm:$0xff]
    %v3724 = vld [vmem:[%s2730 + $0x128] sm:$0xff]
    %v3725 = vld [vmem:[%s2730 + $0x130] sm:$0xff]
    %v3726 = vld [vmem:[%s2730 + $0x138] sm:$0xff]
    %v3727 = vld [vmem:[%s2730 + $0x140] sm:$0xff]
    %v3728 = vld [vmem:[%s2730 + $0x148] sm:$0xff]
    %v3729 = vld [vmem:[%s2730 + $0x150] sm:$0xff]
    %v3730 = vld [vmem:[%s2730 + $0x158] sm:$0xff]
    %v3731 = vld [vmem:[%s2730 + $0x160] sm:$0xff]
    %v3732 = vld [vmem:[%s2730 + $0x168] sm:$0xff]
    %v3733 = vld [vmem:[%s2730 + $0x170] sm:$0xff]
    %v3734 = vld [vmem:[%s2730 + $0x178] sm:$0xff]
    %v3735 = vld [vmem:[%s2730 + $0x180] sm:$0xff]
    %v3736 = vld [vmem:[%s2730 + $0x188] sm:$0xff]
    %v3737 = vld [vmem:[%s2730 + $0x190] sm:$0xff]
    %v3738 = vld [vmem:[%s2730 + $0x198] sm:$0xff]
    %v3739 = vld [vmem:[%s2730 + $0x1a0] sm:$0xff]
    %v3740 = vld [vmem:[%s2730 + $0x1a8] sm:$0xff]
    %v3741 = vld [vmem:[%s2730 + $0x1b0] sm:$0xff]
    %v3742 = vld [vmem:[%s2730 + $0x1b8] sm:$0xff]
    %v3743 = vld [vmem:[%s2730 + $0x1c0] sm:$0xff]
    %v3744 = vld [vmem:[%s2730 + $0x1c8] sm:$0xff]
    %v3745 = vld [vmem:[%s2730 + $0x1d0] sm:$0xff]
    %v3746 = vld [vmem:[%s2730 + $0x1d8] sm:$0xff]
    %v3747 = vld [vmem:[%s2730 + $0x1e0] sm:$0xff]
    %v3748 = vld [vmem:[%s2730 + $0x1e8] sm:$0xff]
    %v3749 = vld [vmem:[%s2730 + $0x1f0] sm:$0xff]
    %v3750 = vld [vmem:[%s2730 + $0x1f8] sm:$0xff]
    %3751 = vmatprep.subr.mxu0 %v3688
    %3752 = vmatpush1.msra.mxu0 %v3687
    %3753 = vmatprep.subr.mxu0 %v3692
    %3754 = vmatpush1.msra.mxu0 %v3691
    %3755 = vmatprep.subr.mxu0 %v3696
    %3756 = vmatpush1.msra.mxu0 %v3695
    %3757 = vmatprep.subr.mxu0 %v3700
    %3758 = vmatpush1.msra.mxu0 %v3699
    %3759 = vmatprep.subr.mxu0 %v3704
    %3760 = vmatpush1.msra.mxu0 %v3703
    %3761 = vmatprep.subr.mxu0 %v3708
    %3762 = vmatpush1.msra.mxu0 %v3707
    %3763 = vmatprep.subr.mxu0 %v3712
    %3764 = vmatpush1.msra.mxu0 %v3711
    %3765 = vmatprep.subr.mxu0 %v3716
    %3766 = vmatpush1.msra.mxu0 %v3715
    %3767 = vmatprep.subr.mxu0 %v3720
    %3768 = vmatpush1.msra.mxu0 %v3719
    %3769 = vmatprep.subr.mxu0 %v3724
    %3770 = vmatpush1.msra.mxu0 %v3723
    %3771 = vmatprep.subr.mxu0 %v3728
    %3772 = vmatpush1.msra.mxu0 %v3727
    %3773 = vmatprep.subr.mxu0 %v3732
    %3774 = vmatpush1.msra.mxu0 %v3731
    %3775 = vmatprep.subr.mxu0 %v3736
    %3776 = vmatpush1.msra.mxu0 %v3735
    %3777 = vmatprep.subr.mxu0 %v3740
    %3778 = vmatpush1.msra.mxu0 %v3739
    %3779 = vmatprep.subr.mxu0 %v3744
    %3780 = vmatpush1.msra.mxu0 %v3743
    %3781 = vmatprep.subr.mxu0 %v3748
    %3782 = vmatpush1.msra.mxu0 %v3747
    %3783 = vmatprep.subr.mxu0 0.0
    %3784 = vmatpush1.msra.mxu0 0.0
    %3785 = vmatprep.subr.mxu0 0.0
    %3786 = vmatpush1.msra.mxu0 0.0
    %3787 = vmatprep.subr.mxu0 0.0
    %3788 = vmatpush1.msra.mxu0 0.0
    %3789 = vmatprep.subr.mxu0 0.0
    %3790 = vmatpush1.msra.mxu0 0.0
    %3791 = vmatprep.subr.mxu0 0.0
    %3792 = vmatpush1.msra.mxu0 0.0
    %3793 = vmatprep.subr.mxu0 0.0
    %3794 = vmatpush1.msra.mxu0 0.0
    %3795 = vmatprep.subr.mxu0 0.0
    %3796 = vmatpush1.msra.mxu0 0.0
    %3797 = vmatprep.subr.mxu0 0.0
    %3798 = vmatpush1.msra.mxu0 0.0
    %3799 = vmatprep.subr.mxu0 0.0
    %3800 = vmatpush1.msra.mxu0 0.0
    %3801 = vmatprep.subr.mxu0 0.0
    %3802 = vmatpush1.msra.mxu0 0.0
    %3803 = vmatprep.subr.mxu0 0.0
    %3804 = vmatpush1.msra.mxu0 0.0
    %3805 = vmatprep.subr.mxu0 0.0
    %3806 = vmatpush1.msra.mxu0 0.0
    %3807 = vmatprep.subr.mxu0 0.0
    %3808 = vmatpush1.msra.mxu0 0.0
    %3809 = vmatprep.subr.mxu0 0.0
    %3810 = vmatpush1.msra.mxu0 0.0
    %3811 = vmatprep.subr.mxu0 0.0
    %3812 = vmatpush1.msra.mxu0 0.0
    %3813 = vmatprep.subr.mxu0 0.0
    %3814 = vmatpush1.msra.mxu0 0.0
    %3815 = vmatprep.mubr.f32.mxu0 0.0
    %3816 = vmatmul.mubr.f32.gmra.mrb[0].mxu0 %v3681
    %v3817 = vpop.f32.mrb[0].mxu0
    %v3818 = vadd.f32 0.0, %v3817
    %v3819 = vpop.f32.mrb[0].mxu0
    %v3820 = vadd.f32 0.0, %v3819
    %3821 = vdwg.mxu0
    %3822 = vmatprep.subr.mxu0 %v3690
    %3823 = vmatpush1.msra.mxu0 %v3689
    %3824 = vmatprep.subr.mxu0 %v3694
    %3825 = vmatpush1.msra.mxu0 %v3693
    %3826 = vmatprep.subr.mxu0 %v3698
    %3827 = vmatpush1.msra.mxu0 %v3697
    %3828 = vmatprep.subr.mxu0 %v3702
    %3829 = vmatpush1.msra.mxu0 %v3701
    %3830 = vmatprep.subr.mxu0 %v3706
    %3831 = vmatpush1.msra.mxu0 %v3705
    %3832 = vmatprep.subr.mxu0 %v3710
    %3833 = vmatpush1.msra.mxu0 %v3709
    %3834 = vmatprep.subr.mxu0 %v3714
    %3835 = vmatpush1.msra.mxu0 %v3713
    %3836 = vmatprep.subr.mxu0 %v3718
    %3837 = vmatpush1.msra.mxu0 %v3717
    %3838 = vmatprep.subr.mxu0 %v3722
    %3839 = vmatpush1.msra.mxu0 %v3721
    %3840 = vmatprep.subr.mxu0 %v3726
    %3841 = vmatpush1.msra.mxu0 %v3725
    %3842 = vmatprep.subr.mxu0 %v3730
    %3843 = vmatpush1.msra.mxu0 %v3729
    %3844 = vmatprep.subr.mxu0 %v3734
    %3845 = vmatpush1.msra.mxu0 %v3733
    %3846 = vmatprep.subr.mxu0 %v3738
    %3847 = vmatpush1.msra.mxu0 %v3737
    %3848 = vmatprep.subr.mxu0 %v3742
    %3849 = vmatpush1.msra.mxu0 %v3741
    %3850 = vmatprep.subr.mxu0 %v3746
    %3851 = vmatpush1.msra.mxu0 %v3745
    %3852 = vmatprep.subr.mxu0 %v3750
    %3853 = vmatpush1.msra.mxu0 %v3749
    %3854 = vmatprep.subr.mxu0 0.0
    %3855 = vmatpush1.msra.mxu0 0.0
    %3856 = vmatprep.subr.mxu0 0.0
    %3857 = vmatpush1.msra.mxu0 0.0
    %3858 = vmatprep.subr.mxu0 0.0
    %3859 = vmatpush1.msra.mxu0 0.0
    %3860 = vmatprep.subr.mxu0 0.0
    %3861 = vmatpush1.msra.mxu0 0.0
    %3862 = vmatprep.subr.mxu0 0.0
    %3863 = vmatpush1.msra.mxu0 0.0
    %3864 = vmatprep.subr.mxu0 0.0
    %3865 = vmatpush1.msra.mxu0 0.0
    %3866 = vmatprep.subr.mxu0 0.0
    %3867 = vmatpush1.msra.mxu0 0.0
    %3868 = vmatprep.subr.mxu0 0.0
    %3869 = vmatpush1.msra.mxu0 0.0
    %3870 = vmatprep.subr.mxu0 0.0
    %3871 = vmatpush1.msra.mxu0 0.0
    %3872 = vmatprep.subr.mxu0 0.0
    %3873 = vmatpush1.msra.mxu0 0.0
    %3874 = vmatprep.subr.mxu0 0.0
    %3875 = vmatpush1.msra.mxu0 0.0
    %3876 = vmatprep.subr.mxu0 0.0
    %3877 = vmatpush1.msra.mxu0 0.0
    %3878 = vmatprep.subr.mxu0 0.0
    %3879 = vmatpush1.msra.mxu0 0.0
    %3880 = vmatprep.subr.mxu0 0.0
    %3881 = vmatpush1.msra.mxu0 0.0
    %3882 = vmatprep.subr.mxu0 0.0
    %3883 = vmatpush1.msra.mxu0 0.0
    %3884 = vmatprep.subr.mxu0 0.0
    %3885 = vmatpush1.msra.mxu0 0.0
    %3886 = vmatprep.mubr.f32.mxu0 0.0
    %3887 = vmatmul.mubr.f32.gmra.mrb[0].mxu0 %v3681
    %v3888 = vpop.f32.mrb[0].mxu0
    %v3889 = vadd.f32 0.0, %v3888
    %v3890 = vpop.f32.mrb[0].mxu0
    %v3891 = vadd.f32 0.0, %v3890
    %3892 = vdwg.mxu0
    %v3893 = vadd.f32 %v3683, %v3818
    %v3894 = vadd.f32 %v3684, %v3820
    %v3895 = vadd.f32 %v3685, %v3889
    %v3896 = vadd.f32 %v3686, %v3891
    %v3897 = vxor.u32 %v3893, 2147483648
    %v3898 = vxor.u32 %v3894, 2147483648
    %v3899 = vxor.u32 %v3895, 2147483648
    %v3900 = vmul.f32 %v3897, 1.442695
    %v3901 = vpow.pop %v3900
    %v3902 = vmul.f32 %v3898, 1.442695
    %v3903 = vpow.pop %v3902
    %v3904 = vmul.f32 %v3899, 1.442695
    %v3905 = vpow.pop %v3904
    %v3906 = vadd.f32 %v3901, 1.0
    %v3907 = vadd.f32 %v3903, 1.0
    %v3908 = vadd.f32 %v3905, 1.0
    %v3909 = vrcp.pop %v3906
    %v3910 = vmul.f32 1.0, %v3909
    %v3911 = vrcp.pop %v3907
    %v3912 = vmul.f32 1.0, %v3911
    %v3913 = vrcp.pop %v3908
    %v3914 = vmul.f32 1.0, %v3913
    %v3915 = vtanh.pop %v3896
    %v3916 = vmul.f32 %v3912, %v3679
    %v3917 = vmul.f32 %v3910, %v3915
    %v3918 = vadd.f32 %v3916, %v3917
    %v3919 = vtanh.pop %v3918
    %v3920 = vmul.f32 %v3914, %v3919
    %3921 = vst [vmem:[#allocation2 + $0x20] sm:$0xff] %v3920
    %v3922 = vld [vmem:[#allocation3 + $0xa0] sm:$0xff]
    %v3923 = vld [vmem:[#allocation3 + $0xa8] sm:$0xff]
    %v3924 = vld [vmem:[#allocation3 + $0xb0] sm:$0xff]
    %v3925 = vld [vmem:[#allocation3 + $0xb8] sm:$0xff]
    %v3926 = vld [vmem:[%s2730] sm:$0xff]
    %v3927 = vld [vmem:[%s2730 + $0x8] sm:$0xff]
    %v3928 = vld [vmem:[%s2730 + $0x10] sm:$0xff]
    %v3929 = vld [vmem:[%s2730 + $0x18] sm:$0xff]
    %v3930 = vld [vmem:[%s2730 + $0x20] sm:$0xff]
    %v3931 = vld [vmem:[%s2730 + $0x28] sm:$0xff]
    %v3932 = vld [vmem:[%s2730 + $0x30] sm:$0xff]
    %v3933 = vld [vmem:[%s2730 + $0x38] sm:$0xff]
    %v3934 = vld [vmem:[%s2730 + $0x40] sm:$0xff]
    %v3935 = vld [vmem:[%s2730 + $0x48] sm:$0xff]
    %v3936 = vld [vmem:[%s2730 + $0x50] sm:$0xff]
    %v3937 = vld [vmem:[%s2730 + $0x58] sm:$0xff]
    %v3938 = vld [vmem:[%s2730 + $0x60] sm:$0xff]
    %v3939 = vld [vmem:[%s2730 + $0x68] sm:$0xff]
    %v3940 = vld [vmem:[%s2730 + $0x70] sm:$0xff]
    %v3941 = vld [vmem:[%s2730 + $0x78] sm:$0xff]
    %v3942 = vld [vmem:[%s2730 + $0x80] sm:$0xff]
    %v3943 = vld [vmem:[%s2730 + $0x88] sm:$0xff]
    %v3944 = vld [vmem:[%s2730 + $0x90] sm:$0xff]
    %v3945 = vld [vmem:[%s2730 + $0x98] sm:$0xff]
    %v3946 = vld [vmem:[%s2730 + $0xa0] sm:$0xff]
    %v3947 = vld [vmem:[%s2730 + $0xa8] sm:$0xff]
    %v3948 = vld [vmem:[%s2730 + $0xb0] sm:$0xff]
    %v3949 = vld [vmem:[%s2730 + $0xb8] sm:$0xff]
    %v3950 = vld [vmem:[%s2730 + $0xc0] sm:$0xff]
    %v3951 = vld [vmem:[%s2730 + $0xc8] sm:$0xff]
    %v3952 = vld [vmem:[%s2730 + $0xd0] sm:$0xff]
    %v3953 = vld [vmem:[%s2730 + $0xd8] sm:$0xff]
    %v3954 = vld [vmem:[%s2730 + $0xe0] sm:$0xff]
    %v3955 = vld [vmem:[%s2730 + $0xe8] sm:$0xff]
    %v3956 = vld [vmem:[%s2730 + $0xf0] sm:$0xff]
    %v3957 = vld [vmem:[%s2730 + $0xf8] sm:$0xff]
    %v3958 = vld [vmem:[%s2730 + $0x100] sm:$0xff]
    %v3959 = vld [vmem:[%s2730 + $0x108] sm:$0xff]
    %v3960 = vld [vmem:[%s2730 + $0x110] sm:$0xff]
    %v3961 = vld [vmem:[%s2730 + $0x118] sm:$0xff]
    %v3962 = vld [vmem:[%s2730 + $0x120] sm:$0xff]
    %v3963 = vld [vmem:[%s2730 + $0x128] sm:$0xff]
    %v3964 = vld [vmem:[%s2730 + $0x130] sm:$0xff]
    %v3965 = vld [vmem:[%s2730 + $0x138] sm:$0xff]
    %v3966 = vld [vmem:[%s2730 + $0x140] sm:$0xff]
    %v3967 = vld [vmem:[%s2730 + $0x148] sm:$0xff]
    %v3968 = vld [vmem:[%s2730 + $0x150] sm:$0xff]
    %v3969 = vld [vmem:[%s2730 + $0x158] sm:$0xff]
    %v3970 = vld [vmem:[%s2730 + $0x160] sm:$0xff]
    %v3971 = vld [vmem:[%s2730 + $0x168] sm:$0xff]
    %v3972 = vld [vmem:[%s2730 + $0x170] sm:$0xff]
    %v3973 = vld [vmem:[%s2730 + $0x178] sm:$0xff]
    %v3974 = vld [vmem:[%s2730 + $0x180] sm:$0xff]
    %v3975 = vld [vmem:[%s2730 + $0x188] sm:$0xff]
    %v3976 = vld [vmem:[%s2730 + $0x190] sm:$0xff]
    %v3977 = vld [vmem:[%s2730 + $0x198] sm:$0xff]
    %v3978 = vld [vmem:[%s2730 + $0x1a0] sm:$0xff]
    %v3979 = vld [vmem:[%s2730 + $0x1a8] sm:$0xff]
    %v3980 = vld [vmem:[%s2730 + $0x1b0] sm:$0xff]
    %v3981 = vld [vmem:[%s2730 + $0x1b8] sm:$0xff]
    %v3982 = vld [vmem:[%s2730 + $0x1c0] sm:$0xff]
    %v3983 = vld [vmem:[%s2730 + $0x1c8] sm:$0xff]
    %v3984 = vld [vmem:[%s2730 + $0x1d0] sm:$0xff]
    %v3985 = vld [vmem:[%s2730 + $0x1d8] sm:$0xff]
    %v3986 = vld [vmem:[%s2730 + $0x1e0] sm:$0xff]
    %v3987 = vld [vmem:[%s2730 + $0x1e8] sm:$0xff]
    %v3988 = vld [vmem:[%s2730 + $0x1f0] sm:$0xff]
    %v3989 = vld [vmem:[%s2730 + $0x1f8] sm:$0xff]
    %3990 = vmatprep.subr.mxu0 %v3927
    %3991 = vmatpush1.msra.mxu0 %v3926
    %3992 = vmatprep.subr.mxu0 %v3931
    %3993 = vmatpush1.msra.mxu0 %v3930
    %3994 = vmatprep.subr.mxu0 %v3935
    %3995 = vmatpush1.msra.mxu0 %v3934
    %3996 = vmatprep.subr.mxu0 %v3939
    %3997 = vmatpush1.msra.mxu0 %v3938
    %3998 = vmatprep.subr.mxu0 %v3943
    %3999 = vmatpush1.msra.mxu0 %v3942
    %4000 = vmatprep.subr.mxu0 %v3947
    %4001 = vmatpush1.msra.mxu0 %v3946
    %4002 = vmatprep.subr.mxu0 %v3951
    %4003 = vmatpush1.msra.mxu0 %v3950
    %4004 = vmatprep.subr.mxu0 %v3955
    %4005 = vmatpush1.msra.mxu0 %v3954
    %4006 = vmatprep.subr.mxu0 %v3959
    %4007 = vmatpush1.msra.mxu0 %v3958
    %4008 = vmatprep.subr.mxu0 %v3963
    %4009 = vmatpush1.msra.mxu0 %v3962
    %4010 = vmatprep.subr.mxu0 %v3967
    %4011 = vmatpush1.msra.mxu0 %v3966
    %4012 = vmatprep.subr.mxu0 %v3971
    %4013 = vmatpush1.msra.mxu0 %v3970
    %4014 = vmatprep.subr.mxu0 %v3975
    %4015 = vmatpush1.msra.mxu0 %v3974
    %4016 = vmatprep.subr.mxu0 %v3979
    %4017 = vmatpush1.msra.mxu0 %v3978
    %4018 = vmatprep.subr.mxu0 %v3983
    %4019 = vmatpush1.msra.mxu0 %v3982
    %4020 = vmatprep.subr.mxu0 %v3987
    %4021 = vmatpush1.msra.mxu0 %v3986
    %4022 = vmatprep.subr.mxu0 0.0
    %4023 = vmatpush1.msra.mxu0 0.0
    %4024 = vmatprep.subr.mxu0 0.0
    %4025 = vmatpush1.msra.mxu0 0.0
    %4026 = vmatprep.subr.mxu0 0.0
    %4027 = vmatpush1.msra.mxu0 0.0
    %4028 = vmatprep.subr.mxu0 0.0
    %4029 = vmatpush1.msra.mxu0 0.0
    %4030 = vmatprep.subr.mxu0 0.0
    %4031 = vmatpush1.msra.mxu0 0.0
    %4032 = vmatprep.subr.mxu0 0.0
    %4033 = vmatpush1.msra.mxu0 0.0
    %4034 = vmatprep.subr.mxu0 0.0
    %4035 = vmatpush1.msra.mxu0 0.0
    %4036 = vmatprep.subr.mxu0 0.0
    %4037 = vmatpush1.msra.mxu0 0.0
    %4038 = vmatprep.subr.mxu0 0.0
    %4039 = vmatpush1.msra.mxu0 0.0
    %4040 = vmatprep.subr.mxu0 0.0
    %4041 = vmatpush1.msra.mxu0 0.0
    %4042 = vmatprep.subr.mxu0 0.0
    %4043 = vmatpush1.msra.mxu0 0.0
    %4044 = vmatprep.subr.mxu0 0.0
    %4045 = vmatpush1.msra.mxu0 0.0
    %4046 = vmatprep.subr.mxu0 0.0
    %4047 = vmatpush1.msra.mxu0 0.0
    %4048 = vmatprep.subr.mxu0 0.0
    %4049 = vmatpush1.msra.mxu0 0.0
    %4050 = vmatprep.subr.mxu0 0.0
    %4051 = vmatpush1.msra.mxu0 0.0
    %4052 = vmatprep.subr.mxu0 0.0
    %4053 = vmatpush1.msra.mxu0 0.0
    %4054 = vmatprep.mubr.f32.mxu0 0.0
    %4055 = vmatmul.mubr.f32.gmra.mrb[0].mxu0 %v3920
    %v4056 = vpop.f32.mrb[0].mxu0
    %v4057 = vadd.f32 0.0, %v4056
    %v4058 = vpop.f32.mrb[0].mxu0
    %v4059 = vadd.f32 0.0, %v4058
    %4060 = vdwg.mxu0
    %4061 = vmatprep.subr.mxu0 %v3929
    %4062 = vmatpush1.msra.mxu0 %v3928
    %4063 = vmatprep.subr.mxu0 %v3933
    %4064 = vmatpush1.msra.mxu0 %v3932
    %4065 = vmatprep.subr.mxu0 %v3937
    %4066 = vmatpush1.msra.mxu0 %v3936
    %4067 = vmatprep.subr.mxu0 %v3941
    %4068 = vmatpush1.msra.mxu0 %v3940
    %4069 = vmatprep.subr.mxu0 %v3945
    %4070 = vmatpush1.msra.mxu0 %v3944
    %4071 = vmatprep.subr.mxu0 %v3949
    %4072 = vmatpush1.msra.mxu0 %v3948
    %4073 = vmatprep.subr.mxu0 %v3953
    %4074 = vmatpush1.msra.mxu0 %v3952
    %4075 = vmatprep.subr.mxu0 %v3957
    %4076 = vmatpush1.msra.mxu0 %v3956
    %4077 = vmatprep.subr.mxu0 %v3961
    %4078 = vmatpush1.msra.mxu0 %v3960
    %4079 = vmatprep.subr.mxu0 %v3965
    %4080 = vmatpush1.msra.mxu0 %v3964
    %4081 = vmatprep.subr.mxu0 %v3969
    %4082 = vmatpush1.msra.mxu0 %v3968
    %4083 = vmatprep.subr.mxu0 %v3973
    %4084 = vmatpush1.msra.mxu0 %v3972
    %4085 = vmatprep.subr.mxu0 %v3977
    %4086 = vmatpush1.msra.mxu0 %v3976
    %4087 = vmatprep.subr.mxu0 %v3981
    %4088 = vmatpush1.msra.mxu0 %v3980
    %4089 = vmatprep.subr.mxu0 %v3985
    %4090 = vmatpush1.msra.mxu0 %v3984
    %4091 = vmatprep.subr.mxu0 %v3989
    %4092 = vmatpush1.msra.mxu0 %v3988
    %4093 = vmatprep.subr.mxu0 0.0
    %4094 = vmatpush1.msra.mxu0 0.0
    %4095 = vmatprep.subr.mxu0 0.0
    %4096 = vmatpush1.msra.mxu0 0.0
    %4097 = vmatprep.subr.mxu0 0.0
    %4098 = vmatpush1.msra.mxu0 0.0
    %4099 = vmatprep.subr.mxu0 0.0
    %4100 = vmatpush1.msra.mxu0 0.0
    %4101 = vmatprep.subr.mxu0 0.0
    %4102 = vmatpush1.msra.mxu0 0.0
    %4103 = vmatprep.subr.mxu0 0.0
    %4104 = vmatpush1.msra.mxu0 0.0
    %4105 = vmatprep.subr.mxu0 0.0
    %4106 = vmatpush1.msra.mxu0 0.0
    %4107 = vmatprep.subr.mxu0 0.0
    %4108 = vmatpush1.msra.mxu0 0.0
    %4109 = vmatprep.subr.mxu0 0.0
    %4110 = vmatpush1.msra.mxu0 0.0
    %4111 = vmatprep.subr.mxu0 0.0
    %4112 = vmatpush1.msra.mxu0 0.0
    %4113 = vmatprep.subr.mxu0 0.0
    %4114 = vmatpush1.msra.mxu0 0.0
    %4115 = vmatprep.subr.mxu0 0.0
    %4116 = vmatpush1.msra.mxu0 0.0
    %4117 = vmatprep.subr.mxu0 0.0
    %4118 = vmatpush1.msra.mxu0 0.0
    %4119 = vmatprep.subr.mxu0 0.0
    %4120 = vmatpush1.msra.mxu0 0.0
    %4121 = vmatprep.subr.mxu0 0.0
    %4122 = vmatpush1.msra.mxu0 0.0
    %4123 = vmatprep.subr.mxu0 0.0
    %4124 = vmatpush1.msra.mxu0 0.0
    %4125 = vmatprep.mubr.f32.mxu0 0.0
    %4126 = vmatmul.mubr.f32.gmra.mrb[0].mxu0 %v3920
    %v4127 = vpop.f32.mrb[0].mxu0
    %v4128 = vadd.f32 0.0, %v4127
    %v4129 = vpop.f32.mrb[0].mxu0
    %v4130 = vadd.f32 0.0, %v4129
    %4131 = vdwg.mxu0
    %v4132 = vadd.f32 %v3922, %v4057
    %v4133 = vadd.f32 %v3923, %v4059
    %v4134 = vadd.f32 %v3924, %v4128
    %v4135 = vadd.f32 %v3925, %v4130
    %v4136 = vxor.u32 %v4132, 2147483648
    %v4137 = vxor.u32 %v4133, 2147483648
    %v4138 = vxor.u32 %v4134, 2147483648
    %v4139 = vmul.f32 %v4136, 1.442695
    %v4140 = vpow.pop %v4139
    %v4141 = vmul.f32 %v4137, 1.442695
    %v4142 = vpow.pop %v4141
    %v4143 = vmul.f32 %v4138, 1.442695
    %v4144 = vpow.pop %v4143
    %v4145 = vadd.f32 %v4140, 1.0
    %v4146 = vadd.f32 %v4142, 1.0
    %v4147 = vadd.f32 %v4144, 1.0
    %v4148 = vrcp.pop %v4145
    %v4149 = vmul.f32 1.0, %v4148
    %v4150 = vrcp.pop %v4146
    %v4151 = vmul.f32 1.0, %v4150
    %v4152 = vrcp.pop %v4147
    %v4153 = vmul.f32 1.0, %v4152
    %v4154 = vtanh.pop %v4135
    %v4155 = vmul.f32 %v4151, %v3918
    %v4156 = vmul.f32 %v4149, %v4154
    %v4157 = vadd.f32 %v4155, %v4156
    %v4158 = vtanh.pop %v4157
    %v4159 = vmul.f32 %v4153, %v4158
    %4160 = vst [vmem:[#allocation2 + $0x28] sm:$0xff] %v4159
    %v4161 = vld [vmem:[#allocation3 + $0xc0] sm:$0xff]
    %v4162 = vld [vmem:[#allocation3 + $0xc8] sm:$0xff]
    %v4163 = vld [vmem:[#allocation3 + $0xd0] sm:$0xff]
    %v4164 = vld [vmem:[#allocation3 + $0xd8] sm:$0xff]
    %v4165 = vld [vmem:[%s2730] sm:$0xff]
    %v4166 = vld [vmem:[%s2730 + $0x8] sm:$0xff]
    %v4167 = vld [vmem:[%s2730 + $0x10] sm:$0xff]
    %v4168 = vld [vmem:[%s2730 + $0x18] sm:$0xff]
    %v4169 = vld [vmem:[%s2730 + $0x20] sm:$0xff]
    %v4170 = vld [vmem:[%s2730 + $0x28] sm:$0xff]
    %v4171 = vld [vmem:[%s2730 + $0x30] sm:$0xff]
    %v4172 = vld [vmem:[%s2730 + $0x38] sm:$0xff]
    %v4173 = vld [vmem:[%s2730 + $0x40] sm:$0xff]
    %v4174 = vld [vmem:[%s2730 + $0x48] sm:$0xff]
    %v4175 = vld [vmem:[%s2730 + $0x50] sm:$0xff]
    %v4176 = vld [vmem:[%s2730 + $0x58] sm:$0xff]
    %v4177 = vld [vmem:[%s2730 + $0x60] sm:$0xff]
    %v4178 = vld [vmem:[%s2730 + $0x68] sm:$0xff]
    %v4179 = vld [vmem:[%s2730 + $0x70] sm:$0xff]
    %v4180 = vld [vmem:[%s2730 + $0x78] sm:$0xff]
    %v4181 = vld [vmem:[%s2730 + $0x80] sm:$0xff]
    %v4182 = vld [vmem:[%s2730 + $0x88] sm:$0xff]
    %v4183 = vld [vmem:[%s2730 + $0x90] sm:$0xff]
    %v4184 = vld [vmem:[%s2730 + $0x98] sm:$0xff]
    %v4185 = vld [vmem:[%s2730 + $0xa0] sm:$0xff]
    %v4186 = vld [vmem:[%s2730 + $0xa8] sm:$0xff]
    %v4187 = vld [vmem:[%s2730 + $0xb0] sm:$0xff]
    %v4188 = vld [vmem:[%s2730 + $0xb8] sm:$0xff]
    %v4189 = vld [vmem:[%s2730 + $0xc0] sm:$0xff]
    %v4190 = vld [vmem:[%s2730 + $0xc8] sm:$0xff]
    %v4191 = vld [vmem:[%s2730 + $0xd0] sm:$0xff]
    %v4192 = vld [vmem:[%s2730 + $0xd8] sm:$0xff]
    %v4193 = vld [vmem:[%s2730 + $0xe0] sm:$0xff]
    %v4194 = vld [vmem:[%s2730 + $0xe8] sm:$0xff]
    %v4195 = vld [vmem:[%s2730 + $0xf0] sm:$0xff]
    %v4196 = vld [vmem:[%s2730 + $0xf8] sm:$0xff]
    %v4197 = vld [vmem:[%s2730 + $0x100] sm:$0xff]
    %v4198 = vld [vmem:[%s2730 + $0x108] sm:$0xff]
    %v4199 = vld [vmem:[%s2730 + $0x110] sm:$0xff]
    %v4200 = vld [vmem:[%s2730 + $0x118] sm:$0xff]
    %v4201 = vld [vmem:[%s2730 + $0x120] sm:$0xff]
    %v4202 = vld [vmem:[%s2730 + $0x128] sm:$0xff]
    %v4203 = vld [vmem:[%s2730 + $0x130] sm:$0xff]
    %v4204 = vld [vmem:[%s2730 + $0x138] sm:$0xff]
    %v4205 = vld [vmem:[%s2730 + $0x140] sm:$0xff]
    %v4206 = vld [vmem:[%s2730 + $0x148] sm:$0xff]
    %v4207 = vld [vmem:[%s2730 + $0x150] sm:$0xff]
    %v4208 = vld [vmem:[%s2730 + $0x158] sm:$0xff]
    %v4209 = vld [vmem:[%s2730 + $0x160] sm:$0xff]
    %v4210 = vld [vmem:[%s2730 + $0x168] sm:$0xff]
    %v4211 = vld [vmem:[%s2730 + $0x170] sm:$0xff]
    %v4212 = vld [vmem:[%s2730 + $0x178] sm:$0xff]
    %v4213 = vld [vmem:[%s2730 + $0x180] sm:$0xff]
    %v4214 = vld [vmem:[%s2730 + $0x188] sm:$0xff]
    %v4215 = vld [vmem:[%s2730 + $0x190] sm:$0xff]
    %v4216 = vld [vmem:[%s2730 + $0x198] sm:$0xff]
    %v4217 = vld [vmem:[%s2730 + $0x1a0] sm:$0xff]
    %v4218 = vld [vmem:[%s2730 + $0x1a8] sm:$0xff]
    %v4219 = vld [vmem:[%s2730 + $0x1b0] sm:$0xff]
    %v4220 = vld [vmem:[%s2730 + $0x1b8] sm:$0xff]
    %v4221 = vld [vmem:[%s2730 + $0x1c0] sm:$0xff]
    %v4222 = vld [vmem:[%s2730 + $0x1c8] sm:$0xff]
    %v4223 = vld [vmem:[%s2730 + $0x1d0] sm:$0xff]
    %v4224 = vld [vmem:[%s2730 + $0x1d8] sm:$0xff]
    %v4225 = vld [vmem:[%s2730 + $0x1e0] sm:$0xff]
    %v4226 = vld [vmem:[%s2730 + $0x1e8] sm:$0xff]
    %v4227 = vld [vmem:[%s2730 + $0x1f0] sm:$0xff]
    %v4228 = vld [vmem:[%s2730 + $0x1f8] sm:$0xff]
    %4229 = vmatprep.subr.mxu0 %v4166
    %4230 = vmatpush1.msra.mxu0 %v4165
    %4231 = vmatprep.subr.mxu0 %v4170
    %4232 = vmatpush1.msra.mxu0 %v4169
    %4233 = vmatprep.subr.mxu0 %v4174
    %4234 = vmatpush1.msra.mxu0 %v4173
    %4235 = vmatprep.subr.mxu0 %v4178
    %4236 = vmatpush1.msra.mxu0 %v4177
    %4237 = vmatprep.subr.mxu0 %v4182
    %4238 = vmatpush1.msra.mxu0 %v4181
    %4239 = vmatprep.subr.mxu0 %v4186
    %4240 = vmatpush1.msra.mxu0 %v4185
    %4241 = vmatprep.subr.mxu0 %v4190
    %4242 = vmatpush1.msra.mxu0 %v4189
    %4243 = vmatprep.subr.mxu0 %v4194
    %4244 = vmatpush1.msra.mxu0 %v4193
    %4245 = vmatprep.subr.mxu0 %v4198
    %4246 = vmatpush1.msra.mxu0 %v4197
    %4247 = vmatprep.subr.mxu0 %v4202
    %4248 = vmatpush1.msra.mxu0 %v4201
    %4249 = vmatprep.subr.mxu0 %v4206
    %4250 = vmatpush1.msra.mxu0 %v4205
    %4251 = vmatprep.subr.mxu0 %v4210
    %4252 = vmatpush1.msra.mxu0 %v4209
    %4253 = vmatprep.subr.mxu0 %v4214
    %4254 = vmatpush1.msra.mxu0 %v4213
    %4255 = vmatprep.subr.mxu0 %v4218
    %4256 = vmatpush1.msra.mxu0 %v4217
    %4257 = vmatprep.subr.mxu0 %v4222
    %4258 = vmatpush1.msra.mxu0 %v4221
    %4259 = vmatprep.subr.mxu0 %v4226
    %4260 = vmatpush1.msra.mxu0 %v4225
    %4261 = vmatprep.subr.mxu0 0.0
    %4262 = vmatpush1.msra.mxu0 0.0
    %4263 = vmatprep.subr.mxu0 0.0
    %4264 = vmatpush1.msra.mxu0 0.0
    %4265 = vmatprep.subr.mxu0 0.0
    %4266 = vmatpush1.msra.mxu0 0.0
    %4267 = vmatprep.subr.mxu0 0.0
    %4268 = vmatpush1.msra.mxu0 0.0
    %4269 = vmatprep.subr.mxu0 0.0
    %4270 = vmatpush1.msra.mxu0 0.0
    %4271 = vmatprep.subr.mxu0 0.0
    %4272 = vmatpush1.msra.mxu0 0.0
    %4273 = vmatprep.subr.mxu0 0.0
    %4274 = vmatpush1.msra.mxu0 0.0
    %4275 = vmatprep.subr.mxu0 0.0
    %4276 = vmatpush1.msra.mxu0 0.0
    %4277 = vmatprep.subr.mxu0 0.0
    %4278 = vmatpush1.msra.mxu0 0.0
    %4279 = vmatprep.subr.mxu0 0.0
    %4280 = vmatpush1.msra.mxu0 0.0
    %4281 = vmatprep.subr.mxu0 0.0
    %4282 = vmatpush1.msra.mxu0 0.0
    %4283 = vmatprep.subr.mxu0 0.0
    %4284 = vmatpush1.msra.mxu0 0.0
    %4285 = vmatprep.subr.mxu0 0.0
    %4286 = vmatpush1.msra.mxu0 0.0
    %4287 = vmatprep.subr.mxu0 0.0
    %4288 = vmatpush1.msra.mxu0 0.0
    %4289 = vmatprep.subr.mxu0 0.0
    %4290 = vmatpush1.msra.mxu0 0.0
    %4291 = vmatprep.subr.mxu0 0.0
    %4292 = vmatpush1.msra.mxu0 0.0
    %4293 = vmatprep.mubr.f32.mxu0 0.0
    %4294 = vmatmul.mubr.f32.gmra.mrb[0].mxu0 %v4159
    %v4295 = vpop.f32.mrb[0].mxu0
    %v4296 = vadd.f32 0.0, %v4295
    %v4297 = vpop.f32.mrb[0].mxu0
    %v4298 = vadd.f32 0.0, %v4297
    %4299 = vdwg.mxu0
    %4300 = vmatprep.subr.mxu0 %v4168
    %4301 = vmatpush1.msra.mxu0 %v4167
    %4302 = vmatprep.subr.mxu0 %v4172
    %4303 = vmatpush1.msra.mxu0 %v4171
    %4304 = vmatprep.subr.mxu0 %v4176
    %4305 = vmatpush1.msra.mxu0 %v4175
    %4306 = vmatprep.subr.mxu0 %v4180
    %4307 = vmatpush1.msra.mxu0 %v4179
    %4308 = vmatprep.subr.mxu0 %v4184
    %4309 = vmatpush1.msra.mxu0 %v4183
    %4310 = vmatprep.subr.mxu0 %v4188
    %4311 = vmatpush1.msra.mxu0 %v4187
    %4312 = vmatprep.subr.mxu0 %v4192
    %4313 = vmatpush1.msra.mxu0 %v4191
    %4314 = vmatprep.subr.mxu0 %v4196
    %4315 = vmatpush1.msra.mxu0 %v4195
    %4316 = vmatprep.subr.mxu0 %v4200
    %4317 = vmatpush1.msra.mxu0 %v4199
    %4318 = vmatprep.subr.mxu0 %v4204
    %4319 = vmatpush1.msra.mxu0 %v4203
    %4320 = vmatprep.subr.mxu0 %v4208
    %4321 = vmatpush1.msra.mxu0 %v4207
    %4322 = vmatprep.subr.mxu0 %v4212
    %4323 = vmatpush1.msra.mxu0 %v4211
    %4324 = vmatprep.subr.mxu0 %v4216
    %4325 = vmatpush1.msra.mxu0 %v4215
    %4326 = vmatprep.subr.mxu0 %v4220
    %4327 = vmatpush1.msra.mxu0 %v4219
    %4328 = vmatprep.subr.mxu0 %v4224
    %4329 = vmatpush1.msra.mxu0 %v4223
    %4330 = vmatprep.subr.mxu0 %v4228
    %4331 = vmatpush1.msra.mxu0 %v4227
    %4332 = vmatprep.subr.mxu0 0.0
    %4333 = vmatpush1.msra.mxu0 0.0
    %4334 = vmatprep.subr.mxu0 0.0
    %4335 = vmatpush1.msra.mxu0 0.0
    %4336 = vmatprep.subr.mxu0 0.0
    %4337 = vmatpush1.msra.mxu0 0.0
    %4338 = vmatprep.subr.mxu0 0.0
    %4339 = vmatpush1.msra.mxu0 0.0
    %4340 = vmatprep.subr.mxu0 0.0
    %4341 = vmatpush1.msra.mxu0 0.0
    %4342 = vmatprep.subr.mxu0 0.0
    %4343 = vmatpush1.msra.mxu0 0.0
    %4344 = vmatprep.subr.mxu0 0.0
    %4345 = vmatpush1.msra.mxu0 0.0
    %4346 = vmatprep.subr.mxu0 0.0
    %4347 = vmatpush1.msra.mxu0 0.0
    %4348 = vmatprep.subr.mxu0 0.0
    %4349 = vmatpush1.msra.mxu0 0.0
    %4350 = vmatprep.subr.mxu0 0.0
    %4351 = vmatpush1.msra.mxu0 0.0
    %4352 = vmatprep.subr.mxu0 0.0
    %4353 = vmatpush1.msra.mxu0 0.0
    %4354 = vmatprep.subr.mxu0 0.0
    %4355 = vmatpush1.msra.mxu0 0.0
    %4356 = vmatprep.subr.mxu0 0.0
    %4357 = vmatpush1.msra.mxu0 0.0
    %4358 = vmatprep.subr.mxu0 0.0
    %4359 = vmatpush1.msra.mxu0 0.0
    %4360 = vmatprep.subr.mxu0 0.0
    %4361 = vmatpush1.msra.mxu0 0.0
    %4362 = vmatprep.subr.mxu0 0.0
    %4363 = vmatpush1.msra.mxu0 0.0
    %4364 = vmatprep.mubr.f32.mxu0 0.0
    %4365 = vmatmul.mubr.f32.gmra.mrb[0].mxu0 %v4159
    %v4366 = vpop.f32.mrb[0].mxu0
    %v4367 = vadd.f32 0.0, %v4366
    %v4368 = vpop.f32.mrb[0].mxu0
    %v4369 = vadd.f32 0.0, %v4368
    %4370 = vdwg.mxu0
    %v4371 = vadd.f32 %v4161, %v4296
    %v4372 = vadd.f32 %v4162, %v4298
    %v4373 = vadd.f32 %v4163, %v4367
    %v4374 = vadd.f32 %v4164, %v4369
    %v4375 = vxor.u32 %v4371, 2147483648
    %v4376 = vxor.u32 %v4372, 2147483648
    %v4377 = vxor.u32 %v4373, 2147483648
    %v4378 = vmul.f32 %v4375, 1.442695
    %v4379 = vpow.pop %v4378
    %v4380 = vmul.f32 %v4376, 1.442695
    %v4381 = vpow.pop %v4380
    %v4382 = vmul.f32 %v4377, 1.442695
    %v4383 = vpow.pop %v4382
    %v4384 = vadd.f32 %v4379, 1.0
    %v4385 = vadd.f32 %v4381, 1.0
    %v4386 = vadd.f32 %v4383, 1.0
    %v4387 = vrcp.pop %v4384
    %v4388 = vmul.f32 1.0, %v4387
    %v4389 = vrcp.pop %v4385
    %v4390 = vmul.f32 1.0, %v4389
    %v4391 = vrcp.pop %v4386
    %v4392 = vmul.f32 1.0, %v4391
    %v4393 = vtanh.pop %v4374
    %v4394 = vmul.f32 %v4390, %v4157
    %v4395 = vmul.f32 %v4388, %v4393
    %v4396 = vadd.f32 %v4394, %v4395
    %v4397 = vtanh.pop %v4396
    %v4398 = vmul.f32 %v4392, %v4397
    %4399 = vst [vmem:[#allocation2 + $0x30] sm:$0xff] %v4398
    %v4400 = vld [vmem:[#allocation3 + $0xe0] sm:$0xff]
    %v4401 = vld [vmem:[#allocation3 + $0xe8] sm:$0xff]
    %v4402 = vld [vmem:[#allocation3 + $0xf0] sm:$0xff]
    %v4403 = vld [vmem:[#allocation3 + $0xf8] sm:$0xff]
    %v4404 = vld [vmem:[%s2730] sm:$0xff]
    %v4405 = vld [vmem:[%s2730 + $0x8] sm:$0xff]
    %v4406 = vld [vmem:[%s2730 + $0x10] sm:$0xff]
    %v4407 = vld [vmem:[%s2730 + $0x18] sm:$0xff]
    %v4408 = vld [vmem:[%s2730 + $0x20] sm:$0xff]
    %v4409 = vld [vmem:[%s2730 + $0x28] sm:$0xff]
    %v4410 = vld [vmem:[%s2730 + $0x30] sm:$0xff]
    %v4411 = vld [vmem:[%s2730 + $0x38] sm:$0xff]
    %v4412 = vld [vmem:[%s2730 + $0x40] sm:$0xff]
    %v4413 = vld [vmem:[%s2730 + $0x48] sm:$0xff]
    %v4414 = vld [vmem:[%s2730 + $0x50] sm:$0xff]
    %v4415 = vld [vmem:[%s2730 + $0x58] sm:$0xff]
    %v4416 = vld [vmem:[%s2730 + $0x60] sm:$0xff]
    %v4417 = vld [vmem:[%s2730 + $0x68] sm:$0xff]
    %v4418 = vld [vmem:[%s2730 + $0x70] sm:$0xff]
    %v4419 = vld [vmem:[%s2730 + $0x78] sm:$0xff]
    %v4420 = vld [vmem:[%s2730 + $0x80] sm:$0xff]
    %v4421 = vld [vmem:[%s2730 + $0x88] sm:$0xff]
    %v4422 = vld [vmem:[%s2730 + $0x90] sm:$0xff]
    %v4423 = vld [vmem:[%s2730 + $0x98] sm:$0xff]
    %v4424 = vld [vmem:[%s2730 + $0xa0] sm:$0xff]
    %v4425 = vld [vmem:[%s2730 + $0xa8] sm:$0xff]
    %v4426 = vld [vmem:[%s2730 + $0xb0] sm:$0xff]
    %v4427 = vld [vmem:[%s2730 + $0xb8] sm:$0xff]
    %v4428 = vld [vmem:[%s2730 + $0xc0] sm:$0xff]
    %v4429 = vld [vmem:[%s2730 + $0xc8] sm:$0xff]
    %v4430 = vld [vmem:[%s2730 + $0xd0] sm:$0xff]
    %v4431 = vld [vmem:[%s2730 + $0xd8] sm:$0xff]
    %v4432 = vld [vmem:[%s2730 + $0xe0] sm:$0xff]
    %v4433 = vld [vmem:[%s2730 + $0xe8] sm:$0xff]
    %v4434 = vld [vmem:[%s2730 + $0xf0] sm:$0xff]
    %v4435 = vld [vmem:[%s2730 + $0xf8] sm:$0xff]
    %v4436 = vld [vmem:[%s2730 + $0x100] sm:$0xff]
    %v4437 = vld [vmem:[%s2730 + $0x108] sm:$0xff]
    %v4438 = vld [vmem:[%s2730 + $0x110] sm:$0xff]
    %v4439 = vld [vmem:[%s2730 + $0x118] sm:$0xff]
    %v4440 = vld [vmem:[%s2730 + $0x120] sm:$0xff]
    %v4441 = vld [vmem:[%s2730 + $0x128] sm:$0xff]
    %v4442 = vld [vmem:[%s2730 + $0x130] sm:$0xff]
    %v4443 = vld [vmem:[%s2730 + $0x138] sm:$0xff]
    %v4444 = vld [vmem:[%s2730 + $0x140] sm:$0xff]
    %v4445 = vld [vmem:[%s2730 + $0x148] sm:$0xff]
    %v4446 = vld [vmem:[%s2730 + $0x150] sm:$0xff]
    %v4447 = vld [vmem:[%s2730 + $0x158] sm:$0xff]
    %v4448 = vld [vmem:[%s2730 + $0x160] sm:$0xff]
    %v4449 = vld [vmem:[%s2730 + $0x168] sm:$0xff]
    %v4450 = vld [vmem:[%s2730 + $0x170] sm:$0xff]
    %v4451 = vld [vmem:[%s2730 + $0x178] sm:$0xff]
    %v4452 = vld [vmem:[%s2730 + $0x180] sm:$0xff]
    %v4453 = vld [vmem:[%s2730 + $0x188] sm:$0xff]
    %v4454 = vld [vmem:[%s2730 + $0x190] sm:$0xff]
    %v4455 = vld [vmem:[%s2730 + $0x198] sm:$0xff]
    %v4456 = vld [vmem:[%s2730 + $0x1a0] sm:$0xff]
    %v4457 = vld [vmem:[%s2730 + $0x1a8] sm:$0xff]
    %v4458 = vld [vmem:[%s2730 + $0x1b0] sm:$0xff]
    %v4459 = vld [vmem:[%s2730 + $0x1b8] sm:$0xff]
    %v4460 = vld [vmem:[%s2730 + $0x1c0] sm:$0xff]
    %v4461 = vld [vmem:[%s2730 + $0x1c8] sm:$0xff]
    %v4462 = vld [vmem:[%s2730 + $0x1d0] sm:$0xff]
    %v4463 = vld [vmem:[%s2730 + $0x1d8] sm:$0xff]
    %v4464 = vld [vmem:[%s2730 + $0x1e0] sm:$0xff]
    %v4465 = vld [vmem:[%s2730 + $0x1e8] sm:$0xff]
    %v4466 = vld [vmem:[%s2730 + $0x1f0] sm:$0xff]
    %v4467 = vld [vmem:[%s2730 + $0x1f8] sm:$0xff]
    %4468 = vmatprep.subr.mxu0 %v4405
    %4469 = vmatpush1.msra.mxu0 %v4404
    %4470 = vmatprep.subr.mxu0 %v4409
    %4471 = vmatpush1.msra.mxu0 %v4408
    %4472 = vmatprep.subr.mxu0 %v4413
    %4473 = vmatpush1.msra.mxu0 %v4412
    %4474 = vmatprep.subr.mxu0 %v4417
    %4475 = vmatpush1.msra.mxu0 %v4416
    %4476 = vmatprep.subr.mxu0 %v4421
    %4477 = vmatpush1.msra.mxu0 %v4420
    %4478 = vmatprep.subr.mxu0 %v4425
    %4479 = vmatpush1.msra.mxu0 %v4424
    %4480 = vmatprep.subr.mxu0 %v4429
    %4481 = vmatpush1.msra.mxu0 %v4428
    %4482 = vmatprep.subr.mxu0 %v4433
    %4483 = vmatpush1.msra.mxu0 %v4432
    %4484 = vmatprep.subr.mxu0 %v4437
    %4485 = vmatpush1.msra.mxu0 %v4436
    %4486 = vmatprep.subr.mxu0 %v4441
    %4487 = vmatpush1.msra.mxu0 %v4440
    %4488 = vmatprep.subr.mxu0 %v4445
    %4489 = vmatpush1.msra.mxu0 %v4444
    %4490 = vmatprep.subr.mxu0 %v4449
    %4491 = vmatpush1.msra.mxu0 %v4448
    %4492 = vmatprep.subr.mxu0 %v4453
    %4493 = vmatpush1.msra.mxu0 %v4452
    %4494 = vmatprep.subr.mxu0 %v4457
    %4495 = vmatpush1.msra.mxu0 %v4456
    %4496 = vmatprep.subr.mxu0 %v4461
    %4497 = vmatpush1.msra.mxu0 %v4460
    %4498 = vmatprep.subr.mxu0 %v4465
    %4499 = vmatpush1.msra.mxu0 %v4464
    %4500 = vmatprep.subr.mxu0 0.0
    %4501 = vmatpush1.msra.mxu0 0.0
    %4502 = vmatprep.subr.mxu0 0.0
    %4503 = vmatpush1.msra.mxu0 0.0
    %4504 = vmatprep.subr.mxu0 0.0
    %4505 = vmatpush1.msra.mxu0 0.0
    %4506 = vmatprep.subr.mxu0 0.0
    %4507 = vmatpush1.msra.mxu0 0.0
    %4508 = vmatprep.subr.mxu0 0.0
    %4509 = vmatpush1.msra.mxu0 0.0
    %4510 = vmatprep.subr.mxu0 0.0
    %4511 = vmatpush1.msra.mxu0 0.0
    %4512 = vmatprep.subr.mxu0 0.0
    %4513 = vmatpush1.msra.mxu0 0.0
    %4514 = vmatprep.subr.mxu0 0.0
    %4515 = vmatpush1.msra.mxu0 0.0
    %4516 = vmatprep.subr.mxu0 0.0
    %4517 = vmatpush1.msra.mxu0 0.0
    %4518 = vmatprep.subr.mxu0 0.0
    %4519 = vmatpush1.msra.mxu0 0.0
    %4520 = vmatprep.subr.mxu0 0.0
    %4521 = vmatpush1.msra.mxu0 0.0
    %4522 = vmatprep.subr.mxu0 0.0
    %4523 = vmatpush1.msra.mxu0 0.0
    %4524 = vmatprep.subr.mxu0 0.0
    %4525 = vmatpush1.msra.mxu0 0.0
    %4526 = vmatprep.subr.mxu0 0.0
    %4527 = vmatpush1.msra.mxu0 0.0
    %4528 = vmatprep.subr.mxu0 0.0
    %4529 = vmatpush1.msra.mxu0 0.0
    %4530 = vmatprep.subr.mxu0 0.0
    %4531 = vmatpush1.msra.mxu0 0.0
    %4532 = vmatprep.mubr.f32.mxu0 0.0
    %4533 = vmatmul.mubr.f32.gmra.mrb[0].mxu0 %v4398
    %v4534 = vpop.f32.mrb[0].mxu0
    %v4535 = vadd.f32 0.0, %v4534
    %v4536 = vpop.f32.mrb[0].mxu0
    %v4537 = vadd.f32 0.0, %v4536
    %4538 = vdwg.mxu0
    %4539 = vmatprep.subr.mxu0 %v4407
    %4540 = vmatpush1.msra.mxu0 %v4406
    %4541 = vmatprep.subr.mxu0 %v4411
    %4542 = vmatpush1.msra.mxu0 %v4410
    %4543 = vmatprep.subr.mxu0 %v4415
    %4544 = vmatpush1.msra.mxu0 %v4414
    %4545 = vmatprep.subr.mxu0 %v4419
    %4546 = vmatpush1.msra.mxu0 %v4418
    %4547 = vmatprep.subr.mxu0 %v4423
    %4548 = vmatpush1.msra.mxu0 %v4422
    %4549 = vmatprep.subr.mxu0 %v4427
    %4550 = vmatpush1.msra.mxu0 %v4426
    %4551 = vmatprep.subr.mxu0 %v4431
    %4552 = vmatpush1.msra.mxu0 %v4430
    %4553 = vmatprep.subr.mxu0 %v4435
    %4554 = vmatpush1.msra.mxu0 %v4434
    %4555 = vmatprep.subr.mxu0 %v4439
    %4556 = vmatpush1.msra.mxu0 %v4438
    %4557 = vmatprep.subr.mxu0 %v4443
    %4558 = vmatpush1.msra.mxu0 %v4442
    %4559 = vmatprep.subr.mxu0 %v4447
    %4560 = vmatpush1.msra.mxu0 %v4446
    %4561 = vmatprep.subr.mxu0 %v4451
    %4562 = vmatpush1.msra.mxu0 %v4450
    %4563 = vmatprep.subr.mxu0 %v4455
    %4564 = vmatpush1.msra.mxu0 %v4454
    %4565 = vmatprep.subr.mxu0 %v4459
    %4566 = vmatpush1.msra.mxu0 %v4458
    %4567 = vmatprep.subr.mxu0 %v4463
    %4568 = vmatpush1.msra.mxu0 %v4462
    %4569 = vmatprep.subr.mxu0 %v4467
    %4570 = vmatpush1.msra.mxu0 %v4466
    %4571 = vmatprep.subr.mxu0 0.0
    %4572 = vmatpush1.msra.mxu0 0.0
    %4573 = vmatprep.subr.mxu0 0.0
    %4574 = vmatpush1.msra.mxu0 0.0
    %4575 = vmatprep.subr.mxu0 0.0
    %4576 = vmatpush1.msra.mxu0 0.0
    %4577 = vmatprep.subr.mxu0 0.0
    %4578 = vmatpush1.msra.mxu0 0.0
    %4579 = vmatprep.subr.mxu0 0.0
    %4580 = vmatpush1.msra.mxu0 0.0
    %4581 = vmatprep.subr.mxu0 0.0
    %4582 = vmatpush1.msra.mxu0 0.0
    %4583 = vmatprep.subr.mxu0 0.0
    %4584 = vmatpush1.msra.mxu0 0.0
    %4585 = vmatprep.subr.mxu0 0.0
    %4586 = vmatpush1.msra.mxu0 0.0
    %4587 = vmatprep.subr.mxu0 0.0
    %4588 = vmatpush1.msra.mxu0 0.0
    %4589 = vmatprep.subr.mxu0 0.0
    %4590 = vmatpush1.msra.mxu0 0.0
    %4591 = vmatprep.subr.mxu0 0.0
    %4592 = vmatpush1.msra.mxu0 0.0
    %4593 = vmatprep.subr.mxu0 0.0
    %4594 = vmatpush1.msra.mxu0 0.0
    %4595 = vmatprep.subr.mxu0 0.0
    %4596 = vmatpush1.msra.mxu0 0.0
    %4597 = vmatprep.subr.mxu0 0.0
    %4598 = vmatpush1.msra.mxu0 0.0
    %4599 = vmatprep.subr.mxu0 0.0
    %4600 = vmatpush1.msra.mxu0 0.0
    %4601 = vmatprep.subr.mxu0 0.0
    %4602 = vmatpush1.msra.mxu0 0.0
    %4603 = vmatprep.mubr.f32.mxu0 0.0
    %4604 = vmatmul.mubr.f32.gmra.mrb[0].mxu0 %v4398
    %v4605 = vpop.f32.mrb[0].mxu0
    %v4606 = vadd.f32 0.0, %v4605
    %v4607 = vpop.f32.mrb[0].mxu0
    %v4608 = vadd.f32 0.0, %v4607
    %4609 = vdwg.mxu0
    %v4610 = vadd.f32 %v4400, %v4535
    %v4611 = vadd.f32 %v4401, %v4537
    %v4612 = vadd.f32 %v4402, %v4606
    %v4613 = vadd.f32 %v4403, %v4608
    %v4614 = vxor.u32 %v4610, 2147483648
    %v4615 = vxor.u32 %v4611, 2147483648
    %v4616 = vxor.u32 %v4612, 2147483648
    %v4617 = vmul.f32 %v4614, 1.442695
    %v4618 = vpow.pop %v4617
    %v4619 = vmul.f32 %v4615, 1.442695
    %v4620 = vpow.pop %v4619
    %v4621 = vmul.f32 %v4616, 1.442695
    %v4622 = vpow.pop %v4621
    %v4623 = vadd.f32 %v4618, 1.0
    %v4624 = vadd.f32 %v4620, 1.0
    %v4625 = vadd.f32 %v4622, 1.0
    %v4626 = vrcp.pop %v4623
    %v4627 = vmul.f32 1.0, %v4626
    %v4628 = vrcp.pop %v4624
    %v4629 = vmul.f32 1.0, %v4628
    %v4630 = vrcp.pop %v4625
    %v4631 = vmul.f32 1.0, %v4630
    %v4632 = vtanh.pop %v4613
    %v4633 = vmul.f32 %v4629, %v4396
    %v4634 = vmul.f32 %v4627, %v4632
    %v4635 = vadd.f32 %v4633, %v4634
    %v4636 = vtanh.pop %v4635
    %v4637 = vmul.f32 %v4631, %v4636
    %4638 = vst [vmem:[#allocation2 + $0x38] sm:$0xff] %v4637
    %v4639 = vld [vmem:[#allocation2] sm:$0xff]
    %v4640 = vld [vmem:[#allocation2 + $0x8] sm:$0xff]
    %v4641 = vld [vmem:[#allocation2 + $0x10] sm:$0xff]
    %v4642 = vld [vmem:[#allocation2 + $0x18] sm:$0xff]
    %v4643 = vld [vmem:[#allocation2 + $0x20] sm:$0xff]
    %v4644 = vld [vmem:[#allocation2 + $0x28] sm:$0xff]
    %v4645 = vld [vmem:[#allocation2 + $0x30] sm:$0xff]
    %v4646 = vld [vmem:[#allocation2 + $0x38] sm:$0xff]
    %s4647 = scalar_lea.vmem [#allocation7], 1024
    %v4648 = vld [vmem:[%s4647] sm:$0xff]
    %v4649 = vld [vmem:[%s4647 + $0x8] sm:$0xff]
    %v4650 = vld [vmem:[%s4647 + $0x10] sm:$0xff]
    %v4651 = vld [vmem:[%s4647 + $0x18] sm:$0xff]
    %v4652 = vld [vmem:[%s4647 + $0x20] sm:$0xff]
    %v4653 = vld [vmem:[%s4647 + $0x28] sm:$0xff]
    %v4654 = vld [vmem:[%s4647 + $0x30] sm:$0xff]
    %v4655 = vld [vmem:[%s4647 + $0x38] sm:$0xff]
    %v4656 = vld [vmem:[%s4647 + $0x40] sm:$0xff]
    %v4657 = vld [vmem:[%s4647 + $0x48] sm:$0xff]
    %v4658 = vld [vmem:[%s4647 + $0x50] sm:$0xff]
    %v4659 = vld [vmem:[%s4647 + $0x58] sm:$0xff]
    %v4660 = vld [vmem:[%s4647 + $0x60] sm:$0xff]
    %v4661 = vld [vmem:[%s4647 + $0x68] sm:$0xff]
    %v4662 = vld [vmem:[%s4647 + $0x70] sm:$0xff]
    %v4663 = vld [vmem:[%s4647 + $0x78] sm:$0xff]
    %v4664 = vld [vmem:[%s4647 + $0x80] sm:$0xff]
    %v4665 = vld [vmem:[%s4647 + $0x88] sm:$0xff]
    %v4666 = vld [vmem:[%s4647 + $0x90] sm:$0xff]
    %v4667 = vld [vmem:[%s4647 + $0x98] sm:$0xff]
    %v4668 = vld [vmem:[%s4647 + $0xa0] sm:$0xff]
    %v4669 = vld [vmem:[%s4647 + $0xa8] sm:$0xff]
    %v4670 = vld [vmem:[%s4647 + $0xb0] sm:$0xff]
    %v4671 = vld [vmem:[%s4647 + $0xb8] sm:$0xff]
    %v4672 = vld [vmem:[%s4647 + $0xc0] sm:$0xff]
    %v4673 = vld [vmem:[%s4647 + $0xc8] sm:$0xff]
    %v4674 = vld [vmem:[%s4647 + $0xd0] sm:$0xff]
    %v4675 = vld [vmem:[%s4647 + $0xd8] sm:$0xff]
    %v4676 = vld [vmem:[%s4647 + $0xe0] sm:$0xff]
    %v4677 = vld [vmem:[%s4647 + $0xe8] sm:$0xff]
    %v4678 = vld [vmem:[%s4647 + $0xf0] sm:$0xff]
    %v4679 = vld [vmem:[%s4647 + $0xf8] sm:$0xff]
    %v4680 = vld [vmem:[%s4647 + $0x100] sm:$0xff]
    %v4681 = vld [vmem:[%s4647 + $0x108] sm:$0xff]
    %v4682 = vld [vmem:[%s4647 + $0x110] sm:$0xff]
    %v4683 = vld [vmem:[%s4647 + $0x118] sm:$0xff]
    %v4684 = vld [vmem:[%s4647 + $0x120] sm:$0xff]
    %v4685 = vld [vmem:[%s4647 + $0x128] sm:$0xff]
    %v4686 = vld [vmem:[%s4647 + $0x130] sm:$0xff]
    %v4687 = vld [vmem:[%s4647 + $0x138] sm:$0xff]
    %v4688 = vld [vmem:[%s4647 + $0x140] sm:$0xff]
    %v4689 = vld [vmem:[%s4647 + $0x148] sm:$0xff]
    %v4690 = vld [vmem:[%s4647 + $0x150] sm:$0xff]
    %v4691 = vld [vmem:[%s4647 + $0x158] sm:$0xff]
    %v4692 = vld [vmem:[%s4647 + $0x160] sm:$0xff]
    %v4693 = vld [vmem:[%s4647 + $0x168] sm:$0xff]
    %v4694 = vld [vmem:[%s4647 + $0x170] sm:$0xff]
    %v4695 = vld [vmem:[%s4647 + $0x178] sm:$0xff]
    %v4696 = vld [vmem:[%s4647 + $0x180] sm:$0xff]
    %v4697 = vld [vmem:[%s4647 + $0x188] sm:$0xff]
    %v4698 = vld [vmem:[%s4647 + $0x190] sm:$0xff]
    %v4699 = vld [vmem:[%s4647 + $0x198] sm:$0xff]
    %v4700 = vld [vmem:[%s4647 + $0x1a0] sm:$0xff]
    %v4701 = vld [vmem:[%s4647 + $0x1a8] sm:$0xff]
    %v4702 = vld [vmem:[%s4647 + $0x1b0] sm:$0xff]
    %v4703 = vld [vmem:[%s4647 + $0x1b8] sm:$0xff]
    %v4704 = vld [vmem:[%s4647 + $0x1c0] sm:$0xff]
    %v4705 = vld [vmem:[%s4647 + $0x1c8] sm:$0xff]
    %v4706 = vld [vmem:[%s4647 + $0x1d0] sm:$0xff]
    %v4707 = vld [vmem:[%s4647 + $0x1d8] sm:$0xff]
    %v4708 = vld [vmem:[%s4647 + $0x1e0] sm:$0xff]
    %v4709 = vld [vmem:[%s4647 + $0x1e8] sm:$0xff]
    %v4710 = vld [vmem:[%s4647 + $0x1f0] sm:$0xff]
    %v4711 = vld [vmem:[%s4647 + $0x1f8] sm:$0xff]
    %s4712 = scalar_lea.vmem [#allocation10], 8
    %v4713 = vld [vmem:[%s4712] sm:$0xf]
    %v4715 = vlaneseq
    %v4716 = vshrl.u32 %v4715, 7
    %v4717 = vsub.s32 0, %v4716
    %v4718 = vrot.slane %v4713, %v4717
    %v4719 = vlaneseq
    %v4720 = vshrl.u32 %v4719, 7
    %v4721 = vsub.s32 1, %v4720
    %v4722 = vrot.slane %v4713, %v4721
    %v4723 = vlaneseq
    %v4724 = vshrl.u32 %v4723, 7
    %v4725 = vsub.s32 2, %v4724
    %v4726 = vrot.slane %v4713, %v4725
    %v4727 = vlaneseq
    %v4728 = vshrl.u32 %v4727, 7
    %v4729 = vsub.s32 3, %v4728
    %v4730 = vrot.slane %v4713, %v4729
    %4735 = vmatprep.subr.mxu0 %v4649
    %4736 = vmatpush1.msra.mxu0 %v4648
    %4737 = vmatprep.subr.mxu0 %v4653
    %4738 = vmatpush1.msra.mxu0 %v4652
    %4739 = vmatprep.subr.mxu0 %v4657
    %4740 = vmatpush1.msra.mxu0 %v4656
    %4741 = vmatprep.subr.mxu0 %v4661
    %4742 = vmatpush1.msra.mxu0 %v4660
    %4743 = vmatprep.subr.mxu0 %v4665
    %4744 = vmatpush1.msra.mxu0 %v4664
    %4745 = vmatprep.subr.mxu0 %v4669
    %4746 = vmatpush1.msra.mxu0 %v4668
    %4747 = vmatprep.subr.mxu0 %v4673
    %4748 = vmatpush1.msra.mxu0 %v4672
    %4749 = vmatprep.subr.mxu0 %v4677
    %4750 = vmatpush1.msra.mxu0 %v4676
    %4751 = vmatprep.subr.mxu0 %v4681
    %4752 = vmatpush1.msra.mxu0 %v4680
    %4753 = vmatprep.subr.mxu0 %v4685
    %4754 = vmatpush1.msra.mxu0 %v4684
    %4755 = vmatprep.subr.mxu0 %v4689
    %4756 = vmatpush1.msra.mxu0 %v4688
    %4757 = vmatprep.subr.mxu0 %v4693
    %4758 = vmatpush1.msra.mxu0 %v4692
    %4759 = vmatprep.subr.mxu0 %v4697
    %4760 = vmatpush1.msra.mxu0 %v4696
    %4761 = vmatprep.subr.mxu0 %v4701
    %4762 = vmatpush1.msra.mxu0 %v4700
    %4763 = vmatprep.subr.mxu0 %v4705
    %4764 = vmatpush1.msra.mxu0 %v4704
    %4765 = vmatprep.subr.mxu0 %v4709
    %4766 = vmatpush1.msra.mxu0 %v4708
    %4767 = vmatprep.subr.mxu0 0.0
    %4768 = vmatpush1.msra.mxu0 0.0
    %4769 = vmatprep.subr.mxu0 0.0
    %4770 = vmatpush1.msra.mxu0 0.0
    %4771 = vmatprep.subr.mxu0 0.0
    %4772 = vmatpush1.msra.mxu0 0.0
    %4773 = vmatprep.subr.mxu0 0.0
    %4774 = vmatpush1.msra.mxu0 0.0
    %4775 = vmatprep.subr.mxu0 0.0
    %4776 = vmatpush1.msra.mxu0 0.0
    %4777 = vmatprep.subr.mxu0 0.0
    %4778 = vmatpush1.msra.mxu0 0.0
    %4779 = vmatprep.subr.mxu0 0.0
    %4780 = vmatpush1.msra.mxu0 0.0
    %4781 = vmatprep.subr.mxu0 0.0
    %4782 = vmatpush1.msra.mxu0 0.0
    %4783 = vmatprep.subr.mxu0 0.0
    %4784 = vmatpush1.msra.mxu0 0.0
    %4785 = vmatprep.subr.mxu0 0.0
    %4786 = vmatpush1.msra.mxu0 0.0
    %4787 = vmatprep.subr.mxu0 0.0
    %4788 = vmatpush1.msra.mxu0 0.0
    %4789 = vmatprep.subr.mxu0 0.0
    %4790 = vmatpush1.msra.mxu0 0.0
    %4791 = vmatprep.subr.mxu0 0.0
    %4792 = vmatpush1.msra.mxu0 0.0
    %4793 = vmatprep.subr.mxu0 0.0
    %4794 = vmatpush1.msra.mxu0 0.0
    %4795 = vmatprep.subr.mxu0 0.0
    %4796 = vmatpush1.msra.mxu0 0.0
    %4797 = vmatprep.subr.mxu0 0.0
    %4798 = vmatpush1.msra.mxu0 0.0
    %4799 = vmatprep.mubr.f32.mxu0 0.0
    %4800 = vmatmul.mubr.f32.gmra.mrb[0].mxu0 %v4639
    %v4801 = vpop.f32.mrb[0].mxu0
    %v4802 = vadd.f32 %v4718, %v4801
    %v4803 = vpop.f32.mrb[0].mxu0
    %v4804 = vadd.f32 %v4722, %v4803
    %4805 = vmatprep.mubr.f32.mxu0 0.0
    %4806 = vmatmul.mubr.f32.gmra.mrb[0].mxu0 %v4640
    %v4807 = vpop.f32.mrb[0].mxu0
    %v4808 = vadd.f32 %v4718, %v4807
    %v4809 = vpop.f32.mrb[0].mxu0
    %v4810 = vadd.f32 %v4722, %v4809
    %4811 = vmatprep.mubr.f32.mxu0 0.0
    %4812 = vmatmul.mubr.f32.gmra.mrb[0].mxu0 %v4641
    %v4813 = vpop.f32.mrb[0].mxu0
    %v4814 = vadd.f32 %v4718, %v4813
    %v4815 = vpop.f32.mrb[0].mxu0
    %v4816 = vadd.f32 %v4722, %v4815
    %4817 = vmatprep.mubr.f32.mxu0 0.0
    %4818 = vmatmul.mubr.f32.gmra.mrb[0].mxu0 %v4642
    %v4819 = vpop.f32.mrb[0].mxu0
    %v4820 = vadd.f32 %v4718, %v4819
    %v4821 = vpop.f32.mrb[0].mxu0
    %v4822 = vadd.f32 %v4722, %v4821
    %4823 = vmatprep.mubr.f32.mxu0 0.0
    %4824 = vmatmul.mubr.f32.gmra.mrb[0].mxu0 %v4643
    %v4825 = vpop.f32.mrb[0].mxu0
    %v4826 = vadd.f32 %v4718, %v4825
    %v4827 = vpop.f32.mrb[0].mxu0
    %v4828 = vadd.f32 %v4722, %v4827
    %4829 = vmatprep.mubr.f32.mxu0 0.0
    %4830 = vmatmul.mubr.f32.gmra.mrb[0].mxu0 %v4644
    %v4831 = vpop.f32.mrb[0].mxu0
    %v4832 = vadd.f32 %v4718, %v4831
    %v4833 = vpop.f32.mrb[0].mxu0
    %v4834 = vadd.f32 %v4722, %v4833
    %4835 = vmatprep.mubr.f32.mxu0 0.0
    %4836 = vmatmul.mubr.f32.gmra.mrb[0].mxu0 %v4645
    %v4837 = vpop.f32.mrb[0].mxu0
    %v4838 = vadd.f32 %v4718, %v4837
    %v4839 = vpop.f32.mrb[0].mxu0
    %v4840 = vadd.f32 %v4722, %v4839
    %4841 = vmatprep.mubr.f32.mxu0 0.0
    %4842 = vmatmul.mubr.f32.gmra.mrb[0].mxu0 %v4646
    %v4843 = vpop.f32.mrb[0].mxu0
    %v4844 = vadd.f32 %v4718, %v4843
    %v4845 = vpop.f32.mrb[0].mxu0
    %v4846 = vadd.f32 %v4722, %v4845
    %4847 = vdwg.mxu0
    %4848 = vmatprep.subr.mxu0 %v4651
    %4849 = vmatpush1.msra.mxu0 %v4650
    %4850 = vmatprep.subr.mxu0 %v4655
    %4851 = vmatpush1.msra.mxu0 %v4654
    %4852 = vmatprep.subr.mxu0 %v4659
    %4853 = vmatpush1.msra.mxu0 %v4658
    %4854 = vmatprep.subr.mxu0 %v4663
    %4855 = vmatpush1.msra.mxu0 %v4662
    %4856 = vmatprep.subr.mxu0 %v4667
    %4857 = vmatpush1.msra.mxu0 %v4666
    %4858 = vmatprep.subr.mxu0 %v4671
    %4859 = vmatpush1.msra.mxu0 %v4670
    %4860 = vmatprep.subr.mxu0 %v4675
    %4861 = vmatpush1.msra.mxu0 %v4674
    %4862 = vmatprep.subr.mxu0 %v4679
    %4863 = vmatpush1.msra.mxu0 %v4678
    %4864 = vmatprep.subr.mxu0 %v4683
    %4865 = vmatpush1.msra.mxu0 %v4682
    %4866 = vmatprep.subr.mxu0 %v4687
    %4867 = vmatpush1.msra.mxu0 %v4686
    %4868 = vmatprep.subr.mxu0 %v4691
    %4869 = vmatpush1.msra.mxu0 %v4690
    %4870 = vmatprep.subr.mxu0 %v4695
    %4871 = vmatpush1.msra.mxu0 %v4694
    %4872 = vmatprep.subr.mxu0 %v4699
    %4873 = vmatpush1.msra.mxu0 %v4698
    %4874 = vmatprep.subr.mxu0 %v4703
    %4875 = vmatpush1.msra.mxu0 %v4702
    %4876 = vmatprep.subr.mxu0 %v4707
    %4877 = vmatpush1.msra.mxu0 %v4706
    %4878 = vmatprep.subr.mxu0 %v4711
    %4879 = vmatpush1.msra.mxu0 %v4710
    %4880 = vmatprep.subr.mxu0 0.0
    %4881 = vmatpush1.msra.mxu0 0.0
    %4882 = vmatprep.subr.mxu0 0.0
    %4883 = vmatpush1.msra.mxu0 0.0
    %4884 = vmatprep.subr.mxu0 0.0
    %4885 = vmatpush1.msra.mxu0 0.0
    %4886 = vmatprep.subr.mxu0 0.0
    %4887 = vmatpush1.msra.mxu0 0.0
    %4888 = vmatprep.subr.mxu0 0.0
    %4889 = vmatpush1.msra.mxu0 0.0
    %4890 = vmatprep.subr.mxu0 0.0
    %4891 = vmatpush1.msra.mxu0 0.0
    %4892 = vmatprep.subr.mxu0 0.0
    %4893 = vmatpush1.msra.mxu0 0.0
    %4894 = vmatprep.subr.mxu0 0.0
    %4895 = vmatpush1.msra.mxu0 0.0
    %4896 = vmatprep.subr.mxu0 0.0
    %4897 = vmatpush1.msra.mxu0 0.0
    %4898 = vmatprep.subr.mxu0 0.0
    %4899 = vmatpush1.msra.mxu0 0.0
    %4900 = vmatprep.subr.mxu0 0.0
    %4901 = vmatpush1.msra.mxu0 0.0
    %4902 = vmatprep.subr.mxu0 0.0
    %4903 = vmatpush1.msra.mxu0 0.0
    %4904 = vmatprep.subr.mxu0 0.0
    %4905 = vmatpush1.msra.mxu0 0.0
    %4906 = vmatprep.subr.mxu0 0.0
    %4907 = vmatpush1.msra.mxu0 0.0
    %4908 = vmatprep.subr.mxu0 0.0
    %4909 = vmatpush1.msra.mxu0 0.0
    %4910 = vmatprep.subr.mxu0 0.0
    %4911 = vmatpush1.msra.mxu0 0.0
    %4912 = vmatprep.mubr.f32.mxu0 0.0
    %4913 = vmatmul.mubr.f32.gmra.mrb[0].mxu0 %v4639
    %v4914 = vpop.f32.mrb[0].mxu0
    %v4915 = vadd.f32 %v4726, %v4914
    %v4916 = vpop.f32.mrb[0].mxu0
    %v4917 = vadd.f32 %v4730, %v4916
    %4918 = vmatprep.mubr.f32.mxu0 0.0
    %4919 = vmatmul.mubr.f32.gmra.mrb[0].mxu0 %v4640
    %v4920 = vpop.f32.mrb[0].mxu0
    %v4921 = vadd.f32 %v4726, %v4920
    %v4922 = vpop.f32.mrb[0].mxu0
    %v4923 = vadd.f32 %v4730, %v4922
    %4924 = vmatprep.mubr.f32.mxu0 0.0
    %4925 = vmatmul.mubr.f32.gmra.mrb[0].mxu0 %v4641
    %v4926 = vpop.f32.mrb[0].mxu0
    %v4927 = vadd.f32 %v4726, %v4926
    %v4928 = vpop.f32.mrb[0].mxu0
    %v4929 = vadd.f32 %v4730, %v4928
    %4930 = vmatprep.mubr.f32.mxu0 0.0
    %4931 = vmatmul.mubr.f32.gmra.mrb[0].mxu0 %v4642
    %v4932 = vpop.f32.mrb[0].mxu0
    %v4933 = vadd.f32 %v4726, %v4932
    %v4934 = vpop.f32.mrb[0].mxu0
    %v4935 = vadd.f32 %v4730, %v4934
    %4936 = vmatprep.mubr.f32.mxu0 0.0
    %4937 = vmatmul.mubr.f32.gmra.mrb[0].mxu0 %v4643
    %v4938 = vpop.f32.mrb[0].mxu0
    %v4939 = vadd.f32 %v4726, %v4938
    %v4940 = vpop.f32.mrb[0].mxu0
    %v4941 = vadd.f32 %v4730, %v4940
    %4942 = vmatprep.mubr.f32.mxu0 0.0
    %4943 = vmatmul.mubr.f32.gmra.mrb[0].mxu0 %v4644
    %v4944 = vpop.f32.mrb[0].mxu0
    %v4945 = vadd.f32 %v4726, %v4944
    %v4946 = vpop.f32.mrb[0].mxu0
    %v4947 = vadd.f32 %v4730, %v4946
    %4948 = vmatprep.mubr.f32.mxu0 0.0
    %4949 = vmatmul.mubr.f32.gmra.mrb[0].mxu0 %v4645
    %v4950 = vpop.f32.mrb[0].mxu0
    %v4951 = vadd.f32 %v4726, %v4950
    %v4952 = vpop.f32.mrb[0].mxu0
    %v4953 = vadd.f32 %v4730, %v4952
    %4954 = vmatprep.mubr.f32.mxu0 0.0
    %4955 = vmatmul.mubr.f32.gmra.mrb[0].mxu0 %v4646
    %v4956 = vpop.f32.mrb[0].mxu0
    %v4957 = vadd.f32 %v4726, %v4956
    %v4958 = vpop.f32.mrb[0].mxu0
    %v4959 = vadd.f32 %v4730, %v4958
    %4960 = vdwg.mxu0
    %4961 = vst [vmem:[#allocation3] sm:$0xff] %v4802
    %4962 = vst [vmem:[#allocation3 + $0x8] sm:$0xff] %v4804
    %4963 = vst [vmem:[#allocation3 + $0x10] sm:$0xff] %v4915
    %4964 = vst [vmem:[#allocation3 + $0x18] sm:$0xff] %v4917
    %4965 = vst [vmem:[#allocation3 + $0x20] sm:$0xff] %v4808
    %4966 = vst [vmem:[#allocation3 + $0x28] sm:$0xff] %v4810
    %4967 = vst [vmem:[#allocation3 + $0x30] sm:$0xff] %v4921
    %4968 = vst [vmem:[#allocation3 + $0x38] sm:$0xff] %v4923
    %4969 = vst [vmem:[#allocation3 + $0x40] sm:$0xff] %v4814
    %4970 = vst [vmem:[#allocation3 + $0x48] sm:$0xff] %v4816
    %4971 = vst [vmem:[#allocation3 + $0x50] sm:$0xff] %v4927
    %4972 = vst [vmem:[#allocation3 + $0x58] sm:$0xff] %v4929
    %4973 = vst [vmem:[#allocation3 + $0x60] sm:$0xff] %v4820
    %4974 = vst [vmem:[#allocation3 + $0x68] sm:$0xff] %v4822
    %4975 = vst [vmem:[#allocation3 + $0x70] sm:$0xff] %v4933
    %4976 = vst [vmem:[#allocation3 + $0x78] sm:$0xff] %v4935
    %4977 = vst [vmem:[#allocation3 + $0x80] sm:$0xff] %v4826
    %4978 = vst [vmem:[#allocation3 + $0x88] sm:$0xff] %v4828
    %4979 = vst [vmem:[#allocation3 + $0x90] sm:$0xff] %v4939
    %4980 = vst [vmem:[#allocation3 + $0x98] sm:$0xff] %v4941
    %4981 = vst [vmem:[#allocation3 + $0xa0] sm:$0xff] %v4832
    %4982 = vst [vmem:[#allocation3 + $0xa8] sm:$0xff] %v4834
    %4983 = vst [vmem:[#allocation3 + $0xb0] sm:$0xff] %v4945
    %4984 = vst [vmem:[#allocation3 + $0xb8] sm:$0xff] %v4947
    %4985 = vst [vmem:[#allocation3 + $0xc0] sm:$0xff] %v4838
    %4986 = vst [vmem:[#allocation3 + $0xc8] sm:$0xff] %v4840
    %4987 = vst [vmem:[#allocation3 + $0xd0] sm:$0xff] %v4951
    %4988 = vst [vmem:[#allocation3 + $0xd8] sm:$0xff] %v4953
    %4989 = vst [vmem:[#allocation3 + $0xe0] sm:$0xff] %v4844
    %4990 = vst [vmem:[#allocation3 + $0xe8] sm:$0xff] %v4846
    %4991 = vst [vmem:[#allocation3 + $0xf0] sm:$0xff] %v4957
    %4992 = vst [vmem:[#allocation3 + $0xf8] sm:$0xff] %v4959
    %v4993 = vld [vmem:[#allocation3] sm:$0xff]
    %v4994 = vld [vmem:[#allocation3 + $0x8] sm:$0xff]
    %v4995 = vld [vmem:[#allocation3 + $0x10] sm:$0xff]
    %v4996 = vld [vmem:[#allocation3 + $0x18] sm:$0xff]
    %s4997 = scalar_lea.vmem [#allocation9], 1024
    %v4998 = vld [vmem:[%s4997] sm:$0xff]
    %v4999 = vld [vmem:[%s4997 + $0x8] sm:$0xff]
    %v5000 = vld [vmem:[%s4997 + $0x10] sm:$0xff]
    %v5001 = vld [vmem:[%s4997 + $0x18] sm:$0xff]
    %v5002 = vld [vmem:[%s4997 + $0x20] sm:$0xff]
    %v5003 = vld [vmem:[%s4997 + $0x28] sm:$0xff]
    %v5004 = vld [vmem:[%s4997 + $0x30] sm:$0xff]
    %v5005 = vld [vmem:[%s4997 + $0x38] sm:$0xff]
    %v5006 = vld [vmem:[%s4997 + $0x40] sm:$0xff]
    %v5007 = vld [vmem:[%s4997 + $0x48] sm:$0xff]
    %v5008 = vld [vmem:[%s4997 + $0x50] sm:$0xff]
    %v5009 = vld [vmem:[%s4997 + $0x58] sm:$0xff]
    %v5010 = vld [vmem:[%s4997 + $0x60] sm:$0xff]
    %v5011 = vld [vmem:[%s4997 + $0x68] sm:$0xff]
    %v5012 = vld [vmem:[%s4997 + $0x70] sm:$0xff]
    %v5013 = vld [vmem:[%s4997 + $0x78] sm:$0xff]
    %v5014 = vld [vmem:[%s4997 + $0x80] sm:$0xff]
    %v5015 = vld [vmem:[%s4997 + $0x88] sm:$0xff]
    %v5016 = vld [vmem:[%s4997 + $0x90] sm:$0xff]
    %v5017 = vld [vmem:[%s4997 + $0x98] sm:$0xff]
    %v5018 = vld [vmem:[%s4997 + $0xa0] sm:$0xff]
    %v5019 = vld [vmem:[%s4997 + $0xa8] sm:$0xff]
    %v5020 = vld [vmem:[%s4997 + $0xb0] sm:$0xff]
    %v5021 = vld [vmem:[%s4997 + $0xb8] sm:$0xff]
    %v5022 = vld [vmem:[%s4997 + $0xc0] sm:$0xff]
    %v5023 = vld [vmem:[%s4997 + $0xc8] sm:$0xff]
    %v5024 = vld [vmem:[%s4997 + $0xd0] sm:$0xff]
    %v5025 = vld [vmem:[%s4997 + $0xd8] sm:$0xff]
    %v5026 = vld [vmem:[%s4997 + $0xe0] sm:$0xff]
    %v5027 = vld [vmem:[%s4997 + $0xe8] sm:$0xff]
    %v5028 = vld [vmem:[%s4997 + $0xf0] sm:$0xff]
    %v5029 = vld [vmem:[%s4997 + $0xf8] sm:$0xff]
    %v5030 = vld [vmem:[%s4997 + $0x100] sm:$0xff]
    %v5031 = vld [vmem:[%s4997 + $0x108] sm:$0xff]
    %v5032 = vld [vmem:[%s4997 + $0x110] sm:$0xff]
    %v5033 = vld [vmem:[%s4997 + $0x118] sm:$0xff]
    %v5034 = vld [vmem:[%s4997 + $0x120] sm:$0xff]
    %v5035 = vld [vmem:[%s4997 + $0x128] sm:$0xff]
    %v5036 = vld [vmem:[%s4997 + $0x130] sm:$0xff]
    %v5037 = vld [vmem:[%s4997 + $0x138] sm:$0xff]
    %v5038 = vld [vmem:[%s4997 + $0x140] sm:$0xff]
    %v5039 = vld [vmem:[%s4997 + $0x148] sm:$0xff]
    %v5040 = vld [vmem:[%s4997 + $0x150] sm:$0xff]
    %v5041 = vld [vmem:[%s4997 + $0x158] sm:$0xff]
    %v5042 = vld [vmem:[%s4997 + $0x160] sm:$0xff]
    %v5043 = vld [vmem:[%s4997 + $0x168] sm:$0xff]
    %v5044 = vld [vmem:[%s4997 + $0x170] sm:$0xff]
    %v5045 = vld [vmem:[%s4997 + $0x178] sm:$0xff]
    %v5046 = vld [vmem:[%s4997 + $0x180] sm:$0xff]
    %v5047 = vld [vmem:[%s4997 + $0x188] sm:$0xff]
    %v5048 = vld [vmem:[%s4997 + $0x190] sm:$0xff]
    %v5049 = vld [vmem:[%s4997 + $0x198] sm:$0xff]
    %v5050 = vld [vmem:[%s4997 + $0x1a0] sm:$0xff]
    %v5051 = vld [vmem:[%s4997 + $0x1a8] sm:$0xff]
    %v5052 = vld [vmem:[%s4997 + $0x1b0] sm:$0xff]
    %v5053 = vld [vmem:[%s4997 + $0x1b8] sm:$0xff]
    %v5054 = vld [vmem:[%s4997 + $0x1c0] sm:$0xff]
    %v5055 = vld [vmem:[%s4997 + $0x1c8] sm:$0xff]
    %v5056 = vld [vmem:[%s4997 + $0x1d0] sm:$0xff]
    %v5057 = vld [vmem:[%s4997 + $0x1d8] sm:$0xff]
    %v5058 = vld [vmem:[%s4997 + $0x1e0] sm:$0xff]
    %v5059 = vld [vmem:[%s4997 + $0x1e8] sm:$0xff]
    %v5060 = vld [vmem:[%s4997 + $0x1f0] sm:$0xff]
    %v5061 = vld [vmem:[%s4997 + $0x1f8] sm:$0xff]
    %5062 = vmatprep.subr.mxu0 %v4999
    %5063 = vmatpush1.msra.mxu0 %v4998
    %5064 = vmatprep.subr.mxu0 %v5003
    %5065 = vmatpush1.msra.mxu0 %v5002
    %5066 = vmatprep.subr.mxu0 %v5007
    %5067 = vmatpush1.msra.mxu0 %v5006
    %5068 = vmatprep.subr.mxu0 %v5011
    %5069 = vmatpush1.msra.mxu0 %v5010
    %5070 = vmatprep.subr.mxu0 %v5015
    %5071 = vmatpush1.msra.mxu0 %v5014
    %5072 = vmatprep.subr.mxu0 %v5019
    %5073 = vmatpush1.msra.mxu0 %v5018
    %5074 = vmatprep.subr.mxu0 %v5023
    %5075 = vmatpush1.msra.mxu0 %v5022
    %5076 = vmatprep.subr.mxu0 %v5027
    %5077 = vmatpush1.msra.mxu0 %v5026
    %5078 = vmatprep.subr.mxu0 %v5031
    %5079 = vmatpush1.msra.mxu0 %v5030
    %5080 = vmatprep.subr.mxu0 %v5035
    %5081 = vmatpush1.msra.mxu0 %v5034
    %5082 = vmatprep.subr.mxu0 %v5039
    %5083 = vmatpush1.msra.mxu0 %v5038
    %5084 = vmatprep.subr.mxu0 %v5043
    %5085 = vmatpush1.msra.mxu0 %v5042
    %5086 = vmatprep.subr.mxu0 %v5047
    %5087 = vmatpush1.msra.mxu0 %v5046
    %5088 = vmatprep.subr.mxu0 %v5051
    %5089 = vmatpush1.msra.mxu0 %v5050
    %5090 = vmatprep.subr.mxu0 %v5055
    %5091 = vmatpush1.msra.mxu0 %v5054
    %5092 = vmatprep.subr.mxu0 %v5059
    %5093 = vmatpush1.msra.mxu0 %v5058
    %5094 = vmatprep.subr.mxu0 0.0
    %5095 = vmatpush1.msra.mxu0 0.0
    %5096 = vmatprep.subr.mxu0 0.0
    %5097 = vmatpush1.msra.mxu0 0.0
    %5098 = vmatprep.subr.mxu0 0.0
    %5099 = vmatpush1.msra.mxu0 0.0
    %5100 = vmatprep.subr.mxu0 0.0
    %5101 = vmatpush1.msra.mxu0 0.0
    %5102 = vmatprep.subr.mxu0 0.0
    %5103 = vmatpush1.msra.mxu0 0.0
    %5104 = vmatprep.subr.mxu0 0.0
    %5105 = vmatpush1.msra.mxu0 0.0
    %5106 = vmatprep.subr.mxu0 0.0
    %5107 = vmatpush1.msra.mxu0 0.0
    %5108 = vmatprep.subr.mxu0 0.0
    %5109 = vmatpush1.msra.mxu0 0.0
    %5110 = vmatprep.subr.mxu0 0.0
    %5111 = vmatpush1.msra.mxu0 0.0
    %5112 = vmatprep.subr.mxu0 0.0
    %5113 = vmatpush1.msra.mxu0 0.0
    %5114 = vmatprep.subr.mxu0 0.0
    %5115 = vmatpush1.msra.mxu0 0.0
    %5116 = vmatprep.subr.mxu0 0.0
    %5117 = vmatpush1.msra.mxu0 0.0
    %5118 = vmatprep.subr.mxu0 0.0
    %5119 = vmatpush1.msra.mxu0 0.0
    %5120 = vmatprep.subr.mxu0 0.0
    %5121 = vmatpush1.msra.mxu0 0.0
    %5122 = vmatprep.subr.mxu0 0.0
    %5123 = vmatpush1.msra.mxu0 0.0
    %5124 = vmatprep.subr.mxu0 0.0
    %5125 = vmatpush1.msra.mxu0 0.0
    %5126 = vmatprep.mubr.f32.mxu0 0.0
    %5127 = vmatmul.mubr.f32.gmra.mrb[0].mxu0 0.0
    %v5128 = vpop.f32.mrb[0].mxu0
    %v5129 = vadd.f32 0.0, %v5128
    %v5130 = vpop.f32.mrb[0].mxu0
    %v5131 = vadd.f32 0.0, %v5130
    %5132 = vdwg.mxu0
    %5133 = vmatprep.subr.mxu0 %v5001
    %5134 = vmatpush1.msra.mxu0 %v5000
    %5135 = vmatprep.subr.mxu0 %v5005
    %5136 = vmatpush1.msra.mxu0 %v5004
    %5137 = vmatprep.subr.mxu0 %v5009
    %5138 = vmatpush1.msra.mxu0 %v5008
    %5139 = vmatprep.subr.mxu0 %v5013
    %5140 = vmatpush1.msra.mxu0 %v5012
    %5141 = vmatprep.subr.mxu0 %v5017
    %5142 = vmatpush1.msra.mxu0 %v5016
    %5143 = vmatprep.subr.mxu0 %v5021
    %5144 = vmatpush1.msra.mxu0 %v5020
    %5145 = vmatprep.subr.mxu0 %v5025
    %5146 = vmatpush1.msra.mxu0 %v5024
    %5147 = vmatprep.subr.mxu0 %v5029
    %5148 = vmatpush1.msra.mxu0 %v5028
    %5149 = vmatprep.subr.mxu0 %v5033
    %5150 = vmatpush1.msra.mxu0 %v5032
    %5151 = vmatprep.subr.mxu0 %v5037
    %5152 = vmatpush1.msra.mxu0 %v5036
    %5153 = vmatprep.subr.mxu0 %v5041
    %5154 = vmatpush1.msra.mxu0 %v5040
    %5155 = vmatprep.subr.mxu0 %v5045
    %5156 = vmatpush1.msra.mxu0 %v5044
    %5157 = vmatprep.subr.mxu0 %v5049
    %5158 = vmatpush1.msra.mxu0 %v5048
    %5159 = vmatprep.subr.mxu0 %v5053
    %5160 = vmatpush1.msra.mxu0 %v5052
    %5161 = vmatprep.subr.mxu0 %v5057
    %5162 = vmatpush1.msra.mxu0 %v5056
    %5163 = vmatprep.subr.mxu0 %v5061
    %5164 = vmatpush1.msra.mxu0 %v5060
    %5165 = vmatprep.subr.mxu0 0.0
    %5166 = vmatpush1.msra.mxu0 0.0
    %5167 = vmatprep.subr.mxu0 0.0
    %5168 = vmatpush1.msra.mxu0 0.0
    %5169 = vmatprep.subr.mxu0 0.0
    %5170 = vmatpush1.msra.mxu0 0.0
    %5171 = vmatprep.subr.mxu0 0.0
    %5172 = vmatpush1.msra.mxu0 0.0
    %5173 = vmatprep.subr.mxu0 0.0
    %5174 = vmatpush1.msra.mxu0 0.0
    %5175 = vmatprep.subr.mxu0 0.0
    %5176 = vmatpush1.msra.mxu0 0.0
    %5177 = vmatprep.subr.mxu0 0.0
    %5178 = vmatpush1.msra.mxu0 0.0
    %5179 = vmatprep.subr.mxu0 0.0
    %5180 = vmatpush1.msra.mxu0 0.0
    %5181 = vmatprep.subr.mxu0 0.0
    %5182 = vmatpush1.msra.mxu0 0.0
    %5183 = vmatprep.subr.mxu0 0.0
    %5184 = vmatpush1.msra.mxu0 0.0
    %5185 = vmatprep.subr.mxu0 0.0
    %5186 = vmatpush1.msra.mxu0 0.0
    %5187 = vmatprep.subr.mxu0 0.0
    %5188 = vmatpush1.msra.mxu0 0.0
    %5189 = vmatprep.subr.mxu0 0.0
    %5190 = vmatpush1.msra.mxu0 0.0
    %5191 = vmatprep.subr.mxu0 0.0
    %5192 = vmatpush1.msra.mxu0 0.0
    %5193 = vmatprep.subr.mxu0 0.0
    %5194 = vmatpush1.msra.mxu0 0.0
    %5195 = vmatprep.subr.mxu0 0.0
    %5196 = vmatpush1.msra.mxu0 0.0
    %5197 = vmatprep.mubr.f32.mxu0 0.0
    %5198 = vmatmul.mubr.f32.gmra.mrb[0].mxu0 0.0
    %v5199 = vpop.f32.mrb[0].mxu0
    %v5200 = vadd.f32 0.0, %v5199
    %v5201 = vpop.f32.mrb[0].mxu0
    %v5202 = vadd.f32 0.0, %v5201
    %5203 = vdwg.mxu0
    %v5204 = vadd.f32 %v4993, %v5129
    %v5205 = vadd.f32 %v4994, %v5131
    %v5206 = vadd.f32 %v4995, %v5200
    %v5207 = vadd.f32 %v4996, %v5202
    %v5208 = vxor.u32 %v5204, 2147483648
    %v5209 = vxor.u32 %v5205, 2147483648
    %v5210 = vxor.u32 %v5206, 2147483648
    %v5211 = vmul.f32 %v5208, 1.442695
    %v5212 = vpow.pop %v5211
    %v5213 = vmul.f32 %v5209, 1.442695
    %v5214 = vpow.pop %v5213
    %v5215 = vmul.f32 %v5210, 1.442695
    %v5216 = vpow.pop %v5215
    %v5217 = vadd.f32 %v5212, 1.0
    %v5218 = vadd.f32 %v5214, 1.0
    %v5219 = vadd.f32 %v5216, 1.0
    %v5220 = vrcp.pop %v5217
    %v5221 = vmul.f32 1.0, %v5220
    %v5222 = vrcp.pop %v5218
    %v5223 = vmul.f32 1.0, %v5222
    %v5224 = vrcp.pop %v5219
    %v5225 = vmul.f32 1.0, %v5224
    %v5226 = vtanh.pop %v5207
    %v5227 = vmul.f32 %v5223, 0.0
    %v5228 = vmul.f32 %v5221, %v5226
    %v5229 = vadd.f32 %v5227, %v5228
    %v5230 = vtanh.pop %v5229
    %v5231 = vmul.f32 %v5225, %v5230
    %5232 = vst [vmem:[#allocation2] sm:$0xff] %v5231
    %v5233 = vld [vmem:[#allocation3 + $0x20] sm:$0xff]
    %v5234 = vld [vmem:[#allocation3 + $0x28] sm:$0xff]
    %v5235 = vld [vmem:[#allocation3 + $0x30] sm:$0xff]
    %v5236 = vld [vmem:[#allocation3 + $0x38] sm:$0xff]
    %v5237 = vld [vmem:[%s4997] sm:$0xff]
    %v5238 = vld [vmem:[%s4997 + $0x8] sm:$0xff]
    %v5239 = vld [vmem:[%s4997 + $0x10] sm:$0xff]
    %v5240 = vld [vmem:[%s4997 + $0x18] sm:$0xff]
    %v5241 = vld [vmem:[%s4997 + $0x20] sm:$0xff]
    %v5242 = vld [vmem:[%s4997 + $0x28] sm:$0xff]
    %v5243 = vld [vmem:[%s4997 + $0x30] sm:$0xff]
    %v5244 = vld [vmem:[%s4997 + $0x38] sm:$0xff]
    %v5245 = vld [vmem:[%s4997 + $0x40] sm:$0xff]
    %v5246 = vld [vmem:[%s4997 + $0x48] sm:$0xff]
    %v5247 = vld [vmem:[%s4997 + $0x50] sm:$0xff]
    %v5248 = vld [vmem:[%s4997 + $0x58] sm:$0xff]
    %v5249 = vld [vmem:[%s4997 + $0x60] sm:$0xff]
    %v5250 = vld [vmem:[%s4997 + $0x68] sm:$0xff]
    %v5251 = vld [vmem:[%s4997 + $0x70] sm:$0xff]
    %v5252 = vld [vmem:[%s4997 + $0x78] sm:$0xff]
    %v5253 = vld [vmem:[%s4997 + $0x80] sm:$0xff]
    %v5254 = vld [vmem:[%s4997 + $0x88] sm:$0xff]
    %v5255 = vld [vmem:[%s4997 + $0x90] sm:$0xff]
    %v5256 = vld [vmem:[%s4997 + $0x98] sm:$0xff]
    %v5257 = vld [vmem:[%s4997 + $0xa0] sm:$0xff]
    %v5258 = vld [vmem:[%s4997 + $0xa8] sm:$0xff]
    %v5259 = vld [vmem:[%s4997 + $0xb0] sm:$0xff]
    %v5260 = vld [vmem:[%s4997 + $0xb8] sm:$0xff]
    %v5261 = vld [vmem:[%s4997 + $0xc0] sm:$0xff]
    %v5262 = vld [vmem:[%s4997 + $0xc8] sm:$0xff]
    %v5263 = vld [vmem:[%s4997 + $0xd0] sm:$0xff]
    %v5264 = vld [vmem:[%s4997 + $0xd8] sm:$0xff]
    %v5265 = vld [vmem:[%s4997 + $0xe0] sm:$0xff]
    %v5266 = vld [vmem:[%s4997 + $0xe8] sm:$0xff]
    %v5267 = vld [vmem:[%s4997 + $0xf0] sm:$0xff]
    %v5268 = vld [vmem:[%s4997 + $0xf8] sm:$0xff]
    %v5269 = vld [vmem:[%s4997 + $0x100] sm:$0xff]
    %v5270 = vld [vmem:[%s4997 + $0x108] sm:$0xff]
    %v5271 = vld [vmem:[%s4997 + $0x110] sm:$0xff]
    %v5272 = vld [vmem:[%s4997 + $0x118] sm:$0xff]
    %v5273 = vld [vmem:[%s4997 + $0x120] sm:$0xff]
    %v5274 = vld [vmem:[%s4997 + $0x128] sm:$0xff]
    %v5275 = vld [vmem:[%s4997 + $0x130] sm:$0xff]
    %v5276 = vld [vmem:[%s4997 + $0x138] sm:$0xff]
    %v5277 = vld [vmem:[%s4997 + $0x140] sm:$0xff]
    %v5278 = vld [vmem:[%s4997 + $0x148] sm:$0xff]
    %v5279 = vld [vmem:[%s4997 + $0x150] sm:$0xff]
    %v5280 = vld [vmem:[%s4997 + $0x158] sm:$0xff]
    %v5281 = vld [vmem:[%s4997 + $0x160] sm:$0xff]
    %v5282 = vld [vmem:[%s4997 + $0x168] sm:$0xff]
    %v5283 = vld [vmem:[%s4997 + $0x170] sm:$0xff]
    %v5284 = vld [vmem:[%s4997 + $0x178] sm:$0xff]
    %v5285 = vld [vmem:[%s4997 + $0x180] sm:$0xff]
    %v5286 = vld [vmem:[%s4997 + $0x188] sm:$0xff]
    %v5287 = vld [vmem:[%s4997 + $0x190] sm:$0xff]
    %v5288 = vld [vmem:[%s4997 + $0x198] sm:$0xff]
    %v5289 = vld [vmem:[%s4997 + $0x1a0] sm:$0xff]
    %v5290 = vld [vmem:[%s4997 + $0x1a8] sm:$0xff]
    %v5291 = vld [vmem:[%s4997 + $0x1b0] sm:$0xff]
    %v5292 = vld [vmem:[%s4997 + $0x1b8] sm:$0xff]
    %v5293 = vld [vmem:[%s4997 + $0x1c0] sm:$0xff]
    %v5294 = vld [vmem:[%s4997 + $0x1c8] sm:$0xff]
    %v5295 = vld [vmem:[%s4997 + $0x1d0] sm:$0xff]
    %v5296 = vld [vmem:[%s4997 + $0x1d8] sm:$0xff]
    %v5297 = vld [vmem:[%s4997 + $0x1e0] sm:$0xff]
    %v5298 = vld [vmem:[%s4997 + $0x1e8] sm:$0xff]
    %v5299 = vld [vmem:[%s4997 + $0x1f0] sm:$0xff]
    %v5300 = vld [vmem:[%s4997 + $0x1f8] sm:$0xff]
    %5301 = vmatprep.subr.mxu0 %v5238
    %5302 = vmatpush1.msra.mxu0 %v5237
    %5303 = vmatprep.subr.mxu0 %v5242
    %5304 = vmatpush1.msra.mxu0 %v5241
    %5305 = vmatprep.subr.mxu0 %v5246
    %5306 = vmatpush1.msra.mxu0 %v5245
    %5307 = vmatprep.subr.mxu0 %v5250
    %5308 = vmatpush1.msra.mxu0 %v5249
    %5309 = vmatprep.subr.mxu0 %v5254
    %5310 = vmatpush1.msra.mxu0 %v5253
    %5311 = vmatprep.subr.mxu0 %v5258
    %5312 = vmatpush1.msra.mxu0 %v5257
    %5313 = vmatprep.subr.mxu0 %v5262
    %5314 = vmatpush1.msra.mxu0 %v5261
    %5315 = vmatprep.subr.mxu0 %v5266
    %5316 = vmatpush1.msra.mxu0 %v5265
    %5317 = vmatprep.subr.mxu0 %v5270
    %5318 = vmatpush1.msra.mxu0 %v5269
    %5319 = vmatprep.subr.mxu0 %v5274
    %5320 = vmatpush1.msra.mxu0 %v5273
    %5321 = vmatprep.subr.mxu0 %v5278
    %5322 = vmatpush1.msra.mxu0 %v5277
    %5323 = vmatprep.subr.mxu0 %v5282
    %5324 = vmatpush1.msra.mxu0 %v5281
    %5325 = vmatprep.subr.mxu0 %v5286
    %5326 = vmatpush1.msra.mxu0 %v5285
    %5327 = vmatprep.subr.mxu0 %v5290
    %5328 = vmatpush1.msra.mxu0 %v5289
    %5329 = vmatprep.subr.mxu0 %v5294
    %5330 = vmatpush1.msra.mxu0 %v5293
    %5331 = vmatprep.subr.mxu0 %v5298
    %5332 = vmatpush1.msra.mxu0 %v5297
    %5333 = vmatprep.subr.mxu0 0.0
    %5334 = vmatpush1.msra.mxu0 0.0
    %5335 = vmatprep.subr.mxu0 0.0
    %5336 = vmatpush1.msra.mxu0 0.0
    %5337 = vmatprep.subr.mxu0 0.0
    %5338 = vmatpush1.msra.mxu0 0.0
    %5339 = vmatprep.subr.mxu0 0.0
    %5340 = vmatpush1.msra.mxu0 0.0
    %5341 = vmatprep.subr.mxu0 0.0
    %5342 = vmatpush1.msra.mxu0 0.0
    %5343 = vmatprep.subr.mxu0 0.0
    %5344 = vmatpush1.msra.mxu0 0.0
    %5345 = vmatprep.subr.mxu0 0.0
    %5346 = vmatpush1.msra.mxu0 0.0
    %5347 = vmatprep.subr.mxu0 0.0
    %5348 = vmatpush1.msra.mxu0 0.0
    %5349 = vmatprep.subr.mxu0 0.0
    %5350 = vmatpush1.msra.mxu0 0.0
    %5351 = vmatprep.subr.mxu0 0.0
    %5352 = vmatpush1.msra.mxu0 0.0
    %5353 = vmatprep.subr.mxu0 0.0
    %5354 = vmatpush1.msra.mxu0 0.0
    %5355 = vmatprep.subr.mxu0 0.0
    %5356 = vmatpush1.msra.mxu0 0.0
    %5357 = vmatprep.subr.mxu0 0.0
    %5358 = vmatpush1.msra.mxu0 0.0
    %5359 = vmatprep.subr.mxu0 0.0
    %5360 = vmatpush1.msra.mxu0 0.0
    %5361 = vmatprep.subr.mxu0 0.0
    %5362 = vmatpush1.msra.mxu0 0.0
    %5363 = vmatprep.subr.mxu0 0.0
    %5364 = vmatpush1.msra.mxu0 0.0
    %5365 = vmatprep.mubr.f32.mxu0 0.0
    %5366 = vmatmul.mubr.f32.gmra.mrb[0].mxu0 %v5231
    %v5367 = vpop.f32.mrb[0].mxu0
    %v5368 = vadd.f32 0.0, %v5367
    %v5369 = vpop.f32.mrb[0].mxu0
    %v5370 = vadd.f32 0.0, %v5369
    %5371 = vdwg.mxu0
    %5372 = vmatprep.subr.mxu0 %v5240
    %5373 = vmatpush1.msra.mxu0 %v5239
    %5374 = vmatprep.subr.mxu0 %v5244
    %5375 = vmatpush1.msra.mxu0 %v5243
    %5376 = vmatprep.subr.mxu0 %v5248
    %5377 = vmatpush1.msra.mxu0 %v5247
    %5378 = vmatprep.subr.mxu0 %v5252
    %5379 = vmatpush1.msra.mxu0 %v5251
    %5380 = vmatprep.subr.mxu0 %v5256
    %5381 = vmatpush1.msra.mxu0 %v5255
    %5382 = vmatprep.subr.mxu0 %v5260
    %5383 = vmatpush1.msra.mxu0 %v5259
    %5384 = vmatprep.subr.mxu0 %v5264
    %5385 = vmatpush1.msra.mxu0 %v5263
    %5386 = vmatprep.subr.mxu0 %v5268
    %5387 = vmatpush1.msra.mxu0 %v5267
    %5388 = vmatprep.subr.mxu0 %v5272
    %5389 = vmatpush1.msra.mxu0 %v5271
    %5390 = vmatprep.subr.mxu0 %v5276
    %5391 = vmatpush1.msra.mxu0 %v5275
    %5392 = vmatprep.subr.mxu0 %v5280
    %5393 = vmatpush1.msra.mxu0 %v5279
    %5394 = vmatprep.subr.mxu0 %v5284
    %5395 = vmatpush1.msra.mxu0 %v5283
    %5396 = vmatprep.subr.mxu0 %v5288
    %5397 = vmatpush1.msra.mxu0 %v5287
    %5398 = vmatprep.subr.mxu0 %v5292
    %5399 = vmatpush1.msra.mxu0 %v5291
    %5400 = vmatprep.subr.mxu0 %v5296
    %5401 = vmatpush1.msra.mxu0 %v5295
    %5402 = vmatprep.subr.mxu0 %v5300
    %5403 = vmatpush1.msra.mxu0 %v5299
    %5404 = vmatprep.subr.mxu0 0.0
    %5405 = vmatpush1.msra.mxu0 0.0
    %5406 = vmatprep.subr.mxu0 0.0
    %5407 = vmatpush1.msra.mxu0 0.0
    %5408 = vmatprep.subr.mxu0 0.0
    %5409 = vmatpush1.msra.mxu0 0.0
    %5410 = vmatprep.subr.mxu0 0.0
    %5411 = vmatpush1.msra.mxu0 0.0
    %5412 = vmatprep.subr.mxu0 0.0
    %5413 = vmatpush1.msra.mxu0 0.0
    %5414 = vmatprep.subr.mxu0 0.0
    %5415 = vmatpush1.msra.mxu0 0.0
    %5416 = vmatprep.subr.mxu0 0.0
    %5417 = vmatpush1.msra.mxu0 0.0
    %5418 = vmatprep.subr.mxu0 0.0
    %5419 = vmatpush1.msra.mxu0 0.0
    %5420 = vmatprep.subr.mxu0 0.0
    %5421 = vmatpush1.msra.mxu0 0.0
    %5422 = vmatprep.subr.mxu0 0.0
    %5423 = vmatpush1.msra.mxu0 0.0
    %5424 = vmatprep.subr.mxu0 0.0
    %5425 = vmatpush1.msra.mxu0 0.0
    %5426 = vmatprep.subr.mxu0 0.0
    %5427 = vmatpush1.msra.mxu0 0.0
    %5428 = vmatprep.subr.mxu0 0.0
    %5429 = vmatpush1.msra.mxu0 0.0
    %5430 = vmatprep.subr.mxu0 0.0
    %5431 = vmatpush1.msra.mxu0 0.0
    %5432 = vmatprep.subr.mxu0 0.0
    %5433 = vmatpush1.msra.mxu0 0.0
    %5434 = vmatprep.subr.mxu0 0.0
    %5435 = vmatpush1.msra.mxu0 0.0
    %5436 = vmatprep.mubr.f32.mxu0 0.0
    %5437 = vmatmul.mubr.f32.gmra.mrb[0].mxu0 %v5231
    %v5438 = vpop.f32.mrb[0].mxu0
    %v5439 = vadd.f32 0.0, %v5438
    %v5440 = vpop.f32.mrb[0].mxu0
    %v5441 = vadd.f32 0.0, %v5440
    %5442 = vdwg.mxu0
    %v5443 = vadd.f32 %v5233, %v5368
    %v5444 = vadd.f32 %v5234, %v5370
    %v5445 = vadd.f32 %v5235, %v5439
    %v5446 = vadd.f32 %v5236, %v5441
    %v5447 = vxor.u32 %v5443, 2147483648
    %v5448 = vxor.u32 %v5444, 2147483648
    %v5449 = vxor.u32 %v5445, 2147483648
    %v5450 = vmul.f32 %v5447, 1.442695
    %v5451 = vpow.pop %v5450
    %v5452 = vmul.f32 %v5448, 1.442695
    %v5453 = vpow.pop %v5452
    %v5454 = vmul.f32 %v5449, 1.442695
    %v5455 = vpow.pop %v5454
    %v5456 = vadd.f32 %v5451, 1.0
    %v5457 = vadd.f32 %v5453, 1.0
    %v5458 = vadd.f32 %v5455, 1.0
    %v5459 = vrcp.pop %v5456
    %v5460 = vmul.f32 1.0, %v5459
    %v5461 = vrcp.pop %v5457
    %v5462 = vmul.f32 1.0, %v5461
    %v5463 = vrcp.pop %v5458
    %v5464 = vmul.f32 1.0, %v5463
    %v5465 = vtanh.pop %v5446
    %v5466 = vmul.f32 %v5462, %v5229
    %v5467 = vmul.f32 %v5460, %v5465
    %v5468 = vadd.f32 %v5466, %v5467
    %v5469 = vtanh.pop %v5468
    %v5470 = vmul.f32 %v5464, %v5469
    %5471 = vst [vmem:[#allocation2 + $0x8] sm:$0xff] %v5470
    %v5472 = vld [vmem:[#allocation3 + $0x40] sm:$0xff]
    %v5473 = vld [vmem:[#allocation3 + $0x48] sm:$0xff]
    %v5474 = vld [vmem:[#allocation3 + $0x50] sm:$0xff]
    %v5475 = vld [vmem:[#allocation3 + $0x58] sm:$0xff]
    %v5476 = vld [vmem:[%s4997] sm:$0xff]
    %v5477 = vld [vmem:[%s4997 + $0x8] sm:$0xff]
    %v5478 = vld [vmem:[%s4997 + $0x10] sm:$0xff]
    %v5479 = vld [vmem:[%s4997 + $0x18] sm:$0xff]
    %v5480 = vld [vmem:[%s4997 + $0x20] sm:$0xff]
    %v5481 = vld [vmem:[%s4997 + $0x28] sm:$0xff]
    %v5482 = vld [vmem:[%s4997 + $0x30] sm:$0xff]
    %v5483 = vld [vmem:[%s4997 + $0x38] sm:$0xff]
    %v5484 = vld [vmem:[%s4997 + $0x40] sm:$0xff]
    %v5485 = vld [vmem:[%s4997 + $0x48] sm:$0xff]
    %v5486 = vld [vmem:[%s4997 + $0x50] sm:$0xff]
    %v5487 = vld [vmem:[%s4997 + $0x58] sm:$0xff]
    %v5488 = vld [vmem:[%s4997 + $0x60] sm:$0xff]
    %v5489 = vld [vmem:[%s4997 + $0x68] sm:$0xff]
    %v5490 = vld [vmem:[%s4997 + $0x70] sm:$0xff]
    %v5491 = vld [vmem:[%s4997 + $0x78] sm:$0xff]
    %v5492 = vld [vmem:[%s4997 + $0x80] sm:$0xff]
    %v5493 = vld [vmem:[%s4997 + $0x88] sm:$0xff]
    %v5494 = vld [vmem:[%s4997 + $0x90] sm:$0xff]
    %v5495 = vld [vmem:[%s4997 + $0x98] sm:$0xff]
    %v5496 = vld [vmem:[%s4997 + $0xa0] sm:$0xff]
    %v5497 = vld [vmem:[%s4997 + $0xa8] sm:$0xff]
    %v5498 = vld [vmem:[%s4997 + $0xb0] sm:$0xff]
    %v5499 = vld [vmem:[%s4997 + $0xb8] sm:$0xff]
    %v5500 = vld [vmem:[%s4997 + $0xc0] sm:$0xff]
    %v5501 = vld [vmem:[%s4997 + $0xc8] sm:$0xff]
    %v5502 = vld [vmem:[%s4997 + $0xd0] sm:$0xff]
    %v5503 = vld [vmem:[%s4997 + $0xd8] sm:$0xff]
    %v5504 = vld [vmem:[%s4997 + $0xe0] sm:$0xff]
    %v5505 = vld [vmem:[%s4997 + $0xe8] sm:$0xff]
    %v5506 = vld [vmem:[%s4997 + $0xf0] sm:$0xff]
    %v5507 = vld [vmem:[%s4997 + $0xf8] sm:$0xff]
    %v5508 = vld [vmem:[%s4997 + $0x100] sm:$0xff]
    %v5509 = vld [vmem:[%s4997 + $0x108] sm:$0xff]
    %v5510 = vld [vmem:[%s4997 + $0x110] sm:$0xff]
    %v5511 = vld [vmem:[%s4997 + $0x118] sm:$0xff]
    %v5512 = vld [vmem:[%s4997 + $0x120] sm:$0xff]
    %v5513 = vld [vmem:[%s4997 + $0x128] sm:$0xff]
    %v5514 = vld [vmem:[%s4997 + $0x130] sm:$0xff]
    %v5515 = vld [vmem:[%s4997 + $0x138] sm:$0xff]
    %v5516 = vld [vmem:[%s4997 + $0x140] sm:$0xff]
    %v5517 = vld [vmem:[%s4997 + $0x148] sm:$0xff]
    %v5518 = vld [vmem:[%s4997 + $0x150] sm:$0xff]
    %v5519 = vld [vmem:[%s4997 + $0x158] sm:$0xff]
    %v5520 = vld [vmem:[%s4997 + $0x160] sm:$0xff]
    %v5521 = vld [vmem:[%s4997 + $0x168] sm:$0xff]
    %v5522 = vld [vmem:[%s4997 + $0x170] sm:$0xff]
    %v5523 = vld [vmem:[%s4997 + $0x178] sm:$0xff]
    %v5524 = vld [vmem:[%s4997 + $0x180] sm:$0xff]
    %v5525 = vld [vmem:[%s4997 + $0x188] sm:$0xff]
    %v5526 = vld [vmem:[%s4997 + $0x190] sm:$0xff]
    %v5527 = vld [vmem:[%s4997 + $0x198] sm:$0xff]
    %v5528 = vld [vmem:[%s4997 + $0x1a0] sm:$0xff]
    %v5529 = vld [vmem:[%s4997 + $0x1a8] sm:$0xff]
    %v5530 = vld [vmem:[%s4997 + $0x1b0] sm:$0xff]
    %v5531 = vld [vmem:[%s4997 + $0x1b8] sm:$0xff]
    %v5532 = vld [vmem:[%s4997 + $0x1c0] sm:$0xff]
    %v5533 = vld [vmem:[%s4997 + $0x1c8] sm:$0xff]
    %v5534 = vld [vmem:[%s4997 + $0x1d0] sm:$0xff]
    %v5535 = vld [vmem:[%s4997 + $0x1d8] sm:$0xff]
    %v5536 = vld [vmem:[%s4997 + $0x1e0] sm:$0xff]
    %v5537 = vld [vmem:[%s4997 + $0x1e8] sm:$0xff]
    %v5538 = vld [vmem:[%s4997 + $0x1f0] sm:$0xff]
    %v5539 = vld [vmem:[%s4997 + $0x1f8] sm:$0xff]
    %5540 = vmatprep.subr.mxu0 %v5477
    %5541 = vmatpush1.msra.mxu0 %v5476
    %5542 = vmatprep.subr.mxu0 %v5481
    %5543 = vmatpush1.msra.mxu0 %v5480
    %5544 = vmatprep.subr.mxu0 %v5485
    %5545 = vmatpush1.msra.mxu0 %v5484
    %5546 = vmatprep.subr.mxu0 %v5489
    %5547 = vmatpush1.msra.mxu0 %v5488
    %5548 = vmatprep.subr.mxu0 %v5493
    %5549 = vmatpush1.msra.mxu0 %v5492
    %5550 = vmatprep.subr.mxu0 %v5497
    %5551 = vmatpush1.msra.mxu0 %v5496
    %5552 = vmatprep.subr.mxu0 %v5501
    %5553 = vmatpush1.msra.mxu0 %v5500
    %5554 = vmatprep.subr.mxu0 %v5505
    %5555 = vmatpush1.msra.mxu0 %v5504
    %5556 = vmatprep.subr.mxu0 %v5509
    %5557 = vmatpush1.msra.mxu0 %v5508
    %5558 = vmatprep.subr.mxu0 %v5513
    %5559 = vmatpush1.msra.mxu0 %v5512
    %5560 = vmatprep.subr.mxu0 %v5517
    %5561 = vmatpush1.msra.mxu0 %v5516
    %5562 = vmatprep.subr.mxu0 %v5521
    %5563 = vmatpush1.msra.mxu0 %v5520
    %5564 = vmatprep.subr.mxu0 %v5525
    %5565 = vmatpush1.msra.mxu0 %v5524
    %5566 = vmatprep.subr.mxu0 %v5529
    %5567 = vmatpush1.msra.mxu0 %v5528
    %5568 = vmatprep.subr.mxu0 %v5533
    %5569 = vmatpush1.msra.mxu0 %v5532
    %5570 = vmatprep.subr.mxu0 %v5537
    %5571 = vmatpush1.msra.mxu0 %v5536
    %5572 = vmatprep.subr.mxu0 0.0
    %5573 = vmatpush1.msra.mxu0 0.0
    %5574 = vmatprep.subr.mxu0 0.0
    %5575 = vmatpush1.msra.mxu0 0.0
    %5576 = vmatprep.subr.mxu0 0.0
    %5577 = vmatpush1.msra.mxu0 0.0
    %5578 = vmatprep.subr.mxu0 0.0
    %5579 = vmatpush1.msra.mxu0 0.0
    %5580 = vmatprep.subr.mxu0 0.0
    %5581 = vmatpush1.msra.mxu0 0.0
    %5582 = vmatprep.subr.mxu0 0.0
    %5583 = vmatpush1.msra.mxu0 0.0
    %5584 = vmatprep.subr.mxu0 0.0
    %5585 = vmatpush1.msra.mxu0 0.0
    %5586 = vmatprep.subr.mxu0 0.0
    %5587 = vmatpush1.msra.mxu0 0.0
    %5588 = vmatprep.subr.mxu0 0.0
    %5589 = vmatpush1.msra.mxu0 0.0
    %5590 = vmatprep.subr.mxu0 0.0
    %5591 = vmatpush1.msra.mxu0 0.0
    %5592 = vmatprep.subr.mxu0 0.0
    %5593 = vmatpush1.msra.mxu0 0.0
    %5594 = vmatprep.subr.mxu0 0.0
    %5595 = vmatpush1.msra.mxu0 0.0
    %5596 = vmatprep.subr.mxu0 0.0
    %5597 = vmatpush1.msra.mxu0 0.0
    %5598 = vmatprep.subr.mxu0 0.0
    %5599 = vmatpush1.msra.mxu0 0.0
    %5600 = vmatprep.subr.mxu0 0.0
    %5601 = vmatpush1.msra.mxu0 0.0
    %5602 = vmatprep.subr.mxu0 0.0
    %5603 = vmatpush1.msra.mxu0 0.0
    %5604 = vmatprep.mubr.f32.mxu0 0.0
    %5605 = vmatmul.mubr.f32.gmra.mrb[0].mxu0 %v5470
    %v5606 = vpop.f32.mrb[0].mxu0
    %v5607 = vadd.f32 0.0, %v5606
    %v5608 = vpop.f32.mrb[0].mxu0
    %v5609 = vadd.f32 0.0, %v5608
    %5610 = vdwg.mxu0
    %5611 = vmatprep.subr.mxu0 %v5479
    %5612 = vmatpush1.msra.mxu0 %v5478
    %5613 = vmatprep.subr.mxu0 %v5483
    %5614 = vmatpush1.msra.mxu0 %v5482
    %5615 = vmatprep.subr.mxu0 %v5487
    %5616 = vmatpush1.msra.mxu0 %v5486
    %5617 = vmatprep.subr.mxu0 %v5491
    %5618 = vmatpush1.msra.mxu0 %v5490
    %5619 = vmatprep.subr.mxu0 %v5495
    %5620 = vmatpush1.msra.mxu0 %v5494
    %5621 = vmatprep.subr.mxu0 %v5499
    %5622 = vmatpush1.msra.mxu0 %v5498
    %5623 = vmatprep.subr.mxu0 %v5503
    %5624 = vmatpush1.msra.mxu0 %v5502
    %5625 = vmatprep.subr.mxu0 %v5507
    %5626 = vmatpush1.msra.mxu0 %v5506
    %5627 = vmatprep.subr.mxu0 %v5511
    %5628 = vmatpush1.msra.mxu0 %v5510
    %5629 = vmatprep.subr.mxu0 %v5515
    %5630 = vmatpush1.msra.mxu0 %v5514
    %5631 = vmatprep.subr.mxu0 %v5519
    %5632 = vmatpush1.msra.mxu0 %v5518
    %5633 = vmatprep.subr.mxu0 %v5523
    %5634 = vmatpush1.msra.mxu0 %v5522
    %5635 = vmatprep.subr.mxu0 %v5527
    %5636 = vmatpush1.msra.mxu0 %v5526
    %5637 = vmatprep.subr.mxu0 %v5531
    %5638 = vmatpush1.msra.mxu0 %v5530
    %5639 = vmatprep.subr.mxu0 %v5535
    %5640 = vmatpush1.msra.mxu0 %v5534
    %5641 = vmatprep.subr.mxu0 %v5539
    %5642 = vmatpush1.msra.mxu0 %v5538
    %5643 = vmatprep.subr.mxu0 0.0
    %5644 = vmatpush1.msra.mxu0 0.0
    %5645 = vmatprep.subr.mxu0 0.0
    %5646 = vmatpush1.msra.mxu0 0.0
    %5647 = vmatprep.subr.mxu0 0.0
    %5648 = vmatpush1.msra.mxu0 0.0
    %5649 = vmatprep.subr.mxu0 0.0
    %5650 = vmatpush1.msra.mxu0 0.0
    %5651 = vmatprep.subr.mxu0 0.0
    %5652 = vmatpush1.msra.mxu0 0.0
    %5653 = vmatprep.subr.mxu0 0.0
    %5654 = vmatpush1.msra.mxu0 0.0
    %5655 = vmatprep.subr.mxu0 0.0
    %5656 = vmatpush1.msra.mxu0 0.0
    %5657 = vmatprep.subr.mxu0 0.0
    %5658 = vmatpush1.msra.mxu0 0.0
    %5659 = vmatprep.subr.mxu0 0.0
    %5660 = vmatpush1.msra.mxu0 0.0
    %5661 = vmatprep.subr.mxu0 0.0
    %5662 = vmatpush1.msra.mxu0 0.0
    %5663 = vmatprep.subr.mxu0 0.0
    %5664 = vmatpush1.msra.mxu0 0.0
    %5665 = vmatprep.subr.mxu0 0.0
    %5666 = vmatpush1.msra.mxu0 0.0
    %5667 = vmatprep.subr.mxu0 0.0
    %5668 = vmatpush1.msra.mxu0 0.0
    %5669 = vmatprep.subr.mxu0 0.0
    %5670 = vmatpush1.msra.mxu0 0.0
    %5671 = vmatprep.subr.mxu0 0.0
    %5672 = vmatpush1.msra.mxu0 0.0
    %5673 = vmatprep.subr.mxu0 0.0
    %5674 = vmatpush1.msra.mxu0 0.0
    %5675 = vmatprep.mubr.f32.mxu0 0.0
    %5676 = vmatmul.mubr.f32.gmra.mrb[0].mxu0 %v5470
    %v5677 = vpop.f32.mrb[0].mxu0
    %v5678 = vadd.f32 0.0, %v5677
    %v5679 = vpop.f32.mrb[0].mxu0
    %v5680 = vadd.f32 0.0, %v5679
    %5681 = vdwg.mxu0
    %v5682 = vadd.f32 %v5472, %v5607
    %v5683 = vadd.f32 %v5473, %v5609
    %v5684 = vadd.f32 %v5474, %v5678
    %v5685 = vadd.f32 %v5475, %v5680
    %v5686 = vxor.u32 %v5682, 2147483648
    %v5687 = vxor.u32 %v5683, 2147483648
    %v5688 = vxor.u32 %v5684, 2147483648
    %v5689 = vmul.f32 %v5686, 1.442695
    %v5690 = vpow.pop %v5689
    %v5691 = vmul.f32 %v5687, 1.442695
    %v5692 = vpow.pop %v5691
    %v5693 = vmul.f32 %v5688, 1.442695
    %v5694 = vpow.pop %v5693
    %v5695 = vadd.f32 %v5690, 1.0
    %v5696 = vadd.f32 %v5692, 1.0
    %v5697 = vadd.f32 %v5694, 1.0
    %v5698 = vrcp.pop %v5695
    %v5699 = vmul.f32 1.0, %v5698
    %v5700 = vrcp.pop %v5696
    %v5701 = vmul.f32 1.0, %v5700
    %v5702 = vrcp.pop %v5697
    %v5703 = vmul.f32 1.0, %v5702
    %v5704 = vtanh.pop %v5685
    %v5705 = vmul.f32 %v5701, %v5468
    %v5706 = vmul.f32 %v5699, %v5704
    %v5707 = vadd.f32 %v5705, %v5706
    %v5708 = vtanh.pop %v5707
    %v5709 = vmul.f32 %v5703, %v5708
    %5710 = vst [vmem:[#allocation2 + $0x10] sm:$0xff] %v5709
    %v5711 = vld [vmem:[#allocation3 + $0x60] sm:$0xff]
    %v5712 = vld [vmem:[#allocation3 + $0x68] sm:$0xff]
    %v5713 = vld [vmem:[#allocation3 + $0x70] sm:$0xff]
    %v5714 = vld [vmem:[#allocation3 + $0x78] sm:$0xff]
    %v5715 = vld [vmem:[%s4997] sm:$0xff]
    %v5716 = vld [vmem:[%s4997 + $0x8] sm:$0xff]
    %v5717 = vld [vmem:[%s4997 + $0x10] sm:$0xff]
    %v5718 = vld [vmem:[%s4997 + $0x18] sm:$0xff]
    %v5719 = vld [vmem:[%s4997 + $0x20] sm:$0xff]
    %v5720 = vld [vmem:[%s4997 + $0x28] sm:$0xff]
    %v5721 = vld [vmem:[%s4997 + $0x30] sm:$0xff]
    %v5722 = vld [vmem:[%s4997 + $0x38] sm:$0xff]
    %v5723 = vld [vmem:[%s4997 + $0x40] sm:$0xff]
    %v5724 = vld [vmem:[%s4997 + $0x48] sm:$0xff]
    %v5725 = vld [vmem:[%s4997 + $0x50] sm:$0xff]
    %v5726 = vld [vmem:[%s4997 + $0x58] sm:$0xff]
    %v5727 = vld [vmem:[%s4997 + $0x60] sm:$0xff]
    %v5728 = vld [vmem:[%s4997 + $0x68] sm:$0xff]
    %v5729 = vld [vmem:[%s4997 + $0x70] sm:$0xff]
    %v5730 = vld [vmem:[%s4997 + $0x78] sm:$0xff]
    %v5731 = vld [vmem:[%s4997 + $0x80] sm:$0xff]
    %v5732 = vld [vmem:[%s4997 + $0x88] sm:$0xff]
    %v5733 = vld [vmem:[%s4997 + $0x90] sm:$0xff]
    %v5734 = vld [vmem:[%s4997 + $0x98] sm:$0xff]
    %v5735 = vld [vmem:[%s4997 + $0xa0] sm:$0xff]
    %v5736 = vld [vmem:[%s4997 + $0xa8] sm:$0xff]
    %v5737 = vld [vmem:[%s4997 + $0xb0] sm:$0xff]
    %v5738 = vld [vmem:[%s4997 + $0xb8] sm:$0xff]
    %v5739 = vld [vmem:[%s4997 + $0xc0] sm:$0xff]
    %v5740 = vld [vmem:[%s4997 + $0xc8] sm:$0xff]
    %v5741 = vld [vmem:[%s4997 + $0xd0] sm:$0xff]
    %v5742 = vld [vmem:[%s4997 + $0xd8] sm:$0xff]
    %v5743 = vld [vmem:[%s4997 + $0xe0] sm:$0xff]
    %v5744 = vld [vmem:[%s4997 + $0xe8] sm:$0xff]
    %v5745 = vld [vmem:[%s4997 + $0xf0] sm:$0xff]
    %v5746 = vld [vmem:[%s4997 + $0xf8] sm:$0xff]
    %v5747 = vld [vmem:[%s4997 + $0x100] sm:$0xff]
    %v5748 = vld [vmem:[%s4997 + $0x108] sm:$0xff]
    %v5749 = vld [vmem:[%s4997 + $0x110] sm:$0xff]
    %v5750 = vld [vmem:[%s4997 + $0x118] sm:$0xff]
    %v5751 = vld [vmem:[%s4997 + $0x120] sm:$0xff]
    %v5752 = vld [vmem:[%s4997 + $0x128] sm:$0xff]
    %v5753 = vld [vmem:[%s4997 + $0x130] sm:$0xff]
    %v5754 = vld [vmem:[%s4997 + $0x138] sm:$0xff]
    %v5755 = vld [vmem:[%s4997 + $0x140] sm:$0xff]
    %v5756 = vld [vmem:[%s4997 + $0x148] sm:$0xff]
    %v5757 = vld [vmem:[%s4997 + $0x150] sm:$0xff]
    %v5758 = vld [vmem:[%s4997 + $0x158] sm:$0xff]
    %v5759 = vld [vmem:[%s4997 + $0x160] sm:$0xff]
    %v5760 = vld [vmem:[%s4997 + $0x168] sm:$0xff]
    %v5761 = vld [vmem:[%s4997 + $0x170] sm:$0xff]
    %v5762 = vld [vmem:[%s4997 + $0x178] sm:$0xff]
    %v5763 = vld [vmem:[%s4997 + $0x180] sm:$0xff]
    %v5764 = vld [vmem:[%s4997 + $0x188] sm:$0xff]
    %v5765 = vld [vmem:[%s4997 + $0x190] sm:$0xff]
    %v5766 = vld [vmem:[%s4997 + $0x198] sm:$0xff]
    %v5767 = vld [vmem:[%s4997 + $0x1a0] sm:$0xff]
    %v5768 = vld [vmem:[%s4997 + $0x1a8] sm:$0xff]
    %v5769 = vld [vmem:[%s4997 + $0x1b0] sm:$0xff]
    %v5770 = vld [vmem:[%s4997 + $0x1b8] sm:$0xff]
    %v5771 = vld [vmem:[%s4997 + $0x1c0] sm:$0xff]
    %v5772 = vld [vmem:[%s4997 + $0x1c8] sm:$0xff]
    %v5773 = vld [vmem:[%s4997 + $0x1d0] sm:$0xff]
    %v5774 = vld [vmem:[%s4997 + $0x1d8] sm:$0xff]
    %v5775 = vld [vmem:[%s4997 + $0x1e0] sm:$0xff]
    %v5776 = vld [vmem:[%s4997 + $0x1e8] sm:$0xff]
    %v5777 = vld [vmem:[%s4997 + $0x1f0] sm:$0xff]
    %v5778 = vld [vmem:[%s4997 + $0x1f8] sm:$0xff]
    %5779 = vmatprep.subr.mxu0 %v5716
    %5780 = vmatpush1.msra.mxu0 %v5715
    %5781 = vmatprep.subr.mxu0 %v5720
    %5782 = vmatpush1.msra.mxu0 %v5719
    %5783 = vmatprep.subr.mxu0 %v5724
    %5784 = vmatpush1.msra.mxu0 %v5723
    %5785 = vmatprep.subr.mxu0 %v5728
    %5786 = vmatpush1.msra.mxu0 %v5727
    %5787 = vmatprep.subr.mxu0 %v5732
    %5788 = vmatpush1.msra.mxu0 %v5731
    %5789 = vmatprep.subr.mxu0 %v5736
    %5790 = vmatpush1.msra.mxu0 %v5735
    %5791 = vmatprep.subr.mxu0 %v5740
    %5792 = vmatpush1.msra.mxu0 %v5739
    %5793 = vmatprep.subr.mxu0 %v5744
    %5794 = vmatpush1.msra.mxu0 %v5743
    %5795 = vmatprep.subr.mxu0 %v5748
    %5796 = vmatpush1.msra.mxu0 %v5747
    %5797 = vmatprep.subr.mxu0 %v5752
    %5798 = vmatpush1.msra.mxu0 %v5751
    %5799 = vmatprep.subr.mxu0 %v5756
    %5800 = vmatpush1.msra.mxu0 %v5755
    %5801 = vmatprep.subr.mxu0 %v5760
    %5802 = vmatpush1.msra.mxu0 %v5759
    %5803 = vmatprep.subr.mxu0 %v5764
    %5804 = vmatpush1.msra.mxu0 %v5763
    %5805 = vmatprep.subr.mxu0 %v5768
    %5806 = vmatpush1.msra.mxu0 %v5767
    %5807 = vmatprep.subr.mxu0 %v5772
    %5808 = vmatpush1.msra.mxu0 %v5771
    %5809 = vmatprep.subr.mxu0 %v5776
    %5810 = vmatpush1.msra.mxu0 %v5775
    %5811 = vmatprep.subr.mxu0 0.0
    %5812 = vmatpush1.msra.mxu0 0.0
    %5813 = vmatprep.subr.mxu0 0.0
    %5814 = vmatpush1.msra.mxu0 0.0
    %5815 = vmatprep.subr.mxu0 0.0
    %5816 = vmatpush1.msra.mxu0 0.0
    %5817 = vmatprep.subr.mxu0 0.0
    %5818 = vmatpush1.msra.mxu0 0.0
    %5819 = vmatprep.subr.mxu0 0.0
    %5820 = vmatpush1.msra.mxu0 0.0
    %5821 = vmatprep.subr.mxu0 0.0
    %5822 = vmatpush1.msra.mxu0 0.0
    %5823 = vmatprep.subr.mxu0 0.0
    %5824 = vmatpush1.msra.mxu0 0.0
    %5825 = vmatprep.subr.mxu0 0.0
    %5826 = vmatpush1.msra.mxu0 0.0
    %5827 = vmatprep.subr.mxu0 0.0
    %5828 = vmatpush1.msra.mxu0 0.0
    %5829 = vmatprep.subr.mxu0 0.0
    %5830 = vmatpush1.msra.mxu0 0.0
    %5831 = vmatprep.subr.mxu0 0.0
    %5832 = vmatpush1.msra.mxu0 0.0
    %5833 = vmatprep.subr.mxu0 0.0
    %5834 = vmatpush1.msra.mxu0 0.0
    %5835 = vmatprep.subr.mxu0 0.0
    %5836 = vmatpush1.msra.mxu0 0.0
    %5837 = vmatprep.subr.mxu0 0.0
    %5838 = vmatpush1.msra.mxu0 0.0
    %5839 = vmatprep.subr.mxu0 0.0
    %5840 = vmatpush1.msra.mxu0 0.0
    %5841 = vmatprep.subr.mxu0 0.0
    %5842 = vmatpush1.msra.mxu0 0.0
    %5843 = vmatprep.mubr.f32.mxu0 0.0
    %5844 = vmatmul.mubr.f32.gmra.mrb[0].mxu0 %v5709
    %v5845 = vpop.f32.mrb[0].mxu0
    %v5846 = vadd.f32 0.0, %v5845
    %v5847 = vpop.f32.mrb[0].mxu0
    %v5848 = vadd.f32 0.0, %v5847
    %5849 = vdwg.mxu0
    %5850 = vmatprep.subr.mxu0 %v5718
    %5851 = vmatpush1.msra.mxu0 %v5717
    %5852 = vmatprep.subr.mxu0 %v5722
    %5853 = vmatpush1.msra.mxu0 %v5721
    %5854 = vmatprep.subr.mxu0 %v5726
    %5855 = vmatpush1.msra.mxu0 %v5725
    %5856 = vmatprep.subr.mxu0 %v5730
    %5857 = vmatpush1.msra.mxu0 %v5729
    %5858 = vmatprep.subr.mxu0 %v5734
    %5859 = vmatpush1.msra.mxu0 %v5733
    %5860 = vmatprep.subr.mxu0 %v5738
    %5861 = vmatpush1.msra.mxu0 %v5737
    %5862 = vmatprep.subr.mxu0 %v5742
    %5863 = vmatpush1.msra.mxu0 %v5741
    %5864 = vmatprep.subr.mxu0 %v5746
    %5865 = vmatpush1.msra.mxu0 %v5745
    %5866 = vmatprep.subr.mxu0 %v5750
    %5867 = vmatpush1.msra.mxu0 %v5749
    %5868 = vmatprep.subr.mxu0 %v5754
    %5869 = vmatpush1.msra.mxu0 %v5753
    %5870 = vmatprep.subr.mxu0 %v5758
    %5871 = vmatpush1.msra.mxu0 %v5757
    %5872 = vmatprep.subr.mxu0 %v5762
    %5873 = vmatpush1.msra.mxu0 %v5761
    %5874 = vmatprep.subr.mxu0 %v5766
    %5875 = vmatpush1.msra.mxu0 %v5765
    %5876 = vmatprep.subr.mxu0 %v5770
    %5877 = vmatpush1.msra.mxu0 %v5769
    %5878 = vmatprep.subr.mxu0 %v5774
    %5879 = vmatpush1.msra.mxu0 %v5773
    %5880 = vmatprep.subr.mxu0 %v5778
    %5881 = vmatpush1.msra.mxu0 %v5777
    %5882 = vmatprep.subr.mxu0 0.0
    %5883 = vmatpush1.msra.mxu0 0.0
    %5884 = vmatprep.subr.mxu0 0.0
    %5885 = vmatpush1.msra.mxu0 0.0
    %5886 = vmatprep.subr.mxu0 0.0
    %5887 = vmatpush1.msra.mxu0 0.0
    %5888 = vmatprep.subr.mxu0 0.0
    %5889 = vmatpush1.msra.mxu0 0.0
    %5890 = vmatprep.subr.mxu0 0.0
    %5891 = vmatpush1.msra.mxu0 0.0
    %5892 = vmatprep.subr.mxu0 0.0
    %5893 = vmatpush1.msra.mxu0 0.0
    %5894 = vmatprep.subr.mxu0 0.0
    %5895 = vmatpush1.msra.mxu0 0.0
    %5896 = vmatprep.subr.mxu0 0.0
    %5897 = vmatpush1.msra.mxu0 0.0
    %5898 = vmatprep.subr.mxu0 0.0
    %5899 = vmatpush1.msra.mxu0 0.0
    %5900 = vmatprep.subr.mxu0 0.0
    %5901 = vmatpush1.msra.mxu0 0.0
    %5902 = vmatprep.subr.mxu0 0.0
    %5903 = vmatpush1.msra.mxu0 0.0
    %5904 = vmatprep.subr.mxu0 0.0
    %5905 = vmatpush1.msra.mxu0 0.0
    %5906 = vmatprep.subr.mxu0 0.0
    %5907 = vmatpush1.msra.mxu0 0.0
    %5908 = vmatprep.subr.mxu0 0.0
    %5909 = vmatpush1.msra.mxu0 0.0
    %5910 = vmatprep.subr.mxu0 0.0
    %5911 = vmatpush1.msra.mxu0 0.0
    %5912 = vmatprep.subr.mxu0 0.0
    %5913 = vmatpush1.msra.mxu0 0.0
    %5914 = vmatprep.mubr.f32.mxu0 0.0
    %5915 = vmatmul.mubr.f32.gmra.mrb[0].mxu0 %v5709
    %v5916 = vpop.f32.mrb[0].mxu0
    %v5917 = vadd.f32 0.0, %v5916
    %v5918 = vpop.f32.mrb[0].mxu0
    %v5919 = vadd.f32 0.0, %v5918
    %5920 = vdwg.mxu0
    %v5921 = vadd.f32 %v5711, %v5846
    %v5922 = vadd.f32 %v5712, %v5848
    %v5923 = vadd.f32 %v5713, %v5917
    %v5924 = vadd.f32 %v5714, %v5919
    %v5925 = vxor.u32 %v5921, 2147483648
    %v5926 = vxor.u32 %v5922, 2147483648
    %v5927 = vxor.u32 %v5923, 2147483648
    %v5928 = vmul.f32 %v5925, 1.442695
    %v5929 = vpow.pop %v5928
    %v5930 = vmul.f32 %v5926, 1.442695
    %v5931 = vpow.pop %v5930
    %v5932 = vmul.f32 %v5927, 1.442695
    %v5933 = vpow.pop %v5932
    %v5934 = vadd.f32 %v5929, 1.0
    %v5935 = vadd.f32 %v5931, 1.0
    %v5936 = vadd.f32 %v5933, 1.0
    %v5937 = vrcp.pop %v5934
    %v5938 = vmul.f32 1.0, %v5937
    %v5939 = vrcp.pop %v5935
    %v5940 = vmul.f32 1.0, %v5939
    %v5941 = vrcp.pop %v5936
    %v5942 = vmul.f32 1.0, %v5941
    %v5943 = vtanh.pop %v5924
    %v5944 = vmul.f32 %v5940, %v5707
    %v5945 = vmul.f32 %v5938, %v5943
    %v5946 = vadd.f32 %v5944, %v5945
    %v5947 = vtanh.pop %v5946
    %v5948 = vmul.f32 %v5942, %v5947
    %5949 = vst [vmem:[#allocation2 + $0x18] sm:$0xff] %v5948
    %v5950 = vld [vmem:[#allocation3 + $0x80] sm:$0xff]
    %v5951 = vld [vmem:[#allocation3 + $0x88] sm:$0xff]
    %v5952 = vld [vmem:[#allocation3 + $0x90] sm:$0xff]
    %v5953 = vld [vmem:[#allocation3 + $0x98] sm:$0xff]
    %v5954 = vld [vmem:[%s4997] sm:$0xff]
    %v5955 = vld [vmem:[%s4997 + $0x8] sm:$0xff]
    %v5956 = vld [vmem:[%s4997 + $0x10] sm:$0xff]
    %v5957 = vld [vmem:[%s4997 + $0x18] sm:$0xff]
    %v5958 = vld [vmem:[%s4997 + $0x20] sm:$0xff]
    %v5959 = vld [vmem:[%s4997 + $0x28] sm:$0xff]
    %v5960 = vld [vmem:[%s4997 + $0x30] sm:$0xff]
    %v5961 = vld [vmem:[%s4997 + $0x38] sm:$0xff]
    %v5962 = vld [vmem:[%s4997 + $0x40] sm:$0xff]
    %v5963 = vld [vmem:[%s4997 + $0x48] sm:$0xff]
    %v5964 = vld [vmem:[%s4997 + $0x50] sm:$0xff]
    %v5965 = vld [vmem:[%s4997 + $0x58] sm:$0xff]
    %v5966 = vld [vmem:[%s4997 + $0x60] sm:$0xff]
    %v5967 = vld [vmem:[%s4997 + $0x68] sm:$0xff]
    %v5968 = vld [vmem:[%s4997 + $0x70] sm:$0xff]
    %v5969 = vld [vmem:[%s4997 + $0x78] sm:$0xff]
    %v5970 = vld [vmem:[%s4997 + $0x80] sm:$0xff]
    %v5971 = vld [vmem:[%s4997 + $0x88] sm:$0xff]
    %v5972 = vld [vmem:[%s4997 + $0x90] sm:$0xff]
    %v5973 = vld [vmem:[%s4997 + $0x98] sm:$0xff]
    %v5974 = vld [vmem:[%s4997 + $0xa0] sm:$0xff]
    %v5975 = vld [vmem:[%s4997 + $0xa8] sm:$0xff]
    %v5976 = vld [vmem:[%s4997 + $0xb0] sm:$0xff]
    %v5977 = vld [vmem:[%s4997 + $0xb8] sm:$0xff]
    %v5978 = vld [vmem:[%s4997 + $0xc0] sm:$0xff]
    %v5979 = vld [vmem:[%s4997 + $0xc8] sm:$0xff]
    %v5980 = vld [vmem:[%s4997 + $0xd0] sm:$0xff]
    %v5981 = vld [vmem:[%s4997 + $0xd8] sm:$0xff]
    %v5982 = vld [vmem:[%s4997 + $0xe0] sm:$0xff]
    %v5983 = vld [vmem:[%s4997 + $0xe8] sm:$0xff]
    %v5984 = vld [vmem:[%s4997 + $0xf0] sm:$0xff]
    %v5985 = vld [vmem:[%s4997 + $0xf8] sm:$0xff]
    %v5986 = vld [vmem:[%s4997 + $0x100] sm:$0xff]
    %v5987 = vld [vmem:[%s4997 + $0x108] sm:$0xff]
    %v5988 = vld [vmem:[%s4997 + $0x110] sm:$0xff]
    %v5989 = vld [vmem:[%s4997 + $0x118] sm:$0xff]
    %v5990 = vld [vmem:[%s4997 + $0x120] sm:$0xff]
    %v5991 = vld [vmem:[%s4997 + $0x128] sm:$0xff]
    %v5992 = vld [vmem:[%s4997 + $0x130] sm:$0xff]
    %v5993 = vld [vmem:[%s4997 + $0x138] sm:$0xff]
    %v5994 = vld [vmem:[%s4997 + $0x140] sm:$0xff]
    %v5995 = vld [vmem:[%s4997 + $0x148] sm:$0xff]
    %v5996 = vld [vmem:[%s4997 + $0x150] sm:$0xff]
    %v5997 = vld [vmem:[%s4997 + $0x158] sm:$0xff]
    %v5998 = vld [vmem:[%s4997 + $0x160] sm:$0xff]
    %v5999 = vld [vmem:[%s4997 + $0x168] sm:$0xff]
    %v6000 = vld [vmem:[%s4997 + $0x170] sm:$0xff]
    %v6001 = vld [vmem:[%s4997 + $0x178] sm:$0xff]
    %v6002 = vld [vmem:[%s4997 + $0x180] sm:$0xff]
    %v6003 = vld [vmem:[%s4997 + $0x188] sm:$0xff]
    %v6004 = vld [vmem:[%s4997 + $0x190] sm:$0xff]
    %v6005 = vld [vmem:[%s4997 + $0x198] sm:$0xff]
    %v6006 = vld [vmem:[%s4997 + $0x1a0] sm:$0xff]
    %v6007 = vld [vmem:[%s4997 + $0x1a8] sm:$0xff]
    %v6008 = vld [vmem:[%s4997 + $0x1b0] sm:$0xff]
    %v6009 = vld [vmem:[%s4997 + $0x1b8] sm:$0xff]
    %v6010 = vld [vmem:[%s4997 + $0x1c0] sm:$0xff]
    %v6011 = vld [vmem:[%s4997 + $0x1c8] sm:$0xff]
    %v6012 = vld [vmem:[%s4997 + $0x1d0] sm:$0xff]
    %v6013 = vld [vmem:[%s4997 + $0x1d8] sm:$0xff]
    %v6014 = vld [vmem:[%s4997 + $0x1e0] sm:$0xff]
    %v6015 = vld [vmem:[%s4997 + $0x1e8] sm:$0xff]
    %v6016 = vld [vmem:[%s4997 + $0x1f0] sm:$0xff]
    %v6017 = vld [vmem:[%s4997 + $0x1f8] sm:$0xff]
    %6018 = vmatprep.subr.mxu0 %v5955
    %6019 = vmatpush1.msra.mxu0 %v5954
    %6020 = vmatprep.subr.mxu0 %v5959
    %6021 = vmatpush1.msra.mxu0 %v5958
    %6022 = vmatprep.subr.mxu0 %v5963
    %6023 = vmatpush1.msra.mxu0 %v5962
    %6024 = vmatprep.subr.mxu0 %v5967
    %6025 = vmatpush1.msra.mxu0 %v5966
    %6026 = vmatprep.subr.mxu0 %v5971
    %6027 = vmatpush1.msra.mxu0 %v5970
    %6028 = vmatprep.subr.mxu0 %v5975
    %6029 = vmatpush1.msra.mxu0 %v5974
    %6030 = vmatprep.subr.mxu0 %v5979
    %6031 = vmatpush1.msra.mxu0 %v5978
    %6032 = vmatprep.subr.mxu0 %v5983
    %6033 = vmatpush1.msra.mxu0 %v5982
    %6034 = vmatprep.subr.mxu0 %v5987
    %6035 = vmatpush1.msra.mxu0 %v5986
    %6036 = vmatprep.subr.mxu0 %v5991
    %6037 = vmatpush1.msra.mxu0 %v5990
    %6038 = vmatprep.subr.mxu0 %v5995
    %6039 = vmatpush1.msra.mxu0 %v5994
    %6040 = vmatprep.subr.mxu0 %v5999
    %6041 = vmatpush1.msra.mxu0 %v5998
    %6042 = vmatprep.subr.mxu0 %v6003
    %6043 = vmatpush1.msra.mxu0 %v6002
    %6044 = vmatprep.subr.mxu0 %v6007
    %6045 = vmatpush1.msra.mxu0 %v6006
    %6046 = vmatprep.subr.mxu0 %v6011
    %6047 = vmatpush1.msra.mxu0 %v6010
    %6048 = vmatprep.subr.mxu0 %v6015
    %6049 = vmatpush1.msra.mxu0 %v6014
    %6050 = vmatprep.subr.mxu0 0.0
    %6051 = vmatpush1.msra.mxu0 0.0
    %6052 = vmatprep.subr.mxu0 0.0
    %6053 = vmatpush1.msra.mxu0 0.0
    %6054 = vmatprep.subr.mxu0 0.0
    %6055 = vmatpush1.msra.mxu0 0.0
    %6056 = vmatprep.subr.mxu0 0.0
    %6057 = vmatpush1.msra.mxu0 0.0
    %6058 = vmatprep.subr.mxu0 0.0
    %6059 = vmatpush1.msra.mxu0 0.0
    %6060 = vmatprep.subr.mxu0 0.0
    %6061 = vmatpush1.msra.mxu0 0.0
    %6062 = vmatprep.subr.mxu0 0.0
    %6063 = vmatpush1.msra.mxu0 0.0
    %6064 = vmatprep.subr.mxu0 0.0
    %6065 = vmatpush1.msra.mxu0 0.0
    %6066 = vmatprep.subr.mxu0 0.0
    %6067 = vmatpush1.msra.mxu0 0.0
    %6068 = vmatprep.subr.mxu0 0.0
    %6069 = vmatpush1.msra.mxu0 0.0
    %6070 = vmatprep.subr.mxu0 0.0
    %6071 = vmatpush1.msra.mxu0 0.0
    %6072 = vmatprep.subr.mxu0 0.0
    %6073 = vmatpush1.msra.mxu0 0.0
    %6074 = vmatprep.subr.mxu0 0.0
    %6075 = vmatpush1.msra.mxu0 0.0
    %6076 = vmatprep.subr.mxu0 0.0
    %6077 = vmatpush1.msra.mxu0 0.0
    %6078 = vmatprep.subr.mxu0 0.0
    %6079 = vmatpush1.msra.mxu0 0.0
    %6080 = vmatprep.subr.mxu0 0.0
    %6081 = vmatpush1.msra.mxu0 0.0
    %6082 = vmatprep.mubr.f32.mxu0 0.0
    %6083 = vmatmul.mubr.f32.gmra.mrb[0].mxu0 %v5948
    %v6084 = vpop.f32.mrb[0].mxu0
    %v6085 = vadd.f32 0.0, %v6084
    %v6086 = vpop.f32.mrb[0].mxu0
    %v6087 = vadd.f32 0.0, %v6086
    %6088 = vdwg.mxu0
    %6089 = vmatprep.subr.mxu0 %v5957
    %6090 = vmatpush1.msra.mxu0 %v5956
    %6091 = vmatprep.subr.mxu0 %v5961
    %6092 = vmatpush1.msra.mxu0 %v5960
    %6093 = vmatprep.subr.mxu0 %v5965
    %6094 = vmatpush1.msra.mxu0 %v5964
    %6095 = vmatprep.subr.mxu0 %v5969
    %6096 = vmatpush1.msra.mxu0 %v5968
    %6097 = vmatprep.subr.mxu0 %v5973
    %6098 = vmatpush1.msra.mxu0 %v5972
    %6099 = vmatprep.subr.mxu0 %v5977
    %6100 = vmatpush1.msra.mxu0 %v5976
    %6101 = vmatprep.subr.mxu0 %v5981
    %6102 = vmatpush1.msra.mxu0 %v5980
    %6103 = vmatprep.subr.mxu0 %v5985
    %6104 = vmatpush1.msra.mxu0 %v5984
    %6105 = vmatprep.subr.mxu0 %v5989
    %6106 = vmatpush1.msra.mxu0 %v5988
    %6107 = vmatprep.subr.mxu0 %v5993
    %6108 = vmatpush1.msra.mxu0 %v5992
    %6109 = vmatprep.subr.mxu0 %v5997
    %6110 = vmatpush1.msra.mxu0 %v5996
    %6111 = vmatprep.subr.mxu0 %v6001
    %6112 = vmatpush1.msra.mxu0 %v6000
    %6113 = vmatprep.subr.mxu0 %v6005
    %6114 = vmatpush1.msra.mxu0 %v6004
    %6115 = vmatprep.subr.mxu0 %v6009
    %6116 = vmatpush1.msra.mxu0 %v6008
    %6117 = vmatprep.subr.mxu0 %v6013
    %6118 = vmatpush1.msra.mxu0 %v6012
    %6119 = vmatprep.subr.mxu0 %v6017
    %6120 = vmatpush1.msra.mxu0 %v6016
    %6121 = vmatprep.subr.mxu0 0.0
    %6122 = vmatpush1.msra.mxu0 0.0
    %6123 = vmatprep.subr.mxu0 0.0
    %6124 = vmatpush1.msra.mxu0 0.0
    %6125 = vmatprep.subr.mxu0 0.0
    %6126 = vmatpush1.msra.mxu0 0.0
    %6127 = vmatprep.subr.mxu0 0.0
    %6128 = vmatpush1.msra.mxu0 0.0
    %6129 = vmatprep.subr.mxu0 0.0
    %6130 = vmatpush1.msra.mxu0 0.0
    %6131 = vmatprep.subr.mxu0 0.0
    %6132 = vmatpush1.msra.mxu0 0.0
    %6133 = vmatprep.subr.mxu0 0.0
    %6134 = vmatpush1.msra.mxu0 0.0
    %6135 = vmatprep.subr.mxu0 0.0
    %6136 = vmatpush1.msra.mxu0 0.0
    %6137 = vmatprep.subr.mxu0 0.0
    %6138 = vmatpush1.msra.mxu0 0.0
    %6139 = vmatprep.subr.mxu0 0.0
    %6140 = vmatpush1.msra.mxu0 0.0
    %6141 = vmatprep.subr.mxu0 0.0
    %6142 = vmatpush1.msra.mxu0 0.0
    %6143 = vmatprep.subr.mxu0 0.0
    %6144 = vmatpush1.msra.mxu0 0.0
    %6145 = vmatprep.subr.mxu0 0.0
    %6146 = vmatpush1.msra.mxu0 0.0
    %6147 = vmatprep.subr.mxu0 0.0
    %6148 = vmatpush1.msra.mxu0 0.0
    %6149 = vmatprep.subr.mxu0 0.0
    %6150 = vmatpush1.msra.mxu0 0.0
    %6151 = vmatprep.subr.mxu0 0.0
    %6152 = vmatpush1.msra.mxu0 0.0
    %6153 = vmatprep.mubr.f32.mxu0 0.0
    %6154 = vmatmul.mubr.f32.gmra.mrb[0].mxu0 %v5948
    %v6155 = vpop.f32.mrb[0].mxu0
    %v6156 = vadd.f32 0.0, %v6155
    %v6157 = vpop.f32.mrb[0].mxu0
    %v6158 = vadd.f32 0.0, %v6157
    %6159 = vdwg.mxu0
    %v6160 = vadd.f32 %v5950, %v6085
    %v6161 = vadd.f32 %v5951, %v6087
    %v6162 = vadd.f32 %v5952, %v6156
    %v6163 = vadd.f32 %v5953, %v6158
    %v6164 = vxor.u32 %v6160, 2147483648
    %v6165 = vxor.u32 %v6161, 2147483648
    %v6166 = vxor.u32 %v6162, 2147483648
    %v6167 = vmul.f32 %v6164, 1.442695
    %v6168 = vpow.pop %v6167
    %v6169 = vmul.f32 %v6165, 1.442695
    %v6170 = vpow.pop %v6169
    %v6171 = vmul.f32 %v6166, 1.442695
    %v6172 = vpow.pop %v6171
    %v6173 = vadd.f32 %v6168, 1.0
    %v6174 = vadd.f32 %v6170, 1.0
    %v6175 = vadd.f32 %v6172, 1.0
    %v6176 = vrcp.pop %v6173
    %v6177 = vmul.f32 1.0, %v6176
    %v6178 = vrcp.pop %v6174
    %v6179 = vmul.f32 1.0, %v6178
    %v6180 = vrcp.pop %v6175
    %v6181 = vmul.f32 1.0, %v6180
    %v6182 = vtanh.pop %v6163
    %v6183 = vmul.f32 %v6179, %v5946
    %v6184 = vmul.f32 %v6177, %v6182
    %v6185 = vadd.f32 %v6183, %v6184
    %v6186 = vtanh.pop %v6185
    %v6187 = vmul.f32 %v6181, %v6186
    %6188 = vst [vmem:[#allocation2 + $0x20] sm:$0xff] %v6187
    %v6189 = vld [vmem:[#allocation3 + $0xa0] sm:$0xff]
    %v6190 = vld [vmem:[#allocation3 + $0xa8] sm:$0xff]
    %v6191 = vld [vmem:[#allocation3 + $0xb0] sm:$0xff]
    %v6192 = vld [vmem:[#allocation3 + $0xb8] sm:$0xff]
    %v6193 = vld [vmem:[%s4997] sm:$0xff]
    %v6194 = vld [vmem:[%s4997 + $0x8] sm:$0xff]
    %v6195 = vld [vmem:[%s4997 + $0x10] sm:$0xff]
    %v6196 = vld [vmem:[%s4997 + $0x18] sm:$0xff]
    %v6197 = vld [vmem:[%s4997 + $0x20] sm:$0xff]
    %v6198 = vld [vmem:[%s4997 + $0x28] sm:$0xff]
    %v6199 = vld [vmem:[%s4997 + $0x30] sm:$0xff]
    %v6200 = vld [vmem:[%s4997 + $0x38] sm:$0xff]
    %v6201 = vld [vmem:[%s4997 + $0x40] sm:$0xff]
    %v6202 = vld [vmem:[%s4997 + $0x48] sm:$0xff]
    %v6203 = vld [vmem:[%s4997 + $0x50] sm:$0xff]
    %v6204 = vld [vmem:[%s4997 + $0x58] sm:$0xff]
    %v6205 = vld [vmem:[%s4997 + $0x60] sm:$0xff]
    %v6206 = vld [vmem:[%s4997 + $0x68] sm:$0xff]
    %v6207 = vld [vmem:[%s4997 + $0x70] sm:$0xff]
    %v6208 = vld [vmem:[%s4997 + $0x78] sm:$0xff]
    %v6209 = vld [vmem:[%s4997 + $0x80] sm:$0xff]
    %v6210 = vld [vmem:[%s4997 + $0x88] sm:$0xff]
    %v6211 = vld [vmem:[%s4997 + $0x90] sm:$0xff]
    %v6212 = vld [vmem:[%s4997 + $0x98] sm:$0xff]
    %v6213 = vld [vmem:[%s4997 + $0xa0] sm:$0xff]
    %v6214 = vld [vmem:[%s4997 + $0xa8] sm:$0xff]
    %v6215 = vld [vmem:[%s4997 + $0xb0] sm:$0xff]
    %v6216 = vld [vmem:[%s4997 + $0xb8] sm:$0xff]
    %v6217 = vld [vmem:[%s4997 + $0xc0] sm:$0xff]
    %v6218 = vld [vmem:[%s4997 + $0xc8] sm:$0xff]
    %v6219 = vld [vmem:[%s4997 + $0xd0] sm:$0xff]
    %v6220 = vld [vmem:[%s4997 + $0xd8] sm:$0xff]
    %v6221 = vld [vmem:[%s4997 + $0xe0] sm:$0xff]
    %v6222 = vld [vmem:[%s4997 + $0xe8] sm:$0xff]
    %v6223 = vld [vmem:[%s4997 + $0xf0] sm:$0xff]
    %v6224 = vld [vmem:[%s4997 + $0xf8] sm:$0xff]
    %v6225 = vld [vmem:[%s4997 + $0x100] sm:$0xff]
    %v6226 = vld [vmem:[%s4997 + $0x108] sm:$0xff]
    %v6227 = vld [vmem:[%s4997 + $0x110] sm:$0xff]
    %v6228 = vld [vmem:[%s4997 + $0x118] sm:$0xff]
    %v6229 = vld [vmem:[%s4997 + $0x120] sm:$0xff]
    %v6230 = vld [vmem:[%s4997 + $0x128] sm:$0xff]
    %v6231 = vld [vmem:[%s4997 + $0x130] sm:$0xff]
    %v6232 = vld [vmem:[%s4997 + $0x138] sm:$0xff]
    %v6233 = vld [vmem:[%s4997 + $0x140] sm:$0xff]
    %v6234 = vld [vmem:[%s4997 + $0x148] sm:$0xff]
    %v6235 = vld [vmem:[%s4997 + $0x150] sm:$0xff]
    %v6236 = vld [vmem:[%s4997 + $0x158] sm:$0xff]
    %v6237 = vld [vmem:[%s4997 + $0x160] sm:$0xff]
    %v6238 = vld [vmem:[%s4997 + $0x168] sm:$0xff]
    %v6239 = vld [vmem:[%s4997 + $0x170] sm:$0xff]
    %v6240 = vld [vmem:[%s4997 + $0x178] sm:$0xff]
    %v6241 = vld [vmem:[%s4997 + $0x180] sm:$0xff]
    %v6242 = vld [vmem:[%s4997 + $0x188] sm:$0xff]
    %v6243 = vld [vmem:[%s4997 + $0x190] sm:$0xff]
    %v6244 = vld [vmem:[%s4997 + $0x198] sm:$0xff]
    %v6245 = vld [vmem:[%s4997 + $0x1a0] sm:$0xff]
    %v6246 = vld [vmem:[%s4997 + $0x1a8] sm:$0xff]
    %v6247 = vld [vmem:[%s4997 + $0x1b0] sm:$0xff]
    %v6248 = vld [vmem:[%s4997 + $0x1b8] sm:$0xff]
    %v6249 = vld [vmem:[%s4997 + $0x1c0] sm:$0xff]
    %v6250 = vld [vmem:[%s4997 + $0x1c8] sm:$0xff]
    %v6251 = vld [vmem:[%s4997 + $0x1d0] sm:$0xff]
    %v6252 = vld [vmem:[%s4997 + $0x1d8] sm:$0xff]
    %v6253 = vld [vmem:[%s4997 + $0x1e0] sm:$0xff]
    %v6254 = vld [vmem:[%s4997 + $0x1e8] sm:$0xff]
    %v6255 = vld [vmem:[%s4997 + $0x1f0] sm:$0xff]
    %v6256 = vld [vmem:[%s4997 + $0x1f8] sm:$0xff]
    %6257 = vmatprep.subr.mxu0 %v6194
    %6258 = vmatpush1.msra.mxu0 %v6193
    %6259 = vmatprep.subr.mxu0 %v6198
    %6260 = vmatpush1.msra.mxu0 %v6197
    %6261 = vmatprep.subr.mxu0 %v6202
    %6262 = vmatpush1.msra.mxu0 %v6201
    %6263 = vmatprep.subr.mxu0 %v6206
    %6264 = vmatpush1.msra.mxu0 %v6205
    %6265 = vmatprep.subr.mxu0 %v6210
    %6266 = vmatpush1.msra.mxu0 %v6209
    %6267 = vmatprep.subr.mxu0 %v6214
    %6268 = vmatpush1.msra.mxu0 %v6213
    %6269 = vmatprep.subr.mxu0 %v6218
    %6270 = vmatpush1.msra.mxu0 %v6217
    %6271 = vmatprep.subr.mxu0 %v6222
    %6272 = vmatpush1.msra.mxu0 %v6221
    %6273 = vmatprep.subr.mxu0 %v6226
    %6274 = vmatpush1.msra.mxu0 %v6225
    %6275 = vmatprep.subr.mxu0 %v6230
    %6276 = vmatpush1.msra.mxu0 %v6229
    %6277 = vmatprep.subr.mxu0 %v6234
    %6278 = vmatpush1.msra.mxu0 %v6233
    %6279 = vmatprep.subr.mxu0 %v6238
    %6280 = vmatpush1.msra.mxu0 %v6237
    %6281 = vmatprep.subr.mxu0 %v6242
    %6282 = vmatpush1.msra.mxu0 %v6241
    %6283 = vmatprep.subr.mxu0 %v6246
    %6284 = vmatpush1.msra.mxu0 %v6245
    %6285 = vmatprep.subr.mxu0 %v6250
    %6286 = vmatpush1.msra.mxu0 %v6249
    %6287 = vmatprep.subr.mxu0 %v6254
    %6288 = vmatpush1.msra.mxu0 %v6253
    %6289 = vmatprep.subr.mxu0 0.0
    %6290 = vmatpush1.msra.mxu0 0.0
    %6291 = vmatprep.subr.mxu0 0.0
    %6292 = vmatpush1.msra.mxu0 0.0
    %6293 = vmatprep.subr.mxu0 0.0
    %6294 = vmatpush1.msra.mxu0 0.0
    %6295 = vmatprep.subr.mxu0 0.0
    %6296 = vmatpush1.msra.mxu0 0.0
    %6297 = vmatprep.subr.mxu0 0.0
    %6298 = vmatpush1.msra.mxu0 0.0
    %6299 = vmatprep.subr.mxu0 0.0
    %6300 = vmatpush1.msra.mxu0 0.0
    %6301 = vmatprep.subr.mxu0 0.0
    %6302 = vmatpush1.msra.mxu0 0.0
    %6303 = vmatprep.subr.mxu0 0.0
    %6304 = vmatpush1.msra.mxu0 0.0
    %6305 = vmatprep.subr.mxu0 0.0
    %6306 = vmatpush1.msra.mxu0 0.0
    %6307 = vmatprep.subr.mxu0 0.0
    %6308 = vmatpush1.msra.mxu0 0.0
    %6309 = vmatprep.subr.mxu0 0.0
    %6310 = vmatpush1.msra.mxu0 0.0
    %6311 = vmatprep.subr.mxu0 0.0
    %6312 = vmatpush1.msra.mxu0 0.0
    %6313 = vmatprep.subr.mxu0 0.0
    %6314 = vmatpush1.msra.mxu0 0.0
    %6315 = vmatprep.subr.mxu0 0.0
    %6316 = vmatpush1.msra.mxu0 0.0
    %6317 = vmatprep.subr.mxu0 0.0
    %6318 = vmatpush1.msra.mxu0 0.0
    %6319 = vmatprep.subr.mxu0 0.0
    %6320 = vmatpush1.msra.mxu0 0.0
    %6321 = vmatprep.mubr.f32.mxu0 0.0
    %6322 = vmatmul.mubr.f32.gmra.mrb[0].mxu0 %v6187
    %v6323 = vpop.f32.mrb[0].mxu0
    %v6324 = vadd.f32 0.0, %v6323
    %v6325 = vpop.f32.mrb[0].mxu0
    %v6326 = vadd.f32 0.0, %v6325
    %6327 = vdwg.mxu0
    %6328 = vmatprep.subr.mxu0 %v6196
    %6329 = vmatpush1.msra.mxu0 %v6195
    %6330 = vmatprep.subr.mxu0 %v6200
    %6331 = vmatpush1.msra.mxu0 %v6199
    %6332 = vmatprep.subr.mxu0 %v6204
    %6333 = vmatpush1.msra.mxu0 %v6203
    %6334 = vmatprep.subr.mxu0 %v6208
    %6335 = vmatpush1.msra.mxu0 %v6207
    %6336 = vmatprep.subr.mxu0 %v6212
    %6337 = vmatpush1.msra.mxu0 %v6211
    %6338 = vmatprep.subr.mxu0 %v6216
    %6339 = vmatpush1.msra.mxu0 %v6215
    %6340 = vmatprep.subr.mxu0 %v6220
    %6341 = vmatpush1.msra.mxu0 %v6219
    %6342 = vmatprep.subr.mxu0 %v6224
    %6343 = vmatpush1.msra.mxu0 %v6223
    %6344 = vmatprep.subr.mxu0 %v6228
    %6345 = vmatpush1.msra.mxu0 %v6227
    %6346 = vmatprep.subr.mxu0 %v6232
    %6347 = vmatpush1.msra.mxu0 %v6231
    %6348 = vmatprep.subr.mxu0 %v6236
    %6349 = vmatpush1.msra.mxu0 %v6235
    %6350 = vmatprep.subr.mxu0 %v6240
    %6351 = vmatpush1.msra.mxu0 %v6239
    %6352 = vmatprep.subr.mxu0 %v6244
    %6353 = vmatpush1.msra.mxu0 %v6243
    %6354 = vmatprep.subr.mxu0 %v6248
    %6355 = vmatpush1.msra.mxu0 %v6247
    %6356 = vmatprep.subr.mxu0 %v6252
    %6357 = vmatpush1.msra.mxu0 %v6251
    %6358 = vmatprep.subr.mxu0 %v6256
    %6359 = vmatpush1.msra.mxu0 %v6255
    %6360 = vmatprep.subr.mxu0 0.0
    %6361 = vmatpush1.msra.mxu0 0.0
    %6362 = vmatprep.subr.mxu0 0.0
    %6363 = vmatpush1.msra.mxu0 0.0
    %6364 = vmatprep.subr.mxu0 0.0
    %6365 = vmatpush1.msra.mxu0 0.0
    %6366 = vmatprep.subr.mxu0 0.0
    %6367 = vmatpush1.msra.mxu0 0.0
    %6368 = vmatprep.subr.mxu0 0.0
    %6369 = vmatpush1.msra.mxu0 0.0
    %6370 = vmatprep.subr.mxu0 0.0
    %6371 = vmatpush1.msra.mxu0 0.0
    %6372 = vmatprep.subr.mxu0 0.0
    %6373 = vmatpush1.msra.mxu0 0.0
    %6374 = vmatprep.subr.mxu0 0.0
    %6375 = vmatpush1.msra.mxu0 0.0
    %6376 = vmatprep.subr.mxu0 0.0
    %6377 = vmatpush1.msra.mxu0 0.0
    %6378 = vmatprep.subr.mxu0 0.0
    %6379 = vmatpush1.msra.mxu0 0.0
    %6380 = vmatprep.subr.mxu0 0.0
    %6381 = vmatpush1.msra.mxu0 0.0
    %6382 = vmatprep.subr.mxu0 0.0
    %6383 = vmatpush1.msra.mxu0 0.0
    %6384 = vmatprep.subr.mxu0 0.0
    %6385 = vmatpush1.msra.mxu0 0.0
    %6386 = vmatprep.subr.mxu0 0.0
    %6387 = vmatpush1.msra.mxu0 0.0
    %6388 = vmatprep.subr.mxu0 0.0
    %6389 = vmatpush1.msra.mxu0 0.0
    %6390 = vmatprep.subr.mxu0 0.0
    %6391 = vmatpush1.msra.mxu0 0.0
    %6392 = vmatprep.mubr.f32.mxu0 0.0
    %6393 = vmatmul.mubr.f32.gmra.mrb[0].mxu0 %v6187
    %v6394 = vpop.f32.mrb[0].mxu0
    %v6395 = vadd.f32 0.0, %v6394
    %v6396 = vpop.f32.mrb[0].mxu0
    %v6397 = vadd.f32 0.0, %v6396
    %6398 = vdwg.mxu0
    %v6399 = vadd.f32 %v6189, %v6324
    %v6400 = vadd.f32 %v6190, %v6326
    %v6401 = vadd.f32 %v6191, %v6395
    %v6402 = vadd.f32 %v6192, %v6397
    %v6403 = vxor.u32 %v6399, 2147483648
    %v6404 = vxor.u32 %v6400, 2147483648
    %v6405 = vxor.u32 %v6401, 2147483648
    %v6406 = vmul.f32 %v6403, 1.442695
    %v6407 = vpow.pop %v6406
    %v6408 = vmul.f32 %v6404, 1.442695
    %v6409 = vpow.pop %v6408
    %v6410 = vmul.f32 %v6405, 1.442695
    %v6411 = vpow.pop %v6410
    %v6412 = vadd.f32 %v6407, 1.0
    %v6413 = vadd.f32 %v6409, 1.0
    %v6414 = vadd.f32 %v6411, 1.0
    %v6415 = vrcp.pop %v6412
    %v6416 = vmul.f32 1.0, %v6415
    %v6417 = vrcp.pop %v6413
    %v6418 = vmul.f32 1.0, %v6417
    %v6419 = vrcp.pop %v6414
    %v6420 = vmul.f32 1.0, %v6419
    %v6421 = vtanh.pop %v6402
    %v6422 = vmul.f32 %v6418, %v6185
    %v6423 = vmul.f32 %v6416, %v6421
    %v6424 = vadd.f32 %v6422, %v6423
    %v6425 = vtanh.pop %v6424
    %v6426 = vmul.f32 %v6420, %v6425
    %6427 = vst [vmem:[#allocation2 + $0x28] sm:$0xff] %v6426
    %v6428 = vld [vmem:[#allocation3 + $0xc0] sm:$0xff]
    %v6429 = vld [vmem:[#allocation3 + $0xc8] sm:$0xff]
    %v6430 = vld [vmem:[#allocation3 + $0xd0] sm:$0xff]
    %v6431 = vld [vmem:[#allocation3 + $0xd8] sm:$0xff]
    %v6432 = vld [vmem:[%s4997] sm:$0xff]
    %v6433 = vld [vmem:[%s4997 + $0x8] sm:$0xff]
    %v6434 = vld [vmem:[%s4997 + $0x10] sm:$0xff]
    %v6435 = vld [vmem:[%s4997 + $0x18] sm:$0xff]
    %v6436 = vld [vmem:[%s4997 + $0x20] sm:$0xff]
    %v6437 = vld [vmem:[%s4997 + $0x28] sm:$0xff]
    %v6438 = vld [vmem:[%s4997 + $0x30] sm:$0xff]
    %v6439 = vld [vmem:[%s4997 + $0x38] sm:$0xff]
    %v6440 = vld [vmem:[%s4997 + $0x40] sm:$0xff]
    %v6441 = vld [vmem:[%s4997 + $0x48] sm:$0xff]
    %v6442 = vld [vmem:[%s4997 + $0x50] sm:$0xff]
    %v6443 = vld [vmem:[%s4997 + $0x58] sm:$0xff]
    %v6444 = vld [vmem:[%s4997 + $0x60] sm:$0xff]
    %v6445 = vld [vmem:[%s4997 + $0x68] sm:$0xff]
    %v6446 = vld [vmem:[%s4997 + $0x70] sm:$0xff]
    %v6447 = vld [vmem:[%s4997 + $0x78] sm:$0xff]
    %v6448 = vld [vmem:[%s4997 + $0x80] sm:$0xff]
    %v6449 = vld [vmem:[%s4997 + $0x88] sm:$0xff]
    %v6450 = vld [vmem:[%s4997 + $0x90] sm:$0xff]
    %v6451 = vld [vmem:[%s4997 + $0x98] sm:$0xff]
    %v6452 = vld [vmem:[%s4997 + $0xa0] sm:$0xff]
    %v6453 = vld [vmem:[%s4997 + $0xa8] sm:$0xff]
    %v6454 = vld [vmem:[%s4997 + $0xb0] sm:$0xff]
    %v6455 = vld [vmem:[%s4997 + $0xb8] sm:$0xff]
    %v6456 = vld [vmem:[%s4997 + $0xc0] sm:$0xff]
    %v6457 = vld [vmem:[%s4997 + $0xc8] sm:$0xff]
    %v6458 = vld [vmem:[%s4997 + $0xd0] sm:$0xff]
    %v6459 = vld [vmem:[%s4997 + $0xd8] sm:$0xff]
    %v6460 = vld [vmem:[%s4997 + $0xe0] sm:$0xff]
    %v6461 = vld [vmem:[%s4997 + $0xe8] sm:$0xff]
    %v6462 = vld [vmem:[%s4997 + $0xf0] sm:$0xff]
    %v6463 = vld [vmem:[%s4997 + $0xf8] sm:$0xff]
    %v6464 = vld [vmem:[%s4997 + $0x100] sm:$0xff]
    %v6465 = vld [vmem:[%s4997 + $0x108] sm:$0xff]
    %v6466 = vld [vmem:[%s4997 + $0x110] sm:$0xff]
    %v6467 = vld [vmem:[%s4997 + $0x118] sm:$0xff]
    %v6468 = vld [vmem:[%s4997 + $0x120] sm:$0xff]
    %v6469 = vld [vmem:[%s4997 + $0x128] sm:$0xff]
    %v6470 = vld [vmem:[%s4997 + $0x130] sm:$0xff]
    %v6471 = vld [vmem:[%s4997 + $0x138] sm:$0xff]
    %v6472 = vld [vmem:[%s4997 + $0x140] sm:$0xff]
    %v6473 = vld [vmem:[%s4997 + $0x148] sm:$0xff]
    %v6474 = vld [vmem:[%s4997 + $0x150] sm:$0xff]
    %v6475 = vld [vmem:[%s4997 + $0x158] sm:$0xff]
    %v6476 = vld [vmem:[%s4997 + $0x160] sm:$0xff]
    %v6477 = vld [vmem:[%s4997 + $0x168] sm:$0xff]
    %v6478 = vld [vmem:[%s4997 + $0x170] sm:$0xff]
    %v6479 = vld [vmem:[%s4997 + $0x178] sm:$0xff]
    %v6480 = vld [vmem:[%s4997 + $0x180] sm:$0xff]
    %v6481 = vld [vmem:[%s4997 + $0x188] sm:$0xff]
    %v6482 = vld [vmem:[%s4997 + $0x190] sm:$0xff]
    %v6483 = vld [vmem:[%s4997 + $0x198] sm:$0xff]
    %v6484 = vld [vmem:[%s4997 + $0x1a0] sm:$0xff]
    %v6485 = vld [vmem:[%s4997 + $0x1a8] sm:$0xff]
    %v6486 = vld [vmem:[%s4997 + $0x1b0] sm:$0xff]
    %v6487 = vld [vmem:[%s4997 + $0x1b8] sm:$0xff]
    %v6488 = vld [vmem:[%s4997 + $0x1c0] sm:$0xff]
    %v6489 = vld [vmem:[%s4997 + $0x1c8] sm:$0xff]
    %v6490 = vld [vmem:[%s4997 + $0x1d0] sm:$0xff]
    %v6491 = vld [vmem:[%s4997 + $0x1d8] sm:$0xff]
    %v6492 = vld [vmem:[%s4997 + $0x1e0] sm:$0xff]
    %v6493 = vld [vmem:[%s4997 + $0x1e8] sm:$0xff]
    %v6494 = vld [vmem:[%s4997 + $0x1f0] sm:$0xff]
    %v6495 = vld [vmem:[%s4997 + $0x1f8] sm:$0xff]
    %6496 = vmatprep.subr.mxu0 %v6433
    %6497 = vmatpush1.msra.mxu0 %v6432
    %6498 = vmatprep.subr.mxu0 %v6437
    %6499 = vmatpush1.msra.mxu0 %v6436
    %6500 = vmatprep.subr.mxu0 %v6441
    %6501 = vmatpush1.msra.mxu0 %v6440
    %6502 = vmatprep.subr.mxu0 %v6445
    %6503 = vmatpush1.msra.mxu0 %v6444
    %6504 = vmatprep.subr.mxu0 %v6449
    %6505 = vmatpush1.msra.mxu0 %v6448
    %6506 = vmatprep.subr.mxu0 %v6453
    %6507 = vmatpush1.msra.mxu0 %v6452
    %6508 = vmatprep.subr.mxu0 %v6457
    %6509 = vmatpush1.msra.mxu0 %v6456
    %6510 = vmatprep.subr.mxu0 %v6461
    %6511 = vmatpush1.msra.mxu0 %v6460
    %6512 = vmatprep.subr.mxu0 %v6465
    %6513 = vmatpush1.msra.mxu0 %v6464
    %6514 = vmatprep.subr.mxu0 %v6469
    %6515 = vmatpush1.msra.mxu0 %v6468
    %6516 = vmatprep.subr.mxu0 %v6473
    %6517 = vmatpush1.msra.mxu0 %v6472
    %6518 = vmatprep.subr.mxu0 %v6477
    %6519 = vmatpush1.msra.mxu0 %v6476
    %6520 = vmatprep.subr.mxu0 %v6481
    %6521 = vmatpush1.msra.mxu0 %v6480
    %6522 = vmatprep.subr.mxu0 %v6485
    %6523 = vmatpush1.msra.mxu0 %v6484
    %6524 = vmatprep.subr.mxu0 %v6489
    %6525 = vmatpush1.msra.mxu0 %v6488
    %6526 = vmatprep.subr.mxu0 %v6493
    %6527 = vmatpush1.msra.mxu0 %v6492
    %6528 = vmatprep.subr.mxu0 0.0
    %6529 = vmatpush1.msra.mxu0 0.0
    %6530 = vmatprep.subr.mxu0 0.0
    %6531 = vmatpush1.msra.mxu0 0.0
    %6532 = vmatprep.subr.mxu0 0.0
    %6533 = vmatpush1.msra.mxu0 0.0
    %6534 = vmatprep.subr.mxu0 0.0
    %6535 = vmatpush1.msra.mxu0 0.0
    %6536 = vmatprep.subr.mxu0 0.0
    %6537 = vmatpush1.msra.mxu0 0.0
    %6538 = vmatprep.subr.mxu0 0.0
    %6539 = vmatpush1.msra.mxu0 0.0
    %6540 = vmatprep.subr.mxu0 0.0
    %6541 = vmatpush1.msra.mxu0 0.0
    %6542 = vmatprep.subr.mxu0 0.0
    %6543 = vmatpush1.msra.mxu0 0.0
    %6544 = vmatprep.subr.mxu0 0.0
    %6545 = vmatpush1.msra.mxu0 0.0
    %6546 = vmatprep.subr.mxu0 0.0
    %6547 = vmatpush1.msra.mxu0 0.0
    %6548 = vmatprep.subr.mxu0 0.0
    %6549 = vmatpush1.msra.mxu0 0.0
    %6550 = vmatprep.subr.mxu0 0.0
    %6551 = vmatpush1.msra.mxu0 0.0
    %6552 = vmatprep.subr.mxu0 0.0
    %6553 = vmatpush1.msra.mxu0 0.0
    %6554 = vmatprep.subr.mxu0 0.0
    %6555 = vmatpush1.msra.mxu0 0.0
    %6556 = vmatprep.subr.mxu0 0.0
    %6557 = vmatpush1.msra.mxu0 0.0
    %6558 = vmatprep.subr.mxu0 0.0
    %6559 = vmatpush1.msra.mxu0 0.0
    %6560 = vmatprep.mubr.f32.mxu0 0.0
    %6561 = vmatmul.mubr.f32.gmra.mrb[0].mxu0 %v6426
    %v6562 = vpop.f32.mrb[0].mxu0
    %v6563 = vadd.f32 0.0, %v6562
    %v6564 = vpop.f32.mrb[0].mxu0
    %v6565 = vadd.f32 0.0, %v6564
    %6566 = vdwg.mxu0
    %6567 = vmatprep.subr.mxu0 %v6435
    %6568 = vmatpush1.msra.mxu0 %v6434
    %6569 = vmatprep.subr.mxu0 %v6439
    %6570 = vmatpush1.msra.mxu0 %v6438
    %6571 = vmatprep.subr.mxu0 %v6443
    %6572 = vmatpush1.msra.mxu0 %v6442
    %6573 = vmatprep.subr.mxu0 %v6447
    %6574 = vmatpush1.msra.mxu0 %v6446
    %6575 = vmatprep.subr.mxu0 %v6451
    %6576 = vmatpush1.msra.mxu0 %v6450
    %6577 = vmatprep.subr.mxu0 %v6455
    %6578 = vmatpush1.msra.mxu0 %v6454
    %6579 = vmatprep.subr.mxu0 %v6459
    %6580 = vmatpush1.msra.mxu0 %v6458
    %6581 = vmatprep.subr.mxu0 %v6463
    %6582 = vmatpush1.msra.mxu0 %v6462
    %6583 = vmatprep.subr.mxu0 %v6467
    %6584 = vmatpush1.msra.mxu0 %v6466
    %6585 = vmatprep.subr.mxu0 %v6471
    %6586 = vmatpush1.msra.mxu0 %v6470
    %6587 = vmatprep.subr.mxu0 %v6475
    %6588 = vmatpush1.msra.mxu0 %v6474
    %6589 = vmatprep.subr.mxu0 %v6479
    %6590 = vmatpush1.msra.mxu0 %v6478
    %6591 = vmatprep.subr.mxu0 %v6483
    %6592 = vmatpush1.msra.mxu0 %v6482
    %6593 = vmatprep.subr.mxu0 %v6487
    %6594 = vmatpush1.msra.mxu0 %v6486
    %6595 = vmatprep.subr.mxu0 %v6491
    %6596 = vmatpush1.msra.mxu0 %v6490
    %6597 = vmatprep.subr.mxu0 %v6495
    %6598 = vmatpush1.msra.mxu0 %v6494
    %6599 = vmatprep.subr.mxu0 0.0
    %6600 = vmatpush1.msra.mxu0 0.0
    %6601 = vmatprep.subr.mxu0 0.0
    %6602 = vmatpush1.msra.mxu0 0.0
    %6603 = vmatprep.subr.mxu0 0.0
    %6604 = vmatpush1.msra.mxu0 0.0
    %6605 = vmatprep.subr.mxu0 0.0
    %6606 = vmatpush1.msra.mxu0 0.0
    %6607 = vmatprep.subr.mxu0 0.0
    %6608 = vmatpush1.msra.mxu0 0.0
    %6609 = vmatprep.subr.mxu0 0.0
    %6610 = vmatpush1.msra.mxu0 0.0
    %6611 = vmatprep.subr.mxu0 0.0
    %6612 = vmatpush1.msra.mxu0 0.0
    %6613 = vmatprep.subr.mxu0 0.0
    %6614 = vmatpush1.msra.mxu0 0.0
    %6615 = vmatprep.subr.mxu0 0.0
    %6616 = vmatpush1.msra.mxu0 0.0
    %6617 = vmatprep.subr.mxu0 0.0
    %6618 = vmatpush1.msra.mxu0 0.0
    %6619 = vmatprep.subr.mxu0 0.0
    %6620 = vmatpush1.msra.mxu0 0.0
    %6621 = vmatprep.subr.mxu0 0.0
    %6622 = vmatpush1.msra.mxu0 0.0
    %6623 = vmatprep.subr.mxu0 0.0
    %6624 = vmatpush1.msra.mxu0 0.0
    %6625 = vmatprep.subr.mxu0 0.0
    %6626 = vmatpush1.msra.mxu0 0.0
    %6627 = vmatprep.subr.mxu0 0.0
    %6628 = vmatpush1.msra.mxu0 0.0
    %6629 = vmatprep.subr.mxu0 0.0
    %6630 = vmatpush1.msra.mxu0 0.0
    %6631 = vmatprep.mubr.f32.mxu0 0.0
    %6632 = vmatmul.mubr.f32.gmra.mrb[0].mxu0 %v6426
    %v6633 = vpop.f32.mrb[0].mxu0
    %v6634 = vadd.f32 0.0, %v6633
    %v6635 = vpop.f32.mrb[0].mxu0
    %v6636 = vadd.f32 0.0, %v6635
    %6637 = vdwg.mxu0
    %v6638 = vadd.f32 %v6428, %v6563
    %v6639 = vadd.f32 %v6429, %v6565
    %v6640 = vadd.f32 %v6430, %v6634
    %v6641 = vadd.f32 %v6431, %v6636
    %v6642 = vxor.u32 %v6638, 2147483648
    %v6643 = vxor.u32 %v6639, 2147483648
    %v6644 = vxor.u32 %v6640, 2147483648
    %v6645 = vmul.f32 %v6642, 1.442695
    %v6646 = vpow.pop %v6645
    %v6647 = vmul.f32 %v6643, 1.442695
    %v6648 = vpow.pop %v6647
    %v6649 = vmul.f32 %v6644, 1.442695
    %v6650 = vpow.pop %v6649
    %v6651 = vadd.f32 %v6646, 1.0
    %v6652 = vadd.f32 %v6648, 1.0
    %v6653 = vadd.f32 %v6650, 1.0
    %v6654 = vrcp.pop %v6651
    %v6655 = vmul.f32 1.0, %v6654
    %v6656 = vrcp.pop %v6652
    %v6657 = vmul.f32 1.0, %v6656
    %v6658 = vrcp.pop %v6653
    %v6659 = vmul.f32 1.0, %v6658
    %v6660 = vtanh.pop %v6641
    %v6661 = vmul.f32 %v6657, %v6424
    %v6662 = vmul.f32 %v6655, %v6660
    %v6663 = vadd.f32 %v6661, %v6662
    %v6664 = vtanh.pop %v6663
    %v6665 = vmul.f32 %v6659, %v6664
    %6666 = vst [vmem:[#allocation2 + $0x30] sm:$0xff] %v6665
    %v6667 = vld [vmem:[#allocation3 + $0xe0] sm:$0xff]
    %v6668 = vld [vmem:[#allocation3 + $0xe8] sm:$0xff]
    %v6669 = vld [vmem:[#allocation3 + $0xf0] sm:$0xff]
    %v6670 = vld [vmem:[#allocation3 + $0xf8] sm:$0xff]
    %v6671 = vld [vmem:[%s4997] sm:$0xff]
    %v6672 = vld [vmem:[%s4997 + $0x8] sm:$0xff]
    %v6673 = vld [vmem:[%s4997 + $0x10] sm:$0xff]
    %v6674 = vld [vmem:[%s4997 + $0x18] sm:$0xff]
    %v6675 = vld [vmem:[%s4997 + $0x20] sm:$0xff]
    %v6676 = vld [vmem:[%s4997 + $0x28] sm:$0xff]
    %v6677 = vld [vmem:[%s4997 + $0x30] sm:$0xff]
    %v6678 = vld [vmem:[%s4997 + $0x38] sm:$0xff]
    %v6679 = vld [vmem:[%s4997 + $0x40] sm:$0xff]
    %v6680 = vld [vmem:[%s4997 + $0x48] sm:$0xff]
    %v6681 = vld [vmem:[%s4997 + $0x50] sm:$0xff]
    %v6682 = vld [vmem:[%s4997 + $0x58] sm:$0xff]
    %v6683 = vld [vmem:[%s4997 + $0x60] sm:$0xff]
    %v6684 = vld [vmem:[%s4997 + $0x68] sm:$0xff]
    %v6685 = vld [vmem:[%s4997 + $0x70] sm:$0xff]
    %v6686 = vld [vmem:[%s4997 + $0x78] sm:$0xff]
    %v6687 = vld [vmem:[%s4997 + $0x80] sm:$0xff]
    %v6688 = vld [vmem:[%s4997 + $0x88] sm:$0xff]
    %v6689 = vld [vmem:[%s4997 + $0x90] sm:$0xff]
    %v6690 = vld [vmem:[%s4997 + $0x98] sm:$0xff]
    %v6691 = vld [vmem:[%s4997 + $0xa0] sm:$0xff]
    %v6692 = vld [vmem:[%s4997 + $0xa8] sm:$0xff]
    %v6693 = vld [vmem:[%s4997 + $0xb0] sm:$0xff]
    %v6694 = vld [vmem:[%s4997 + $0xb8] sm:$0xff]
    %v6695 = vld [vmem:[%s4997 + $0xc0] sm:$0xff]
    %v6696 = vld [vmem:[%s4997 + $0xc8] sm:$0xff]
    %v6697 = vld [vmem:[%s4997 + $0xd0] sm:$0xff]
    %v6698 = vld [vmem:[%s4997 + $0xd8] sm:$0xff]
    %v6699 = vld [vmem:[%s4997 + $0xe0] sm:$0xff]
    %v6700 = vld [vmem:[%s4997 + $0xe8] sm:$0xff]
    %v6701 = vld [vmem:[%s4997 + $0xf0] sm:$0xff]
    %v6702 = vld [vmem:[%s4997 + $0xf8] sm:$0xff]
    %v6703 = vld [vmem:[%s4997 + $0x100] sm:$0xff]
    %v6704 = vld [vmem:[%s4997 + $0x108] sm:$0xff]
    %v6705 = vld [vmem:[%s4997 + $0x110] sm:$0xff]
    %v6706 = vld [vmem:[%s4997 + $0x118] sm:$0xff]
    %v6707 = vld [vmem:[%s4997 + $0x120] sm:$0xff]
    %v6708 = vld [vmem:[%s4997 + $0x128] sm:$0xff]
    %v6709 = vld [vmem:[%s4997 + $0x130] sm:$0xff]
    %v6710 = vld [vmem:[%s4997 + $0x138] sm:$0xff]
    %v6711 = vld [vmem:[%s4997 + $0x140] sm:$0xff]
    %v6712 = vld [vmem:[%s4997 + $0x148] sm:$0xff]
    %v6713 = vld [vmem:[%s4997 + $0x150] sm:$0xff]
    %v6714 = vld [vmem:[%s4997 + $0x158] sm:$0xff]
    %v6715 = vld [vmem:[%s4997 + $0x160] sm:$0xff]
    %v6716 = vld [vmem:[%s4997 + $0x168] sm:$0xff]
    %v6717 = vld [vmem:[%s4997 + $0x170] sm:$0xff]
    %v6718 = vld [vmem:[%s4997 + $0x178] sm:$0xff]
    %v6719 = vld [vmem:[%s4997 + $0x180] sm:$0xff]
    %v6720 = vld [vmem:[%s4997 + $0x188] sm:$0xff]
    %v6721 = vld [vmem:[%s4997 + $0x190] sm:$0xff]
    %v6722 = vld [vmem:[%s4997 + $0x198] sm:$0xff]
    %v6723 = vld [vmem:[%s4997 + $0x1a0] sm:$0xff]
    %v6724 = vld [vmem:[%s4997 + $0x1a8] sm:$0xff]
    %v6725 = vld [vmem:[%s4997 + $0x1b0] sm:$0xff]
    %v6726 = vld [vmem:[%s4997 + $0x1b8] sm:$0xff]
    %v6727 = vld [vmem:[%s4997 + $0x1c0] sm:$0xff]
    %v6728 = vld [vmem:[%s4997 + $0x1c8] sm:$0xff]
    %v6729 = vld [vmem:[%s4997 + $0x1d0] sm:$0xff]
    %v6730 = vld [vmem:[%s4997 + $0x1d8] sm:$0xff]
    %v6731 = vld [vmem:[%s4997 + $0x1e0] sm:$0xff]
    %v6732 = vld [vmem:[%s4997 + $0x1e8] sm:$0xff]
    %v6733 = vld [vmem:[%s4997 + $0x1f0] sm:$0xff]
    %v6734 = vld [vmem:[%s4997 + $0x1f8] sm:$0xff]
    %6735 = vmatprep.subr.mxu0 %v6672
    %6736 = vmatpush1.msra.mxu0 %v6671
    %6737 = vmatprep.subr.mxu0 %v6676
    %6738 = vmatpush1.msra.mxu0 %v6675
    %6739 = vmatprep.subr.mxu0 %v6680
    %6740 = vmatpush1.msra.mxu0 %v6679
    %6741 = vmatprep.subr.mxu0 %v6684
    %6742 = vmatpush1.msra.mxu0 %v6683
    %6743 = vmatprep.subr.mxu0 %v6688
    %6744 = vmatpush1.msra.mxu0 %v6687
    %6745 = vmatprep.subr.mxu0 %v6692
    %6746 = vmatpush1.msra.mxu0 %v6691
    %6747 = vmatprep.subr.mxu0 %v6696
    %6748 = vmatpush1.msra.mxu0 %v6695
    %6749 = vmatprep.subr.mxu0 %v6700
    %6750 = vmatpush1.msra.mxu0 %v6699
    %6751 = vmatprep.subr.mxu0 %v6704
    %6752 = vmatpush1.msra.mxu0 %v6703
    %6753 = vmatprep.subr.mxu0 %v6708
    %6754 = vmatpush1.msra.mxu0 %v6707
    %6755 = vmatprep.subr.mxu0 %v6712
    %6756 = vmatpush1.msra.mxu0 %v6711
    %6757 = vmatprep.subr.mxu0 %v6716
    %6758 = vmatpush1.msra.mxu0 %v6715
    %6759 = vmatprep.subr.mxu0 %v6720
    %6760 = vmatpush1.msra.mxu0 %v6719
    %6761 = vmatprep.subr.mxu0 %v6724
    %6762 = vmatpush1.msra.mxu0 %v6723
    %6763 = vmatprep.subr.mxu0 %v6728
    %6764 = vmatpush1.msra.mxu0 %v6727
    %6765 = vmatprep.subr.mxu0 %v6732
    %6766 = vmatpush1.msra.mxu0 %v6731
    %6767 = vmatprep.subr.mxu0 0.0
    %6768 = vmatpush1.msra.mxu0 0.0
    %6769 = vmatprep.subr.mxu0 0.0
    %6770 = vmatpush1.msra.mxu0 0.0
    %6771 = vmatprep.subr.mxu0 0.0
    %6772 = vmatpush1.msra.mxu0 0.0
    %6773 = vmatprep.subr.mxu0 0.0
    %6774 = vmatpush1.msra.mxu0 0.0
    %6775 = vmatprep.subr.mxu0 0.0
    %6776 = vmatpush1.msra.mxu0 0.0
    %6777 = vmatprep.subr.mxu0 0.0
    %6778 = vmatpush1.msra.mxu0 0.0
    %6779 = vmatprep.subr.mxu0 0.0
    %6780 = vmatpush1.msra.mxu0 0.0
    %6781 = vmatprep.subr.mxu0 0.0
    %6782 = vmatpush1.msra.mxu0 0.0
    %6783 = vmatprep.subr.mxu0 0.0
    %6784 = vmatpush1.msra.mxu0 0.0
    %6785 = vmatprep.subr.mxu0 0.0
    %6786 = vmatpush1.msra.mxu0 0.0
    %6787 = vmatprep.subr.mxu0 0.0
    %6788 = vmatpush1.msra.mxu0 0.0
    %6789 = vmatprep.subr.mxu0 0.0
    %6790 = vmatpush1.msra.mxu0 0.0
    %6791 = vmatprep.subr.mxu0 0.0
    %6792 = vmatpush1.msra.mxu0 0.0
    %6793 = vmatprep.subr.mxu0 0.0
    %6794 = vmatpush1.msra.mxu0 0.0
    %6795 = vmatprep.subr.mxu0 0.0
    %6796 = vmatpush1.msra.mxu0 0.0
    %6797 = vmatprep.subr.mxu0 0.0
    %6798 = vmatpush1.msra.mxu0 0.0
    %6799 = vmatprep.mubr.f32.mxu0 0.0
    %6800 = vmatmul.mubr.f32.gmra.mrb[0].mxu0 %v6665
    %v6801 = vpop.f32.mrb[0].mxu0
    %v6802 = vadd.f32 0.0, %v6801
    %v6803 = vpop.f32.mrb[0].mxu0
    %v6804 = vadd.f32 0.0, %v6803
    %6805 = vdwg.mxu0
    %6806 = vmatprep.subr.mxu0 %v6674
    %6807 = vmatpush1.msra.mxu0 %v6673
    %6808 = vmatprep.subr.mxu0 %v6678
    %6809 = vmatpush1.msra.mxu0 %v6677
    %6810 = vmatprep.subr.mxu0 %v6682
    %6811 = vmatpush1.msra.mxu0 %v6681
    %6812 = vmatprep.subr.mxu0 %v6686
    %6813 = vmatpush1.msra.mxu0 %v6685
    %6814 = vmatprep.subr.mxu0 %v6690
    %6815 = vmatpush1.msra.mxu0 %v6689
    %6816 = vmatprep.subr.mxu0 %v6694
    %6817 = vmatpush1.msra.mxu0 %v6693
    %6818 = vmatprep.subr.mxu0 %v6698
    %6819 = vmatpush1.msra.mxu0 %v6697
    %6820 = vmatprep.subr.mxu0 %v6702
    %6821 = vmatpush1.msra.mxu0 %v6701
    %6822 = vmatprep.subr.mxu0 %v6706
    %6823 = vmatpush1.msra.mxu0 %v6705
    %6824 = vmatprep.subr.mxu0 %v6710
    %6825 = vmatpush1.msra.mxu0 %v6709
    %6826 = vmatprep.subr.mxu0 %v6714
    %6827 = vmatpush1.msra.mxu0 %v6713
    %6828 = vmatprep.subr.mxu0 %v6718
    %6829 = vmatpush1.msra.mxu0 %v6717
    %6830 = vmatprep.subr.mxu0 %v6722
    %6831 = vmatpush1.msra.mxu0 %v6721
    %6832 = vmatprep.subr.mxu0 %v6726
    %6833 = vmatpush1.msra.mxu0 %v6725
    %6834 = vmatprep.subr.mxu0 %v6730
    %6835 = vmatpush1.msra.mxu0 %v6729
    %6836 = vmatprep.subr.mxu0 %v6734
    %6837 = vmatpush1.msra.mxu0 %v6733
    %6838 = vmatprep.subr.mxu0 0.0
    %6839 = vmatpush1.msra.mxu0 0.0
    %6840 = vmatprep.subr.mxu0 0.0
    %6841 = vmatpush1.msra.mxu0 0.0
    %6842 = vmatprep.subr.mxu0 0.0
    %6843 = vmatpush1.msra.mxu0 0.0
    %6844 = vmatprep.subr.mxu0 0.0
    %6845 = vmatpush1.msra.mxu0 0.0
    %6846 = vmatprep.subr.mxu0 0.0
    %6847 = vmatpush1.msra.mxu0 0.0
    %6848 = vmatprep.subr.mxu0 0.0
    %6849 = vmatpush1.msra.mxu0 0.0
    %6850 = vmatprep.subr.mxu0 0.0
    %6851 = vmatpush1.msra.mxu0 0.0
    %6852 = vmatprep.subr.mxu0 0.0
    %6853 = vmatpush1.msra.mxu0 0.0
    %6854 = vmatprep.subr.mxu0 0.0
    %6855 = vmatpush1.msra.mxu0 0.0
    %6856 = vmatprep.subr.mxu0 0.0
    %6857 = vmatpush1.msra.mxu0 0.0
    %6858 = vmatprep.subr.mxu0 0.0
    %6859 = vmatpush1.msra.mxu0 0.0
    %6860 = vmatprep.subr.mxu0 0.0
    %6861 = vmatpush1.msra.mxu0 0.0
    %6862 = vmatprep.subr.mxu0 0.0
    %6863 = vmatpush1.msra.mxu0 0.0
    %6864 = vmatprep.subr.mxu0 0.0
    %6865 = vmatpush1.msra.mxu0 0.0
    %6866 = vmatprep.subr.mxu0 0.0
    %6867 = vmatpush1.msra.mxu0 0.0
    %6868 = vmatprep.subr.mxu0 0.0
    %6869 = vmatpush1.msra.mxu0 0.0
    %6870 = vmatprep.mubr.f32.mxu0 0.0
    %6871 = vmatmul.mubr.f32.gmra.mrb[0].mxu0 %v6665
    %v6872 = vpop.f32.mrb[0].mxu0
    %v6873 = vadd.f32 0.0, %v6872
    %v6874 = vpop.f32.mrb[0].mxu0
    %v6875 = vadd.f32 0.0, %v6874
    %6876 = vdwg.mxu0
    %v6877 = vadd.f32 %v6667, %v6802
    %v6878 = vadd.f32 %v6668, %v6804
    %v6879 = vadd.f32 %v6669, %v6873
    %v6880 = vadd.f32 %v6670, %v6875
    %v6881 = vxor.u32 %v6877, 2147483648
    %v6882 = vxor.u32 %v6878, 2147483648
    %v6883 = vxor.u32 %v6879, 2147483648
    %v6884 = vmul.f32 %v6881, 1.442695
    %v6885 = vpow.pop %v6884
    %v6886 = vmul.f32 %v6882, 1.442695
    %v6887 = vpow.pop %v6886
    %v6888 = vmul.f32 %v6883, 1.442695
    %v6889 = vpow.pop %v6888
    %v6890 = vadd.f32 %v6885, 1.0
    %v6891 = vadd.f32 %v6887, 1.0
    %v6892 = vadd.f32 %v6889, 1.0
    %v6893 = vrcp.pop %v6890
    %v6894 = vmul.f32 1.0, %v6893
    %v6895 = vrcp.pop %v6891
    %v6896 = vmul.f32 1.0, %v6895
    %v6897 = vrcp.pop %v6892
    %v6898 = vmul.f32 1.0, %v6897
    %v6899 = vtanh.pop %v6880
    %v6900 = vmul.f32 %v6896, %v6663
    %v6901 = vmul.f32 %v6894, %v6899
    %v6902 = vadd.f32 %v6900, %v6901
    %v6903 = vtanh.pop %v6902
    %v6904 = vmul.f32 %v6898, %v6903
    %6905 = vst [vmem:[#allocation2 + $0x38] sm:$0xff] %v6904
    %v6906 = vld [vmem:[#allocation2] sm:$0xff]
    %v6907 = vld [vmem:[#allocation2 + $0x8] sm:$0xff]
    %v6908 = vld [vmem:[#allocation2 + $0x10] sm:$0xff]
    %v6909 = vld [vmem:[#allocation2 + $0x18] sm:$0xff]
    %v6910 = vld [vmem:[#allocation2 + $0x20] sm:$0xff]
    %v6911 = vld [vmem:[#allocation2 + $0x28] sm:$0xff]
    %v6912 = vld [vmem:[#allocation2 + $0x30] sm:$0xff]
    %v6913 = vld [vmem:[#allocation2 + $0x38] sm:$0xff]
    %v6914 = vld [vmem:[#allocation12] sm:$0xff]
    %v6915 = vld [vmem:[#allocation12 + $0x8] sm:$0xff]
    %v6916 = vld [vmem:[#allocation12 + $0x10] sm:$0xff]
    %v6917 = vld [vmem:[#allocation12 + $0x18] sm:$0xff]
    %v6918 = vld [vmem:[#allocation12 + $0x20] sm:$0xff]
    %v6919 = vld [vmem:[#allocation12 + $0x28] sm:$0xff]
    %v6920 = vld [vmem:[#allocation12 + $0x30] sm:$0xff]
    %v6921 = vld [vmem:[#allocation12 + $0x38] sm:$0xff]
    %v6922 = vld [vmem:[#allocation12 + $0x40] sm:$0xff]
    %v6923 = vld [vmem:[#allocation12 + $0x48] sm:$0xff]
    %v6924 = vld [vmem:[#allocation12 + $0x50] sm:$0xff]
    %v6925 = vld [vmem:[#allocation12 + $0x58] sm:$0xff]
    %v6926 = vld [vmem:[#allocation12 + $0x60] sm:$0xff]
    %v6927 = vld [vmem:[#allocation12 + $0x68] sm:$0xff]
    %v6928 = vld [vmem:[#allocation12 + $0x70] sm:$0xff]
    %v6929 = vld [vmem:[#allocation12 + $0x78] sm:$0xff]
    %v6930 = vld [vmem:[%s5] sm:$0x1]
    %v6932 = vlaneseq
    %v6933 = vshrl.u32 %v6932, 7
    %v6934 = vsub.s32 0, %v6933
    %v6935 = vrot.slane %v6930, %v6934
    %6937 = vmatprep.subr.mxu0 0.0
    %6938 = vmatpush1.msra.mxu0 %v6914
    %6939 = vmatprep.subr.mxu0 0.0
    %6940 = vmatpush1.msra.mxu0 %v6915
    %6941 = vmatprep.subr.mxu0 0.0
    %6942 = vmatpush1.msra.mxu0 %v6916
    %6943 = vmatprep.subr.mxu0 0.0
    %6944 = vmatpush1.msra.mxu0 %v6917
    %6945 = vmatprep.subr.mxu0 0.0
    %6946 = vmatpush1.msra.mxu0 %v6918
    %6947 = vmatprep.subr.mxu0 0.0
    %6948 = vmatpush1.msra.mxu0 %v6919
    %6949 = vmatprep.subr.mxu0 0.0
    %6950 = vmatpush1.msra.mxu0 %v6920
    %6951 = vmatprep.subr.mxu0 0.0
    %6952 = vmatpush1.msra.mxu0 %v6921
    %6953 = vmatprep.subr.mxu0 0.0
    %6954 = vmatpush1.msra.mxu0 %v6922
    %6955 = vmatprep.subr.mxu0 0.0
    %6956 = vmatpush1.msra.mxu0 %v6923
    %6957 = vmatprep.subr.mxu0 0.0
    %6958 = vmatpush1.msra.mxu0 %v6924
    %6959 = vmatprep.subr.mxu0 0.0
    %6960 = vmatpush1.msra.mxu0 %v6925
    %6961 = vmatprep.subr.mxu0 0.0
    %6962 = vmatpush1.msra.mxu0 %v6926
    %6963 = vmatprep.subr.mxu0 0.0
    %6964 = vmatpush1.msra.mxu0 %v6927
    %6965 = vmatprep.subr.mxu0 0.0
    %6966 = vmatpush1.msra.mxu0 %v6928
    %6967 = vmatprep.subr.mxu0 0.0
    %6968 = vmatpush1.msra.mxu0 %v6929
    %6969 = vmatprep.subr.mxu0 0.0
    %6970 = vmatpush1.msra.mxu0 0.0
    %6971 = vmatprep.subr.mxu0 0.0
    %6972 = vmatpush1.msra.mxu0 0.0
    %6973 = vmatprep.subr.mxu0 0.0
    %6974 = vmatpush1.msra.mxu0 0.0
    %6975 = vmatprep.subr.mxu0 0.0
    %6976 = vmatpush1.msra.mxu0 0.0
    %6977 = vmatprep.subr.mxu0 0.0
    %6978 = vmatpush1.msra.mxu0 0.0
    %6979 = vmatprep.subr.mxu0 0.0
    %6980 = vmatpush1.msra.mxu0 0.0
    %6981 = vmatprep.subr.mxu0 0.0
    %6982 = vmatpush1.msra.mxu0 0.0
    %6983 = vmatprep.subr.mxu0 0.0
    %6984 = vmatpush1.msra.mxu0 0.0
    %6985 = vmatprep.subr.mxu0 0.0
    %6986 = vmatpush1.msra.mxu0 0.0
    %6987 = vmatprep.subr.mxu0 0.0
    %6988 = vmatpush1.msra.mxu0 0.0
    %6989 = vmatprep.subr.mxu0 0.0
    %6990 = vmatpush1.msra.mxu0 0.0
    %6991 = vmatprep.subr.mxu0 0.0
    %6992 = vmatpush1.msra.mxu0 0.0
    %6993 = vmatprep.subr.mxu0 0.0
    %6994 = vmatpush1.msra.mxu0 0.0
    %6995 = vmatprep.subr.mxu0 0.0
    %6996 = vmatpush1.msra.mxu0 0.0
    %6997 = vmatprep.subr.mxu0 0.0
    %6998 = vmatpush1.msra.mxu0 0.0
    %6999 = vmatprep.subr.mxu0 0.0
    %7000 = vmatpush1.msra.mxu0 0.0
    %7001 = vmatprep.mubr.f32.mxu0 0.0
    %7002 = vmatmul.mubr.f32.gmra.mrb[0].mxu0 %v6906
    %v7003 = vpop.f32.mrb[0].mxu0
    %v7004 = vadd.f32 %v6935, %v7003
    %v7005 = vpop.f32.mrb[0].mxu0
    %7006 = vmatprep.mubr.f32.mxu0 0.0
    %7007 = vmatmul.mubr.f32.gmra.mrb[0].mxu0 %v6907
    %v7008 = vpop.f32.mrb[0].mxu0
    %v7009 = vadd.f32 %v6935, %v7008
    %v7010 = vpop.f32.mrb[0].mxu0
    %7011 = vmatprep.mubr.f32.mxu0 0.0
    %7012 = vmatmul.mubr.f32.gmra.mrb[0].mxu0 %v6908
    %v7013 = vpop.f32.mrb[0].mxu0
    %v7014 = vadd.f32 %v6935, %v7013
    %v7015 = vpop.f32.mrb[0].mxu0
    %7016 = vmatprep.mubr.f32.mxu0 0.0
    %7017 = vmatmul.mubr.f32.gmra.mrb[0].mxu0 %v6909
    %v7018 = vpop.f32.mrb[0].mxu0
    %v7019 = vadd.f32 %v6935, %v7018
    %v7020 = vpop.f32.mrb[0].mxu0
    %7021 = vmatprep.mubr.f32.mxu0 0.0
    %7022 = vmatmul.mubr.f32.gmra.mrb[0].mxu0 %v6910
    %v7023 = vpop.f32.mrb[0].mxu0
    %v7024 = vadd.f32 %v6935, %v7023
    %v7025 = vpop.f32.mrb[0].mxu0
    %7026 = vmatprep.mubr.f32.mxu0 0.0
    %7027 = vmatmul.mubr.f32.gmra.mrb[0].mxu0 %v6911
    %v7028 = vpop.f32.mrb[0].mxu0
    %v7029 = vadd.f32 %v6935, %v7028
    %v7030 = vpop.f32.mrb[0].mxu0
    %7031 = vmatprep.mubr.f32.mxu0 0.0
    %7032 = vmatmul.mubr.f32.gmra.mrb[0].mxu0 %v6912
    %v7033 = vpop.f32.mrb[0].mxu0
    %v7034 = vadd.f32 %v6935, %v7033
    %v7035 = vpop.f32.mrb[0].mxu0
    %7036 = vmatprep.mubr.f32.mxu0 0.0
    %7037 = vmatmul.mubr.f32.gmra.mrb[0].mxu0 %v6913
    %v7038 = vpop.f32.mrb[0].mxu0
    %v7039 = vadd.f32 %v6935, %v7038
    %v7040 = vpop.f32.mrb[0].mxu0
    %7041 = vdwg.mxu0
    %7042 = vst [vmem:[#allocation13] sm:$0xff] %v7004
    %7043 = vst [vmem:[#allocation13 + $0x8] sm:$0xff] %v7009
    %7044 = vst [vmem:[#allocation13 + $0x10] sm:$0xff] %v7014
    %7045 = vst [vmem:[#allocation13 + $0x18] sm:$0xff] %v7019
    %7046 = vst [vmem:[#allocation13 + $0x20] sm:$0xff] %v7024
    %7047 = vst [vmem:[#allocation13 + $0x28] sm:$0xff] %v7029
    %7048 = vst [vmem:[#allocation13 + $0x30] sm:$0xff] %v7034
    %7049 = vst [vmem:[#allocation13 + $0x38] sm:$0xff] %v7039
    // Predicated region
    $region46: #{lstm_pallas.1} parent=1 // pred_check
      _
    $region47: #{lstm_pallas.1} parent=1 // pred_check_branch
      %7051 = sbr.rel (0) target = $region49
    $region48: #{lstm_pallas.1} parent=1 // pred_region
      %s7053 = ssub.s32 1024, 1024
      %7054 = vsyncadd [#allocation6], %s7053
      %s7055 = sshll.u32 [#allocation13], 4
      %s7056 = int_to_ptr.vmem [resolvable:$true] %s7055
      %7061 = dma.vmem_to_hbm [thread:$0]  %s7056, 1024, %s6, [#allocation6], 128, 128, 8
    $region49: #{lstm_pallas.1} parent=1 // pred_fallthru
      _
    // Predicated region
    $region50: #{lstm_pallas.1} parent=1 // pred_check
      _
    $region51: #{lstm_pallas.1} parent=1 // pred_check_branch
      %7063 = sbr.rel (0) target = $region53
    $region52: #{lstm_pallas.1} parent=1 // pred_region
      %7064 = dma.done [#allocation6], 1024
    $region53: #{lstm_pallas.1} parent=1 // pred_fallthru
      _
    %7065 = vsyncpa [#allocation5], 1
    %7066 = vsyncpa [#allocation8], 1
    %7067 = vsyncpa [#allocation11], 1
    %7068 = vsyncpa [#allocation6], 1

</llo_original>
